<compile_context>
chip_gen: v5e
topology: v5e:2x2
jax: 0.10.0
libtpu: 0.0.40
codegen_flags: <defaults>
</compile_context>

<pallas_src>
import functools
from types import SimpleNamespace

import numpy as np
import jax
import jax.numpy as jnp
from jax import lax
from jax.experimental import pallas as pl
from jax.experimental.pallas import tpu as pltpu


# -----------------------------------------------------------------------------
# pallas_call helper: single grid step, whole-array blocks (operands are tiny).
# TODO(synk): at production sizes (large T) the SG3 einsum should get a K-tiled grid axis and a
# 'parallel' axis for v7x's second TensorCore; at these demo sizes grid=(1,) is optimal.
# -----------------------------------------------------------------------------
def _f32(shape):
    return jax.ShapeDtypeStruct(tuple(shape), jnp.float32)


def _pcall(kernel, inputs, out_shapes, *, scalars=()):
    inputs = [jnp.asarray(a, jnp.float32) for a in inputs]
    scalars = [jnp.asarray(s) for s in scalars]

    def zmap(nd):
        return lambda *args, _nd=nd: (0,) * _nd

    in_specs = [pl.BlockSpec(tuple(a.shape), zmap(a.ndim)) for a in inputs]
    out_specs = tuple(pl.BlockSpec(tuple(s.shape), zmap(len(s.shape))) for s in out_shapes)
    gs = pltpu.PrefetchScalarGridSpec(
        num_scalar_prefetch=len(scalars),
        grid=(1,),
        in_specs=in_specs,
        out_specs=out_specs,
    )
    return pl.pallas_call(
        kernel,
        out_shape=tuple(out_shapes),
        grid_spec=gs,
        compiler_params=pltpu.CompilerParams(
            dimension_semantics=("arbitrary",),
            vmem_limit_bytes=32 * 1024 * 1024,
        ),
    )(*scalars, *inputs)


# -----------------------------------------------------------------------------
# In-kernel helpers
# -----------------------------------------------------------------------------
def _front_compute(hpar_ref, e0r_ref, e0i_ref, fslab_ref, *, front_offs, modes, ey_size,
                   n0_u0, coef_t, h_min, h_max):
    """sigmoid(h_paras) + batched {enn | neffnn | genu0.neffnn} MLP + U0/T overlap integral."""
    hp = hpar_ref[...]                                            # [N, 1]
    sig = pl.reciprocal(1.0 + jnp.exp(-hp), approx=True)          # EUP divide
    hs = sig * (h_max - h_min) + h_min

    h = hs
    depth = len(front_offs)
    for li, (wr, in_l, out_l, br) in enumerate(front_offs):
        W = fslab_ref[wr:wr + in_l, 0:out_l]
        b = fslab_ref[br:br + 1, 0:out_l]
        if in_l < 8:                                              # degenerate contraction -> VPU
            acc = h[:, 0:1] * W[0:1, :]
            for kk in range(1, in_l):
                acc = acc + h[:, kk:kk + 1] * W[kk:kk + 1, :]
            h = acc + b
        else:                                                     # MXU matmul (block-diag batched)
            h = jnp.dot(h, W, preferred_element_type=jnp.float32) + b
        if li < depth - 1:
            h = jnp.maximum(h, 0.0)

    ey = h[:, 0:modes * ey_size]                                  # [N, modes*ey_size]
    neffs = h[:, modes * ey_size:modes * ey_size + modes]         # [N, modes]
    neff_u0 = h[:, modes * ey_size + modes:modes * ey_size + 2 * modes]

    e0r = e0r_ref[...]                                            # [N, ey_size]
    e0i = e0i_ref[...]
    esr, esi = [], []
    for m in range(modes):
        seg = ey[:, m * ey_size:(m + 1) * ey_size]
        esr.append(jnp.sum(seg * e0r, axis=-1, keepdims=True))
        esi.append(jnp.sum(seg * e0i, axis=-1, keepdims=True))
    esr = jnp.concatenate(esr, axis=1)
    esi = jnp.concatenate(esi, axis=1)
    eta0 = neff_u0 * n0_u0 * pl.reciprocal(neff_u0 + n0_u0, approx=True)
    u0r = coef_t * eta0 * esr                                     # T = 2*C_EPSILON*dx*eta*sum(Ey*E0)
    u0i = coef_t * eta0 * esi
    return hs, neffs, ey, u0r, u0i


def _apply_freespace(ey, neffs, uzr, uzi, sg3_ref, efr_o, efi_o, *, modes, ey_size, n0_en, T):
    """gen_En mode weighting + (overlap-add + crop + Toeplitz) folded into one precomputed SG3
    tensor, applied with a single batched MXU einsum (replaces the serial RMW overlap-add loop)."""
    eta = neffs * n0_en * pl.reciprocal(neffs + n0_en, approx=True)
    wr = eta * uzr
    wi = eta * uzi
    cr = wr[:, 0:1] * ey[:, 0:ey_size]
    ci = wi[:, 0:1] * ey[:, 0:ey_size]
    for m in range(1, modes):
        seg = ey[:, m * ey_size:(m + 1) * ey_size]
        cr = cr + wr[:, m:m + 1] * seg
        ci = ci + wi[:, m:m + 1] * seg
    c_stack = jnp.concatenate([cr[:, None, :], ci[:, None, :]], axis=1)     # [N, 2, ey_size]
    r3 = jnp.einsum('nbj,njt->nbt', c_stack, sg3_ref[...],
                    preferred_element_type=jnp.float32)                     # [N, 2, 2T]
    r = jnp.sum(r3, axis=0)                                                 # [2, 2T]
    efr_o[...] = r[0:1, 0:T] - r[1:2, T:2 * T]                              # lane-dense [1, T] stores
    efi_o[...] = r[0:1, T:2 * T] + r[1:2, 0:T]


# -----------------------------------------------------------------------------
# Pallas kernels
# -----------------------------------------------------------------------------
def _layer_nocoupling_kernel(hpar_ref, e0r_ref, e0i_ref, fslab_ref, sg3_ref, efr_o, efi_o, *,
                             front_offs, modes, ey_size, n0_u0, coef_t, h_min, h_max,
                             n0_en, kwh, T):
    """COUPLING=False: whole Metalayer + freespace layer in ONE pallas_call."""
    hs, neffs, ey, u0r, u0i = _front_compute(
        hpar_ref, e0r_ref, e0i_ref, fslab_ref, front_offs=front_offs, modes=modes,
        ey_size=ey_size, n0_u0=n0_u0, coef_t=coef_t, h_min=h_min, h_max=h_max)
    ph = neffs * kwh
    cph = jnp.cos(ph)
    sph = jnp.sin(ph)
    uzr = cph * u0r - sph * u0i                                   # Uz = exp(i*neff*k*wh)*U0
    uzi = sph * u0r + cph * u0i
    _apply_freespace(ey, neffs, uzr, uzi, sg3_ref, efr_o, efi_o,
                     modes=modes, ey_size=ey_size, n0_en=n0_en, T=T)


def _front_ck_kernel(hpar_ref, e0r_ref, e0i_ref, fslab_ref, ckslab_ref, sel_ref, rowT_ref,
                     colcat_ref, small_o, ey_o, ck_o, *,
                     front_offs, modes, ey_size, n0_u0, coef_t, h_min, h_max,
                     ck_offs, ck_db0_start, ck_E, ck_H2):
    """COUPLING=True call 1: front MLPs + U0 + in-kernel CK_input + C/K MLPs + dense C|K assembly
    via one MXU matmul."""
    hs, neffs, ey, u0r, u0i = _front_compute(
        hpar_ref, e0r_ref, e0i_ref, fslab_ref, front_offs=front_offs, modes=modes,
        ey_size=ey_size, n0_u0=n0_u0, coef_t=coef_t, h_min=h_min, h_max=h_max)
    small_o[...] = jnp.concatenate([neffs, u0r, u0i], axis=1)     # [N, 3*modes]
    ey_o[...] = ey

    # CK_input = (hi, hj, dis): hi/hj gathered from hs with a one-hot matmul; dis-term + bias
    # folded into DB0 at build time.
    hij = jnp.dot(sel_ref[...], hs, preferred_element_type=jnp.float32)      # [2E, 1]
    hi = hij[0:ck_E, :]
    hj = hij[ck_E:2 * ck_E, :]
    w0hi = ckslab_ref[0:1, 0:ck_H2]
    w0hj = ckslab_ref[1:2, 0:ck_H2]
    db0 = ckslab_ref[ck_db0_start:ck_db0_start + ck_E, 0:ck_H2]
    h = jnp.maximum(hi * w0hi + hj * w0hj + db0, 0.0)                        # [E, 2*nodes]
    for li, (wr, in_l, out_l, br) in enumerate(ck_offs):
        W = ckslab_ref[wr:wr + in_l, 0:out_l]
        b = ckslab_ref[br:br + 1, 0:out_l]
        h = jnp.dot(h, W, preferred_element_type=jnp.float32) + b
        if li < len(ck_offs) - 1:
            h = jnp.maximum(h, 0.0)
    mm = modes * modes
    cvals = h[:, 0:mm]                                                       # [E, modes**2]
    kvals = h[:, mm:2 * mm]

    # C|K = RowT [D, mm*E] @ (channel-scaled one-hot columns) [mm*E, 2D] : ONE matmul for both.
    colcat = colcat_ref[...]
    pieces = []
    for ch in range(mm):
        blk = colcat[ch * ck_E:(ch + 1) * ck_E, :]
        pieces.append(jnp.concatenate([cvals[:, ch:ch + 1] * blk,
                                       kvals[:, ch:ch + 1] * blk], axis=1))
    scaled = jnp.concatenate(pieces, axis=0)                                 # [mm*E, 2D]
    ck_o[...] = jnp.dot(rowT_ref[...], scaled, preferred_element_type=jnp.float32)


def _post_coupling_kernel(nstep_ref, ey_ref, neff_ref, smat_ref, u0_ref, esel_ref, sg3_ref,
                          efr_o, efi_o, *, modes, N, ey_size, n0_en, T, k_taylor):
    """COUPLING=True call 2: Uz = expm(i*S) @ U0 as an in-kernel scaled Taylor action on the
    [D,2] vector (no materialized P, no XLA matrix_exp), then gen_En + folded freespace."""
    Smat = smat_ref[...]                                          # S / n_steps   [D, D]
    v = u0_ref[...]                                               # [D, 2] = [Re | Im]

    def taylor(_, v):
        y = v
        term = v
        for kk in range(1, k_taylor + 1):
            w = jnp.dot(Smat, term, preferred_element_type=jnp.float32)       # S @ term
            term = jnp.concatenate([-w[:, 1:2], w[:, 0:1]], axis=1) * (1.0 / kk)  # *(i)/k
            y = y + term
        return y

    v = lax.fori_loop(0, nstep_ref[0], taylor, v)                 # (exp(iS/s))^s @ U0

    # Unflatten Uz [D,2] -> [N, modes] with a static one-hot matmul (no lane/sublane reshape).
    uz = jnp.dot(esel_ref[...], v, preferred_element_type=jnp.float32)        # [modes*N, 2]
    uzr = jnp.concatenate([uz[m * N:(m + 1) * N, 0:1] for m in range(modes)], axis=1)
    uzi = jnp.concatenate([uz[m * N:(m + 1) * N, 1:2] for m in range(modes)], axis=1)
    _apply_freespace(ey_ref[...], neff_ref[...], uzr, uzi, sg3_ref, efr_o, efi_o,
                     modes=modes, ey_size=ey_size, n0_en=n0_en, T=T)


# -----------------------------------------------------------------------------
# Build-time helpers (numpy) — reconstructed pieces
# -----------------------------------------------------------------------------
# TODO(synk): Model / gen_coo_sparse / gen_input_hs / gen_dis_CK_input / fourier_conv1D are not
# shipped with the module; they are reconstructed deterministically (ReLU MLP, clipped
# +-(Knn+1) neighbour stencil, signed distance in lattice units, Toeplitz 'same' convolution).
def propagator(prop, lam, total_size, dx):
    def W(x, y, z, wavelength):
        r = np.sqrt(x * x + y * y + z * z)
        return z / r ** 2 * (1 / (wavelength * 1j)) * np.exp(1j * 2 * np.pi * r / wavelength)
    x = np.arange(-(total_size - 1), total_size, 1) * dx
    return W(x, 0, prop, lam)


def build_sg3(prop, lam, N, res, Knn, dx):
    """Fold overlap-add scatter + crop + Toeplitz freespace conv into one [N, Ey, 2T] tensor."""
    T = N * res
    ey_size = 2 * (Knn + 1) * res
    G = propagator(prop, lam, T, dx)
    idx = np.arange(T)[:, None] - np.arange(T)[None, :] + (T - 1)
    Gmat = G[idx].astype(np.complex64)
    Gcat = np.concatenate([Gmat.real.T, Gmat.imag.T], axis=1).astype(np.float32)   # [T, 2T]
    crop = (2 * Knn + 1) * res // 2
    S = np.zeros((N * ey_size, T), np.float32)
    for n in range(N):
        for j in range(ey_size):
            t = n * res + j - crop
            if 0 <= t < T:
                S[n * ey_size + j, t] = 1.0
    SG = (S @ Gcat).reshape(N, ey_size, 2 * T)
    return jnp.asarray(SG)


def build_static_mats(N, Knn, modes):
    nb = 2 * (Knn + 1)
    offsets = np.arange(-(Knn + 1), Knn + 1)
    rows = np.repeat(np.arange(N), nb)
    cols = np.clip((np.arange(N)[:, None] + offsets[None, :]).reshape(-1), 0, N - 1)
    E = rows.shape[0]
    D = N * modes
    mm = modes * modes
    SEL = np.zeros((2 * E, N), np.float32)
    SEL[np.arange(E), rows] = 1.0
    SEL[E + np.arange(E), cols] = 1.0
    RowT = np.zeros((D, mm * E), np.float32)
    ColCat = np.zeros((mm * E, D), np.float32)
    for mi in range(modes):
        for mj in range(modes):
            ch = mi * modes + mj
            RowT[rows * modes + mi, ch * E + np.arange(E)] = 1.0
            ColCat[ch * E + np.arange(E), cols * modes + mj] = 1.0
    Esel = np.zeros((modes * N, D), np.float32)
    for m in range(modes):
        Esel[m * N + np.arange(N), np.arange(N) * modes + m] = 1.0
    dis = np.tile(offsets.astype(np.float32), N)                   # [E]
    return dict(SEL=jnp.asarray(SEL), RowT=jnp.asarray(RowT),
                ColCat=jnp.asarray(ColCat), Esel=jnp.asarray(Esel), dis=dis)


def _round_up(x, m):
    return int(((x + m - 1) // m) * m)


def _block_diag(mats):
    mats = [np.asarray(m, np.float32) for m in mats]
    R = sum(m.shape[0] for m in mats)
    C = sum(m.shape[1] for m in mats)
    out = np.zeros((R, C), np.float32)
    r = c = 0
    for m in mats:
        out[r:r + m.shape[0], c:c + m.shape[1]] = m
        r += m.shape[0]
        c += m.shape[1]
    return out


def pack_front_slab(mlps):
    """Batch equal-depth MLPs (shared scalar input) into block-diagonal layers and pack all
    weights/biases into one row-8 / lane-128 padded slab + static offset metadata."""
    depth = len(mlps[0])
    assert all(len(m) == depth for m in mlps)
    layers_wb = []
    for l in range(depth):
        Ws = [np.asarray(m[l][0], np.float32) for m in mlps]
        bs = [np.asarray(m[l][1], np.float32) for m in mlps]
        W = np.concatenate(Ws, axis=1) if l == 0 else _block_diag(Ws)
        b = np.concatenate(bs, axis=1)
        layers_wb.append((W, b))
    Cw = _round_up(max(W.shape[1] for W, _ in layers_wb), 128)
    offs, spans = [], []
    r = 0
    for W, b in layers_wb:
        offs.append((r, int(W.shape[0]), int(W.shape[1]), r + int(W.shape[0])))
        spans.append((r, W, b))
        r = _round_up(r + W.shape[0] + 1, 8)
    slab = np.zeros((r, Cw), np.float32)
    for start, W, b in spans:
        slab[start:start + W.shape[0], :W.shape[1]] = W
        slab[start + W.shape[0], :b.shape[1]] = b[0]
    return jnp.asarray(slab), tuple(offs)


def pack_ck_slab(c_params, k_params, dis_flat):
    """Batch the C and K MLPs; fold the static `dis` column and the first-layer bias into DB0."""
    depth = len(c_params)
    assert len(k_params) == depth
    W0 = np.concatenate([np.asarray(c_params[0][0]), np.asarray(k_params[0][0])],
                        axis=1).astype(np.float32)                 # [3, 2H]
    b0 = np.concatenate([np.asarray(c_params[0][1]), np.asarray(k_params[0][1])],
                        axis=1).astype(np.float32)                 # [1, 2H]
    DB0 = dis_flat[:, None] * W0[2:3, :] + b0                      # [E, 2H]
    W0_hihj = W0[0:2, :]
    rest = []
    for l in range(1, depth):
        W = _block_diag([c_params[l][0], k_params[l][0]])
        b = np.concatenate([np.asarray(c_params[l][1]), np.asarray(k_params[l][1])],
                           axis=1).astype(np.float32)
        rest.append((W, b))
    E = DB0.shape[0]
    H2 = W0.shape[1]
    Cw = _round_up(max([H2] + [W.shape[1] for W, _ in rest]), 128)
    db0_start = _round_up(2, 8)
    r = _round_up(db0_start + E, 8)
    offs, spans = [], []
    for W, b in rest:
        offs.append((r, int(W.shape[0]), int(W.shape[1]), r + int(W.shape[0])))
        spans.append((r, W, b))
        r = _round_up(r + W.shape[0] + 1, 8)
    slab = np.zeros((r, Cw), np.float32)
    slab[0:2, :H2] = W0_hihj
    slab[db0_start:db0_start + E, :H2] = DB0
    for start, W, b in spans:
        slab[start:start + W.shape[0], :W.shape[1]] = W
        slab[start + W.shape[0], :b.shape[1]] = b[0]
    return jnp.asarray(slab), dict(db0_start=db0_start, E=int(E), H2=int(H2), offs=tuple(offs))


# -----------------------------------------------------------------------------
# Deterministic synthetic parameter construction
# -----------------------------------------------------------------------------
NEFF_PARAS = dict(nodes=32, layers=2)
C_PARAS = dict(nodes=32, layers=2)
K_PARAS = dict(nodes=32, layers=2)
E_PARAS = dict(nodes=32, layers=2)


def make_random_mlp_params(key, in_size, out_size, layers, nodes, scale=0.1):
    dims = [in_size] + [nodes] * layers + [out_size]
    params = []
    for i in range(len(dims) - 1):
        key, kw, kb = jax.random.split(key, 3)
        params.append((scale * jax.random.normal(kw, (dims[i], dims[i + 1]), jnp.float32),
                       scale * jax.random.normal(kb, (1, dims[i + 1]), jnp.float32)))
    return params


def make_crafted_neff_params(modes, layers, nodes):
    # neff(h, m) = 1.5 + 0.1*m + 0.05*h  (positive, deterministic)
    dims = [1] + [nodes] * layers + [modes]
    Ws = [np.zeros((dims[i], dims[i + 1]), np.float32) for i in range(len(dims) - 1)]
    bs = [np.zeros((1, dims[i + 1]), np.float32) for i in range(len(dims) - 1)]
    Ws[0][0, 0] = 1.0
    for l in range(1, layers):
        Ws[l][0, 0] = 1.0
    for m in range(modes):
        Ws[-1][0, m] = 0.05
        bs[-1][0, m] = 1.5 + 0.1 * m
    return [(jnp.asarray(W), jnp.asarray(b)) for W, b in zip(Ws, bs)]


def make_crafted_ck_params(modes, layers, nodes, diag_scale, cross_scale):
    # out_ch(hi, hj, dis) = scale_ch * relu(1 - |dis|)  -> well conditioned C, small K
    assert layers >= 2
    dims = [3] + [nodes] * layers + [modes * modes]
    Ws = [np.zeros((dims[i], dims[i + 1]), np.float32) for i in range(len(dims) - 1)]
    bs = [np.zeros((1, dims[i + 1]), np.float32) for i in range(len(dims) - 1)]
    Ws[0][2, 0] = 1.0
    Ws[0][2, 1] = -1.0
    Ws[1][0, 0] = -1.0
    Ws[1][1, 0] = -1.0
    bs[1][0, 0] = 1.0
    for l in range(2, layers):
        Ws[l][0, 0] = 1.0
    for mi in range(modes):
        for mj in range(modes):
            Ws[-1][0, mi * modes + mj] = diag_scale if mi == mj else cross_scale
    return [(jnp.asarray(W), jnp.asarray(b)) for W, b in zip(Ws, bs)]


def build_metalayer_params(key, GP, N, statics):
    k_h, k_e = jax.random.split(key, 2)
    ey_size = 2 * (GP.Knn + 1) * GP.res
    neffnn = make_crafted_neff_params(GP.modes, NEFF_PARAS['layers'], NEFF_PARAS['nodes'])
    nu0_neff = make_crafted_neff_params(GP.modes, NEFF_PARAS['layers'], NEFF_PARAS['nodes'])
    enn = make_random_mlp_params(k_e, 1, GP.modes * ey_size,
                                 E_PARAS['layers'], E_PARAS['nodes'], scale=0.2)
    genc = make_crafted_ck_params(GP.modes, C_PARAS['layers'], C_PARAS['nodes'], 1.0, 0.1)
    genk = make_crafted_ck_params(GP.modes, K_PARAS['layers'], K_PARAS['nodes'], 0.2, 0.05)
    front_slab, front_offs = pack_front_slab([enn, neffnn, nu0_neff])
    assert front_offs[-1][2] == GP.modes * ey_size + 2 * GP.modes
    ck_slab, ck_meta = pack_ck_slab(genc, genk, statics['dis'])
    return dict(
        h_paras=0.5 * jax.random.normal(k_h, (N,), jnp.float32),
        front_slab=front_slab, front_offs=front_offs,
        ck_slab=ck_slab, ck_meta=ck_meta,
    )


def build_model_params(key, GP, N, prop_dis):
    assert len(prop_dis) == 2, '2 layer model, number of prop_dis should be 2.!'
    statics = build_static_mats(N, GP.Knn, GP.modes)
    k1, k2 = jax.random.split(key, 2)
    lams = [GP.lam / GP.n_sub, GP.lam]              # layer 1 = inverse (light exits into sub)
    layers = []
    for kk, prop, lam in zip((k1, k2), prop_dis, lams):
        layers.append(dict(metalayer=build_metalayer_params(kk, GP, N, statics),
                           SG3=build_sg3(prop, lam, N, GP.res, GP.Knn, GP.dx)))
    return dict(layers=layers, statics=statics)


# -----------------------------------------------------------------------------
# Module forward passes
# -----------------------------------------------------------------------------
def scmt_layer_forward(lp, statics, E0r, E0i, *, GP, COUPLING, N, inverse):
    mp = lp['metalayer']
    modes, res, Knn = GP.modes, GP.res, GP.Knn
    nb = 2 * (Knn + 1)
    ey_size = nb * res
    D = modes * N
    T = N * res
    pad1 = (2 * Knn + 1) * res // 2
    pad2 = (2 * Knn + 1) * res - pad1
    n0_u0 = GP.n0 if inverse else GP.n_sub
    n0_en = GP.n_sub if inverse else GP.n0

    E0r_p = jnp.pad(E0r, (pad1, pad2))
    E0i_p = jnp.pad(E0i, (pad1, pad2))

    def mk_slices(E):
        return jnp.concatenate(
            [E[i * res:(N + i) * res].reshape(N, res) for i in range(nb)], axis=-1)

    E0r_s = mk_slices(E0r_p)
    E0i_s = mk_slices(E0i_p)
    hpar = jnp.asarray(mp['h_paras'], jnp.float32).reshape(N, 1)

    front_kwargs = dict(front_offs=mp['front_offs'], modes=modes, ey_size=ey_size,
                        n0_u0=float(n0_u0), coef_t=float(2.0 * GP.C_EPSILON * GP.dx),
                        h_min=float(GP.h_min), h_max=float(GP.h_max))

    if not COUPLING:
        kern = functools.partial(_layer_nocoupling_kernel, n0_en=float(n0_en),
                                 kwh=float(GP.k * GP.wh), T=T, **front_kwargs)
        efr, efi = _pcall(kern,
                          [hpar, E0r_s, E0i_s, mp['front_slab'], lp['SG3']],
                          (_f32((1, T)), _f32((1, T))))
    else:
        ckm = mp['ck_meta']
        kern1 = functools.partial(_front_ck_kernel,
                                  ck_offs=ckm['offs'], ck_db0_start=ckm['db0_start'],
                                  ck_E=ckm['E'], ck_H2=ckm['H2'], **front_kwargs)
        small, Ey, CK = _pcall(
            kern1,
            [hpar, E0r_s, E0i_s, mp['front_slab'], mp['ck_slab'],
             statics['SEL'], statics['RowT'], statics['ColCat']],
            (_f32((N, 3 * modes)), _f32((N, modes * ey_size)), _f32((D, 2 * D))))
        neffs = small[:, 0:modes]
        U0r = small[:, modes:2 * modes]
        U0i = small[:, 2 * modes:3 * modes]
        C = CK[:, 0:D]
        K = CK[:, D:2 * D]
        bvec = neffs.reshape(-1) * GP.k
        # TODO(synk): torch.inverse + matmul replaced by one LU solve at JAX level (no Pallas LU).
        EigM = jnp.linalg.solve(C, bvec[:, None] * C + K)
        S = GP.wh * EigM
        nrm = jnp.max(jnp.sum(jnp.abs(S), axis=1))
        n_steps = jnp.clip(jnp.ceil(nrm), 1.0, 512.0).astype(jnp.int32)
        S_scaled = S / n_steps.astype(jnp.float32)                 # ||S_scaled||_inf <= 1
        U0ri = jnp.stack([U0r.reshape(-1), U0i.reshape(-1)], axis=1)   # [D, 2]
        kern2 = functools.partial(_post_coupling_kernel, modes=modes, N=N, ey_size=ey_size,
                                  n0_en=float(n0_en), T=T, k_taylor=12)
        efr, efi = _pcall(kern2,
                          [Ey, neffs, S_scaled, U0ri, statics['Esel'], lp['SG3']],
                          (_f32((1, T)), _f32((1, T))),
                          scalars=(n_steps.reshape(1),))
    return efr.reshape(-1), efi.reshape(-1)


def scmt_model_2_layer_forward(params, E0, *, GP, COUPLING, N):
    Er = jnp.real(E0).astype(jnp.float32)
    Ei = jnp.imag(E0).astype(jnp.float32)
    statics = params['statics']
    for li, lp in enumerate(params['layers']):
        Er, Ei = scmt_layer_forward(lp, statics, Er, Ei, GP=GP, COUPLING=COUPLING, N=N,
                                    inverse=(li == 0))
    return jax.lax.complex(Er, Ei)


# -----------------------------------------------------------------------------
if __name__ == "__main__":
    GP = SimpleNamespace(modes=2, Knn=2, res=8, dx=0.1, lam=0.8, k=2.0 * np.pi / 0.8,
                         n0=1.0, n_sub=1.46, C_EPSILON=1.0,
                         h_min=0.2, h_max=0.6, dh=0.01, wh=0.6)
    N = 16
    prop_dis = [5.0, 10.0]

    key = jax.random.PRNGKey(0)
    k_params, k_er, k_ei = jax.random.split(key, 3)
    params = build_model_params(k_params, GP, N, prop_dis)

    # Input field.  The 2-layer chain forces len(E0) == N*res (layer-2 input is layer-1 output).
    E0 = jax.lax.complex(0.5 * jax.random.normal(k_er, (N * GP.res,), jnp.float32),
                         0.5 * jax.random.normal(k_ei, (N * GP.res,), jnp.float32))

    fwd_coupled = jax.jit(lambda e0: scmt_model_2_layer_forward(params, e0, GP=GP,
                                                                COUPLING=True, N=N))
    fwd_uncoupled = jax.jit(lambda e0: scmt_model_2_layer_forward(params, e0, GP=GP,
                                                                  COUPLING=False, N=N))

    Ef_c = jax.block_until_ready(fwd_coupled(E0))
    Ef_u = jax.block_until_ready(fwd_uncoupled(E0))

    for Ef in (Ef_c, Ef_u):
        assert Ef.shape == (N * GP.res,)
        assert jnp.issubdtype(Ef.dtype, jnp.complexfloating)
        assert bool(jnp.all(jnp.isfinite(jnp.real(Ef)))) and bool(jnp.all(jnp.isfinite(jnp.imag(Ef))))
    print("KERNEL_OK")
</pallas_src>

<mosaic_0001>
module attributes {stable_mosaic.version = 11 : i64} {
  func.func @_front_ck_kernel(%arg0: i32, %arg1: memref<16x1xf32, #tpu.memory_space<vmem>>, %arg2: memref<16x48xf32, #tpu.memory_space<vmem>>, %arg3: memref<16x48xf32, #tpu.memory_space<vmem>>, %arg4: memref<216x128xf32, #tpu.memory_space<vmem>>, %arg5: memref<248x128xf32, #tpu.memory_space<vmem>>, %arg6: memref<192x16xf32, #tpu.memory_space<vmem>>, %arg7: memref<32x384xf32, #tpu.memory_space<vmem>>, %arg8: memref<384x32xf32, #tpu.memory_space<vmem>>, %arg9: memref<16x6xf32, #tpu.memory_space<vmem>>, %arg10: memref<16x96xf32, #tpu.memory_space<vmem>>, %arg11: memref<32x64xf32, #tpu.memory_space<vmem>>) attributes {dimension_semantics = [#tpu.dimension_semantics<arbitrary>], iteration_bounds = array<i64: 1>, scalar_prefetch = 0 : i64, scratch_operands = 0 : i64, tpu.core_type = #tpu.core_type<tc>, window_params = [{pipeline_mode = #tpu.pipeline_mode<synchronous>, transform_indices = @transform_0, window_bounds = array<i64: 16, 1>}, {pipeline_mode = #tpu.pipeline_mode<synchronous>, transform_indices = @transform_1, window_bounds = array<i64: 16, 48>}, {pipeline_mode = #tpu.pipeline_mode<synchronous>, transform_indices = @transform_2, window_bounds = array<i64: 16, 48>}, {pipeline_mode = #tpu.pipeline_mode<synchronous>, transform_indices = @transform_3, window_bounds = array<i64: 216, 128>}, {pipeline_mode = #tpu.pipeline_mode<synchronous>, transform_indices = @transform_4, window_bounds = array<i64: 248, 128>}, {pipeline_mode = #tpu.pipeline_mode<synchronous>, transform_indices = @transform_5, window_bounds = array<i64: 192, 16>}, {pipeline_mode = #tpu.pipeline_mode<synchronous>, transform_indices = @transform_6, window_bounds = array<i64: 32, 384>}, {pipeline_mode = #tpu.pipeline_mode<synchronous>, transform_indices = @transform_7, window_bounds = array<i64: 384, 32>}, {pipeline_mode = #tpu.pipeline_mode<synchronous>, transform_indices = @transform_8, window_bounds = array<i64: 16, 6>}, {pipeline_mode = #tpu.pipeline_mode<synchronous>, transform_indices = @transform_9, window_bounds = array<i64: 16, 96>}, {pipeline_mode = #tpu.pipeline_mode<synchronous>, transform_indices = @transform_10, window_bounds = array<i64: 32, 64>}]} {
    %c0 = arith.constant 0 : index
    %c0_0 = arith.constant 0 : index
    %0 = vector.load %arg1[%c0, %c0_0] : memref<16x1xf32, #tpu.memory_space<vmem>>, vector<16x1xf32>
    %cst = arith.constant 0.000000e+00 : f32
    %1 = vector.broadcast %cst : f32 to vector<16x1xf32>
    %2 = arith.subf %1, %0 : vector<16x1xf32>
    %3 = math.exp %2 : vector<16x1xf32>
    %cst_1 = arith.constant 1.000000e+00 : f32
    %4 = vector.broadcast %cst_1 : f32 to vector<16x1xf32>
    %5 = arith.addf %4, %3 : vector<16x1xf32>
    %6 = tpu.reciprocal %5 {approx = true} : vector<16x1xf32> -> vector<16x1xf32>
    %cst_2 = arith.constant 4.000000e-01 : f32
    %7 = vector.broadcast %cst_2 : f32 to vector<16x1xf32>
    %8 = arith.mulf %6, %7 : vector<16x1xf32>
    %cst_3 = arith.constant 2.000000e-01 : f32
    %9 = vector.broadcast %cst_3 : f32 to vector<16x1xf32>
    %10 = arith.addf %8, %9 : vector<16x1xf32>
    %c0_4 = arith.constant 0 : index
    %c0_5 = arith.constant 0 : index
    %11 = vector.load %arg4[%c0_4, %c0_5] : memref<216x128xf32, #tpu.memory_space<vmem>>, vector<1x96xf32>
    %c1 = arith.constant 1 : index
    %c0_6 = arith.constant 0 : index
    %12 = vector.load %arg4[%c1, %c0_6] : memref<216x128xf32, #tpu.memory_space<vmem>>, vector<1x96xf32>
    %13 = vector.broadcast %10 : vector<16x1xf32> to vector<16x96xf32>
    %14 = vector.broadcast %11 : vector<1x96xf32> to vector<16x96xf32>
    %15 = arith.mulf %13, %14 : vector<16x96xf32>
    %16 = vector.broadcast %12 : vector<1x96xf32> to vector<16x96xf32>
    %17 = arith.addf %15, %16 : vector<16x96xf32>
    %cst_7 = arith.constant 0.000000e+00 : f32
    %18 = vector.broadcast %cst_7 : f32 to vector<16x96xf32>
    %19 = arith.maximumf %17, %18 : vector<16x96xf32>
    %c8 = arith.constant 8 : index
    %c0_8 = arith.constant 0 : index
    %20 = vector.load %arg4[%c8, %c0_8] : memref<216x128xf32, #tpu.memory_space<vmem>>, vector<96x96xf32>
    %c104 = arith.constant 104 : index
    %c0_9 = arith.constant 0 : index
    %21 = vector.load %arg4[%c104, %c0_9] : memref<216x128xf32, #tpu.memory_space<vmem>>, vector<1x96xf32>
    %cst_10 = arith.constant dense<0.000000e+00> : vector<16x96xf32>
    %22 = tpu.matmul %19, %20, %cst_10 {dimension_numbers = #tpu.dot_dimension_numbers<[1], [0], [0], [1], [0, 0, 1, 1], [], []>} : vector<16x96xf32>, vector<96x96xf32>, vector<16x96xf32> -> vector<16x96xf32>
    %23 = vector.broadcast %21 : vector<1x96xf32> to vector<16x96xf32>
    %24 = arith.addf %22, %23 : vector<16x96xf32>
    %cst_11 = arith.constant 0.000000e+00 : f32
    %25 = vector.broadcast %cst_11 : f32 to vector<16x96xf32>
    %26 = arith.maximumf %24, %25 : vector<16x96xf32>
    %c112 = arith.constant 112 : index
    %c0_12 = arith.constant 0 : index
    %27 = vector.load %arg4[%c112, %c0_12] : memref<216x128xf32, #tpu.memory_space<vmem>>, vector<96x100xf32>
    %c208 = arith.constant 208 : index
    %c0_13 = arith.constant 0 : index
    %28 = vector.load %arg4[%c208, %c0_13] : memref<216x128xf32, #tpu.memory_space<vmem>>, vector<1x100xf32>
    %cst_14 = arith.constant dense<0.000000e+00> : vector<16x100xf32>
    %29 = tpu.matmul %26, %27, %cst_14 {dimension_numbers = #tpu.dot_dimension_numbers<[1], [0], [0], [1], [0, 0, 1, 1], [], []>} : vector<16x96xf32>, vector<96x100xf32>, vector<16x100xf32> -> vector<16x100xf32>
    %30 = vector.broadcast %28 : vector<1x100xf32> to vector<16x100xf32>
    %31 = arith.addf %29, %30 : vector<16x100xf32>
    %32 = vector.extract_strided_slice %31 {offsets = [0, 0], sizes = [16, 96], strides = [1, 1]} : vector<16x100xf32> to vector<16x96xf32>
    %33 = vector.extract_strided_slice %31 {offsets = [0, 96], sizes = [16, 2], strides = [1, 1]} : vector<16x100xf32> to vector<16x2xf32>
    %34 = vector.extract_strided_slice %31 {offsets = [0, 98], sizes = [16, 2], strides = [1, 1]} : vector<16x100xf32> to vector<16x2xf32>
    %c0_15 = arith.constant 0 : index
    %c0_16 = arith.constant 0 : index
    %35 = vector.load %arg2[%c0_15, %c0_16] : memref<16x48xf32, #tpu.memory_space<vmem>>, vector<16x48xf32>
    %c0_17 = arith.constant 0 : index
    %c0_18 = arith.constant 0 : index
    %36 = vector.load %arg3[%c0_17, %c0_18] : memref<16x48xf32, #tpu.memory_space<vmem>>, vector<16x48xf32>
    %37 = vector.extract_strided_slice %32 {offsets = [0, 0], sizes = [16, 48], strides = [1, 1]} : vector<16x96xf32> to vector<16x48xf32>
    %38 = arith.mulf %37, %35 : vector<16x48xf32>
    %cst_19 = arith.constant dense<0.000000e+00> : vector<16xf32>
    %39 = vector.multi_reduction <add>, %38, %cst_19 [1] : vector<16x48xf32> to vector<16xf32>
    %40 = vector.shape_cast %39 : vector<16xf32> to vector<16x1xf32>
    %41 = arith.mulf %37, %36 : vector<16x48xf32>
    %cst_20 = arith.constant dense<0.000000e+00> : vector<16xf32>
    %42 = vector.multi_reduction <add>, %41, %cst_20 [1] : vector<16x48xf32> to vector<16xf32>
    %43 = vector.shape_cast %42 : vector<16xf32> to vector<16x1xf32>
    %44 = vector.extract_strided_slice %32 {offsets = [0, 48], sizes = [16, 48], strides = [1, 1]} : vector<16x96xf32> to vector<16x48xf32>
    %45 = arith.mulf %44, %35 : vector<16x48xf32>
    %cst_21 = arith.constant dense<0.000000e+00> : vector<16xf32>
    %46 = vector.multi_reduction <add>, %45, %cst_21 [1] : vector<16x48xf32> to vector<16xf32>
    %47 = vector.shape_cast %46 : vector<16xf32> to vector<16x1xf32>
    %48 = arith.mulf %44, %36 : vector<16x48xf32>
    %cst_22 = arith.constant dense<0.000000e+00> : vector<16xf32>
    %49 = vector.multi_reduction <add>, %48, %cst_22 [1] : vector<16x48xf32> to vector<16xf32>
    %50 = vector.shape_cast %49 : vector<16xf32> to vector<16x1xf32>
    %51 = tpu.concatenate %40, %47 in 1 : vector<16x1xf32>, vector<16x1xf32> -> vector<16x2xf32>
    %52 = tpu.concatenate %43, %50 in 1 : vector<16x1xf32>, vector<16x1xf32> -> vector<16x2xf32>
    %cst_23 = arith.constant 1.000000e+00 : f32
    %53 = vector.broadcast %cst_23 : f32 to vector<16x2xf32>
    %54 = arith.mulf %34, %53 : vector<16x2xf32>
    %cst_24 = arith.constant 1.000000e+00 : f32
    %55 = vector.broadcast %cst_24 : f32 to vector<16x2xf32>
    %56 = arith.addf %34, %55 : vector<16x2xf32>
    %57 = tpu.reciprocal %56 {approx = true} : vector<16x2xf32> -> vector<16x2xf32>
    %58 = arith.mulf %54, %57 : vector<16x2xf32>
    %cst_25 = arith.constant 2.000000e-01 : f32
    %59 = vector.broadcast %cst_25 : f32 to vector<16x2xf32>
    %60 = arith.mulf %59, %58 : vector<16x2xf32>
    %61 = arith.mulf %60, %51 : vector<16x2xf32>
    %cst_26 = arith.constant 2.000000e-01 : f32
    %62 = vector.broadcast %cst_26 : f32 to vector<16x2xf32>
    %63 = arith.mulf %62, %58 : vector<16x2xf32>
    %64 = arith.mulf %63, %52 : vector<16x2xf32>
    %65 = tpu.concatenate %33, %61, %64 in 1 : vector<16x2xf32>, vector<16x2xf32>, vector<16x2xf32> -> vector<16x6xf32>
    %c0_27 = arith.constant 0 : index
    %c0_28 = arith.constant 0 : index
    %66 = vector.load %arg9[%c0_27, %c0_28] : memref<16x6xf32, #tpu.memory_space<vmem>>, vector<16x6xf32>
    tpu.vector_store %arg9[%c0_27, %c0_28], %65 {strides = array<i32>} : memref<16x6xf32, #tpu.memory_space<vmem>>, vector<16x6xf32>,
    %c0_29 = arith.constant 0 : index
    %c0_30 = arith.constant 0 : index
    %67 = vector.load %arg10[%c0_29, %c0_30] : memref<16x96xf32, #tpu.memory_space<vmem>>, vector<16x96xf32>
    tpu.vector_store %arg10[%c0_29, %c0_30], %32 {strides = array<i32>} : memref<16x96xf32, #tpu.memory_space<vmem>>, vector<16x96xf32>,
    %c0_31 = arith.constant 0 : index
    %c0_32 = arith.constant 0 : index
    %68 = vector.load %arg6[%c0_31, %c0_32] : memref<192x16xf32, #tpu.memory_space<vmem>>, vector<192x16xf32>
    %cst_33 = arith.constant dense<0.000000e+00> : vector<192x1xf32>
    %69 = tpu.matmul %68, %10, %cst_33 {dimension_numbers = #tpu.dot_dimension_numbers<[1], [0], [0], [1], [0, 0, 1, 1], [], []>} : vector<192x16xf32>, vector<16x1xf32>, vector<192x1xf32> -> vector<192x1xf32>
    %70 = vector.extract_strided_slice %69 {offsets = [0, 0], sizes = [96, 1], strides = [1, 1]} : vector<192x1xf32> to vector<96x1xf32>
    %71 = vector.extract_strided_slice %69 {offsets = [96, 0], sizes = [96, 1], strides = [1, 1]} : vector<192x1xf32> to vector<96x1xf32>
    %c0_34 = arith.constant 0 : index
    %c0_35 = arith.constant 0 : index
    %72 = vector.load %arg5[%c0_34, %c0_35] : memref<248x128xf32, #tpu.memory_space<vmem>>, vector<1x64xf32>
    %c1_36 = arith.constant 1 : index
    %c0_37 = arith.constant 0 : index
    %73 = vector.load %arg5[%c1_36, %c0_37] : memref<248x128xf32, #tpu.memory_space<vmem>>, vector<1x64xf32>
    %c8_38 = arith.constant 8 : index
    %c0_39 = arith.constant 0 : index
    %74 = vector.load %arg5[%c8_38, %c0_39] : memref<248x128xf32, #tpu.memory_space<vmem>>, vector<96x64xf32>
    %75 = vector.broadcast %70 : vector<96x1xf32> to vector<96x64xf32>
    %76 = vector.broadcast %72 : vector<1x64xf32> to vector<96x64xf32>
    %77 = arith.mulf %75, %76 : vector<96x64xf32>
    %78 = vector.broadcast %71 : vector<96x1xf32> to vector<96x64xf32>
    %79 = vector.broadcast %73 : vector<1x64xf32> to vector<96x64xf32>
    %80 = arith.mulf %78, %79 : vector<96x64xf32>
    %81 = arith.addf %77, %80 : vector<96x64xf32>
    %82 = arith.addf %81, %74 : vector<96x64xf32>
    %cst_40 = arith.constant 0.000000e+00 : f32
    %83 = vector.broadcast %cst_40 : f32 to vector<96x64xf32>
    %84 = arith.maximumf %82, %83 : vector<96x64xf32>
    %c104_41 = arith.constant 104 : index
    %c0_42 = arith.constant 0 : index
    %85 = vector.load %arg5[%c104_41, %c0_42] : memref<248x128xf32, #tpu.memory_space<vmem>>, vector<64x64xf32>
    %c168 = arith.constant 168 : index
    %c0_43 = arith.constant 0 : index
    %86 = vector.load %arg5[%c168, %c0_43] : memref<248x128xf32, #tpu.memory_space<vmem>>, vector<1x64xf32>
    %cst_44 = arith.constant dense<0.000000e+00> : vector<96x64xf32>
    %87 = tpu.matmul %84, %85, %cst_44 {dimension_numbers = #tpu.dot_dimension_numbers<[1], [0], [0], [1], [0, 0, 1, 1], [], []>} : vector<96x64xf32>, vector<64x64xf32>, vector<96x64xf32> -> vector<96x64xf32>
    %88 = vector.broadcast %86 : vector<1x64xf32> to vector<96x64xf32>
    %89 = arith.addf %87, %88 : vector<96x64xf32>
    %cst_45 = arith.constant 0.000000e+00 : f32
    %90 = vector.broadcast %cst_45 : f32 to vector<96x64xf32>
    %91 = arith.maximumf %89, %90 : vector<96x64xf32>
    %c176 = arith.constant 176 : index
    %c0_46 = arith.constant 0 : index
    %92 = vector.load %arg5[%c176, %c0_46] : memref<248x128xf32, #tpu.memory_space<vmem>>, vector<64x8xf32>
    %c240 = arith.constant 240 : index
    %c0_47 = arith.constant 0 : index
    %93 = vector.load %arg5[%c240, %c0_47] : memref<248x128xf32, #tpu.memory_space<vmem>>, vector<1x8xf32>
    %cst_48 = arith.constant dense<0.000000e+00> : vector<96x8xf32>
    %94 = tpu.matmul %91, %92, %cst_48 {dimension_numbers = #tpu.dot_dimension_numbers<[1], [0], [0], [1], [0, 0, 1, 1], [], []>} : vector<96x64xf32>, vector<64x8xf32>, vector<96x8xf32> -> vector<96x8xf32>
    %95 = vector.broadcast %93 : vector<1x8xf32> to vector<96x8xf32>
    %96 = arith.addf %94, %95 : vector<96x8xf32>
    %97 = vector.extract_strided_slice %96 {offsets = [0, 0], sizes = [96, 4], strides = [1, 1]} : vector<96x8xf32> to vector<96x4xf32>
    %98 = vector.extract_strided_slice %96 {offsets = [0, 4], sizes = [96, 4], strides = [1, 1]} : vector<96x8xf32> to vector<96x4xf32>
    %c0_49 = arith.constant 0 : index
    %c0_50 = arith.constant 0 : index
    %99 = vector.load %arg8[%c0_49, %c0_50] : memref<384x32xf32, #tpu.memory_space<vmem>>, vector<384x32xf32>
    %100 = vector.extract_strided_slice %99 {offsets = [0, 0], sizes = [96, 32], strides = [1, 1]} : vector<384x32xf32> to vector<96x32xf32>
    %101 = vector.extract_strided_slice %97 {offsets = [0, 0], sizes = [96, 1], strides = [1, 1]} : vector<96x4xf32> to vector<96x1xf32>
    %102 = vector.broadcast %101 : vector<96x1xf32> to vector<96x32xf32>
    %103 = arith.mulf %102, %100 : vector<96x32xf32>
    %104 = vector.extract_strided_slice %98 {offsets = [0, 0], sizes = [96, 1], strides = [1, 1]} : vector<96x4xf32> to vector<96x1xf32>
    %105 = vector.broadcast %104 : vector<96x1xf32> to vector<96x32xf32>
    %106 = arith.mulf %105, %100 : vector<96x32xf32>
    %107 = tpu.concatenate %103, %106 in 1 : vector<96x32xf32>, vector<96x32xf32> -> vector<96x64xf32>
    %108 = vector.extract_strided_slice %99 {offsets = [96, 0], sizes = [96, 32], strides = [1, 1]} : vector<384x32xf32> to vector<96x32xf32>
    %109 = vector.extract_strided_slice %97 {offsets = [0, 1], sizes = [96, 1], strides = [1, 1]} : vector<96x4xf32> to vector<96x1xf32>
    %110 = vector.broadcast %109 : vector<96x1xf32> to vector<96x32xf32>
    %111 = arith.mulf %110, %108 : vector<96x32xf32>
    %112 = vector.extract_strided_slice %98 {offsets = [0, 1], sizes = [96, 1], strides = [1, 1]} : vector<96x4xf32> to vector<96x1xf32>
    %113 = vector.broadcast %112 : vector<96x1xf32> to vector<96x32xf32>
    %114 = arith.mulf %113, %108 : vector<96x32xf32>
    %115 = tpu.concatenate %111, %114 in 1 : vector<96x32xf32>, vector<96x32xf32> -> vector<96x64xf32>
    %116 = vector.extract_strided_slice %99 {offsets = [192, 0], sizes = [96, 32], strides = [1, 1]} : vector<384x32xf32> to vector<96x32xf32>
    %117 = vector.extract_strided_slice %97 {offsets = [0, 2], sizes = [96, 1], strides = [1, 1]} : vector<96x4xf32> to vector<96x1xf32>
    %118 = vector.broadcast %117 : vector<96x1xf32> to vector<96x32xf32>
    %119 = arith.mulf %118, %116 : vector<96x32xf32>
    %120 = vector.extract_strided_slice %98 {offsets = [0, 2], sizes = [96, 1], strides = [1, 1]} : vector<96x4xf32> to vector<96x1xf32>
    %121 = vector.broadcast %120 : vector<96x1xf32> to vector<96x32xf32>
    %122 = arith.mulf %121, %116 : vector<96x32xf32>
    %123 = tpu.concatenate %119, %122 in 1 : vector<96x32xf32>, vector<96x32xf32> -> vector<96x64xf32>
    %124 = vector.extract_strided_slice %99 {offsets = [288, 0], sizes = [96, 32], strides = [1, 1]} : vector<384x32xf32> to vector<96x32xf32>
    %125 = vector.extract_strided_slice %97 {offsets = [0, 3], sizes = [96, 1], strides = [1, 1]} : vector<96x4xf32> to vector<96x1xf32>
    %126 = vector.broadcast %125 : vector<96x1xf32> to vector<96x32xf32>
    %127 = arith.mulf %126, %124 : vector<96x32xf32>
    %128 = vector.extract_strided_slice %98 {offsets = [0, 3], sizes = [96, 1], strides = [1, 1]} : vector<96x4xf32> to vector<96x1xf32>
    %129 = vector.broadcast %128 : vector<96x1xf32> to vector<96x32xf32>
    %130 = arith.mulf %129, %124 : vector<96x32xf32>
    %131 = tpu.concatenate %127, %130 in 1 : vector<96x32xf32>, vector<96x32xf32> -> vector<96x64xf32>
    %132 = tpu.concatenate %107, %115, %123, %131 in 0 : vector<96x64xf32>, vector<96x64xf32>, vector<96x64xf32>, vector<96x64xf32> -> vector<384x64xf32>
    %c0_51 = arith.constant 0 : index
    %c0_52 = arith.constant 0 : index
    %133 = vector.load %arg7[%c0_51, %c0_52] : memref<32x384xf32, #tpu.memory_space<vmem>>, vector<32x384xf32>
    %cst_53 = arith.constant dense<0.000000e+00> : vector<32x64xf32>
    %134 = tpu.matmul %133, %132, %cst_53 {dimension_numbers = #tpu.dot_dimension_numbers<[1], [0], [0], [1], [0, 0, 1, 1], [], []>} : vector<32x384xf32>, vector<384x64xf32>, vector<32x64xf32> -> vector<32x64xf32>
    %c0_54 = arith.constant 0 : index
    %c0_55 = arith.constant 0 : index
    %135 = vector.load %arg11[%c0_54, %c0_55] : memref<32x64xf32, #tpu.memory_space<vmem>>, vector<32x64xf32>
    tpu.vector_store %arg11[%c0_54, %c0_55], %134 {strides = array<i32>} : memref<32x64xf32, #tpu.memory_space<vmem>>, vector<32x64xf32>,
    return
  }
  func.func @transform_0(%arg0: i32) -> (i32, i32) {
    %c0_i32 = arith.constant 0 : i32
    %c0_i32_0 = arith.constant 0 : i32
    %c0_i32_1 = arith.constant 0 : i32
    return %c0_i32, %c0_i32_0 : i32, i32
  }
  func.func @transform_1(%arg0: i32) -> (i32, i32) {
    %c0_i32 = arith.constant 0 : i32
    %c0_i32_0 = arith.constant 0 : i32
    %c0_i32_1 = arith.constant 0 : i32
    return %c0_i32, %c0_i32_0 : i32, i32
  }
  func.func @transform_2(%arg0: i32) -> (i32, i32) {
    %c0_i32 = arith.constant 0 : i32
    %c0_i32_0 = arith.constant 0 : i32
    %c0_i32_1 = arith.constant 0 : i32
    return %c0_i32, %c0_i32_0 : i32, i32
  }
  func.func @transform_3(%arg0: i32) -> (i32, i32) {
    %c0_i32 = arith.constant 0 : i32
    %c0_i32_0 = arith.constant 0 : i32
    %c0_i32_1 = arith.constant 0 : i32
    return %c0_i32, %c0_i32_0 : i32, i32
  }
  func.func @transform_4(%arg0: i32) -> (i32, i32) {
    %c0_i32 = arith.constant 0 : i32
    %c0_i32_0 = arith.constant 0 : i32
    %c0_i32_1 = arith.constant 0 : i32
    return %c0_i32, %c0_i32_0 : i32, i32
  }
  func.func @transform_5(%arg0: i32) -> (i32, i32) {
    %c0_i32 = arith.constant 0 : i32
    %c0_i32_0 = arith.constant 0 : i32
    %c0_i32_1 = arith.constant 0 : i32
    return %c0_i32, %c0_i32_0 : i32, i32
  }
  func.func @transform_6(%arg0: i32) -> (i32, i32) {
    %c0_i32 = arith.constant 0 : i32
    %c0_i32_0 = arith.constant 0 : i32
    %c0_i32_1 = arith.constant 0 : i32
    return %c0_i32, %c0_i32_0 : i32, i32
  }
  func.func @transform_7(%arg0: i32) -> (i32, i32) {
    %c0_i32 = arith.constant 0 : i32
    %c0_i32_0 = arith.constant 0 : i32
    %c0_i32_1 = arith.constant 0 : i32
    return %c0_i32, %c0_i32_0 : i32, i32
  }
  func.func @transform_8(%arg0: i32) -> (i32, i32) {
    %c0_i32 = arith.constant 0 : i32
    %c0_i32_0 = arith.constant 0 : i32
    %c0_i32_1 = arith.constant 0 : i32
    return %c0_i32, %c0_i32_0 : i32, i32
  }
  func.func @transform_9(%arg0: i32) -> (i32, i32) {
    %c0_i32 = arith.constant 0 : i32
    %c0_i32_0 = arith.constant 0 : i32
    %c0_i32_1 = arith.constant 0 : i32
    return %c0_i32, %c0_i32_0 : i32, i32
  }
  func.func @transform_10(%arg0: i32) -> (i32, i32) {
    %c0_i32 = arith.constant 0 : i32
    %c0_i32_0 = arith.constant 0 : i32
    %c0_i32_1 = arith.constant 0 : i32
    return %c0_i32, %c0_i32_0 : i32, i32
  }
}

module attributes {stable_mosaic.version = 11 : i64} {
  func.func @_post_coupling_kernel(%arg0: i32, %arg1: memref<1xi32, #tpu.memory_space<smem>>, %arg2: memref<16x96xf32, #tpu.memory_space<vmem>>, %arg3: memref<16x2xf32, #tpu.memory_space<vmem>>, %arg4: memref<32x32xf32, #tpu.memory_space<vmem>>, %arg5: memref<32x2xf32, #tpu.memory_space<vmem>>, %arg6: memref<32x32xf32, #tpu.memory_space<vmem>>, %arg7: memref<16x48x256xf32, #tpu.memory_space<vmem>>, %arg8: memref<1x128xf32, #tpu.memory_space<vmem>>, %arg9: memref<1x128xf32, #tpu.memory_space<vmem>>) attributes {dimension_semantics = [#tpu.dimension_semantics<arbitrary>], iteration_bounds = array<i64: 1>, scalar_prefetch = 1 : i64, scratch_operands = 0 : i64, tpu.core_type = #tpu.core_type<tc>, window_params = [{pipeline_mode = #tpu.pipeline_mode<synchronous>, transform_indices = @transform_0, window_bounds = array<i64: 16, 96>}, {pipeline_mode = #tpu.pipeline_mode<synchronous>, transform_indices = @transform_1, window_bounds = array<i64: 16, 2>}, {pipeline_mode = #tpu.pipeline_mode<synchronous>, transform_indices = @transform_2, window_bounds = array<i64: 32, 32>}, {pipeline_mode = #tpu.pipeline_mode<synchronous>, transform_indices = @transform_3, window_bounds = array<i64: 32, 2>}, {pipeline_mode = #tpu.pipeline_mode<synchronous>, transform_indices = @transform_4, window_bounds = array<i64: 32, 32>}, {pipeline_mode = #tpu.pipeline_mode<synchronous>, transform_indices = @transform_5, window_bounds = array<i64: 16, 48, 256>}, {pipeline_mode = #tpu.pipeline_mode<synchronous>, transform_indices = @transform_6, window_bounds = array<i64: 1, 128>}, {pipeline_mode = #tpu.pipeline_mode<synchronous>, transform_indices = @transform_7, window_bounds = array<i64: 1, 128>}]} {
    %c0 = arith.constant 0 : index
    %c0_0 = arith.constant 0 : index
    %0 = vector.load %arg4[%c0, %c0_0] : memref<32x32xf32, #tpu.memory_space<vmem>>, vector<32x32xf32>
    %c0_1 = arith.constant 0 : index
    %c0_2 = arith.constant 0 : index
    %1 = vector.load %arg5[%c0_1, %c0_2] : memref<32x2xf32, #tpu.memory_space<vmem>>, vector<32x2xf32>
    %c0_3 = arith.constant 0 : index
    %2 = memref.load %arg1[%c0_3] : memref<1xi32, #tpu.memory_space<smem>>
    %c0_i32 = arith.constant 0 : i32
    %3 = arith.subi %2, %c0_i32 : i32
    %4 = arith.addi %c0_i32, %3 : i32
    %c1_i32 = arith.constant 1 : i32
    %5 = scf.for %arg10 = %c0_i32 to %4 step %c1_i32 iter_args(%arg11 = %1) -> (vector<32x2xf32>)  : i32 {
      %cst_21 = arith.constant dense<0.000000e+00> : vector<32x2xf32>
      %55 = tpu.matmul %0, %arg11, %cst_21 {dimension_numbers = #tpu.dot_dimension_numbers<[1], [0], [0], [1], [0, 0, 1, 1], [], []>} : vector<32x32xf32>, vector<32x2xf32>, vector<32x2xf32> -> vector<32x2xf32>
      %56 = vector.extract_strided_slice %55 {offsets = [0, 1], sizes = [32, 1], strides = [1, 1]} : vector<32x2xf32> to vector<32x1xf32>
      %cst_22 = arith.constant 0.000000e+00 : f32
      %57 = vector.broadcast %cst_22 : f32 to vector<32x1xf32>
      %58 = arith.subf %57, %56 : vector<32x1xf32>
      %59 = vector.extract_strided_slice %55 {offsets = [0, 0], sizes = [32, 1], strides = [1, 1]} : vector<32x2xf32> to vector<32x1xf32>
      %60 = tpu.concatenate %58, %59 in 1 : vector<32x1xf32>, vector<32x1xf32> -> vector<32x2xf32>
      %cst_23 = arith.constant 1.000000e+00 : f32
      %61 = vector.broadcast %cst_23 : f32 to vector<32x2xf32>
      %62 = arith.mulf %60, %61 : vector<32x2xf32>
      %63 = arith.addf %arg11, %62 : vector<32x2xf32>
      %cst_24 = arith.constant dense<0.000000e+00> : vector<32x2xf32>
      %64 = tpu.matmul %0, %62, %cst_24 {dimension_numbers = #tpu.dot_dimension_numbers<[1], [0], [0], [1], [0, 0, 1, 1], [], []>} : vector<32x32xf32>, vector<32x2xf32>, vector<32x2xf32> -> vector<32x2xf32>
      %65 = vector.extract_strided_slice %64 {offsets = [0, 1], sizes = [32, 1], strides = [1, 1]} : vector<32x2xf32> to vector<32x1xf32>
      %cst_25 = arith.constant 0.000000e+00 : f32
      %66 = vector.broadcast %cst_25 : f32 to vector<32x1xf32>
      %67 = arith.subf %66, %65 : vector<32x1xf32>
      %68 = vector.extract_strided_slice %64 {offsets = [0, 0], sizes = [32, 1], strides = [1, 1]} : vector<32x2xf32> to vector<32x1xf32>
      %69 = tpu.concatenate %67, %68 in 1 : vector<32x1xf32>, vector<32x1xf32> -> vector<32x2xf32>
      %cst_26 = arith.constant 5.000000e-01 : f32
      %70 = vector.broadcast %cst_26 : f32 to vector<32x2xf32>
      %71 = arith.mulf %69, %70 : vector<32x2xf32>
      %72 = arith.addf %63, %71 : vector<32x2xf32>
      %cst_27 = arith.constant dense<0.000000e+00> : vector<32x2xf32>
      %73 = tpu.matmul %0, %71, %cst_27 {dimension_numbers = #tpu.dot_dimension_numbers<[1], [0], [0], [1], [0, 0, 1, 1], [], []>} : vector<32x32xf32>, vector<32x2xf32>, vector<32x2xf32> -> vector<32x2xf32>
      %74 = vector.extract_strided_slice %73 {offsets = [0, 1], sizes = [32, 1], strides = [1, 1]} : vector<32x2xf32> to vector<32x1xf32>
      %cst_28 = arith.constant 0.000000e+00 : f32
      %75 = vector.broadcast %cst_28 : f32 to vector<32x1xf32>
      %76 = arith.subf %75, %74 : vector<32x1xf32>
      %77 = vector.extract_strided_slice %73 {offsets = [0, 0], sizes = [32, 1], strides = [1, 1]} : vector<32x2xf32> to vector<32x1xf32>
      %78 = tpu.concatenate %76, %77 in 1 : vector<32x1xf32>, vector<32x1xf32> -> vector<32x2xf32>
      %cst_29 = arith.constant 0.333333343 : f32
      %79 = vector.broadcast %cst_29 : f32 to vector<32x2xf32>
      %80 = arith.mulf %78, %79 : vector<32x2xf32>
      %81 = arith.addf %72, %80 : vector<32x2xf32>
      %cst_30 = arith.constant dense<0.000000e+00> : vector<32x2xf32>
      %82 = tpu.matmul %0, %80, %cst_30 {dimension_numbers = #tpu.dot_dimension_numbers<[1], [0], [0], [1], [0, 0, 1, 1], [], []>} : vector<32x32xf32>, vector<32x2xf32>, vector<32x2xf32> -> vector<32x2xf32>
      %83 = vector.extract_strided_slice %82 {offsets = [0, 1], sizes = [32, 1], strides = [1, 1]} : vector<32x2xf32> to vector<32x1xf32>
      %cst_31 = arith.constant 0.000000e+00 : f32
      %84 = vector.broadcast %cst_31 : f32 to vector<32x1xf32>
      %85 = arith.subf %84, %83 : vector<32x1xf32>
      %86 = vector.extract_strided_slice %82 {offsets = [0, 0], sizes = [32, 1], strides = [1, 1]} : vector<32x2xf32> to vector<32x1xf32>
      %87 = tpu.concatenate %85, %86 in 1 : vector<32x1xf32>, vector<32x1xf32> -> vector<32x2xf32>
      %cst_32 = arith.constant 2.500000e-01 : f32
      %88 = vector.broadcast %cst_32 : f32 to vector<32x2xf32>
      %89 = arith.mulf %87, %88 : vector<32x2xf32>
      %90 = arith.addf %81, %89 : vector<32x2xf32>
      %cst_33 = arith.constant dense<0.000000e+00> : vector<32x2xf32>
      %91 = tpu.matmul %0, %89, %cst_33 {dimension_numbers = #tpu.dot_dimension_numbers<[1], [0], [0], [1], [0, 0, 1, 1], [], []>} : vector<32x32xf32>, vector<32x2xf32>, vector<32x2xf32> -> vector<32x2xf32>
      %92 = vector.extract_strided_slice %91 {offsets = [0, 1], sizes = [32, 1], strides = [1, 1]} : vector<32x2xf32> to vector<32x1xf32>
      %cst_34 = arith.constant 0.000000e+00 : f32
      %93 = vector.broadcast %cst_34 : f32 to vector<32x1xf32>
      %94 = arith.subf %93, %92 : vector<32x1xf32>
      %95 = vector.extract_strided_slice %91 {offsets = [0, 0], sizes = [32, 1], strides = [1, 1]} : vector<32x2xf32> to vector<32x1xf32>
      %96 = tpu.concatenate %94, %95 in 1 : vector<32x1xf32>, vector<32x1xf32> -> vector<32x2xf32>
      %cst_35 = arith.constant 2.000000e-01 : f32
      %97 = vector.broadcast %cst_35 : f32 to vector<32x2xf32>
      %98 = arith.mulf %96, %97 : vector<32x2xf32>
      %99 = arith.addf %90, %98 : vector<32x2xf32>
      %cst_36 = arith.constant dense<0.000000e+00> : vector<32x2xf32>
      %100 = tpu.matmul %0, %98, %cst_36 {dimension_numbers = #tpu.dot_dimension_numbers<[1], [0], [0], [1], [0, 0, 1, 1], [], []>} : vector<32x32xf32>, vector<32x2xf32>, vector<32x2xf32> -> vector<32x2xf32>
      %101 = vector.extract_strided_slice %100 {offsets = [0, 1], sizes = [32, 1], strides = [1, 1]} : vector<32x2xf32> to vector<32x1xf32>
      %cst_37 = arith.constant 0.000000e+00 : f32
      %102 = vector.broadcast %cst_37 : f32 to vector<32x1xf32>
      %103 = arith.subf %102, %101 : vector<32x1xf32>
      %104 = vector.extract_strided_slice %100 {offsets = [0, 0], sizes = [32, 1], strides = [1, 1]} : vector<32x2xf32> to vector<32x1xf32>
      %105 = tpu.concatenate %103, %104 in 1 : vector<32x1xf32>, vector<32x1xf32> -> vector<32x2xf32>
      %cst_38 = arith.constant 0.166666672 : f32
      %106 = vector.broadcast %cst_38 : f32 to vector<32x2xf32>
      %107 = arith.mulf %105, %106 : vector<32x2xf32>
      %108 = arith.addf %99, %107 : vector<32x2xf32>
      %cst_39 = arith.constant dense<0.000000e+00> : vector<32x2xf32>
      %109 = tpu.matmul %0, %107, %cst_39 {dimension_numbers = #tpu.dot_dimension_numbers<[1], [0], [0], [1], [0, 0, 1, 1], [], []>} : vector<32x32xf32>, vector<32x2xf32>, vector<32x2xf32> -> vector<32x2xf32>
      %110 = vector.extract_strided_slice %109 {offsets = [0, 1], sizes = [32, 1], strides = [1, 1]} : vector<32x2xf32> to vector<32x1xf32>
      %cst_40 = arith.constant 0.000000e+00 : f32
      %111 = vector.broadcast %cst_40 : f32 to vector<32x1xf32>
      %112 = arith.subf %111, %110 : vector<32x1xf32>
      %113 = vector.extract_strided_slice %109 {offsets = [0, 0], sizes = [32, 1], strides = [1, 1]} : vector<32x2xf32> to vector<32x1xf32>
      %114 = tpu.concatenate %112, %113 in 1 : vector<32x1xf32>, vector<32x1xf32> -> vector<32x2xf32>
      %cst_41 = arith.constant 0.142857149 : f32
      %115 = vector.broadcast %cst_41 : f32 to vector<32x2xf32>
      %116 = arith.mulf %114, %115 : vector<32x2xf32>
      %117 = arith.addf %108, %116 : vector<32x2xf32>
      %cst_42 = arith.constant dense<0.000000e+00> : vector<32x2xf32>
      %118 = tpu.matmul %0, %116, %cst_42 {dimension_numbers = #tpu.dot_dimension_numbers<[1], [0], [0], [1], [0, 0, 1, 1], [], []>} : vector<32x32xf32>, vector<32x2xf32>, vector<32x2xf32> -> vector<32x2xf32>
      %119 = vector.extract_strided_slice %118 {offsets = [0, 1], sizes = [32, 1], strides = [1, 1]} : vector<32x2xf32> to vector<32x1xf32>
      %cst_43 = arith.constant 0.000000e+00 : f32
      %120 = vector.broadcast %cst_43 : f32 to vector<32x1xf32>
      %121 = arith.subf %120, %119 : vector<32x1xf32>
      %122 = vector.extract_strided_slice %118 {offsets = [0, 0], sizes = [32, 1], strides = [1, 1]} : vector<32x2xf32> to vector<32x1xf32>
      %123 = tpu.concatenate %121, %122 in 1 : vector<32x1xf32>, vector<32x1xf32> -> vector<32x2xf32>
      %cst_44 = arith.constant 1.250000e-01 : f32
      %124 = vector.broadcast %cst_44 : f32 to vector<32x2xf32>
      %125 = arith.mulf %123, %124 : vector<32x2xf32>
      %126 = arith.addf %117, %125 : vector<32x2xf32>
      %cst_45 = arith.constant dense<0.000000e+00> : vector<32x2xf32>
      %127 = tpu.matmul %0, %125, %cst_45 {dimension_numbers = #tpu.dot_dimension_numbers<[1], [0], [0], [1], [0, 0, 1, 1], [], []>} : vector<32x32xf32>, vector<32x2xf32>, vector<32x2xf32> -> vector<32x2xf32>
      %128 = vector.extract_strided_slice %127 {offsets = [0, 1], sizes = [32, 1], strides = [1, 1]} : vector<32x2xf32> to vector<32x1xf32>
      %cst_46 = arith.constant 0.000000e+00 : f32
      %129 = vector.broadcast %cst_46 : f32 to vector<32x1xf32>
      %130 = arith.subf %129, %128 : vector<32x1xf32>
      %131 = vector.extract_strided_slice %127 {offsets = [0, 0], sizes = [32, 1], strides = [1, 1]} : vector<32x2xf32> to vector<32x1xf32>
      %132 = tpu.concatenate %130, %131 in 1 : vector<32x1xf32>, vector<32x1xf32> -> vector<32x2xf32>
      %cst_47 = arith.constant 0.111111112 : f32
      %133 = vector.broadcast %cst_47 : f32 to vector<32x2xf32>
      %134 = arith.mulf %132, %133 : vector<32x2xf32>
      %135 = arith.addf %126, %134 : vector<32x2xf32>
      %cst_48 = arith.constant dense<0.000000e+00> : vector<32x2xf32>
      %136 = tpu.matmul %0, %134, %cst_48 {dimension_numbers = #tpu.dot_dimension_numbers<[1], [0], [0], [1], [0, 0, 1, 1], [], []>} : vector<32x32xf32>, vector<32x2xf32>, vector<32x2xf32> -> vector<32x2xf32>
      %137 = vector.extract_strided_slice %136 {offsets = [0, 1], sizes = [32, 1], strides = [1, 1]} : vector<32x2xf32> to vector<32x1xf32>
      %cst_49 = arith.constant 0.000000e+00 : f32
      %138 = vector.broadcast %cst_49 : f32 to vector<32x1xf32>
      %139 = arith.subf %138, %137 : vector<32x1xf32>
      %140 = vector.extract_strided_slice %136 {offsets = [0, 0], sizes = [32, 1], strides = [1, 1]} : vector<32x2xf32> to vector<32x1xf32>
      %141 = tpu.concatenate %139, %140 in 1 : vector<32x1xf32>, vector<32x1xf32> -> vector<32x2xf32>
      %cst_50 = arith.constant 1.000000e-01 : f32
      %142 = vector.broadcast %cst_50 : f32 to vector<32x2xf32>
      %143 = arith.mulf %141, %142 : vector<32x2xf32>
      %144 = arith.addf %135, %143 : vector<32x2xf32>
      %cst_51 = arith.constant dense<0.000000e+00> : vector<32x2xf32>
      %145 = tpu.matmul %0, %143, %cst_51 {dimension_numbers = #tpu.dot_dimension_numbers<[1], [0], [0], [1], [0, 0, 1, 1], [], []>} : vector<32x32xf32>, vector<32x2xf32>, vector<32x2xf32> -> vector<32x2xf32>
      %146 = vector.extract_strided_slice %145 {offsets = [0, 1], sizes = [32, 1], strides = [1, 1]} : vector<32x2xf32> to vector<32x1xf32>
      %cst_52 = arith.constant 0.000000e+00 : f32
      %147 = vector.broadcast %cst_52 : f32 to vector<32x1xf32>
      %148 = arith.subf %147, %146 : vector<32x1xf32>
      %149 = vector.extract_strided_slice %145 {offsets = [0, 0], sizes = [32, 1], strides = [1, 1]} : vector<32x2xf32> to vector<32x1xf32>
      %150 = tpu.concatenate %148, %149 in 1 : vector<32x1xf32>, vector<32x1xf32> -> vector<32x2xf32>
      %cst_53 = arith.constant 0.0909090936 : f32
      %151 = vector.broadcast %cst_53 : f32 to vector<32x2xf32>
      %152 = arith.mulf %150, %151 : vector<32x2xf32>
      %153 = arith.addf %144, %152 : vector<32x2xf32>
      %cst_54 = arith.constant dense<0.000000e+00> : vector<32x2xf32>
      %154 = tpu.matmul %0, %152, %cst_54 {dimension_numbers = #tpu.dot_dimension_numbers<[1], [0], [0], [1], [0, 0, 1, 1], [], []>} : vector<32x32xf32>, vector<32x2xf32>, vector<32x2xf32> -> vector<32x2xf32>
      %155 = vector.extract_strided_slice %154 {offsets = [0, 1], sizes = [32, 1], strides = [1, 1]} : vector<32x2xf32> to vector<32x1xf32>
      %cst_55 = arith.constant 0.000000e+00 : f32
      %156 = vector.broadcast %cst_55 : f32 to vector<32x1xf32>
      %157 = arith.subf %156, %155 : vector<32x1xf32>
      %158 = vector.extract_strided_slice %154 {offsets = [0, 0], sizes = [32, 1], strides = [1, 1]} : vector<32x2xf32> to vector<32x1xf32>
      %159 = tpu.concatenate %157, %158 in 1 : vector<32x1xf32>, vector<32x1xf32> -> vector<32x2xf32>
      %cst_56 = arith.constant 0.0833333358 : f32
      %160 = vector.broadcast %cst_56 : f32 to vector<32x2xf32>
      %161 = arith.mulf %159, %160 : vector<32x2xf32>
      %162 = arith.addf %153, %161 : vector<32x2xf32>
      scf.yield %162 : vector<32x2xf32>
    }
    %c0_4 = arith.constant 0 : index
    %c0_5 = arith.constant 0 : index
    %6 = vector.load %arg6[%c0_4, %c0_5] : memref<32x32xf32, #tpu.memory_space<vmem>>, vector<32x32xf32>
    %cst = arith.constant dense<0.000000e+00> : vector<32x2xf32>
    %7 = tpu.matmul %6, %5, %cst {dimension_numbers = #tpu.dot_dimension_numbers<[1], [0], [0], [1], [0, 0, 1, 1], [], []>} : vector<32x32xf32>, vector<32x2xf32>, vector<32x2xf32> -> vector<32x2xf32>
    %8 = vector.extract_strided_slice %7 {offsets = [0, 0], sizes = [16, 1], strides = [1, 1]} : vector<32x2xf32> to vector<16x1xf32>
    %9 = vector.extract_strided_slice %7 {offsets = [16, 0], sizes = [16, 1], strides = [1, 1]} : vector<32x2xf32> to vector<16x1xf32>
    %10 = tpu.concatenate %8, %9 in 1 : vector<16x1xf32>, vector<16x1xf32> -> vector<16x2xf32>
    %11 = vector.extract_strided_slice %7 {offsets = [0, 1], sizes = [16, 1], strides = [1, 1]} : vector<32x2xf32> to vector<16x1xf32>
    %12 = vector.extract_strided_slice %7 {offsets = [16, 1], sizes = [16, 1], strides = [1, 1]} : vector<32x2xf32> to vector<16x1xf32>
    %13 = tpu.concatenate %11, %12 in 1 : vector<16x1xf32>, vector<16x1xf32> -> vector<16x2xf32>
    %c0_6 = arith.constant 0 : index
    %c0_7 = arith.constant 0 : index
    %14 = vector.load %arg2[%c0_6, %c0_7] : memref<16x96xf32, #tpu.memory_space<vmem>>, vector<16x96xf32>
    %c0_8 = arith.constant 0 : index
    %c0_9 = arith.constant 0 : index
    %15 = vector.load %arg3[%c0_8, %c0_9] : memref<16x2xf32, #tpu.memory_space<vmem>>, vector<16x2xf32>
    %cst_10 = arith.constant 1.460000e+00 : f32
    %16 = vector.broadcast %cst_10 : f32 to vector<16x2xf32>
    %17 = arith.mulf %15, %16 : vector<16x2xf32>
    %cst_11 = arith.constant 1.460000e+00 : f32
    %18 = vector.broadcast %cst_11 : f32 to vector<16x2xf32>
    %19 = arith.addf %15, %18 : vector<16x2xf32>
    %20 = tpu.reciprocal %19 {approx = true} : vector<16x2xf32> -> vector<16x2xf32>
    %21 = arith.mulf %17, %20 : vector<16x2xf32>
    %22 = arith.mulf %21, %10 : vector<16x2xf32>
    %23 = arith.mulf %21, %13 : vector<16x2xf32>
    %24 = vector.extract_strided_slice %22 {offsets = [0, 0], sizes = [16, 1], strides = [1, 1]} : vector<16x2xf32> to vector<16x1xf32>
    %25 = vector.extract_strided_slice %14 {offsets = [0, 0], sizes = [16, 48], strides = [1, 1]} : vector<16x96xf32> to vector<16x48xf32>
    %26 = vector.broadcast %24 : vector<16x1xf32> to vector<16x48xf32>
    %27 = arith.mulf %26, %25 : vector<16x48xf32>
    %28 = vector.extract_strided_slice %23 {offsets = [0, 0], sizes = [16, 1], strides = [1, 1]} : vector<16x2xf32> to vector<16x1xf32>
    %29 = vector.extract_strided_slice %14 {offsets = [0, 0], sizes = [16, 48], strides = [1, 1]} : vector<16x96xf32> to vector<16x48xf32>
    %30 = vector.broadcast %28 : vector<16x1xf32> to vector<16x48xf32>
    %31 = arith.mulf %30, %29 : vector<16x48xf32>
    %32 = vector.extract_strided_slice %14 {offsets = [0, 48], sizes = [16, 48], strides = [1, 1]} : vector<16x96xf32> to vector<16x48xf32>
    %33 = vector.extract_strided_slice %22 {offsets = [0, 1], sizes = [16, 1], strides = [1, 1]} : vector<16x2xf32> to vector<16x1xf32>
    %34 = vector.broadcast %33 : vector<16x1xf32> to vector<16x48xf32>
    %35 = arith.mulf %34, %32 : vector<16x48xf32>
    %36 = arith.addf %27, %35 : vector<16x48xf32>
    %37 = vector.extract_strided_slice %23 {offsets = [0, 1], sizes = [16, 1], strides = [1, 1]} : vector<16x2xf32> to vector<16x1xf32>
    %38 = vector.broadcast %37 : vector<16x1xf32> to vector<16x48xf32>
    %39 = arith.mulf %38, %32 : vector<16x48xf32>
    %40 = arith.addf %31, %39 : vector<16x48xf32>
    %41 = vector.shape_cast %36 : vector<16x48xf32> to vector<16x1x48xf32>
    %42 = vector.shape_cast %40 : vector<16x48xf32> to vector<16x1x48xf32>
    %43 = tpu.concatenate %41, %42 in 1 : vector<16x1x48xf32>, vector<16x1x48xf32> -> vector<16x2x48xf32>
    %c0_12 = arith.constant 0 : index
    %c0_13 = arith.constant 0 : index
    %c0_14 = arith.constant 0 : index
    %44 = vector.load %arg7[%c0_12, %c0_13, %c0_14] : memref<16x48x256xf32, #tpu.memory_space<vmem>>, vector<16x48x256xf32>
    "tpu.trace_start"() <{level = 10 : i32, message = "nbj,njt->nbt"}> : () -> ()
    %cst_15 = arith.constant dense<0.000000e+00> : vector<16x2x256xf32>
    %45 = tpu.matmul %43, %44, %cst_15 {dimension_numbers = #tpu.dot_dimension_numbers<[2], [1], [1], [2], [0, 0, 0, 1, 1, 2], [0], [0]>} : vector<16x2x48xf32>, vector<16x48x256xf32>, vector<16x2x256xf32> -> vector<16x2x256xf32>
    "tpu.trace_stop"() : () -> ()
    %cst_16 = arith.constant dense<0.000000e+00> : vector<2x256xf32>
    %46 = vector.multi_reduction <add>, %45, %cst_16 [0] : vector<16x2x256xf32> to vector<2x256xf32>
    %47 = vector.extract_strided_slice %46 {offsets = [0, 0], sizes = [1, 128], strides = [1, 1]} : vector<2x256xf32> to vector<1x128xf32>
    %48 = vector.extract_strided_slice %46 {offsets = [1, 128], sizes = [1, 128], strides = [1, 1]} : vector<2x256xf32> to vector<1x128xf32>
    %49 = arith.subf %47, %48 : vector<1x128xf32>
    %c0_17 = arith.constant 0 : index
    %c0_18 = arith.constant 0 : index
    %50 = vector.load %arg8[%c0_17, %c0_18] : memref<1x128xf32, #tpu.memory_space<vmem>>, vector<1x128xf32>
    tpu.vector_store %arg8[%c0_17, %c0_18], %49 {strides = array<i32>} : memref<1x128xf32, #tpu.memory_space<vmem>>, vector<1x128xf32>,
    %51 = vector.extract_strided_slice %46 {offsets = [0, 128], sizes = [1, 128], strides = [1, 1]} : vector<2x256xf32> to vector<1x128xf32>
    %52 = vector.extract_strided_slice %46 {offsets = [1, 0], sizes = [1, 128], strides = [1, 1]} : vector<2x256xf32> to vector<1x128xf32>
    %53 = arith.addf %51, %52 : vector<1x128xf32>
    %c0_19 = arith.constant 0 : index
    %c0_20 = arith.constant 0 : index
    %54 = vector.load %arg9[%c0_19, %c0_20] : memref<1x128xf32, #tpu.memory_space<vmem>>, vector<1x128xf32>
    tpu.vector_store %arg9[%c0_19, %c0_20], %53 {strides = array<i32>} : memref<1x128xf32, #tpu.memory_space<vmem>>, vector<1x128xf32>,
    return
  }
  func.func @transform_0(%arg0: i32, %arg1: memref<1xi32, #tpu.memory_space<smem>>) -> (i32, i32) {
    %c0_i32 = arith.constant 0 : i32
    %c0_i32_0 = arith.constant 0 : i32
    %c0_i32_1 = arith.constant 0 : i32
    return %c0_i32, %c0_i32_0 : i32, i32
  }
  func.func @transform_1(%arg0: i32, %arg1: memref<1xi32, #tpu.memory_space<smem>>) -> (i32, i32) {
    %c0_i32 = arith.constant 0 : i32
    %c0_i32_0 = arith.constant 0 : i32
    %c0_i32_1 = arith.constant 0 : i32
    return %c0_i32, %c0_i32_0 : i32, i32
  }
  func.func @transform_2(%arg0: i32, %arg1: memref<1xi32, #tpu.memory_space<smem>>) -> (i32, i32) {
    %c0_i32 = arith.constant 0 : i32
    %c0_i32_0 = arith.constant 0 : i32
    %c0_i32_1 = arith.constant 0 : i32
    return %c0_i32, %c0_i32_0 : i32, i32
  }
  func.func @transform_3(%arg0: i32, %arg1: memref<1xi32, #tpu.memory_space<smem>>) -> (i32, i32) {
    %c0_i32 = arith.constant 0 : i32
    %c0_i32_0 = arith.constant 0 : i32
    %c0_i32_1 = arith.constant 0 : i32
    return %c0_i32, %c0_i32_0 : i32, i32
  }
  func.func @transform_4(%arg0: i32, %arg1: memref<1xi32, #tpu.memory_space<smem>>) -> (i32, i32) {
    %c0_i32 = arith.constant 0 : i32
    %c0_i32_0 = arith.constant 0 : i32
    %c0_i32_1 = arith.constant 0 : i32
    return %c0_i32, %c0_i32_0 : i32, i32
  }
  func.func @transform_5(%arg0: i32, %arg1: memref<1xi32, #tpu.memory_space<smem>>) -> (i32, i32, i32) {
    %c0_i32 = arith.constant 0 : i32
    %c0_i32_0 = arith.constant 0 : i32
    %c0_i32_1 = arith.constant 0 : i32
    %c0_i32_2 = arith.constant 0 : i32
    return %c0_i32, %c0_i32_0, %c0_i32_1 : i32, i32, i32
  }
  func.func @transform_6(%arg0: i32, %arg1: memref<1xi32, #tpu.memory_space<smem>>) -> (i32, i32) {
    %c0_i32 = arith.constant 0 : i32
    %c0_i32_0 = arith.constant 0 : i32
    %c0_i32_1 = arith.constant 0 : i32
    return %c0_i32, %c0_i32_0 : i32, i32
  }
  func.func @transform_7(%arg0: i32, %arg1: memref<1xi32, #tpu.memory_space<smem>>) -> (i32, i32) {
    %c0_i32 = arith.constant 0 : i32
    %c0_i32_0 = arith.constant 0 : i32
    %c0_i32_1 = arith.constant 0 : i32
    return %c0_i32, %c0_i32_0 : i32, i32
  }
}

module attributes {stable_mosaic.version = 11 : i64} {
  func.func @_front_ck_kernel(%arg0: i32, %arg1: memref<16x1xf32, #tpu.memory_space<vmem>>, %arg2: memref<16x48xf32, #tpu.memory_space<vmem>>, %arg3: memref<16x48xf32, #tpu.memory_space<vmem>>, %arg4: memref<216x128xf32, #tpu.memory_space<vmem>>, %arg5: memref<248x128xf32, #tpu.memory_space<vmem>>, %arg6: memref<192x16xf32, #tpu.memory_space<vmem>>, %arg7: memref<32x384xf32, #tpu.memory_space<vmem>>, %arg8: memref<384x32xf32, #tpu.memory_space<vmem>>, %arg9: memref<16x6xf32, #tpu.memory_space<vmem>>, %arg10: memref<16x96xf32, #tpu.memory_space<vmem>>, %arg11: memref<32x64xf32, #tpu.memory_space<vmem>>) attributes {dimension_semantics = [#tpu.dimension_semantics<arbitrary>], iteration_bounds = array<i64: 1>, scalar_prefetch = 0 : i64, scratch_operands = 0 : i64, tpu.core_type = #tpu.core_type<tc>, window_params = [{pipeline_mode = #tpu.pipeline_mode<synchronous>, transform_indices = @transform_0, window_bounds = array<i64: 16, 1>}, {pipeline_mode = #tpu.pipeline_mode<synchronous>, transform_indices = @transform_1, window_bounds = array<i64: 16, 48>}, {pipeline_mode = #tpu.pipeline_mode<synchronous>, transform_indices = @transform_2, window_bounds = array<i64: 16, 48>}, {pipeline_mode = #tpu.pipeline_mode<synchronous>, transform_indices = @transform_3, window_bounds = array<i64: 216, 128>}, {pipeline_mode = #tpu.pipeline_mode<synchronous>, transform_indices = @transform_4, window_bounds = array<i64: 248, 128>}, {pipeline_mode = #tpu.pipeline_mode<synchronous>, transform_indices = @transform_5, window_bounds = array<i64: 192, 16>}, {pipeline_mode = #tpu.pipeline_mode<synchronous>, transform_indices = @transform_6, window_bounds = array<i64: 32, 384>}, {pipeline_mode = #tpu.pipeline_mode<synchronous>, transform_indices = @transform_7, window_bounds = array<i64: 384, 32>}, {pipeline_mode = #tpu.pipeline_mode<synchronous>, transform_indices = @transform_8, window_bounds = array<i64: 16, 6>}, {pipeline_mode = #tpu.pipeline_mode<synchronous>, transform_indices = @transform_9, window_bounds = array<i64: 16, 96>}, {pipeline_mode = #tpu.pipeline_mode<synchronous>, transform_indices = @transform_10, window_bounds = array<i64: 32, 64>}]} {
    %c0 = arith.constant 0 : index
    %c0_0 = arith.constant 0 : index
    %0 = vector.load %arg1[%c0, %c0_0] : memref<16x1xf32, #tpu.memory_space<vmem>>, vector<16x1xf32>
    %cst = arith.constant 0.000000e+00 : f32
    %1 = vector.broadcast %cst : f32 to vector<16x1xf32>
    %2 = arith.subf %1, %0 : vector<16x1xf32>
    %3 = math.exp %2 : vector<16x1xf32>
    %cst_1 = arith.constant 1.000000e+00 : f32
    %4 = vector.broadcast %cst_1 : f32 to vector<16x1xf32>
    %5 = arith.addf %4, %3 : vector<16x1xf32>
    %6 = tpu.reciprocal %5 {approx = true} : vector<16x1xf32> -> vector<16x1xf32>
    %cst_2 = arith.constant 4.000000e-01 : f32
    %7 = vector.broadcast %cst_2 : f32 to vector<16x1xf32>
    %8 = arith.mulf %6, %7 : vector<16x1xf32>
    %cst_3 = arith.constant 2.000000e-01 : f32
    %9 = vector.broadcast %cst_3 : f32 to vector<16x1xf32>
    %10 = arith.addf %8, %9 : vector<16x1xf32>
    %c0_4 = arith.constant 0 : index
    %c0_5 = arith.constant 0 : index
    %11 = vector.load %arg4[%c0_4, %c0_5] : memref<216x128xf32, #tpu.memory_space<vmem>>, vector<1x96xf32>
    %c1 = arith.constant 1 : index
    %c0_6 = arith.constant 0 : index
    %12 = vector.load %arg4[%c1, %c0_6] : memref<216x128xf32, #tpu.memory_space<vmem>>, vector<1x96xf32>
    %13 = vector.broadcast %10 : vector<16x1xf32> to vector<16x96xf32>
    %14 = vector.broadcast %11 : vector<1x96xf32> to vector<16x96xf32>
    %15 = arith.mulf %13, %14 : vector<16x96xf32>
    %16 = vector.broadcast %12 : vector<1x96xf32> to vector<16x96xf32>
    %17 = arith.addf %15, %16 : vector<16x96xf32>
    %cst_7 = arith.constant 0.000000e+00 : f32
    %18 = vector.broadcast %cst_7 : f32 to vector<16x96xf32>
    %19 = arith.maximumf %17, %18 : vector<16x96xf32>
    %c8 = arith.constant 8 : index
    %c0_8 = arith.constant 0 : index
    %20 = vector.load %arg4[%c8, %c0_8] : memref<216x128xf32, #tpu.memory_space<vmem>>, vector<96x96xf32>
    %c104 = arith.constant 104 : index
    %c0_9 = arith.constant 0 : index
    %21 = vector.load %arg4[%c104, %c0_9] : memref<216x128xf32, #tpu.memory_space<vmem>>, vector<1x96xf32>
    %cst_10 = arith.constant dense<0.000000e+00> : vector<16x96xf32>
    %22 = tpu.matmul %19, %20, %cst_10 {dimension_numbers = #tpu.dot_dimension_numbers<[1], [0], [0], [1], [0, 0, 1, 1], [], []>} : vector<16x96xf32>, vector<96x96xf32>, vector<16x96xf32> -> vector<16x96xf32>
    %23 = vector.broadcast %21 : vector<1x96xf32> to vector<16x96xf32>
    %24 = arith.addf %22, %23 : vector<16x96xf32>
    %cst_11 = arith.constant 0.000000e+00 : f32
    %25 = vector.broadcast %cst_11 : f32 to vector<16x96xf32>
    %26 = arith.maximumf %24, %25 : vector<16x96xf32>
    %c112 = arith.constant 112 : index
    %c0_12 = arith.constant 0 : index
    %27 = vector.load %arg4[%c112, %c0_12] : memref<216x128xf32, #tpu.memory_space<vmem>>, vector<96x100xf32>
    %c208 = arith.constant 208 : index
    %c0_13 = arith.constant 0 : index
    %28 = vector.load %arg4[%c208, %c0_13] : memref<216x128xf32, #tpu.memory_space<vmem>>, vector<1x100xf32>
    %cst_14 = arith.constant dense<0.000000e+00> : vector<16x100xf32>
    %29 = tpu.matmul %26, %27, %cst_14 {dimension_numbers = #tpu.dot_dimension_numbers<[1], [0], [0], [1], [0, 0, 1, 1], [], []>} : vector<16x96xf32>, vector<96x100xf32>, vector<16x100xf32> -> vector<16x100xf32>
    %30 = vector.broadcast %28 : vector<1x100xf32> to vector<16x100xf32>
    %31 = arith.addf %29, %30 : vector<16x100xf32>
    %32 = vector.extract_strided_slice %31 {offsets = [0, 0], sizes = [16, 96], strides = [1, 1]} : vector<16x100xf32> to vector<16x96xf32>
    %33 = vector.extract_strided_slice %31 {offsets = [0, 96], sizes = [16, 2], strides = [1, 1]} : vector<16x100xf32> to vector<16x2xf32>
    %34 = vector.extract_strided_slice %31 {offsets = [0, 98], sizes = [16, 2], strides = [1, 1]} : vector<16x100xf32> to vector<16x2xf32>
    %c0_15 = arith.constant 0 : index
    %c0_16 = arith.constant 0 : index
    %35 = vector.load %arg2[%c0_15, %c0_16] : memref<16x48xf32, #tpu.memory_space<vmem>>, vector<16x48xf32>
    %c0_17 = arith.constant 0 : index
    %c0_18 = arith.constant 0 : index
    %36 = vector.load %arg3[%c0_17, %c0_18] : memref<16x48xf32, #tpu.memory_space<vmem>>, vector<16x48xf32>
    %37 = vector.extract_strided_slice %32 {offsets = [0, 0], sizes = [16, 48], strides = [1, 1]} : vector<16x96xf32> to vector<16x48xf32>
    %38 = arith.mulf %37, %35 : vector<16x48xf32>
    %cst_19 = arith.constant dense<0.000000e+00> : vector<16xf32>
    %39 = vector.multi_reduction <add>, %38, %cst_19 [1] : vector<16x48xf32> to vector<16xf32>
    %40 = vector.shape_cast %39 : vector<16xf32> to vector<16x1xf32>
    %41 = arith.mulf %37, %36 : vector<16x48xf32>
    %cst_20 = arith.constant dense<0.000000e+00> : vector<16xf32>
    %42 = vector.multi_reduction <add>, %41, %cst_20 [1] : vector<16x48xf32> to vector<16xf32>
    %43 = vector.shape_cast %42 : vector<16xf32> to vector<16x1xf32>
    %44 = vector.extract_strided_slice %32 {offsets = [0, 48], sizes = [16, 48], strides = [1, 1]} : vector<16x96xf32> to vector<16x48xf32>
    %45 = arith.mulf %44, %35 : vector<16x48xf32>
    %cst_21 = arith.constant dense<0.000000e+00> : vector<16xf32>
    %46 = vector.multi_reduction <add>, %45, %cst_21 [1] : vector<16x48xf32> to vector<16xf32>
    %47 = vector.shape_cast %46 : vector<16xf32> to vector<16x1xf32>
    %48 = arith.mulf %44, %36 : vector<16x48xf32>
    %cst_22 = arith.constant dense<0.000000e+00> : vector<16xf32>
    %49 = vector.multi_reduction <add>, %48, %cst_22 [1] : vector<16x48xf32> to vector<16xf32>
    %50 = vector.shape_cast %49 : vector<16xf32> to vector<16x1xf32>
    %51 = tpu.concatenate %40, %47 in 1 : vector<16x1xf32>, vector<16x1xf32> -> vector<16x2xf32>
    %52 = tpu.concatenate %43, %50 in 1 : vector<16x1xf32>, vector<16x1xf32> -> vector<16x2xf32>
    %cst_23 = arith.constant 1.460000e+00 : f32
    %53 = vector.broadcast %cst_23 : f32 to vector<16x2xf32>
    %54 = arith.mulf %34, %53 : vector<16x2xf32>
    %cst_24 = arith.constant 1.460000e+00 : f32
    %55 = vector.broadcast %cst_24 : f32 to vector<16x2xf32>
    %56 = arith.addf %34, %55 : vector<16x2xf32>
    %57 = tpu.reciprocal %56 {approx = true} : vector<16x2xf32> -> vector<16x2xf32>
    %58 = arith.mulf %54, %57 : vector<16x2xf32>
    %cst_25 = arith.constant 2.000000e-01 : f32
    %59 = vector.broadcast %cst_25 : f32 to vector<16x2xf32>
    %60 = arith.mulf %59, %58 : vector<16x2xf32>
    %61 = arith.mulf %60, %51 : vector<16x2xf32>
    %cst_26 = arith.constant 2.000000e-01 : f32
    %62 = vector.broadcast %cst_26 : f32 to vector<16x2xf32>
    %63 = arith.mulf %62, %58 : vector<16x2xf32>
    %64 = arith.mulf %63, %52 : vector<16x2xf32>
    %65 = tpu.concatenate %33, %61, %64 in 1 : vector<16x2xf32>, vector<16x2xf32>, vector<16x2xf32> -> vector<16x6xf32>
    %c0_27 = arith.constant 0 : index
    %c0_28 = arith.constant 0 : index
    %66 = vector.load %arg9[%c0_27, %c0_28] : memref<16x6xf32, #tpu.memory_space<vmem>>, vector<16x6xf32>
    tpu.vector_store %arg9[%c0_27, %c0_28], %65 {strides = array<i32>} : memref<16x6xf32, #tpu.memory_space<vmem>>, vector<16x6xf32>,
    %c0_29 = arith.constant 0 : index
    %c0_30 = arith.constant 0 : index
    %67 = vector.load %arg10[%c0_29, %c0_30] : memref<16x96xf32, #tpu.memory_space<vmem>>, vector<16x96xf32>
    tpu.vector_store %arg10[%c0_29, %c0_30], %32 {strides = array<i32>} : memref<16x96xf32, #tpu.memory_space<vmem>>, vector<16x96xf32>,
    %c0_31 = arith.constant 0 : index
    %c0_32 = arith.constant 0 : index
    %68 = vector.load %arg6[%c0_31, %c0_32] : memref<192x16xf32, #tpu.memory_space<vmem>>, vector<192x16xf32>
    %cst_33 = arith.constant dense<0.000000e+00> : vector<192x1xf32>
    %69 = tpu.matmul %68, %10, %cst_33 {dimension_numbers = #tpu.dot_dimension_numbers<[1], [0], [0], [1], [0, 0, 1, 1], [], []>} : vector<192x16xf32>, vector<16x1xf32>, vector<192x1xf32> -> vector<192x1xf32>
    %70 = vector.extract_strided_slice %69 {offsets = [0, 0], sizes = [96, 1], strides = [1, 1]} : vector<192x1xf32> to vector<96x1xf32>
    %71 = vector.extract_strided_slice %69 {offsets = [96, 0], sizes = [96, 1], strides = [1, 1]} : vector<192x1xf32> to vector<96x1xf32>
    %c0_34 = arith.constant 0 : index
    %c0_35 = arith.constant 0 : index
    %72 = vector.load %arg5[%c0_34, %c0_35] : memref<248x128xf32, #tpu.memory_space<vmem>>, vector<1x64xf32>
    %c1_36 = arith.constant 1 : index
    %c0_37 = arith.constant 0 : index
    %73 = vector.load %arg5[%c1_36, %c0_37] : memref<248x128xf32, #tpu.memory_space<vmem>>, vector<1x64xf32>
    %c8_38 = arith.constant 8 : index
    %c0_39 = arith.constant 0 : index
    %74 = vector.load %arg5[%c8_38, %c0_39] : memref<248x128xf32, #tpu.memory_space<vmem>>, vector<96x64xf32>
    %75 = vector.broadcast %70 : vector<96x1xf32> to vector<96x64xf32>
    %76 = vector.broadcast %72 : vector<1x64xf32> to vector<96x64xf32>
    %77 = arith.mulf %75, %76 : vector<96x64xf32>
    %78 = vector.broadcast %71 : vector<96x1xf32> to vector<96x64xf32>
    %79 = vector.broadcast %73 : vector<1x64xf32> to vector<96x64xf32>
    %80 = arith.mulf %78, %79 : vector<96x64xf32>
    %81 = arith.addf %77, %80 : vector<96x64xf32>
    %82 = arith.addf %81, %74 : vector<96x64xf32>
    %cst_40 = arith.constant 0.000000e+00 : f32
    %83 = vector.broadcast %cst_40 : f32 to vector<96x64xf32>
    %84 = arith.maximumf %82, %83 : vector<96x64xf32>
    %c104_41 = arith.constant 104 : index
    %c0_42 = arith.constant 0 : index
    %85 = vector.load %arg5[%c104_41, %c0_42] : memref<248x128xf32, #tpu.memory_space<vmem>>, vector<64x64xf32>
    %c168 = arith.constant 168 : index
    %c0_43 = arith.constant 0 : index
    %86 = vector.load %arg5[%c168, %c0_43] : memref<248x128xf32, #tpu.memory_space<vmem>>, vector<1x64xf32>
    %cst_44 = arith.constant dense<0.000000e+00> : vector<96x64xf32>
    %87 = tpu.matmul %84, %85, %cst_44 {dimension_numbers = #tpu.dot_dimension_numbers<[1], [0], [0], [1], [0, 0, 1, 1], [], []>} : vector<96x64xf32>, vector<64x64xf32>, vector<96x64xf32> -> vector<96x64xf32>
    %88 = vector.broadcast %86 : vector<1x64xf32> to vector<96x64xf32>
    %89 = arith.addf %87, %88 : vector<96x64xf32>
    %cst_45 = arith.constant 0.000000e+00 : f32
    %90 = vector.broadcast %cst_45 : f32 to vector<96x64xf32>
    %91 = arith.maximumf %89, %90 : vector<96x64xf32>
    %c176 = arith.constant 176 : index
    %c0_46 = arith.constant 0 : index
    %92 = vector.load %arg5[%c176, %c0_46] : memref<248x128xf32, #tpu.memory_space<vmem>>, vector<64x8xf32>
    %c240 = arith.constant 240 : index
    %c0_47 = arith.constant 0 : index
    %93 = vector.load %arg5[%c240, %c0_47] : memref<248x128xf32, #tpu.memory_space<vmem>>, vector<1x8xf32>
    %cst_48 = arith.constant dense<0.000000e+00> : vector<96x8xf32>
    %94 = tpu.matmul %91, %92, %cst_48 {dimension_numbers = #tpu.dot_dimension_numbers<[1], [0], [0], [1], [0, 0, 1, 1], [], []>} : vector<96x64xf32>, vector<64x8xf32>, vector<96x8xf32> -> vector<96x8xf32>
    %95 = vector.broadcast %93 : vector<1x8xf32> to vector<96x8xf32>
    %96 = arith.addf %94, %95 : vector<96x8xf32>
    %97 = vector.extract_strided_slice %96 {offsets = [0, 0], sizes = [96, 4], strides = [1, 1]} : vector<96x8xf32> to vector<96x4xf32>
    %98 = vector.extract_strided_slice %96 {offsets = [0, 4], sizes = [96, 4], strides = [1, 1]} : vector<96x8xf32> to vector<96x4xf32>
    %c0_49 = arith.constant 0 : index
    %c0_50 = arith.constant 0 : index
    %99 = vector.load %arg8[%c0_49, %c0_50] : memref<384x32xf32, #tpu.memory_space<vmem>>, vector<384x32xf32>
    %100 = vector.extract_strided_slice %99 {offsets = [0, 0], sizes = [96, 32], strides = [1, 1]} : vector<384x32xf32> to vector<96x32xf32>
    %101 = vector.extract_strided_slice %97 {offsets = [0, 0], sizes = [96, 1], strides = [1, 1]} : vector<96x4xf32> to vector<96x1xf32>
    %102 = vector.broadcast %101 : vector<96x1xf32> to vector<96x32xf32>
    %103 = arith.mulf %102, %100 : vector<96x32xf32>
    %104 = vector.extract_strided_slice %98 {offsets = [0, 0], sizes = [96, 1], strides = [1, 1]} : vector<96x4xf32> to vector<96x1xf32>
    %105 = vector.broadcast %104 : vector<96x1xf32> to vector<96x32xf32>
    %106 = arith.mulf %105, %100 : vector<96x32xf32>
    %107 = tpu.concatenate %103, %106 in 1 : vector<96x32xf32>, vector<96x32xf32> -> vector<96x64xf32>
    %108 = vector.extract_strided_slice %99 {offsets = [96, 0], sizes = [96, 32], strides = [1, 1]} : vector<384x32xf32> to vector<96x32xf32>
    %109 = vector.extract_strided_slice %97 {offsets = [0, 1], sizes = [96, 1], strides = [1, 1]} : vector<96x4xf32> to vector<96x1xf32>
    %110 = vector.broadcast %109 : vector<96x1xf32> to vector<96x32xf32>
    %111 = arith.mulf %110, %108 : vector<96x32xf32>
    %112 = vector.extract_strided_slice %98 {offsets = [0, 1], sizes = [96, 1], strides = [1, 1]} : vector<96x4xf32> to vector<96x1xf32>
    %113 = vector.broadcast %112 : vector<96x1xf32> to vector<96x32xf32>
    %114 = arith.mulf %113, %108 : vector<96x32xf32>
    %115 = tpu.concatenate %111, %114 in 1 : vector<96x32xf32>, vector<96x32xf32> -> vector<96x64xf32>
    %116 = vector.extract_strided_slice %99 {offsets = [192, 0], sizes = [96, 32], strides = [1, 1]} : vector<384x32xf32> to vector<96x32xf32>
    %117 = vector.extract_strided_slice %97 {offsets = [0, 2], sizes = [96, 1], strides = [1, 1]} : vector<96x4xf32> to vector<96x1xf32>
    %118 = vector.broadcast %117 : vector<96x1xf32> to vector<96x32xf32>
    %119 = arith.mulf %118, %116 : vector<96x32xf32>
    %120 = vector.extract_strided_slice %98 {offsets = [0, 2], sizes = [96, 1], strides = [1, 1]} : vector<96x4xf32> to vector<96x1xf32>
    %121 = vector.broadcast %120 : vector<96x1xf32> to vector<96x32xf32>
    %122 = arith.mulf %121, %116 : vector<96x32xf32>
    %123 = tpu.concatenate %119, %122 in 1 : vector<96x32xf32>, vector<96x32xf32> -> vector<96x64xf32>
    %124 = vector.extract_strided_slice %99 {offsets = [288, 0], sizes = [96, 32], strides = [1, 1]} : vector<384x32xf32> to vector<96x32xf32>
    %125 = vector.extract_strided_slice %97 {offsets = [0, 3], sizes = [96, 1], strides = [1, 1]} : vector<96x4xf32> to vector<96x1xf32>
    %126 = vector.broadcast %125 : vector<96x1xf32> to vector<96x32xf32>
    %127 = arith.mulf %126, %124 : vector<96x32xf32>
    %128 = vector.extract_strided_slice %98 {offsets = [0, 3], sizes = [96, 1], strides = [1, 1]} : vector<96x4xf32> to vector<96x1xf32>
    %129 = vector.broadcast %128 : vector<96x1xf32> to vector<96x32xf32>
    %130 = arith.mulf %129, %124 : vector<96x32xf32>
    %131 = tpu.concatenate %127, %130 in 1 : vector<96x32xf32>, vector<96x32xf32> -> vector<96x64xf32>
    %132 = tpu.concatenate %107, %115, %123, %131 in 0 : vector<96x64xf32>, vector<96x64xf32>, vector<96x64xf32>, vector<96x64xf32> -> vector<384x64xf32>
    %c0_51 = arith.constant 0 : index
    %c0_52 = arith.constant 0 : index
    %133 = vector.load %arg7[%c0_51, %c0_52] : memref<32x384xf32, #tpu.memory_space<vmem>>, vector<32x384xf32>
    %cst_53 = arith.constant dense<0.000000e+00> : vector<32x64xf32>
    %134 = tpu.matmul %133, %132, %cst_53 {dimension_numbers = #tpu.dot_dimension_numbers<[1], [0], [0], [1], [0, 0, 1, 1], [], []>} : vector<32x384xf32>, vector<384x64xf32>, vector<32x64xf32> -> vector<32x64xf32>
    %c0_54 = arith.constant 0 : index
    %c0_55 = arith.constant 0 : index
    %135 = vector.load %arg11[%c0_54, %c0_55] : memref<32x64xf32, #tpu.memory_space<vmem>>, vector<32x64xf32>
    tpu.vector_store %arg11[%c0_54, %c0_55], %134 {strides = array<i32>} : memref<32x64xf32, #tpu.memory_space<vmem>>, vector<32x64xf32>,
    return
  }
  func.func @transform_0(%arg0: i32) -> (i32, i32) {
    %c0_i32 = arith.constant 0 : i32
    %c0_i32_0 = arith.constant 0 : i32
    %c0_i32_1 = arith.constant 0 : i32
    return %c0_i32, %c0_i32_0 : i32, i32
  }
  func.func @transform_1(%arg0: i32) -> (i32, i32) {
    %c0_i32 = arith.constant 0 : i32
    %c0_i32_0 = arith.constant 0 : i32
    %c0_i32_1 = arith.constant 0 : i32
    return %c0_i32, %c0_i32_0 : i32, i32
  }
  func.func @transform_2(%arg0: i32) -> (i32, i32) {
    %c0_i32 = arith.constant 0 : i32
    %c0_i32_0 = arith.constant 0 : i32
    %c0_i32_1 = arith.constant 0 : i32
    return %c0_i32, %c0_i32_0 : i32, i32
  }
  func.func @transform_3(%arg0: i32) -> (i32, i32) {
    %c0_i32 = arith.constant 0 : i32
    %c0_i32_0 = arith.constant 0 : i32
    %c0_i32_1 = arith.constant 0 : i32
    return %c0_i32, %c0_i32_0 : i32, i32
  }
  func.func @transform_4(%arg0: i32) -> (i32, i32) {
    %c0_i32 = arith.constant 0 : i32
    %c0_i32_0 = arith.constant 0 : i32
    %c0_i32_1 = arith.constant 0 : i32
    return %c0_i32, %c0_i32_0 : i32, i32
  }
  func.func @transform_5(%arg0: i32) -> (i32, i32) {
    %c0_i32 = arith.constant 0 : i32
    %c0_i32_0 = arith.constant 0 : i32
    %c0_i32_1 = arith.constant 0 : i32
    return %c0_i32, %c0_i32_0 : i32, i32
  }
  func.func @transform_6(%arg0: i32) -> (i32, i32) {
    %c0_i32 = arith.constant 0 : i32
    %c0_i32_0 = arith.constant 0 : i32
    %c0_i32_1 = arith.constant 0 : i32
    return %c0_i32, %c0_i32_0 : i32, i32
  }
  func.func @transform_7(%arg0: i32) -> (i32, i32) {
    %c0_i32 = arith.constant 0 : i32
    %c0_i32_0 = arith.constant 0 : i32
    %c0_i32_1 = arith.constant 0 : i32
    return %c0_i32, %c0_i32_0 : i32, i32
  }
  func.func @transform_8(%arg0: i32) -> (i32, i32) {
    %c0_i32 = arith.constant 0 : i32
    %c0_i32_0 = arith.constant 0 : i32
    %c0_i32_1 = arith.constant 0 : i32
    return %c0_i32, %c0_i32_0 : i32, i32
  }
  func.func @transform_9(%arg0: i32) -> (i32, i32) {
    %c0_i32 = arith.constant 0 : i32
    %c0_i32_0 = arith.constant 0 : i32
    %c0_i32_1 = arith.constant 0 : i32
    return %c0_i32, %c0_i32_0 : i32, i32
  }
  func.func @transform_10(%arg0: i32) -> (i32, i32) {
    %c0_i32 = arith.constant 0 : i32
    %c0_i32_0 = arith.constant 0 : i32
    %c0_i32_1 = arith.constant 0 : i32
    return %c0_i32, %c0_i32_0 : i32, i32
  }
}

module attributes {stable_mosaic.version = 11 : i64} {
  func.func @_post_coupling_kernel(%arg0: i32, %arg1: memref<1xi32, #tpu.memory_space<smem>>, %arg2: memref<16x96xf32, #tpu.memory_space<vmem>>, %arg3: memref<16x2xf32, #tpu.memory_space<vmem>>, %arg4: memref<32x32xf32, #tpu.memory_space<vmem>>, %arg5: memref<32x2xf32, #tpu.memory_space<vmem>>, %arg6: memref<32x32xf32, #tpu.memory_space<vmem>>, %arg7: memref<16x48x256xf32, #tpu.memory_space<vmem>>, %arg8: memref<1x128xf32, #tpu.memory_space<vmem>>, %arg9: memref<1x128xf32, #tpu.memory_space<vmem>>) attributes {dimension_semantics = [#tpu.dimension_semantics<arbitrary>], iteration_bounds = array<i64: 1>, scalar_prefetch = 1 : i64, scratch_operands = 0 : i64, tpu.core_type = #tpu.core_type<tc>, window_params = [{pipeline_mode = #tpu.pipeline_mode<synchronous>, transform_indices = @transform_0, window_bounds = array<i64: 16, 96>}, {pipeline_mode = #tpu.pipeline_mode<synchronous>, transform_indices = @transform_1, window_bounds = array<i64: 16, 2>}, {pipeline_mode = #tpu.pipeline_mode<synchronous>, transform_indices = @transform_2, window_bounds = array<i64: 32, 32>}, {pipeline_mode = #tpu.pipeline_mode<synchronous>, transform_indices = @transform_3, window_bounds = array<i64: 32, 2>}, {pipeline_mode = #tpu.pipeline_mode<synchronous>, transform_indices = @transform_4, window_bounds = array<i64: 32, 32>}, {pipeline_mode = #tpu.pipeline_mode<synchronous>, transform_indices = @transform_5, window_bounds = array<i64: 16, 48, 256>}, {pipeline_mode = #tpu.pipeline_mode<synchronous>, transform_indices = @transform_6, window_bounds = array<i64: 1, 128>}, {pipeline_mode = #tpu.pipeline_mode<synchronous>, transform_indices = @transform_7, window_bounds = array<i64: 1, 128>}]} {
    %c0 = arith.constant 0 : index
    %c0_0 = arith.constant 0 : index
    %0 = vector.load %arg4[%c0, %c0_0] : memref<32x32xf32, #tpu.memory_space<vmem>>, vector<32x32xf32>
    %c0_1 = arith.constant 0 : index
    %c0_2 = arith.constant 0 : index
    %1 = vector.load %arg5[%c0_1, %c0_2] : memref<32x2xf32, #tpu.memory_space<vmem>>, vector<32x2xf32>
    %c0_3 = arith.constant 0 : index
    %2 = memref.load %arg1[%c0_3] : memref<1xi32, #tpu.memory_space<smem>>
    %c0_i32 = arith.constant 0 : i32
    %3 = arith.subi %2, %c0_i32 : i32
    %4 = arith.addi %c0_i32, %3 : i32
    %c1_i32 = arith.constant 1 : i32
    %5 = scf.for %arg10 = %c0_i32 to %4 step %c1_i32 iter_args(%arg11 = %1) -> (vector<32x2xf32>)  : i32 {
      %cst_21 = arith.constant dense<0.000000e+00> : vector<32x2xf32>
      %55 = tpu.matmul %0, %arg11, %cst_21 {dimension_numbers = #tpu.dot_dimension_numbers<[1], [0], [0], [1], [0, 0, 1, 1], [], []>} : vector<32x32xf32>, vector<32x2xf32>, vector<32x2xf32> -> vector<32x2xf32>
      %56 = vector.extract_strided_slice %55 {offsets = [0, 1], sizes = [32, 1], strides = [1, 1]} : vector<32x2xf32> to vector<32x1xf32>
      %cst_22 = arith.constant 0.000000e+00 : f32
      %57 = vector.broadcast %cst_22 : f32 to vector<32x1xf32>
      %58 = arith.subf %57, %56 : vector<32x1xf32>
      %59 = vector.extract_strided_slice %55 {offsets = [0, 0], sizes = [32, 1], strides = [1, 1]} : vector<32x2xf32> to vector<32x1xf32>
      %60 = tpu.concatenate %58, %59 in 1 : vector<32x1xf32>, vector<32x1xf32> -> vector<32x2xf32>
      %cst_23 = arith.constant 1.000000e+00 : f32
      %61 = vector.broadcast %cst_23 : f32 to vector<32x2xf32>
      %62 = arith.mulf %60, %61 : vector<32x2xf32>
      %63 = arith.addf %arg11, %62 : vector<32x2xf32>
      %cst_24 = arith.constant dense<0.000000e+00> : vector<32x2xf32>
      %64 = tpu.matmul %0, %62, %cst_24 {dimension_numbers = #tpu.dot_dimension_numbers<[1], [0], [0], [1], [0, 0, 1, 1], [], []>} : vector<32x32xf32>, vector<32x2xf32>, vector<32x2xf32> -> vector<32x2xf32>
      %65 = vector.extract_strided_slice %64 {offsets = [0, 1], sizes = [32, 1], strides = [1, 1]} : vector<32x2xf32> to vector<32x1xf32>
      %cst_25 = arith.constant 0.000000e+00 : f32
      %66 = vector.broadcast %cst_25 : f32 to vector<32x1xf32>
      %67 = arith.subf %66, %65 : vector<32x1xf32>
      %68 = vector.extract_strided_slice %64 {offsets = [0, 0], sizes = [32, 1], strides = [1, 1]} : vector<32x2xf32> to vector<32x1xf32>
      %69 = tpu.concatenate %67, %68 in 1 : vector<32x1xf32>, vector<32x1xf32> -> vector<32x2xf32>
      %cst_26 = arith.constant 5.000000e-01 : f32
      %70 = vector.broadcast %cst_26 : f32 to vector<32x2xf32>
      %71 = arith.mulf %69, %70 : vector<32x2xf32>
      %72 = arith.addf %63, %71 : vector<32x2xf32>
      %cst_27 = arith.constant dense<0.000000e+00> : vector<32x2xf32>
      %73 = tpu.matmul %0, %71, %cst_27 {dimension_numbers = #tpu.dot_dimension_numbers<[1], [0], [0], [1], [0, 0, 1, 1], [], []>} : vector<32x32xf32>, vector<32x2xf32>, vector<32x2xf32> -> vector<32x2xf32>
      %74 = vector.extract_strided_slice %73 {offsets = [0, 1], sizes = [32, 1], strides = [1, 1]} : vector<32x2xf32> to vector<32x1xf32>
      %cst_28 = arith.constant 0.000000e+00 : f32
      %75 = vector.broadcast %cst_28 : f32 to vector<32x1xf32>
      %76 = arith.subf %75, %74 : vector<32x1xf32>
      %77 = vector.extract_strided_slice %73 {offsets = [0, 0], sizes = [32, 1], strides = [1, 1]} : vector<32x2xf32> to vector<32x1xf32>
      %78 = tpu.concatenate %76, %77 in 1 : vector<32x1xf32>, vector<32x1xf32> -> vector<32x2xf32>
      %cst_29 = arith.constant 0.333333343 : f32
      %79 = vector.broadcast %cst_29 : f32 to vector<32x2xf32>
      %80 = arith.mulf %78, %79 : vector<32x2xf32>
      %81 = arith.addf %72, %80 : vector<32x2xf32>
      %cst_30 = arith.constant dense<0.000000e+00> : vector<32x2xf32>
      %82 = tpu.matmul %0, %80, %cst_30 {dimension_numbers = #tpu.dot_dimension_numbers<[1], [0], [0], [1], [0, 0, 1, 1], [], []>} : vector<32x32xf32>, vector<32x2xf32>, vector<32x2xf32> -> vector<32x2xf32>
      %83 = vector.extract_strided_slice %82 {offsets = [0, 1], sizes = [32, 1], strides = [1, 1]} : vector<32x2xf32> to vector<32x1xf32>
      %cst_31 = arith.constant 0.000000e+00 : f32
      %84 = vector.broadcast %cst_31 : f32 to vector<32x1xf32>
      %85 = arith.subf %84, %83 : vector<32x1xf32>
      %86 = vector.extract_strided_slice %82 {offsets = [0, 0], sizes = [32, 1], strides = [1, 1]} : vector<32x2xf32> to vector<32x1xf32>
      %87 = tpu.concatenate %85, %86 in 1 : vector<32x1xf32>, vector<32x1xf32> -> vector<32x2xf32>
      %cst_32 = arith.constant 2.500000e-01 : f32
      %88 = vector.broadcast %cst_32 : f32 to vector<32x2xf32>
      %89 = arith.mulf %87, %88 : vector<32x2xf32>
      %90 = arith.addf %81, %89 : vector<32x2xf32>
      %cst_33 = arith.constant dense<0.000000e+00> : vector<32x2xf32>
      %91 = tpu.matmul %0, %89, %cst_33 {dimension_numbers = #tpu.dot_dimension_numbers<[1], [0], [0], [1], [0, 0, 1, 1], [], []>} : vector<32x32xf32>, vector<32x2xf32>, vector<32x2xf32> -> vector<32x2xf32>
      %92 = vector.extract_strided_slice %91 {offsets = [0, 1], sizes = [32, 1], strides = [1, 1]} : vector<32x2xf32> to vector<32x1xf32>
      %cst_34 = arith.constant 0.000000e+00 : f32
      %93 = vector.broadcast %cst_34 : f32 to vector<32x1xf32>
      %94 = arith.subf %93, %92 : vector<32x1xf32>
      %95 = vector.extract_strided_slice %91 {offsets = [0, 0], sizes = [32, 1], strides = [1, 1]} : vector<32x2xf32> to vector<32x1xf32>
      %96 = tpu.concatenate %94, %95 in 1 : vector<32x1xf32>, vector<32x1xf32> -> vector<32x2xf32>
      %cst_35 = arith.constant 2.000000e-01 : f32
      %97 = vector.broadcast %cst_35 : f32 to vector<32x2xf32>
      %98 = arith.mulf %96, %97 : vector<32x2xf32>
      %99 = arith.addf %90, %98 : vector<32x2xf32>
      %cst_36 = arith.constant dense<0.000000e+00> : vector<32x2xf32>
      %100 = tpu.matmul %0, %98, %cst_36 {dimension_numbers = #tpu.dot_dimension_numbers<[1], [0], [0], [1], [0, 0, 1, 1], [], []>} : vector<32x32xf32>, vector<32x2xf32>, vector<32x2xf32> -> vector<32x2xf32>
      %101 = vector.extract_strided_slice %100 {offsets = [0, 1], sizes = [32, 1], strides = [1, 1]} : vector<32x2xf32> to vector<32x1xf32>
      %cst_37 = arith.constant 0.000000e+00 : f32
      %102 = vector.broadcast %cst_37 : f32 to vector<32x1xf32>
      %103 = arith.subf %102, %101 : vector<32x1xf32>
      %104 = vector.extract_strided_slice %100 {offsets = [0, 0], sizes = [32, 1], strides = [1, 1]} : vector<32x2xf32> to vector<32x1xf32>
      %105 = tpu.concatenate %103, %104 in 1 : vector<32x1xf32>, vector<32x1xf32> -> vector<32x2xf32>
      %cst_38 = arith.constant 0.166666672 : f32
      %106 = vector.broadcast %cst_38 : f32 to vector<32x2xf32>
      %107 = arith.mulf %105, %106 : vector<32x2xf32>
      %108 = arith.addf %99, %107 : vector<32x2xf32>
      %cst_39 = arith.constant dense<0.000000e+00> : vector<32x2xf32>
      %109 = tpu.matmul %0, %107, %cst_39 {dimension_numbers = #tpu.dot_dimension_numbers<[1], [0], [0], [1], [0, 0, 1, 1], [], []>} : vector<32x32xf32>, vector<32x2xf32>, vector<32x2xf32> -> vector<32x2xf32>
      %110 = vector.extract_strided_slice %109 {offsets = [0, 1], sizes = [32, 1], strides = [1, 1]} : vector<32x2xf32> to vector<32x1xf32>
      %cst_40 = arith.constant 0.000000e+00 : f32
      %111 = vector.broadcast %cst_40 : f32 to vector<32x1xf32>
      %112 = arith.subf %111, %110 : vector<32x1xf32>
      %113 = vector.extract_strided_slice %109 {offsets = [0, 0], sizes = [32, 1], strides = [1, 1]} : vector<32x2xf32> to vector<32x1xf32>
      %114 = tpu.concatenate %112, %113 in 1 : vector<32x1xf32>, vector<32x1xf32> -> vector<32x2xf32>
      %cst_41 = arith.constant 0.142857149 : f32
      %115 = vector.broadcast %cst_41 : f32 to vector<32x2xf32>
      %116 = arith.mulf %114, %115 : vector<32x2xf32>
      %117 = arith.addf %108, %116 : vector<32x2xf32>
      %cst_42 = arith.constant dense<0.000000e+00> : vector<32x2xf32>
      %118 = tpu.matmul %0, %116, %cst_42 {dimension_numbers = #tpu.dot_dimension_numbers<[1], [0], [0], [1], [0, 0, 1, 1], [], []>} : vector<32x32xf32>, vector<32x2xf32>, vector<32x2xf32> -> vector<32x2xf32>
      %119 = vector.extract_strided_slice %118 {offsets = [0, 1], sizes = [32, 1], strides = [1, 1]} : vector<32x2xf32> to vector<32x1xf32>
      %cst_43 = arith.constant 0.000000e+00 : f32
      %120 = vector.broadcast %cst_43 : f32 to vector<32x1xf32>
      %121 = arith.subf %120, %119 : vector<32x1xf32>
      %122 = vector.extract_strided_slice %118 {offsets = [0, 0], sizes = [32, 1], strides = [1, 1]} : vector<32x2xf32> to vector<32x1xf32>
      %123 = tpu.concatenate %121, %122 in 1 : vector<32x1xf32>, vector<32x1xf32> -> vector<32x2xf32>
      %cst_44 = arith.constant 1.250000e-01 : f32
      %124 = vector.broadcast %cst_44 : f32 to vector<32x2xf32>
      %125 = arith.mulf %123, %124 : vector<32x2xf32>
      %126 = arith.addf %117, %125 : vector<32x2xf32>
      %cst_45 = arith.constant dense<0.000000e+00> : vector<32x2xf32>
      %127 = tpu.matmul %0, %125, %cst_45 {dimension_numbers = #tpu.dot_dimension_numbers<[1], [0], [0], [1], [0, 0, 1, 1], [], []>} : vector<32x32xf32>, vector<32x2xf32>, vector<32x2xf32> -> vector<32x2xf32>
      %128 = vector.extract_strided_slice %127 {offsets = [0, 1], sizes = [32, 1], strides = [1, 1]} : vector<32x2xf32> to vector<32x1xf32>
      %cst_46 = arith.constant 0.000000e+00 : f32
      %129 = vector.broadcast %cst_46 : f32 to vector<32x1xf32>
      %130 = arith.subf %129, %128 : vector<32x1xf32>
      %131 = vector.extract_strided_slice %127 {offsets = [0, 0], sizes = [32, 1], strides = [1, 1]} : vector<32x2xf32> to vector<32x1xf32>
      %132 = tpu.concatenate %130, %131 in 1 : vector<32x1xf32>, vector<32x1xf32> -> vector<32x2xf32>
      %cst_47 = arith.constant 0.111111112 : f32
      %133 = vector.broadcast %cst_47 : f32 to vector<32x2xf32>
      %134 = arith.mulf %132, %133 : vector<32x2xf32>
      %135 = arith.addf %126, %134 : vector<32x2xf32>
      %cst_48 = arith.constant dense<0.000000e+00> : vector<32x2xf32>
      %136 = tpu.matmul %0, %134, %cst_48 {dimension_numbers = #tpu.dot_dimension_numbers<[1], [0], [0], [1], [0, 0, 1, 1], [], []>} : vector<32x32xf32>, vector<32x2xf32>, vector<32x2xf32> -> vector<32x2xf32>
      %137 = vector.extract_strided_slice %136 {offsets = [0, 1], sizes = [32, 1], strides = [1, 1]} : vector<32x2xf32> to vector<32x1xf32>
      %cst_49 = arith.constant 0.000000e+00 : f32
      %138 = vector.broadcast %cst_49 : f32 to vector<32x1xf32>
      %139 = arith.subf %138, %137 : vector<32x1xf32>
      %140 = vector.extract_strided_slice %136 {offsets = [0, 0], sizes = [32, 1], strides = [1, 1]} : vector<32x2xf32> to vector<32x1xf32>
      %141 = tpu.concatenate %139, %140 in 1 : vector<32x1xf32>, vector<32x1xf32> -> vector<32x2xf32>
      %cst_50 = arith.constant 1.000000e-01 : f32
      %142 = vector.broadcast %cst_50 : f32 to vector<32x2xf32>
      %143 = arith.mulf %141, %142 : vector<32x2xf32>
      %144 = arith.addf %135, %143 : vector<32x2xf32>
      %cst_51 = arith.constant dense<0.000000e+00> : vector<32x2xf32>
      %145 = tpu.matmul %0, %143, %cst_51 {dimension_numbers = #tpu.dot_dimension_numbers<[1], [0], [0], [1], [0, 0, 1, 1], [], []>} : vector<32x32xf32>, vector<32x2xf32>, vector<32x2xf32> -> vector<32x2xf32>
      %146 = vector.extract_strided_slice %145 {offsets = [0, 1], sizes = [32, 1], strides = [1, 1]} : vector<32x2xf32> to vector<32x1xf32>
      %cst_52 = arith.constant 0.000000e+00 : f32
      %147 = vector.broadcast %cst_52 : f32 to vector<32x1xf32>
      %148 = arith.subf %147, %146 : vector<32x1xf32>
      %149 = vector.extract_strided_slice %145 {offsets = [0, 0], sizes = [32, 1], strides = [1, 1]} : vector<32x2xf32> to vector<32x1xf32>
      %150 = tpu.concatenate %148, %149 in 1 : vector<32x1xf32>, vector<32x1xf32> -> vector<32x2xf32>
      %cst_53 = arith.constant 0.0909090936 : f32
      %151 = vector.broadcast %cst_53 : f32 to vector<32x2xf32>
      %152 = arith.mulf %150, %151 : vector<32x2xf32>
      %153 = arith.addf %144, %152 : vector<32x2xf32>
      %cst_54 = arith.constant dense<0.000000e+00> : vector<32x2xf32>
      %154 = tpu.matmul %0, %152, %cst_54 {dimension_numbers = #tpu.dot_dimension_numbers<[1], [0], [0], [1], [0, 0, 1, 1], [], []>} : vector<32x32xf32>, vector<32x2xf32>, vector<32x2xf32> -> vector<32x2xf32>
      %155 = vector.extract_strided_slice %154 {offsets = [0, 1], sizes = [32, 1], strides = [1, 1]} : vector<32x2xf32> to vector<32x1xf32>
      %cst_55 = arith.constant 0.000000e+00 : f32
      %156 = vector.broadcast %cst_55 : f32 to vector<32x1xf32>
      %157 = arith.subf %156, %155 : vector<32x1xf32>
      %158 = vector.extract_strided_slice %154 {offsets = [0, 0], sizes = [32, 1], strides = [1, 1]} : vector<32x2xf32> to vector<32x1xf32>
      %159 = tpu.concatenate %157, %158 in 1 : vector<32x1xf32>, vector<32x1xf32> -> vector<32x2xf32>
      %cst_56 = arith.constant 0.0833333358 : f32
      %160 = vector.broadcast %cst_56 : f32 to vector<32x2xf32>
      %161 = arith.mulf %159, %160 : vector<32x2xf32>
      %162 = arith.addf %153, %161 : vector<32x2xf32>
      scf.yield %162 : vector<32x2xf32>
    }
    %c0_4 = arith.constant 0 : index
    %c0_5 = arith.constant 0 : index
    %6 = vector.load %arg6[%c0_4, %c0_5] : memref<32x32xf32, #tpu.memory_space<vmem>>, vector<32x32xf32>
    %cst = arith.constant dense<0.000000e+00> : vector<32x2xf32>
    %7 = tpu.matmul %6, %5, %cst {dimension_numbers = #tpu.dot_dimension_numbers<[1], [0], [0], [1], [0, 0, 1, 1], [], []>} : vector<32x32xf32>, vector<32x2xf32>, vector<32x2xf32> -> vector<32x2xf32>
    %8 = vector.extract_strided_slice %7 {offsets = [0, 0], sizes = [16, 1], strides = [1, 1]} : vector<32x2xf32> to vector<16x1xf32>
    %9 = vector.extract_strided_slice %7 {offsets = [16, 0], sizes = [16, 1], strides = [1, 1]} : vector<32x2xf32> to vector<16x1xf32>
    %10 = tpu.concatenate %8, %9 in 1 : vector<16x1xf32>, vector<16x1xf32> -> vector<16x2xf32>
    %11 = vector.extract_strided_slice %7 {offsets = [0, 1], sizes = [16, 1], strides = [1, 1]} : vector<32x2xf32> to vector<16x1xf32>
    %12 = vector.extract_strided_slice %7 {offsets = [16, 1], sizes = [16, 1], strides = [1, 1]} : vector<32x2xf32> to vector<16x1xf32>
    %13 = tpu.concatenate %11, %12 in 1 : vector<16x1xf32>, vector<16x1xf32> -> vector<16x2xf32>
    %c0_6 = arith.constant 0 : index
    %c0_7 = arith.constant 0 : index
    %14 = vector.load %arg2[%c0_6, %c0_7] : memref<16x96xf32, #tpu.memory_space<vmem>>, vector<16x96xf32>
    %c0_8 = arith.constant 0 : index
    %c0_9 = arith.constant 0 : index
    %15 = vector.load %arg3[%c0_8, %c0_9] : memref<16x2xf32, #tpu.memory_space<vmem>>, vector<16x2xf32>
    %cst_10 = arith.constant 1.000000e+00 : f32
    %16 = vector.broadcast %cst_10 : f32 to vector<16x2xf32>
    %17 = arith.mulf %15, %16 : vector<16x2xf32>
    %cst_11 = arith.constant 1.000000e+00 : f32
    %18 = vector.broadcast %cst_11 : f32 to vector<16x2xf32>
    %19 = arith.addf %15, %18 : vector<16x2xf32>
    %20 = tpu.reciprocal %19 {approx = true} : vector<16x2xf32> -> vector<16x2xf32>
    %21 = arith.mulf %17, %20 : vector<16x2xf32>
    %22 = arith.mulf %21, %10 : vector<16x2xf32>
    %23 = arith.mulf %21, %13 : vector<16x2xf32>
    %24 = vector.extract_strided_slice %22 {offsets = [0, 0], sizes = [16, 1], strides = [1, 1]} : vector<16x2xf32> to vector<16x1xf32>
    %25 = vector.extract_strided_slice %14 {offsets = [0, 0], sizes = [16, 48], strides = [1, 1]} : vector<16x96xf32> to vector<16x48xf32>
    %26 = vector.broadcast %24 : vector<16x1xf32> to vector<16x48xf32>
    %27 = arith.mulf %26, %25 : vector<16x48xf32>
    %28 = vector.extract_strided_slice %23 {offsets = [0, 0], sizes = [16, 1], strides = [1, 1]} : vector<16x2xf32> to vector<16x1xf32>
    %29 = vector.extract_strided_slice %14 {offsets = [0, 0], sizes = [16, 48], strides = [1, 1]} : vector<16x96xf32> to vector<16x48xf32>
    %30 = vector.broadcast %28 : vector<16x1xf32> to vector<16x48xf32>
    %31 = arith.mulf %30, %29 : vector<16x48xf32>
    %32 = vector.extract_strided_slice %14 {offsets = [0, 48], sizes = [16, 48], strides = [1, 1]} : vector<16x96xf32> to vector<16x48xf32>
    %33 = vector.extract_strided_slice %22 {offsets = [0, 1], sizes = [16, 1], strides = [1, 1]} : vector<16x2xf32> to vector<16x1xf32>
    %34 = vector.broadcast %33 : vector<16x1xf32> to vector<16x48xf32>
    %35 = arith.mulf %34, %32 : vector<16x48xf32>
    %36 = arith.addf %27, %35 : vector<16x48xf32>
    %37 = vector.extract_strided_slice %23 {offsets = [0, 1], sizes = [16, 1], strides = [1, 1]} : vector<16x2xf32> to vector<16x1xf32>
    %38 = vector.broadcast %37 : vector<16x1xf32> to vector<16x48xf32>
    %39 = arith.mulf %38, %32 : vector<16x48xf32>
    %40 = arith.addf %31, %39 : vector<16x48xf32>
    %41 = vector.shape_cast %36 : vector<16x48xf32> to vector<16x1x48xf32>
    %42 = vector.shape_cast %40 : vector<16x48xf32> to vector<16x1x48xf32>
    %43 = tpu.concatenate %41, %42 in 1 : vector<16x1x48xf32>, vector<16x1x48xf32> -> vector<16x2x48xf32>
    %c0_12 = arith.constant 0 : index
    %c0_13 = arith.constant 0 : index
    %c0_14 = arith.constant 0 : index
    %44 = vector.load %arg7[%c0_12, %c0_13, %c0_14] : memref<16x48x256xf32, #tpu.memory_space<vmem>>, vector<16x48x256xf32>
    "tpu.trace_start"() <{level = 10 : i32, message = "nbj,njt->nbt"}> : () -> ()
    %cst_15 = arith.constant dense<0.000000e+00> : vector<16x2x256xf32>
    %45 = tpu.matmul %43, %44, %cst_15 {dimension_numbers = #tpu.dot_dimension_numbers<[2], [1], [1], [2], [0, 0, 0, 1, 1, 2], [0], [0]>} : vector<16x2x48xf32>, vector<16x48x256xf32>, vector<16x2x256xf32> -> vector<16x2x256xf32>
    "tpu.trace_stop"() : () -> ()
    %cst_16 = arith.constant dense<0.000000e+00> : vector<2x256xf32>
    %46 = vector.multi_reduction <add>, %45, %cst_16 [0] : vector<16x2x256xf32> to vector<2x256xf32>
    %47 = vector.extract_strided_slice %46 {offsets = [0, 0], sizes = [1, 128], strides = [1, 1]} : vector<2x256xf32> to vector<1x128xf32>
    %48 = vector.extract_strided_slice %46 {offsets = [1, 128], sizes = [1, 128], strides = [1, 1]} : vector<2x256xf32> to vector<1x128xf32>
    %49 = arith.subf %47, %48 : vector<1x128xf32>
    %c0_17 = arith.constant 0 : index
    %c0_18 = arith.constant 0 : index
    %50 = vector.load %arg8[%c0_17, %c0_18] : memref<1x128xf32, #tpu.memory_space<vmem>>, vector<1x128xf32>
    tpu.vector_store %arg8[%c0_17, %c0_18], %49 {strides = array<i32>} : memref<1x128xf32, #tpu.memory_space<vmem>>, vector<1x128xf32>,
    %51 = vector.extract_strided_slice %46 {offsets = [0, 128], sizes = [1, 128], strides = [1, 1]} : vector<2x256xf32> to vector<1x128xf32>
    %52 = vector.extract_strided_slice %46 {offsets = [1, 0], sizes = [1, 128], strides = [1, 1]} : vector<2x256xf32> to vector<1x128xf32>
    %53 = arith.addf %51, %52 : vector<1x128xf32>
    %c0_19 = arith.constant 0 : index
    %c0_20 = arith.constant 0 : index
    %54 = vector.load %arg9[%c0_19, %c0_20] : memref<1x128xf32, #tpu.memory_space<vmem>>, vector<1x128xf32>
    tpu.vector_store %arg9[%c0_19, %c0_20], %53 {strides = array<i32>} : memref<1x128xf32, #tpu.memory_space<vmem>>, vector<1x128xf32>,
    return
  }
  func.func @transform_0(%arg0: i32, %arg1: memref<1xi32, #tpu.memory_space<smem>>) -> (i32, i32) {
    %c0_i32 = arith.constant 0 : i32
    %c0_i32_0 = arith.constant 0 : i32
    %c0_i32_1 = arith.constant 0 : i32
    return %c0_i32, %c0_i32_0 : i32, i32
  }
  func.func @transform_1(%arg0: i32, %arg1: memref<1xi32, #tpu.memory_space<smem>>) -> (i32, i32) {
    %c0_i32 = arith.constant 0 : i32
    %c0_i32_0 = arith.constant 0 : i32
    %c0_i32_1 = arith.constant 0 : i32
    return %c0_i32, %c0_i32_0 : i32, i32
  }
  func.func @transform_2(%arg0: i32, %arg1: memref<1xi32, #tpu.memory_space<smem>>) -> (i32, i32) {
    %c0_i32 = arith.constant 0 : i32
    %c0_i32_0 = arith.constant 0 : i32
    %c0_i32_1 = arith.constant 0 : i32
    return %c0_i32, %c0_i32_0 : i32, i32
  }
  func.func @transform_3(%arg0: i32, %arg1: memref<1xi32, #tpu.memory_space<smem>>) -> (i32, i32) {
    %c0_i32 = arith.constant 0 : i32
    %c0_i32_0 = arith.constant 0 : i32
    %c0_i32_1 = arith.constant 0 : i32
    return %c0_i32, %c0_i32_0 : i32, i32
  }
  func.func @transform_4(%arg0: i32, %arg1: memref<1xi32, #tpu.memory_space<smem>>) -> (i32, i32) {
    %c0_i32 = arith.constant 0 : i32
    %c0_i32_0 = arith.constant 0 : i32
    %c0_i32_1 = arith.constant 0 : i32
    return %c0_i32, %c0_i32_0 : i32, i32
  }
  func.func @transform_5(%arg0: i32, %arg1: memref<1xi32, #tpu.memory_space<smem>>) -> (i32, i32, i32) {
    %c0_i32 = arith.constant 0 : i32
    %c0_i32_0 = arith.constant 0 : i32
    %c0_i32_1 = arith.constant 0 : i32
    %c0_i32_2 = arith.constant 0 : i32
    return %c0_i32, %c0_i32_0, %c0_i32_1 : i32, i32, i32
  }
  func.func @transform_6(%arg0: i32, %arg1: memref<1xi32, #tpu.memory_space<smem>>) -> (i32, i32) {
    %c0_i32 = arith.constant 0 : i32
    %c0_i32_0 = arith.constant 0 : i32
    %c0_i32_1 = arith.constant 0 : i32
    return %c0_i32, %c0_i32_0 : i32, i32
  }
  func.func @transform_7(%arg0: i32, %arg1: memref<1xi32, #tpu.memory_space<smem>>) -> (i32, i32) {
    %c0_i32 = arith.constant 0 : i32
    %c0_i32_0 = arith.constant 0 : i32
    %c0_i32_1 = arith.constant 0 : i32
    return %c0_i32, %c0_i32_0 : i32, i32
  }
}

</mosaic_0001>

<llo_original>
// kernel: custom-call
$region0: #{custom-call}
  %s0 = inlined_call_operand.hbm [shape: c64[128], index: 0, kind: input, shape index: {}]
  %s1 = inlined_call_operand.vmem [shape: f32[128], index: 1, kind: output, shape index: {}]
  $region1: #{custom-call} parent=0
    #allocation0 [shape = 's32[1]{0}', space=sflag, size = 0x4, scoped, tag = 'scoped memory for custom-call']
    %2 = vsyncpa [#allocation0], 0
    %s4 = sshll.u32 %s0, 4
    %s5 = int_to_ptr.hbm [resolvable:$true] %s4
    %s6 = sshll.u32 %s1, 4
    %s7 = int_to_ptr.vmem [resolvable:$true] %s6
    %9 = dma.hbm_to_vmem [thread:$0]  %s5, 16, %s7, [#allocation0]
    %11 = dma.done [#allocation0], 16
    %12 = vsyncpa [#allocation0], 1

// kernel: custom-call.1
$region0: #{custom-call.1}
  %s0 = inlined_call_operand.hbm [shape: c64[128], index: 0, kind: input, shape index: {}]
  %s1 = inlined_call_operand.vmem [shape: f32[128], index: 1, kind: output, shape index: {}]
  %s2 = scalar_lea.hbm %s0, 1
  $region1: #{custom-call.1} parent=0
    #allocation0 [shape = 's32[1]{0}', space=sflag, size = 0x4, scoped, tag = 'scoped memory for custom-call.1']
    %3 = vsyncpa [#allocation0], 0
    %s5 = sshll.u32 %s2, 4
    %s6 = int_to_ptr.hbm [resolvable:$true] %s5
    %s7 = sshll.u32 %s1, 4
    %s8 = int_to_ptr.vmem [resolvable:$true] %s7
    %10 = dma.hbm_to_vmem [thread:$0]  %s6, 16, %s8, [#allocation0]
    %12 = dma.done [#allocation0], 16
    %13 = vsyncpa [#allocation0], 1

// kernel: custom-call.9
$region0: #{custom-call.9}
  %s0 = inlined_call_operand.vmem [shape: f32[32,32], index: 0, kind: input, shape index: {}]
  %s1 = inlined_call_operand.vmem [shape: f32[32,32], index: 1, kind: output, shape index: {0}]
  %s2 = inlined_call_operand.hbm [shape: s32[32], index: 2, kind: output, shape index: {1}]
  %s3 = inlined_call_operand.vmem [shape: s32[32], index: 3, kind: output, shape index: {2}]
  %4 = xla_tuple %s1, %s2, %s3
  $region1: #{custom-call.9} parent=0
    #allocation0 [shape = 'u8[16384]{0}', space=vmem, size = 0x4000, scoped, tag = 'operand span for operand 0']
    #allocation1 [shape = 'u8[16384]{0}', space=vmem, size = 0x4000, scoped, tag = 'operand span for operand 1']
    #allocation2 [shape = 'u8[4096]{0}', space=vmem, size = 0x1000, scoped, tag = 'operand span for operand 2']
    #allocation3 [shape = 'u8[512]{0}', space=vmem, size = 0x400, scoped, tag = 'packed  for operand 2']
    #allocation4 [shape = 's32[1]{0}', space=sflag, size = 0x4, scoped, tag = 'scoped memory for custom-call.9']
    #allocation5 [shape = 'u8[4096]{0}', space=vmem, size = 0x1000, scoped, tag = 'operand span for operand 3']
    #allocation6 [shape = 'u8[512]{0}', space=vmem, size = 0x400, scoped, tag = 'packed  for operand 3']
    #allocation7 [shape = 's32[32,128]{1,0}', space=vmem, size = 0x4000, scoped, tag = 'scratch for permutations']
    %5 = vsyncpa [#allocation4], 0
    // Predicated region
    $region2: #{custom-call.9} parent=1 // pred_check
      _
    $region3: #{custom-call.9} parent=1 // pred_check_branch
      %7 = sbr.rel (0) target = $region5
    $region4: #{custom-call.9} parent=1 // pred_region
      %p9 = scmp.gt.s32.totalorder 4, 0
      // Predicated region
      $region6: #{custom-call.9} parent=4 // pred_check
        %p10 = pneg %p9
      $region7: #{custom-call.9} parent=4 // pred_check_branch
        %12 = sbr.rel (%p10) target = $region9
      $region8: #{custom-call.9} parent=4 // pred_region
        %s13 = ssub.s32 4, 1
        %s14 = smul.u32 %s13, 8
        %s15 = scalar_lea.vmem %s0, %s14
        %v16 = vld [vmem:[%s0] sm:$0xff]
        // While loop
        $region10: #{custom-call.9} parent=8 // loop_pre_header
          _
        $region11: #{custom-call.9} parent=8 // loop_header
          %s17 = sphi %s0, %s39
          %s18 = sphi [#allocation0], %s40
          %v19 = vphi %v16, %v41
          %s20 = ssub.s32 %s15, 64
          %p21 = scmp.gt.s32.totalorder %s17, %s20
        $region12: #{custom-call.9} parent=8 // loop_header_branch
          %23 = sbr.rel (%p21) target = $region16
        $region13: #{custom-call.9} parent=8 // loop_body
          %24 = vst [vmem:[%s18] sm:$0xff] %v19
          %v25 = vld [vmem:[%s17 + $0x8] sm:$0xff]
          %26 = vst [vmem:[%s18 + $0x8] sm:$0xff] %v25
          %v27 = vld [vmem:[%s17 + $0x10] sm:$0xff]
          %28 = vst [vmem:[%s18 + $0x10] sm:$0xff] %v27
          %v29 = vld [vmem:[%s17 + $0x18] sm:$0xff]
          %30 = vst [vmem:[%s18 + $0x18] sm:$0xff] %v29
          %v31 = vld [vmem:[%s17 + $0x20] sm:$0xff]
          %32 = vst [vmem:[%s18 + $0x20] sm:$0xff] %v31
          %v33 = vld [vmem:[%s17 + $0x28] sm:$0xff]
          %34 = vst [vmem:[%s18 + $0x28] sm:$0xff] %v33
          %v35 = vld [vmem:[%s17 + $0x30] sm:$0xff]
          %36 = vst [vmem:[%s18 + $0x30] sm:$0xff] %v35
          %v37 = vld [vmem:[%s17 + $0x38] sm:$0xff]
          %38 = vst [vmem:[%s18 + $0x38] sm:$0xff] %v37
        $region14: #{custom-call.9} parent=8 // loop_footer
          %s39 = scalar_lea.vmem %s17, 64
          %s40 = scalar_lea.vmem %s18, 64
          %v41 = vld [vmem:[%s17 + $0x40] sm:$0xff]
        $region15: #{custom-call.9} parent=8 // loop_footer_branch
          %42 = sbr.rel target = $region11
        $region16: #{custom-call.9} parent=8 // loop_exit
          _
        // While loop
        $region17: #{custom-call.9} parent=8 // loop_pre_header
          _
        $region18: #{custom-call.9} parent=8 // loop_header
          %s43 = sphi %s17, %s51
          %s44 = sphi %s18, %s52
          %v45 = vphi %v19, %v45
          %p46 = scmp.gt.s32.totalorder %s43, %s15
        $region19: #{custom-call.9} parent=8 // loop_header_branch
          %48 = sbr.rel (%p46) target = $region23
        $region20: #{custom-call.9} parent=8 // loop_body
          %v49 = vld [vmem:[%s43] sm:$0xff]
          %50 = vst [vmem:[%s44] sm:$0xff] %v49
        $region21: #{custom-call.9} parent=8 // loop_footer
          %s51 = scalar_lea.vmem %s43, 8
          %s52 = scalar_lea.vmem %s44, 8
        $region22: #{custom-call.9} parent=8 // loop_footer_branch
          %53 = sbr.rel target = $region18
        $region23: #{custom-call.9} parent=8 // loop_exit
          _
      $region9: #{custom-call.9} parent=4 // pred_fallthru
        _
      %s55 = ssub.s32 1, 1
      %s56 = smul.u32 4, 8
      %s57 = scalar_lea.vmem [#allocation0], %s56
      %s58 = smul.u32 4, 8
      %s59 = scalar_lea.vmem %s0, %s58
      %v60 = vld [vmem:[%s59] sm:%s55]
      %61 = vst [vmem:[%s57] sm:%s55] %v60
    $region5: #{custom-call.9} parent=1 // pred_fallthru
      _
    %v62 = vld [vmem:[#allocation0] sm:$0xff]
    %63 = vst [vmem:[#allocation1] sm:$0xff] %v62
    %s64 = scalar_lea.vmem [#allocation1], 8
    %s65 = scalar_lea.vmem [#allocation0], 8
    %v66 = vld [vmem:[%s65] sm:$0xff]
    %67 = vst [vmem:[%s64] sm:$0xff] %v66
    %s68 = scalar_lea.vmem [#allocation1], 16
    %s69 = scalar_lea.vmem [#allocation0], 16
    %v70 = vld [vmem:[%s69] sm:$0xff]
    %71 = vst [vmem:[%s68] sm:$0xff] %v70
    %s72 = scalar_lea.vmem [#allocation1], 24
    %s73 = scalar_lea.vmem [#allocation0], 24
    %v74 = vld [vmem:[%s73] sm:$0xff]
    %75 = vst [vmem:[%s72] sm:$0xff] %v74
    %76 = vst [vmem:[#allocation2] sm:$0x1] 0
    %v77 = vlaneseq
    %v78 = vshrl.u32 %v77, 7
    %v79 = vmov %v78
    loop: start=0, step=1, limit=4
    $region24: #{custom-call.9} parent=1 // loop_pre_header
      _
    $region25: #{custom-call.9} parent=1 // loop_header
      %s81 = sphi 0, %s85
      %p82 = scmp.ge.s32.totalorder %s81, 4
    $region26: #{custom-call.9} parent=1 // loop_header_branch
      %84 = sbr.rel (%p82) target = $region30
    $region27: #{custom-call.9} parent=1 // loop_body
      %s86 = smul.addr %s81, 8
      %s87 = scalar_lea.vmem [#allocation7], %s86
      %s88 = smul.u32 %s81, 8
      %v89 = vstv %s88
      %v90 = vadd.s32 %v79, %v89
      %91 = vst [vmem:[%s87] sm:$0xff] %v90
    $region28: #{custom-call.9} parent=1 // loop_footer
      %s85 = sadd.s32 1, %s81
    $region29: #{custom-call.9} parent=1 // loop_footer_branch
      %80 = sbr.rel target = $region25
    $region30: #{custom-call.9} parent=1 // loop_exit
      _
    loop: start=0, step=1, limit=32
    $region31: #{custom-call.9} parent=1 // loop_pre_header
      _
    $region32: #{custom-call.9} parent=1 // loop_header
      %s93 = sphi 0, %s97
      %p94 = scmp.ge.s32.totalorder %s93, 32
    $region33: #{custom-call.9} parent=1 // loop_header_branch
      %96 = sbr.rel (%p94) target = $region37
    $region34: #{custom-call.9} parent=1 // loop_body
      %v98 = vstv %s93
      %v99 = vlaneseq
      %v100 = vshrl.u32 %v99, 7
      %v101 = vmov %v100
      %v102 = vld [vmem:[#allocation1] sm:$0xff]
      %v103 = vand.u32 2147483647, %v102
      %v105 = vstv %s93
      %vm106 = vcmp.ge.s32.totalorder %v101, %v105
      %vm107 = vcmp.lt.s32.totalorder %v101, 32
      %vm108 = vmand %vm106, %vm107
      %vm109 = vcmp.lt.f32.partialorder -inf, %v103
      %vm110 = vmand %vm108, %vm109
      %v111 = vsel %vm110, %v101, %v98
      %v112 = vsel %vm110, %v103, -inf
      %s113 = scalar_lea.vmem [#allocation1], 8
      %v114 = vld [vmem:[%s113] sm:$0xff]
      %v115 = vand.u32 2147483647, %v114
      %v116 = vadd.s32 %v101, 8
      %v117 = vstv %s93
      %vm118 = vcmp.ge.s32.totalorder %v116, %v117
      %vm119 = vcmp.lt.s32.totalorder %v116, 32
      %vm120 = vmand %vm118, %vm119
      %vm121 = vcmp.lt.f32.partialorder %v112, %v115
      %vm122 = vmand %vm120, %vm121
      %v123 = vsel %vm122, %v116, %v111
      %v124 = vsel %vm122, %v115, %v112
      %s125 = scalar_lea.vmem [#allocation1], 16
      %v126 = vld [vmem:[%s125] sm:$0xff]
      %v127 = vand.u32 2147483647, %v126
      %v128 = vadd.s32 %v101, 16
      %v129 = vstv %s93
      %vm130 = vcmp.ge.s32.totalorder %v128, %v129
      %vm131 = vcmp.lt.s32.totalorder %v128, 32
      %vm132 = vmand %vm130, %vm131
      %vm133 = vcmp.lt.f32.partialorder %v124, %v127
      %vm134 = vmand %vm132, %vm133
      %v135 = vsel %vm134, %v128, %v123
      %v136 = vsel %vm134, %v127, %v124
      %s137 = scalar_lea.vmem [#allocation1], 24
      %v138 = vld [vmem:[%s137] sm:$0xff]
      %v139 = vand.u32 2147483647, %v138
      %v140 = vadd.s32 %v101, 24
      %v141 = vstv %s93
      %vm142 = vcmp.ge.s32.totalorder %v140, %v141
      %vm143 = vcmp.lt.s32.totalorder %v140, 32
      %vm144 = vmand %vm142, %vm143
      %vm145 = vcmp.lt.f32.partialorder %v136, %v139
      %vm146 = vmand %vm144, %vm145
      %v147 = vsel %vm146, %v140, %v135
      %v148 = vsel %vm146, %v139, %v136
      %v149 = vrot.slane %v148, 1
      %v150 = vrot.slane %v147, 1
      %vm151 = vcmp.ge.f32.partialorder %v149, %v148
      %v152 = vsel %vm151, %v149, %v148
      %v153 = vsel %vm151, %v150, %v147
      %v154 = vrot.slane %v149, 1
      %v155 = vrot.slane %v150, 1
      %vm156 = vcmp.ge.f32.partialorder %v154, %v152
      %v157 = vsel %vm156, %v154, %v152
      %v158 = vsel %vm156, %v155, %v153
      %v159 = vrot.slane %v154, 1
      %v160 = vrot.slane %v155, 1
      %vm161 = vcmp.ge.f32.partialorder %v159, %v157
      %v162 = vsel %vm161, %v159, %v157
      %v163 = vsel %vm161, %v160, %v158
      %v164 = vrot.slane %v159, 1
      %v165 = vrot.slane %v160, 1
      %vm166 = vcmp.ge.f32.partialorder %v164, %v162
      %v167 = vsel %vm166, %v164, %v162
      %v168 = vsel %vm166, %v165, %v163
      %v169 = vrot.slane %v164, 1
      %v170 = vrot.slane %v165, 1
      %vm171 = vcmp.ge.f32.partialorder %v169, %v167
      %v172 = vsel %vm171, %v169, %v167
      %v173 = vsel %vm171, %v170, %v168
      %v174 = vrot.slane %v169, 1
      %v175 = vrot.slane %v170, 1
      %vm176 = vcmp.ge.f32.partialorder %v174, %v172
      %v177 = vsel %vm176, %v174, %v172
      %v178 = vsel %vm176, %v175, %v173
      %v179 = vrot.slane %v174, 1
      %v180 = vrot.slane %v175, 1
      %vm181 = vcmp.ge.f32.partialorder %v179, %v177
      %v182 = vsel %vm181, %v179, %v177
      %v183 = vsel %vm181, %v180, %v178
      %s184 = ssub.s32 128, %s93
      %185 = vrot.lane.b32.xlu0 %v183, %s184
      %v186 = vpop.permute.xlu0 %185
      %s187 = vtos %v186
      %v188 = vstv %s93
      %v189 = vlaneseq
      %v190 = vand.u32 %v189, 127
      %vm191 = vcmp.eq.s32.totalorder %v190, %v188
      %v192 = vstv %s187
      %v193 = vld [vmem:[#allocation2] ss:$0 sm:$0xff]
      %v194 = vsel %vm191, %v192, %v193
      %195 = vst [vmem:[#allocation2] sm:$0x1] %v194
      %s196 = scalar_lea.vmem [#allocation1], %s93
      %s197 = scalar_lea.vmem [#allocation1], %s187
      %v198 = vld [vmem:[%s196] ss:$0 sm:$0xff]
      %v199 = vld [vmem:[%s197] ss:$0 sm:$0xff]
      %200 = vst [vmem:[%s197] sm:$0x1] %v198
      %201 = vst [vmem:[%s196] sm:$0x1] %v199
      %s202 = scalar_lea.vmem [#allocation7], %s93
      %s203 = scalar_lea.vmem [#allocation7], %s187
      %v204 = vld [vmem:[%s202] ss:$0 sm:$0xff]
      %v205 = vld [vmem:[%s203] ss:$0 sm:$0xff]
      %206 = vst [vmem:[%s203] sm:$0x1] %v204
      %207 = vst [vmem:[%s202] sm:$0x1] %v205
      %vm208 = vcmp.ne.f32.partialorder %v199, 0.0
      %vm209 = vmand %vm191, %vm208
      %v210 = vsel %vm209, %v199, 1.0
      %v211 = vlaneseq
      %v212 = vand.u32 %v211, 127
      %v213 = vstv %s93
      %vm214 = vcmp.gt.s32.totalorder %v212, %v213
      %v215 = vsel %vm214, %v199, 0.0
      %v216 = vlaneseq
      %v217 = vshrl.u32 %v216, 7
      %v218 = vmov %v217
      %v219 = vld [vmem:[#allocation1] sm:$0xff]
      %v221 = vstv %s93
      %vm222 = vcmp.gt.s32.totalorder %v218, %v221
      %v223 = vsel %vm222, %v210, 1.0
      %v224 = vrcp.pop %v223
      %v225 = vmul.f32 %v223, %v224
      %v226 = vsub.f32 1.0, %v225
      %v227 = vmul.f32 %v224, %v226
      %v228 = vadd.f32 %v224, %v227
      %vm229 = vweird.f32 %v223
      %vm230 = vweird.f32 %v224
      %vm231 = vmor %vm229, %vm230
      %v232 = vsel %vm231, %v224, %v228
      %v233 = vand.u32 2147483647, %v223
      %vm234 = vcmp.eq.f32.partialorder %v233, 8.507059e+37
      %v235 = vand.u32 %v223, 2147483648
      %v236 = vor.u32 1.1754944e-38, %v235
      %v237 = vsel %vm234, %v236, %v232
      %v238 = vmul.f32 %v219, %v237
      %vm239 = vmand %vm222, %vm191
      %v240 = vsel %vm239, %v238, 0.0
      %241 = vadd.xlane.f32.xlu0 %v240
      %v242 = vpop.xlane.xlu0 %241
      %v243 = vmul.f32 %v242, %v215
      %v244 = vsub.f32 %v238, %v243
      %245 = vst [vmem:[#allocation1] sm:$0xff] %v244
      %s246 = scalar_lea.vmem [#allocation1], 8
      %v247 = vld [vmem:[%s246] sm:$0xff]
      %v248 = vadd.s32 %v218, 8
      %v249 = vstv %s93
      %vm250 = vcmp.gt.s32.totalorder %v248, %v249
      %v251 = vsel %vm250, %v210, 1.0
      %v252 = vrcp.pop %v251
      %v253 = vmul.f32 %v251, %v252
      %v254 = vsub.f32 1.0, %v253
      %v255 = vmul.f32 %v252, %v254
      %v256 = vadd.f32 %v252, %v255
      %vm257 = vweird.f32 %v251
      %vm258 = vweird.f32 %v252
      %vm259 = vmor %vm257, %vm258
      %v260 = vsel %vm259, %v252, %v256
      %v261 = vand.u32 2147483647, %v251
      %vm262 = vcmp.eq.f32.partialorder %v261, 8.507059e+37
      %v263 = vand.u32 %v251, 2147483648
      %v264 = vor.u32 1.1754944e-38, %v263
      %v265 = vsel %vm262, %v264, %v260
      %v266 = vmul.f32 %v247, %v265
      %vm267 = vmand %vm250, %vm191
      %v268 = vsel %vm267, %v266, 0.0
      %269 = vadd.xlane.f32.xlu0 %v268
      %v270 = vpop.xlane.xlu0 %269
      %v271 = vmul.f32 %v270, %v215
      %v272 = vsub.f32 %v266, %v271
      %273 = vst [vmem:[%s246] sm:$0xff] %v272
      %s274 = scalar_lea.vmem [#allocation1], 16
      %v275 = vld [vmem:[%s274] sm:$0xff]
      %v276 = vadd.s32 %v218, 16
      %v277 = vstv %s93
      %vm278 = vcmp.gt.s32.totalorder %v276, %v277
      %v279 = vsel %vm278, %v210, 1.0
      %v280 = vrcp.pop %v279
      %v281 = vmul.f32 %v279, %v280
      %v282 = vsub.f32 1.0, %v281
      %v283 = vmul.f32 %v280, %v282
      %v284 = vadd.f32 %v280, %v283
      %vm285 = vweird.f32 %v279
      %vm286 = vweird.f32 %v280
      %vm287 = vmor %vm285, %vm286
      %v288 = vsel %vm287, %v280, %v284
      %v289 = vand.u32 2147483647, %v279
      %vm290 = vcmp.eq.f32.partialorder %v289, 8.507059e+37
      %v291 = vand.u32 %v279, 2147483648
      %v292 = vor.u32 1.1754944e-38, %v291
      %v293 = vsel %vm290, %v292, %v288
      %v294 = vmul.f32 %v275, %v293
      %vm295 = vmand %vm278, %vm191
      %v296 = vsel %vm295, %v294, 0.0
      %297 = vadd.xlane.f32.xlu0 %v296
      %v298 = vpop.xlane.xlu0 %297
      %v299 = vmul.f32 %v298, %v215
      %v300 = vsub.f32 %v294, %v299
      %301 = vst [vmem:[%s274] sm:$0xff] %v300
      %s302 = scalar_lea.vmem [#allocation1], 24
      %v303 = vld [vmem:[%s302] sm:$0xff]
      %v304 = vadd.s32 %v218, 24
      %v305 = vstv %s93
      %vm306 = vcmp.gt.s32.totalorder %v304, %v305
      %v307 = vsel %vm306, %v210, 1.0
      %v308 = vrcp.pop %v307
      %v309 = vmul.f32 %v307, %v308
      %v310 = vsub.f32 1.0, %v309
      %v311 = vmul.f32 %v308, %v310
      %v312 = vadd.f32 %v308, %v311
      %vm313 = vweird.f32 %v307
      %vm314 = vweird.f32 %v308
      %vm315 = vmor %vm313, %vm314
      %v316 = vsel %vm315, %v308, %v312
      %v317 = vand.u32 2147483647, %v307
      %vm318 = vcmp.eq.f32.partialorder %v317, 8.507059e+37
      %v319 = vand.u32 %v307, 2147483648
      %v320 = vor.u32 1.1754944e-38, %v319
      %v321 = vsel %vm318, %v320, %v316
      %v322 = vmul.f32 %v303, %v321
      %vm323 = vmand %vm306, %vm191
      %v324 = vsel %vm323, %v322, 0.0
      %325 = vadd.xlane.f32.xlu0 %v324
      %v326 = vpop.xlane.xlu0 %325
      %v327 = vmul.f32 %v326, %v215
      %v328 = vsub.f32 %v322, %v327
      %329 = vst [vmem:[%s302] sm:$0xff] %v328
    $region35: #{custom-call.9} parent=1 // loop_footer
      %s97 = sadd.s32 1, %s93
    $region36: #{custom-call.9} parent=1 // loop_footer_branch
      %92 = sbr.rel target = $region32
    $region37: #{custom-call.9} parent=1 // loop_exit
      _
    %v330 = vld [vmem:[#allocation7] sm:$0xff]
    %s331 = scalar_lea.vmem [#allocation7], 8
    %v332 = vld [vmem:[%s331] sm:$0xff]
    %s333 = scalar_lea.vmem [#allocation7], 16
    %v334 = vld [vmem:[%s333] sm:$0xff]
    %s335 = scalar_lea.vmem [#allocation7], 24
    %v336 = vld [vmem:[%s335] sm:$0xff]
    %s337 = scalar_lea.vmem [#allocation7], 32
    %s338 = scalar_lea.vmem [#allocation7], 40
    %s339 = scalar_lea.vmem [#allocation7], 48
    %s340 = scalar_lea.vmem [#allocation7], 56
    %s341 = scalar_lea.vmem [#allocation7], 64
    %s342 = scalar_lea.vmem [#allocation7], 72
    %s343 = scalar_lea.vmem [#allocation7], 80
    %s344 = scalar_lea.vmem [#allocation7], 88
    %s345 = scalar_lea.vmem [#allocation7], 96
    %s346 = scalar_lea.vmem [#allocation7], 104
    %s347 = scalar_lea.vmem [#allocation7], 112
    %s348 = scalar_lea.vmem [#allocation7], 120
    %349 = vxpose.xlu0.b32.start [1/16] %v330, 128
    %350 = vxpose.xlu0.b32.cont [2/16] %v332, 128
    %351 = vxpose.xlu0.b32.cont [3/16] %v334, 128
    %352 = vxpose.xlu0.b32.cont [4/16] %v336, 128
    %353 = vxpose.xlu0.b32.cont [5/16] 0, 128
    %354 = vxpose.xlu0.b32.cont [6/16] 0, 128
    %355 = vxpose.xlu0.b32.cont [7/16] 0, 128
    %356 = vxpose.xlu0.b32.cont [8/16] 0, 128
    %357 = vxpose.xlu0.b32.cont [9/16] 0, 128
    %358 = vxpose.xlu0.b32.cont [10/16] 0, 128
    %359 = vxpose.xlu0.b32.cont [11/16] 0, 128
    %360 = vxpose.xlu0.b32.cont [12/16] 0, 128
    %361 = vxpose.xlu0.b32.cont [13/16] 0, 128
    %362 = vxpose.xlu0.b32.cont [14/16] 0, 128
    %363 = vxpose.xlu0.b32.cont [15/16] 0, 128
    %364 = vxpose.xlu0.b32.end [16/16] 0, 128
    %v365 = vpop.trf.xlu0
    %v366 = vpop.trf.xlu0
    %v367 = vpop.trf.xlu0
    %v368 = vpop.trf.xlu0
    %v369 = vpop.trf.xlu0
    %v370 = vpop.trf.xlu0
    %v371 = vpop.trf.xlu0
    %v372 = vpop.trf.xlu0
    %v373 = vpop.trf.xlu0
    %v374 = vpop.trf.xlu0
    %v375 = vpop.trf.xlu0
    %v376 = vpop.trf.xlu0
    %v377 = vpop.trf.xlu0
    %v378 = vpop.trf.xlu0
    %v379 = vpop.trf.xlu0
    %v380 = vpop.trf.xlu0
    %381 = vst [vmem:[#allocation5] sm:$0x1] %v365
    %s383 = ssub.s32 2, 1
    %v384 = vld [vmem:[#allocation2] sm:%s383]
    %s386 = ssub.s32 2, 1
    %387 = vst [vmem:[#allocation3] sm:%s386] %v384
    %s389 = ssub.s32 2, 1
    %v390 = vld [vmem:[#allocation5] sm:%s389]
    %s392 = ssub.s32 2, 1
    %393 = vst [vmem:[#allocation6] sm:%s392] %v390
    // Predicated region
    $region38: #{custom-call.9} parent=1 // pred_check
      _
    $region39: #{custom-call.9} parent=1 // pred_check_branch
      %395 = sbr.rel (0) target = $region41
    $region40: #{custom-call.9} parent=1 // pred_region
      %p397 = scmp.gt.s32.totalorder 4, 0
      // Predicated region
      $region42: #{custom-call.9} parent=40 // pred_check
        %p398 = pneg %p397
      $region43: #{custom-call.9} parent=40 // pred_check_branch
        %400 = sbr.rel (%p398) target = $region45
      $region44: #{custom-call.9} parent=40 // pred_region
        %s401 = ssub.s32 4, 1
        %s402 = smul.u32 %s401, 8
        %s403 = scalar_lea.vmem [#allocation1], %s402
        %v404 = vld [vmem:[#allocation1] sm:$0xff]
        // While loop
        $region46: #{custom-call.9} parent=44 // loop_pre_header
          _
        $region47: #{custom-call.9} parent=44 // loop_header
          %s405 = sphi [#allocation1], %s427
          %s406 = sphi %s1, %s428
          %v407 = vphi %v404, %v429
          %s408 = ssub.s32 %s403, 64
          %p409 = scmp.gt.s32.totalorder %s405, %s408
        $region48: #{custom-call.9} parent=44 // loop_header_branch
          %411 = sbr.rel (%p409) target = $region52
        $region49: #{custom-call.9} parent=44 // loop_body
          %412 = vst [vmem:[%s406] sm:$0xff] %v407
          %v413 = vld [vmem:[%s405 + $0x8] sm:$0xff]
          %414 = vst [vmem:[%s406 + $0x8] sm:$0xff] %v413
          %v415 = vld [vmem:[%s405 + $0x10] sm:$0xff]
          %416 = vst [vmem:[%s406 + $0x10] sm:$0xff] %v415
          %v417 = vld [vmem:[%s405 + $0x18] sm:$0xff]
          %418 = vst [vmem:[%s406 + $0x18] sm:$0xff] %v417
          %v419 = vld [vmem:[%s405 + $0x20] sm:$0xff]
          %420 = vst [vmem:[%s406 + $0x20] sm:$0xff] %v419
          %v421 = vld [vmem:[%s405 + $0x28] sm:$0xff]
          %422 = vst [vmem:[%s406 + $0x28] sm:$0xff] %v421
          %v423 = vld [vmem:[%s405 + $0x30] sm:$0xff]
          %424 = vst [vmem:[%s406 + $0x30] sm:$0xff] %v423
          %v425 = vld [vmem:[%s405 + $0x38] sm:$0xff]
          %426 = vst [vmem:[%s406 + $0x38] sm:$0xff] %v425
        $region50: #{custom-call.9} parent=44 // loop_footer
          %s427 = scalar_lea.vmem %s405, 64
          %s428 = scalar_lea.vmem %s406, 64
          %v429 = vld [vmem:[%s405 + $0x40] sm:$0xff]
        $region51: #{custom-call.9} parent=44 // loop_footer_branch
          %430 = sbr.rel target = $region47
        $region52: #{custom-call.9} parent=44 // loop_exit
          _
        // While loop
        $region53: #{custom-call.9} parent=44 // loop_pre_header
          _
        $region54: #{custom-call.9} parent=44 // loop_header
          %s431 = sphi %s405, %s439
          %s432 = sphi %s406, %s440
          %v433 = vphi %v407, %v433
          %p434 = scmp.gt.s32.totalorder %s431, %s403
        $region55: #{custom-call.9} parent=44 // loop_header_branch
          %436 = sbr.rel (%p434) target = $region59
        $region56: #{custom-call.9} parent=44 // loop_body
          %v437 = vld [vmem:[%s431] sm:$0xff]
          %438 = vst [vmem:[%s432] sm:$0xff] %v437
        $region57: #{custom-call.9} parent=44 // loop_footer
          %s439 = scalar_lea.vmem %s431, 8
          %s440 = scalar_lea.vmem %s432, 8
        $region58: #{custom-call.9} parent=44 // loop_footer_branch
          %441 = sbr.rel target = $region54
        $region59: #{custom-call.9} parent=44 // loop_exit
          _
      $region45: #{custom-call.9} parent=40 // pred_fallthru
        _
      %s443 = ssub.s32 1, 1
      %s444 = smul.u32 4, 8
      %s445 = scalar_lea.vmem %s1, %s444
      %s446 = smul.u32 4, 8
      %s447 = scalar_lea.vmem [#allocation1], %s446
      %v448 = vld [vmem:[%s447] sm:%s443]
      %449 = vst [vmem:[%s445] sm:%s443] %v448
    $region41: #{custom-call.9} parent=1 // pred_fallthru
      _
    // Predicated region
    $region60: #{custom-call.9} parent=1 // pred_check
      _
    $region61: #{custom-call.9} parent=1 // pred_check_branch
      %451 = sbr.rel (0) target = $region63
    $region62: #{custom-call.9} parent=1 // pred_region
      %453 = vsyncadd [#allocation4], 0
      %s455 = sshll.u32 [#allocation3], 4
      %s456 = int_to_ptr.vmem [resolvable:$true] %s455
      %s457 = sshll.u32 %s2, 4
      %s458 = int_to_ptr.hbm [resolvable:$true] %s457
      %460 = dma.vmem_to_hbm [thread:$0]  %s456, 16, %s458, [#allocation4]
    $region63: #{custom-call.9} parent=1 // pred_fallthru
      _
    // Predicated region
    $region64: #{custom-call.9} parent=1 // pred_check
      _
    $region65: #{custom-call.9} parent=1 // pred_check_branch
      %462 = sbr.rel (0) target = $region67
    $region66: #{custom-call.9} parent=1 // pred_region
      // Predicated region
      $region68: #{custom-call.9} parent=66 // pred_check
        _
      $region69: #{custom-call.9} parent=66 // pred_check_branch
        %464 = sbr.rel (0) target = $region71
      $region70: #{custom-call.9} parent=66 // pred_region
        %p466 = scmp.gt.s32.totalorder 0, 0
        // Predicated region
        $region72: #{custom-call.9} parent=70 // pred_check
          %p467 = pneg %p466
        $region73: #{custom-call.9} parent=70 // pred_check_branch
          %469 = sbr.rel (%p467) target = $region75
        $region74: #{custom-call.9} parent=70 // pred_region
          %s470 = ssub.s32 0, 1
          %s471 = smul.u32 %s470, 8
          %s472 = scalar_lea.vmem [#allocation6], %s471
          %v473 = vld [vmem:[#allocation6] sm:$0xff]
          // While loop
          $region76: #{custom-call.9} parent=74 // loop_pre_header
            _
          $region77: #{custom-call.9} parent=74 // loop_header
            %s474 = sphi [#allocation6], %s496
            %s475 = sphi %s3, %s497
            %v476 = vphi %v473, %v498
            %s477 = ssub.s32 %s472, 64
            %p478 = scmp.gt.s32.totalorder %s474, %s477
          $region78: #{custom-call.9} parent=74 // loop_header_branch
            %480 = sbr.rel (%p478) target = $region82
          $region79: #{custom-call.9} parent=74 // loop_body
            %481 = vst [vmem:[%s475] sm:$0xff] %v476
            %v482 = vld [vmem:[%s474 + $0x8] sm:$0xff]
            %483 = vst [vmem:[%s475 + $0x8] sm:$0xff] %v482
            %v484 = vld [vmem:[%s474 + $0x10] sm:$0xff]
            %485 = vst [vmem:[%s475 + $0x10] sm:$0xff] %v484
            %v486 = vld [vmem:[%s474 + $0x18] sm:$0xff]
            %487 = vst [vmem:[%s475 + $0x18] sm:$0xff] %v486
            %v488 = vld [vmem:[%s474 + $0x20] sm:$0xff]
            %489 = vst [vmem:[%s475 + $0x20] sm:$0xff] %v488
            %v490 = vld [vmem:[%s474 + $0x28] sm:$0xff]
            %491 = vst [vmem:[%s475 + $0x28] sm:$0xff] %v490
            %v492 = vld [vmem:[%s474 + $0x30] sm:$0xff]
            %493 = vst [vmem:[%s475 + $0x30] sm:$0xff] %v492
            %v494 = vld [vmem:[%s474 + $0x38] sm:$0xff]
            %495 = vst [vmem:[%s475 + $0x38] sm:$0xff] %v494
          $region80: #{custom-call.9} parent=74 // loop_footer
            %s496 = scalar_lea.vmem %s474, 64
            %s497 = scalar_lea.vmem %s475, 64
            %v498 = vld [vmem:[%s474 + $0x40] sm:$0xff]
          $region81: #{custom-call.9} parent=74 // loop_footer_branch
            %499 = sbr.rel target = $region77
          $region82: #{custom-call.9} parent=74 // loop_exit
            _
          // While loop
          $region83: #{custom-call.9} parent=74 // loop_pre_header
            _
          $region84: #{custom-call.9} parent=74 // loop_header
            %s500 = sphi %s474, %s508
            %s501 = sphi %s475, %s509
            %v502 = vphi %v476, %v502
            %p503 = scmp.gt.s32.totalorder %s500, %s472
          $region85: #{custom-call.9} parent=74 // loop_header_branch
            %505 = sbr.rel (%p503) target = $region89
          $region86: #{custom-call.9} parent=74 // loop_body
            %v506 = vld [vmem:[%s500] sm:$0xff]
            %507 = vst [vmem:[%s501] sm:$0xff] %v506
          $region87: #{custom-call.9} parent=74 // loop_footer
            %s508 = scalar_lea.vmem %s500, 8
            %s509 = scalar_lea.vmem %s501, 8
          $region88: #{custom-call.9} parent=74 // loop_footer_branch
            %510 = sbr.rel target = $region84
          $region89: #{custom-call.9} parent=74 // loop_exit
            _
        $region75: #{custom-call.9} parent=70 // pred_fallthru
          _
        %s512 = ssub.s32 2, 1
        %s513 = smul.u32 0, 8
        %s514 = scalar_lea.vmem %s3, %s513
        %s515 = smul.u32 0, 8
        %s516 = scalar_lea.vmem [#allocation6], %s515
        %v517 = vld [vmem:[%s516] sm:%s512]
        %518 = vst [vmem:[%s514] sm:%s512] %v517
      $region71: #{custom-call.9} parent=66 // pred_fallthru
        _
    $region67: #{custom-call.9} parent=1 // pred_fallthru
      _
    // Predicated region
    $region90: #{custom-call.9} parent=1 // pred_check
      _
    $region91: #{custom-call.9} parent=1 // pred_check_branch
      %520 = sbr.rel (0) target = $region93
    $region92: #{custom-call.9} parent=1 // pred_region
      %522 = dma.done [#allocation4], 16
    $region93: #{custom-call.9} parent=1 // pred_fallthru
      _
    // Predicated region
    $region94: #{custom-call.9} parent=1 // pred_check
      _
    $region95: #{custom-call.9} parent=1 // pred_check_branch
      %524 = sbr.rel (0) target = $region97
    $region96: #{custom-call.9} parent=1 // pred_region
      _
    $region97: #{custom-call.9} parent=1 // pred_fallthru
      _
    %525 = vsyncpa [#allocation4], 1

// kernel: custom-call.10
$region0: #{custom-call.10}
  %s0 = inlined_call_operand.vmem [shape: f32[1,32,32], index: 0, kind: input, shape index: {}]
  %s1 = inlined_call_operand.vmem [shape: f32[1,32,32], index: 1, kind: output, shape index: {}]
  $region1: #{custom-call.10} parent=0
    #allocation0 [shape = 'u8[16384]{0}', space=vmem, size = 0x4000, scoped, tag = 'operand span for operand 0']
    #allocation1 [shape = 'u8[16384]{0}', space=vmem, size = 0x4000, scoped, tag = 'operand span for operand 1']
    #allocation2 [shape = 'f32[32,32]{1,0}', space=vmem, size = 0x4000, scoped, tag = 'rescaled input a']
    // Predicated region
    $region2: #{custom-call.10} parent=1 // pred_check
      _
    $region3: #{custom-call.10} parent=1 // pred_check_branch
      %3 = sbr.rel (0) target = $region5
    $region4: #{custom-call.10} parent=1 // pred_region
      // Predicated region
      $region6: #{custom-call.10} parent=4 // pred_check
        _
      $region7: #{custom-call.10} parent=4 // pred_check_branch
        %5 = sbr.rel (0) target = $region9
      $region8: #{custom-call.10} parent=4 // pred_region
        // Predicated region
        $region21: #{custom-call.10} parent=8 // pred_check
          _
        $region22: #{custom-call.10} parent=8 // pred_check_branch
          %27 = sbr.rel (0) target = $region24
        $region23: #{custom-call.10} parent=8 // pred_region
          loop: start=0, step=1, limit=1
          $region25: #{custom-call.10} parent=23 // loop_pre_header
            _
          $region26: #{custom-call.10} parent=23 // loop_header
            %s29 = sphi 0, %s33
            %p30 = scmp.ge.s32.totalorder %s29, 1
            %s34 = sphi %s0, %s0
            %s35 = sphi [#allocation0], [#allocation0]
          $region27: #{custom-call.10} parent=23 // loop_header_branch
            %32 = sbr.rel (%p30) target = $region31
          $region28: #{custom-call.10} parent=23 // loop_body
            %v36 = vld [vmem:[%s34] sm:$0xff]
            %37 = vst [vmem:[%s35] sm:$0xff] %v36
            %v38 = vld [vmem:[%s34 + $0x8] sm:$0xff]
            %39 = vst [vmem:[%s35 + $0x8] sm:$0xff] %v38
            %v40 = vld [vmem:[%s34 + $0x10] sm:$0xff]
            %41 = vst [vmem:[%s35 + $0x10] sm:$0xff] %v40
            %v42 = vld [vmem:[%s34 + $0x18] sm:$0xff]
            %43 = vst [vmem:[%s35 + $0x18] sm:$0xff] %v42
          $region29: #{custom-call.10} parent=23 // loop_footer
            %s33 = sadd.s32 1, %s29
          $region30: #{custom-call.10} parent=23 // loop_footer_branch
            %28 = sbr.rel target = $region26
          $region31: #{custom-call.10} parent=23 // loop_exit
            _
        $region24: #{custom-call.10} parent=8 // pred_fallthru
          _
        // Predicated region
        $region32: #{custom-call.10} parent=8 // pred_check
          _
        $region33: #{custom-call.10} parent=8 // pred_check_branch
          %45 = sbr.rel target = $region35
        $region34: #{custom-call.10} parent=8 // pred_region
          _
        $region35: #{custom-call.10} parent=8 // pred_fallthru
          _
      $region9: #{custom-call.10} parent=4 // pred_fallthru
        _
      // Predicated region
      $region10: #{custom-call.10} parent=4 // pred_check
        _
      $region11: #{custom-call.10} parent=4 // pred_check_branch
        %7 = sbr.rel target = $region13
      $region12: #{custom-call.10} parent=4 // pred_region
        %s9 = ssub.s32 256, 1
        loop: start=0, step=1, limit=1
        $region14: #{custom-call.10} parent=12 // loop_pre_header
          _
        $region15: #{custom-call.10} parent=12 // loop_header
          %s11 = sphi 0, %s15
          %p12 = scmp.ge.s32.totalorder %s11, 1
          %s16 = sphi %s0, %s0
          %s17 = sphi [#allocation0], [#allocation0]
        $region16: #{custom-call.10} parent=12 // loop_header_branch
          %14 = sbr.rel (%p12) target = $region20
        $region17: #{custom-call.10} parent=12 // loop_body
          %v18 = vld [vmem:[%s16] sm:%s9]
          %19 = vst [vmem:[%s17] sm:%s9] %v18
          %v20 = vld [vmem:[%s16 + $0x8] sm:%s9]
          %21 = vst [vmem:[%s17 + $0x8] sm:%s9] %v20
          %v22 = vld [vmem:[%s16 + $0x10] sm:%s9]
          %23 = vst [vmem:[%s17 + $0x10] sm:%s9] %v22
          %v24 = vld [vmem:[%s16 + $0x18] sm:%s9]
          %25 = vst [vmem:[%s17 + $0x18] sm:%s9] %v24
        $region18: #{custom-call.10} parent=12 // loop_footer
          %s15 = sadd.s32 1, %s11
        $region19: #{custom-call.10} parent=12 // loop_footer_branch
          %10 = sbr.rel target = $region15
        $region20: #{custom-call.10} parent=12 // loop_exit
          _
      $region13: #{custom-call.10} parent=4 // pred_fallthru
        _
    $region5: #{custom-call.10} parent=1 // pred_fallthru
      _
    %46 = vnop
    %v47 = vlaneseq
    %v48 = vand.u32 %v47, 127
    %vm49 = vcmp.lt.s32.totalorder %v48, 32
    %v50 = vlaneseq
    %v51 = vshrl.u32 %v50, 7
    %vm53 = vcmp.eq.s32.totalorder %v51, %v48
    %v54 = vld [vmem:[#allocation0] sm:$0xff]
    %v55 = vsel %vm53, %v54, 0.0
    %56 = vadd.xlane.f32.xlu0 %v55
    %v57 = vpop.xlane.xlu0 %56
    %vm58 = vcmp.le.s32.totalorder %v51, %v48
    %vm59 = vmand %vm58, %vm49
    %v60 = vsel %vm59, %v54, 0.0
    %v61 = vrcp.pop %v57
    %v62 = vmul.f32 %v57, %v61
    %v63 = vsub.f32 1.0, %v62
    %v64 = vmul.f32 %v61, %v63
    %v65 = vadd.f32 %v61, %v64
    %vm66 = vweird.f32 %v57
    %vm67 = vweird.f32 %v61
    %vm68 = vmor %vm66, %vm67
    %v69 = vsel %vm68, %v61, %v65
    %v70 = vand.u32 2147483647, %v57
    %vm71 = vcmp.eq.f32.partialorder %v70, 8.507059e+37
    %v72 = vand.u32 %v57, 2147483648
    %v73 = vor.u32 1.1754944e-38, %v72
    %v74 = vsel %vm71, %v73, %v69
    %v75 = vmul.f32 %v60, %v74
    %76 = vst [vmem:[#allocation2] sm:$0xff] %v75
    %s77 = scalar_lea.vmem [#allocation0], 8
    %s78 = scalar_lea.vmem [#allocation2], 8
    %v79 = vlaneseq
    %v80 = vshrl.u32 %v79, 7
    %v81 = vadd.s32 %v80, 8
    %vm82 = vcmp.eq.s32.totalorder %v81, %v48
    %v83 = vld [vmem:[%s77] sm:$0xff]
    %v84 = vsel %vm82, %v83, 0.0
    %85 = vadd.xlane.f32.xlu0 %v84
    %v86 = vpop.xlane.xlu0 %85
    %vm87 = vcmp.le.s32.totalorder %v81, %v48
    %vm88 = vmand %vm87, %vm49
    %v89 = vsel %vm88, %v83, 0.0
    %v90 = vrcp.pop %v86
    %v91 = vmul.f32 %v86, %v90
    %v92 = vsub.f32 1.0, %v91
    %v93 = vmul.f32 %v90, %v92
    %v94 = vadd.f32 %v90, %v93
    %vm95 = vweird.f32 %v86
    %vm96 = vweird.f32 %v90
    %vm97 = vmor %vm95, %vm96
    %v98 = vsel %vm97, %v90, %v94
    %v99 = vand.u32 2147483647, %v86
    %vm100 = vcmp.eq.f32.partialorder %v99, 8.507059e+37
    %v101 = vand.u32 %v86, 2147483648
    %v102 = vor.u32 1.1754944e-38, %v101
    %v103 = vsel %vm100, %v102, %v98
    %v104 = vmul.f32 %v89, %v103
    %105 = vst [vmem:[%s78] sm:$0xff] %v104
    %s106 = scalar_lea.vmem [#allocation0], 16
    %s107 = scalar_lea.vmem [#allocation2], 16
    %v108 = vlaneseq
    %v109 = vshrl.u32 %v108, 7
    %v110 = vadd.s32 %v109, 16
    %vm111 = vcmp.eq.s32.totalorder %v110, %v48
    %v112 = vld [vmem:[%s106] sm:$0xff]
    %v113 = vsel %vm111, %v112, 0.0
    %114 = vadd.xlane.f32.xlu0 %v113
    %v115 = vpop.xlane.xlu0 %114
    %vm116 = vcmp.le.s32.totalorder %v110, %v48
    %vm117 = vmand %vm116, %vm49
    %v118 = vsel %vm117, %v112, 0.0
    %v119 = vrcp.pop %v115
    %v120 = vmul.f32 %v115, %v119
    %v121 = vsub.f32 1.0, %v120
    %v122 = vmul.f32 %v119, %v121
    %v123 = vadd.f32 %v119, %v122
    %vm124 = vweird.f32 %v115
    %vm125 = vweird.f32 %v119
    %vm126 = vmor %vm124, %vm125
    %v127 = vsel %vm126, %v119, %v123
    %v128 = vand.u32 2147483647, %v115
    %vm129 = vcmp.eq.f32.partialorder %v128, 8.507059e+37
    %v130 = vand.u32 %v115, 2147483648
    %v131 = vor.u32 1.1754944e-38, %v130
    %v132 = vsel %vm129, %v131, %v127
    %v133 = vmul.f32 %v118, %v132
    %134 = vst [vmem:[%s107] sm:$0xff] %v133
    %s135 = scalar_lea.vmem [#allocation0], 24
    %s136 = scalar_lea.vmem [#allocation2], 24
    %v137 = vlaneseq
    %v138 = vshrl.u32 %v137, 7
    %v139 = vadd.s32 %v138, 24
    %vm140 = vcmp.eq.s32.totalorder %v139, %v48
    %v141 = vld [vmem:[%s135] sm:$0xff]
    %v142 = vsel %vm140, %v141, 0.0
    %143 = vadd.xlane.f32.xlu0 %v142
    %v144 = vpop.xlane.xlu0 %143
    %vm145 = vcmp.le.s32.totalorder %v139, %v48
    %vm146 = vmand %vm145, %vm49
    %v147 = vsel %vm146, %v141, 0.0
    %v148 = vrcp.pop %v144
    %v149 = vmul.f32 %v144, %v148
    %v150 = vsub.f32 1.0, %v149
    %v151 = vmul.f32 %v148, %v150
    %v152 = vadd.f32 %v148, %v151
    %vm153 = vweird.f32 %v144
    %vm154 = vweird.f32 %v148
    %vm155 = vmor %vm153, %vm154
    %v156 = vsel %vm155, %v148, %v152
    %v157 = vand.u32 2147483647, %v144
    %vm158 = vcmp.eq.f32.partialorder %v157, 8.507059e+37
    %v159 = vand.u32 %v144, 2147483648
    %v160 = vor.u32 1.1754944e-38, %v159
    %v161 = vsel %vm158, %v160, %v156
    %v162 = vmul.f32 %v147, %v161
    %163 = vst [vmem:[%s136] sm:$0xff] %v162
    %v164 = vlaneseq
    %v165 = vand.u32 %v164, 127
    %v166 = vlaneseq
    %v167 = vshrl.u32 %v166, 7
    %vm169 = vcmp.eq.s32.totalorder %v165, %v167
    %v170 = vsel %vm169, -1.0, 0.0
    %v171 = vlaneseq
    %v172 = vand.u32 %v171, 127
    %v173 = vlaneseq
    %v174 = vshrl.u32 %v173, 7
    %v175 = vadd.s32 %v174, 8
    %vm176 = vcmp.eq.s32.totalorder %v172, %v175
    %v177 = vsel %vm176, -1.0, 0.0
    %v178 = vlaneseq
    %v179 = vand.u32 %v178, 127
    %v180 = vlaneseq
    %v181 = vshrl.u32 %v180, 7
    %v182 = vadd.s32 %v181, 16
    %vm183 = vcmp.eq.s32.totalorder %v179, %v182
    %v184 = vsel %vm183, -1.0, 0.0
    %v185 = vlaneseq
    %v186 = vand.u32 %v185, 127
    %v187 = vlaneseq
    %v188 = vshrl.u32 %v187, 7
    %v189 = vadd.s32 %v188, 24
    %vm190 = vcmp.eq.s32.totalorder %v186, %v189
    %v191 = vlaneseq
    %v192 = vand.u32 %v191, 127
    %vm193 = vcmp.eq.s32.totalorder %v192, 31
    %v194 = vsel %vm193, 1.0, -1.0
    %v195 = vsel %vm190, %v194, 0.0
    %s196 = scalar_lea.vmem [#allocation2], 30
    %v197 = vld [vmem:[%s196] ss:$0 sm:$0xff]
    %v198 = vxor.u32 %v197, 2147483648
    %v199 = vlaneseq
    %v200 = vand.u32 %v199, 127
    %vm201 = vcmp.eq.s32.totalorder %v200, 30
    %v202 = vmul.f32 %v198, %v195
    %203 = vadd.xlane.f32.xlu0 %v202
    %v204 = vpop.xlane.xlu0 %203
    %v205 = vsel %vm201, %v204, %v195
    %s206 = scalar_lea.vmem [#allocation2], 29
    %v207 = vld [vmem:[%s206] ss:$0 sm:$0xff]
    %v208 = vxor.u32 %v207, 2147483648
    %v209 = vlaneseq
    %v210 = vand.u32 %v209, 127
    %vm211 = vcmp.eq.s32.totalorder %v210, 29
    %v212 = vmul.f32 %v208, %v205
    %213 = vadd.xlane.f32.xlu0 %v212
    %v214 = vpop.xlane.xlu0 %213
    %v215 = vsel %vm211, %v214, %v205
    %s216 = scalar_lea.vmem [#allocation2], 28
    %v217 = vld [vmem:[%s216] ss:$0 sm:$0xff]
    %v218 = vxor.u32 %v217, 2147483648
    %v219 = vlaneseq
    %v220 = vand.u32 %v219, 127
    %vm221 = vcmp.eq.s32.totalorder %v220, 28
    %v222 = vmul.f32 %v218, %v215
    %223 = vadd.xlane.f32.xlu0 %v222
    %v224 = vpop.xlane.xlu0 %223
    %v225 = vsel %vm221, %v224, %v215
    %s226 = scalar_lea.vmem [#allocation2], 27
    %v227 = vld [vmem:[%s226] ss:$0 sm:$0xff]
    %v228 = vxor.u32 %v227, 2147483648
    %v229 = vlaneseq
    %v230 = vand.u32 %v229, 127
    %vm231 = vcmp.eq.s32.totalorder %v230, 27
    %v232 = vmul.f32 %v228, %v225
    %233 = vadd.xlane.f32.xlu0 %v232
    %v234 = vpop.xlane.xlu0 %233
    %v235 = vsel %vm231, %v234, %v225
    %s236 = scalar_lea.vmem [#allocation2], 26
    %v237 = vld [vmem:[%s236] ss:$0 sm:$0xff]
    %v238 = vxor.u32 %v237, 2147483648
    %v239 = vlaneseq
    %v240 = vand.u32 %v239, 127
    %vm241 = vcmp.eq.s32.totalorder %v240, 26
    %v242 = vmul.f32 %v238, %v235
    %243 = vadd.xlane.f32.xlu0 %v242
    %v244 = vpop.xlane.xlu0 %243
    %v245 = vsel %vm241, %v244, %v235
    %s246 = scalar_lea.vmem [#allocation2], 25
    %v247 = vld [vmem:[%s246] ss:$0 sm:$0xff]
    %v248 = vxor.u32 %v247, 2147483648
    %v249 = vlaneseq
    %v250 = vand.u32 %v249, 127
    %vm251 = vcmp.eq.s32.totalorder %v250, 25
    %v252 = vmul.f32 %v248, %v245
    %253 = vadd.xlane.f32.xlu0 %v252
    %v254 = vpop.xlane.xlu0 %253
    %v255 = vsel %vm251, %v254, %v245
    %s256 = scalar_lea.vmem [#allocation2], 24
    %v257 = vld [vmem:[%s256] ss:$0 sm:$0xff]
    %v258 = vxor.u32 %v257, 2147483648
    %v259 = vlaneseq
    %v260 = vand.u32 %v259, 127
    %vm261 = vcmp.eq.s32.totalorder %v260, 24
    %v262 = vmul.f32 %v258, %v255
    %263 = vadd.xlane.f32.xlu0 %v262
    %v264 = vpop.xlane.xlu0 %263
    %v265 = vsel %vm261, %v264, %v255
    %s266 = scalar_lea.vmem [#allocation2], 23
    %v267 = vld [vmem:[%s266] ss:$0 sm:$0xff]
    %v268 = vxor.u32 %v267, 2147483648
    %v269 = vlaneseq
    %v270 = vand.u32 %v269, 127
    %vm271 = vcmp.eq.s32.totalorder %v270, 23
    %v272 = vmul.f32 %v268, %v184
    %273 = vadd.xlane.f32.xlu0 %v272
    %v274 = vpop.xlane.xlu0 %273
    %v275 = vsel %vm271, %v274, %v184
    %v276 = vmul.f32 %v268, %v265
    %277 = vadd.xlane.f32.xlu0 %v276
    %v278 = vpop.xlane.xlu0 %277
    %v279 = vsel %vm271, %v278, %v265
    %s280 = scalar_lea.vmem [#allocation2], 22
    %v281 = vld [vmem:[%s280] ss:$0 sm:$0xff]
    %v282 = vxor.u32 %v281, 2147483648
    %v283 = vlaneseq
    %v284 = vand.u32 %v283, 127
    %vm285 = vcmp.eq.s32.totalorder %v284, 22
    %v286 = vmul.f32 %v282, %v275
    %287 = vadd.xlane.f32.xlu0 %v286
    %v288 = vpop.xlane.xlu0 %287
    %v289 = vsel %vm285, %v288, %v275
    %v290 = vmul.f32 %v282, %v279
    %291 = vadd.xlane.f32.xlu0 %v290
    %v292 = vpop.xlane.xlu0 %291
    %v293 = vsel %vm285, %v292, %v279
    %s294 = scalar_lea.vmem [#allocation2], 21
    %v295 = vld [vmem:[%s294] ss:$0 sm:$0xff]
    %v296 = vxor.u32 %v295, 2147483648
    %v297 = vlaneseq
    %v298 = vand.u32 %v297, 127
    %vm299 = vcmp.eq.s32.totalorder %v298, 21
    %v300 = vmul.f32 %v296, %v289
    %301 = vadd.xlane.f32.xlu0 %v300
    %v302 = vpop.xlane.xlu0 %301
    %v303 = vsel %vm299, %v302, %v289
    %v304 = vmul.f32 %v296, %v293
    %305 = vadd.xlane.f32.xlu0 %v304
    %v306 = vpop.xlane.xlu0 %305
    %v307 = vsel %vm299, %v306, %v293
    %s308 = scalar_lea.vmem [#allocation2], 20
    %v309 = vld [vmem:[%s308] ss:$0 sm:$0xff]
    %v310 = vxor.u32 %v309, 2147483648
    %v311 = vlaneseq
    %v312 = vand.u32 %v311, 127
    %vm313 = vcmp.eq.s32.totalorder %v312, 20
    %v314 = vmul.f32 %v310, %v303
    %315 = vadd.xlane.f32.xlu0 %v314
    %v316 = vpop.xlane.xlu0 %315
    %v317 = vsel %vm313, %v316, %v303
    %v318 = vmul.f32 %v310, %v307
    %319 = vadd.xlane.f32.xlu0 %v318
    %v320 = vpop.xlane.xlu0 %319
    %v321 = vsel %vm313, %v320, %v307
    %s322 = scalar_lea.vmem [#allocation2], 19
    %v323 = vld [vmem:[%s322] ss:$0 sm:$0xff]
    %v324 = vxor.u32 %v323, 2147483648
    %v325 = vlaneseq
    %v326 = vand.u32 %v325, 127
    %vm327 = vcmp.eq.s32.totalorder %v326, 19
    %v328 = vmul.f32 %v324, %v317
    %329 = vadd.xlane.f32.xlu0 %v328
    %v330 = vpop.xlane.xlu0 %329
    %v331 = vsel %vm327, %v330, %v317
    %v332 = vmul.f32 %v324, %v321
    %333 = vadd.xlane.f32.xlu0 %v332
    %v334 = vpop.xlane.xlu0 %333
    %v335 = vsel %vm327, %v334, %v321
    %s336 = scalar_lea.vmem [#allocation2], 18
    %v337 = vld [vmem:[%s336] ss:$0 sm:$0xff]
    %v338 = vxor.u32 %v337, 2147483648
    %v339 = vlaneseq
    %v340 = vand.u32 %v339, 127
    %vm341 = vcmp.eq.s32.totalorder %v340, 18
    %v342 = vmul.f32 %v338, %v331
    %343 = vadd.xlane.f32.xlu0 %v342
    %v344 = vpop.xlane.xlu0 %343
    %v345 = vsel %vm341, %v344, %v331
    %v346 = vmul.f32 %v338, %v335
    %347 = vadd.xlane.f32.xlu0 %v346
    %v348 = vpop.xlane.xlu0 %347
    %v349 = vsel %vm341, %v348, %v335
    %s350 = scalar_lea.vmem [#allocation2], 17
    %v351 = vld [vmem:[%s350] ss:$0 sm:$0xff]
    %v352 = vxor.u32 %v351, 2147483648
    %v353 = vlaneseq
    %v354 = vand.u32 %v353, 127
    %vm355 = vcmp.eq.s32.totalorder %v354, 17
    %v356 = vmul.f32 %v352, %v345
    %357 = vadd.xlane.f32.xlu0 %v356
    %v358 = vpop.xlane.xlu0 %357
    %v359 = vsel %vm355, %v358, %v345
    %v360 = vmul.f32 %v352, %v349
    %361 = vadd.xlane.f32.xlu0 %v360
    %v362 = vpop.xlane.xlu0 %361
    %v363 = vsel %vm355, %v362, %v349
    %s364 = scalar_lea.vmem [#allocation2], 16
    %v365 = vld [vmem:[%s364] ss:$0 sm:$0xff]
    %v366 = vxor.u32 %v365, 2147483648
    %v367 = vlaneseq
    %v368 = vand.u32 %v367, 127
    %vm369 = vcmp.eq.s32.totalorder %v368, 16
    %v370 = vmul.f32 %v366, %v359
    %371 = vadd.xlane.f32.xlu0 %v370
    %v372 = vpop.xlane.xlu0 %371
    %v373 = vsel %vm369, %v372, %v359
    %v374 = vmul.f32 %v366, %v363
    %375 = vadd.xlane.f32.xlu0 %v374
    %v376 = vpop.xlane.xlu0 %375
    %v377 = vsel %vm369, %v376, %v363
    %s378 = scalar_lea.vmem [#allocation2], 15
    %v379 = vld [vmem:[%s378] ss:$0 sm:$0xff]
    %v380 = vxor.u32 %v379, 2147483648
    %v381 = vlaneseq
    %v382 = vand.u32 %v381, 127
    %vm383 = vcmp.eq.s32.totalorder %v382, 15
    %v384 = vmul.f32 %v380, %v177
    %385 = vadd.xlane.f32.xlu0 %v384
    %v386 = vpop.xlane.xlu0 %385
    %v387 = vsel %vm383, %v386, %v177
    %v388 = vmul.f32 %v380, %v373
    %389 = vadd.xlane.f32.xlu0 %v388
    %v390 = vpop.xlane.xlu0 %389
    %v391 = vsel %vm383, %v390, %v373
    %v392 = vmul.f32 %v380, %v377
    %393 = vadd.xlane.f32.xlu0 %v392
    %v394 = vpop.xlane.xlu0 %393
    %v395 = vsel %vm383, %v394, %v377
    %s396 = scalar_lea.vmem [#allocation2], 14
    %v397 = vld [vmem:[%s396] ss:$0 sm:$0xff]
    %v398 = vxor.u32 %v397, 2147483648
    %v399 = vlaneseq
    %v400 = vand.u32 %v399, 127
    %vm401 = vcmp.eq.s32.totalorder %v400, 14
    %v402 = vmul.f32 %v398, %v387
    %403 = vadd.xlane.f32.xlu0 %v402
    %v404 = vpop.xlane.xlu0 %403
    %v405 = vsel %vm401, %v404, %v387
    %v406 = vmul.f32 %v398, %v391
    %407 = vadd.xlane.f32.xlu0 %v406
    %v408 = vpop.xlane.xlu0 %407
    %v409 = vsel %vm401, %v408, %v391
    %v410 = vmul.f32 %v398, %v395
    %411 = vadd.xlane.f32.xlu0 %v410
    %v412 = vpop.xlane.xlu0 %411
    %v413 = vsel %vm401, %v412, %v395
    %s414 = scalar_lea.vmem [#allocation2], 13
    %v415 = vld [vmem:[%s414] ss:$0 sm:$0xff]
    %v416 = vxor.u32 %v415, 2147483648
    %v417 = vlaneseq
    %v418 = vand.u32 %v417, 127
    %vm419 = vcmp.eq.s32.totalorder %v418, 13
    %v420 = vmul.f32 %v416, %v405
    %421 = vadd.xlane.f32.xlu0 %v420
    %v422 = vpop.xlane.xlu0 %421
    %v423 = vsel %vm419, %v422, %v405
    %v424 = vmul.f32 %v416, %v409
    %425 = vadd.xlane.f32.xlu0 %v424
    %v426 = vpop.xlane.xlu0 %425
    %v427 = vsel %vm419, %v426, %v409
    %v428 = vmul.f32 %v416, %v413
    %429 = vadd.xlane.f32.xlu0 %v428
    %v430 = vpop.xlane.xlu0 %429
    %v431 = vsel %vm419, %v430, %v413
    %s432 = scalar_lea.vmem [#allocation2], 12
    %v433 = vld [vmem:[%s432] ss:$0 sm:$0xff]
    %v434 = vxor.u32 %v433, 2147483648
    %v435 = vlaneseq
    %v436 = vand.u32 %v435, 127
    %vm437 = vcmp.eq.s32.totalorder %v436, 12
    %v438 = vmul.f32 %v434, %v423
    %439 = vadd.xlane.f32.xlu0 %v438
    %v440 = vpop.xlane.xlu0 %439
    %v441 = vsel %vm437, %v440, %v423
    %v442 = vmul.f32 %v434, %v427
    %443 = vadd.xlane.f32.xlu0 %v442
    %v444 = vpop.xlane.xlu0 %443
    %v445 = vsel %vm437, %v444, %v427
    %v446 = vmul.f32 %v434, %v431
    %447 = vadd.xlane.f32.xlu0 %v446
    %v448 = vpop.xlane.xlu0 %447
    %v449 = vsel %vm437, %v448, %v431
    %s450 = scalar_lea.vmem [#allocation2], 11
    %v451 = vld [vmem:[%s450] ss:$0 sm:$0xff]
    %v452 = vxor.u32 %v451, 2147483648
    %v453 = vlaneseq
    %v454 = vand.u32 %v453, 127
    %vm455 = vcmp.eq.s32.totalorder %v454, 11
    %v456 = vmul.f32 %v452, %v441
    %457 = vadd.xlane.f32.xlu0 %v456
    %v458 = vpop.xlane.xlu0 %457
    %v459 = vsel %vm455, %v458, %v441
    %v460 = vmul.f32 %v452, %v445
    %461 = vadd.xlane.f32.xlu0 %v460
    %v462 = vpop.xlane.xlu0 %461
    %v463 = vsel %vm455, %v462, %v445
    %v464 = vmul.f32 %v452, %v449
    %465 = vadd.xlane.f32.xlu0 %v464
    %v466 = vpop.xlane.xlu0 %465
    %v467 = vsel %vm455, %v466, %v449
    %s468 = scalar_lea.vmem [#allocation2], 10
    %v469 = vld [vmem:[%s468] ss:$0 sm:$0xff]
    %v470 = vxor.u32 %v469, 2147483648
    %v471 = vlaneseq
    %v472 = vand.u32 %v471, 127
    %vm473 = vcmp.eq.s32.totalorder %v472, 10
    %v474 = vmul.f32 %v470, %v459
    %475 = vadd.xlane.f32.xlu0 %v474
    %v476 = vpop.xlane.xlu0 %475
    %v477 = vsel %vm473, %v476, %v459
    %v478 = vmul.f32 %v470, %v463
    %479 = vadd.xlane.f32.xlu0 %v478
    %v480 = vpop.xlane.xlu0 %479
    %v481 = vsel %vm473, %v480, %v463
    %v482 = vmul.f32 %v470, %v467
    %483 = vadd.xlane.f32.xlu0 %v482
    %v484 = vpop.xlane.xlu0 %483
    %v485 = vsel %vm473, %v484, %v467
    %s486 = scalar_lea.vmem [#allocation2], 9
    %v487 = vld [vmem:[%s486] ss:$0 sm:$0xff]
    %v488 = vxor.u32 %v487, 2147483648
    %v489 = vlaneseq
    %v490 = vand.u32 %v489, 127
    %vm491 = vcmp.eq.s32.totalorder %v490, 9
    %v492 = vmul.f32 %v488, %v477
    %493 = vadd.xlane.f32.xlu0 %v492
    %v494 = vpop.xlane.xlu0 %493
    %v495 = vsel %vm491, %v494, %v477
    %v496 = vmul.f32 %v488, %v481
    %497 = vadd.xlane.f32.xlu0 %v496
    %v498 = vpop.xlane.xlu0 %497
    %v499 = vsel %vm491, %v498, %v481
    %v500 = vmul.f32 %v488, %v485
    %501 = vadd.xlane.f32.xlu0 %v500
    %v502 = vpop.xlane.xlu0 %501
    %v503 = vsel %vm491, %v502, %v485
    %s504 = scalar_lea.vmem [#allocation2], 8
    %v505 = vld [vmem:[%s504] ss:$0 sm:$0xff]
    %v506 = vxor.u32 %v505, 2147483648
    %v507 = vlaneseq
    %v508 = vand.u32 %v507, 127
    %vm509 = vcmp.eq.s32.totalorder %v508, 8
    %v510 = vmul.f32 %v506, %v495
    %511 = vadd.xlane.f32.xlu0 %v510
    %v512 = vpop.xlane.xlu0 %511
    %v513 = vsel %vm509, %v512, %v495
    %v514 = vmul.f32 %v506, %v499
    %515 = vadd.xlane.f32.xlu0 %v514
    %v516 = vpop.xlane.xlu0 %515
    %v517 = vsel %vm509, %v516, %v499
    %v518 = vmul.f32 %v506, %v503
    %519 = vadd.xlane.f32.xlu0 %v518
    %v520 = vpop.xlane.xlu0 %519
    %v521 = vsel %vm509, %v520, %v503
    %s522 = scalar_lea.vmem [#allocation2], 7
    %v523 = vld [vmem:[%s522] ss:$0 sm:$0xff]
    %v524 = vxor.u32 %v523, 2147483648
    %v525 = vlaneseq
    %v526 = vand.u32 %v525, 127
    %vm527 = vcmp.eq.s32.totalorder %v526, 7
    %v528 = vmul.f32 %v524, %v170
    %529 = vadd.xlane.f32.xlu0 %v528
    %v530 = vpop.xlane.xlu0 %529
    %v531 = vsel %vm527, %v530, %v170
    %v532 = vmul.f32 %v524, %v513
    %533 = vadd.xlane.f32.xlu0 %v532
    %v534 = vpop.xlane.xlu0 %533
    %v535 = vsel %vm527, %v534, %v513
    %v536 = vmul.f32 %v524, %v517
    %537 = vadd.xlane.f32.xlu0 %v536
    %v538 = vpop.xlane.xlu0 %537
    %v539 = vsel %vm527, %v538, %v517
    %v540 = vmul.f32 %v524, %v521
    %541 = vadd.xlane.f32.xlu0 %v540
    %v542 = vpop.xlane.xlu0 %541
    %v543 = vsel %vm527, %v542, %v521
    %s544 = scalar_lea.vmem [#allocation2], 6
    %v545 = vld [vmem:[%s544] ss:$0 sm:$0xff]
    %v546 = vxor.u32 %v545, 2147483648
    %v547 = vlaneseq
    %v548 = vand.u32 %v547, 127
    %vm549 = vcmp.eq.s32.totalorder %v548, 6
    %v550 = vmul.f32 %v546, %v531
    %551 = vadd.xlane.f32.xlu0 %v550
    %v552 = vpop.xlane.xlu0 %551
    %v553 = vsel %vm549, %v552, %v531
    %v554 = vmul.f32 %v546, %v535
    %555 = vadd.xlane.f32.xlu0 %v554
    %v556 = vpop.xlane.xlu0 %555
    %v557 = vsel %vm549, %v556, %v535
    %v558 = vmul.f32 %v546, %v539
    %559 = vadd.xlane.f32.xlu0 %v558
    %v560 = vpop.xlane.xlu0 %559
    %v561 = vsel %vm549, %v560, %v539
    %v562 = vmul.f32 %v546, %v543
    %563 = vadd.xlane.f32.xlu0 %v562
    %v564 = vpop.xlane.xlu0 %563
    %v565 = vsel %vm549, %v564, %v543
    %s566 = scalar_lea.vmem [#allocation2], 5
    %v567 = vld [vmem:[%s566] ss:$0 sm:$0xff]
    %v568 = vxor.u32 %v567, 2147483648
    %v569 = vlaneseq
    %v570 = vand.u32 %v569, 127
    %vm571 = vcmp.eq.s32.totalorder %v570, 5
    %v572 = vmul.f32 %v568, %v553
    %573 = vadd.xlane.f32.xlu0 %v572
    %v574 = vpop.xlane.xlu0 %573
    %v575 = vsel %vm571, %v574, %v553
    %v576 = vmul.f32 %v568, %v557
    %577 = vadd.xlane.f32.xlu0 %v576
    %v578 = vpop.xlane.xlu0 %577
    %v579 = vsel %vm571, %v578, %v557
    %v580 = vmul.f32 %v568, %v561
    %581 = vadd.xlane.f32.xlu0 %v580
    %v582 = vpop.xlane.xlu0 %581
    %v583 = vsel %vm571, %v582, %v561
    %v584 = vmul.f32 %v568, %v565
    %585 = vadd.xlane.f32.xlu0 %v584
    %v586 = vpop.xlane.xlu0 %585
    %v587 = vsel %vm571, %v586, %v565
    %s588 = scalar_lea.vmem [#allocation2], 4
    %v589 = vld [vmem:[%s588] ss:$0 sm:$0xff]
    %v590 = vxor.u32 %v589, 2147483648
    %v591 = vlaneseq
    %v592 = vand.u32 %v591, 127
    %vm593 = vcmp.eq.s32.totalorder %v592, 4
    %v594 = vmul.f32 %v590, %v575
    %595 = vadd.xlane.f32.xlu0 %v594
    %v596 = vpop.xlane.xlu0 %595
    %v597 = vsel %vm593, %v596, %v575
    %v598 = vmul.f32 %v590, %v579
    %599 = vadd.xlane.f32.xlu0 %v598
    %v600 = vpop.xlane.xlu0 %599
    %v601 = vsel %vm593, %v600, %v579
    %v602 = vmul.f32 %v590, %v583
    %603 = vadd.xlane.f32.xlu0 %v602
    %v604 = vpop.xlane.xlu0 %603
    %v605 = vsel %vm593, %v604, %v583
    %v606 = vmul.f32 %v590, %v587
    %607 = vadd.xlane.f32.xlu0 %v606
    %v608 = vpop.xlane.xlu0 %607
    %v609 = vsel %vm593, %v608, %v587
    %s610 = scalar_lea.vmem [#allocation2], 3
    %v611 = vld [vmem:[%s610] ss:$0 sm:$0xff]
    %v612 = vxor.u32 %v611, 2147483648
    %v613 = vlaneseq
    %v614 = vand.u32 %v613, 127
    %vm615 = vcmp.eq.s32.totalorder %v614, 3
    %v616 = vmul.f32 %v612, %v597
    %617 = vadd.xlane.f32.xlu0 %v616
    %v618 = vpop.xlane.xlu0 %617
    %v619 = vsel %vm615, %v618, %v597
    %v620 = vmul.f32 %v612, %v601
    %621 = vadd.xlane.f32.xlu0 %v620
    %v622 = vpop.xlane.xlu0 %621
    %v623 = vsel %vm615, %v622, %v601
    %v624 = vmul.f32 %v612, %v605
    %625 = vadd.xlane.f32.xlu0 %v624
    %v626 = vpop.xlane.xlu0 %625
    %v627 = vsel %vm615, %v626, %v605
    %v628 = vmul.f32 %v612, %v609
    %629 = vadd.xlane.f32.xlu0 %v628
    %v630 = vpop.xlane.xlu0 %629
    %v631 = vsel %vm615, %v630, %v609
    %s632 = scalar_lea.vmem [#allocation2], 2
    %v633 = vld [vmem:[%s632] ss:$0 sm:$0xff]
    %v634 = vxor.u32 %v633, 2147483648
    %v635 = vlaneseq
    %v636 = vand.u32 %v635, 127
    %vm637 = vcmp.eq.s32.totalorder %v636, 2
    %v638 = vmul.f32 %v634, %v619
    %639 = vadd.xlane.f32.xlu0 %v638
    %v640 = vpop.xlane.xlu0 %639
    %v641 = vsel %vm637, %v640, %v619
    %v642 = vmul.f32 %v634, %v623
    %643 = vadd.xlane.f32.xlu0 %v642
    %v644 = vpop.xlane.xlu0 %643
    %v645 = vsel %vm637, %v644, %v623
    %v646 = vmul.f32 %v634, %v627
    %647 = vadd.xlane.f32.xlu0 %v646
    %v648 = vpop.xlane.xlu0 %647
    %v649 = vsel %vm637, %v648, %v627
    %v650 = vmul.f32 %v634, %v631
    %651 = vadd.xlane.f32.xlu0 %v650
    %v652 = vpop.xlane.xlu0 %651
    %v653 = vsel %vm637, %v652, %v631
    %s654 = scalar_lea.vmem [#allocation2], 1
    %v655 = vld [vmem:[%s654] ss:$0 sm:$0xff]
    %v656 = vxor.u32 %v655, 2147483648
    %v657 = vlaneseq
    %v658 = vand.u32 %v657, 127
    %vm659 = vcmp.eq.s32.totalorder %v658, 1
    %v660 = vmul.f32 %v656, %v641
    %661 = vadd.xlane.f32.xlu0 %v660
    %v662 = vpop.xlane.xlu0 %661
    %v663 = vsel %vm659, %v662, %v641
    %v664 = vmul.f32 %v656, %v645
    %665 = vadd.xlane.f32.xlu0 %v664
    %v666 = vpop.xlane.xlu0 %665
    %v667 = vsel %vm659, %v666, %v645
    %v668 = vmul.f32 %v656, %v649
    %669 = vadd.xlane.f32.xlu0 %v668
    %v670 = vpop.xlane.xlu0 %669
    %v671 = vsel %vm659, %v670, %v649
    %v672 = vmul.f32 %v656, %v653
    %673 = vadd.xlane.f32.xlu0 %v672
    %v674 = vpop.xlane.xlu0 %673
    %v675 = vsel %vm659, %v674, %v653
    %v676 = vld [vmem:[#allocation2] ss:$0 sm:$0xff]
    %v677 = vxor.u32 %v676, 2147483648
    %v678 = vlaneseq
    %v679 = vand.u32 %v678, 127
    %vm680 = vcmp.eq.s32.totalorder %v679, 0
    %v681 = vmul.f32 %v677, %v663
    %682 = vadd.xlane.f32.xlu0 %v681
    %v683 = vpop.xlane.xlu0 %682
    %v684 = vsel %vm680, %v683, %v663
    %v685 = vmul.f32 %v677, %v667
    %686 = vadd.xlane.f32.xlu0 %v685
    %v687 = vpop.xlane.xlu0 %686
    %v688 = vsel %vm680, %v687, %v667
    %v689 = vmul.f32 %v677, %v671
    %690 = vadd.xlane.f32.xlu0 %v689
    %v691 = vpop.xlane.xlu0 %690
    %v692 = vsel %vm680, %v691, %v671
    %v693 = vmul.f32 %v677, %v675
    %694 = vadd.xlane.f32.xlu0 %v693
    %v695 = vpop.xlane.xlu0 %694
    %v696 = vsel %vm680, %v695, %v675
    %v697 = vrcp.pop %v57
    %v698 = vmul.f32 %v57, %v697
    %v699 = vsub.f32 1.0, %v698
    %v700 = vmul.f32 %v697, %v699
    %v701 = vadd.f32 %v697, %v700
    %vm702 = vweird.f32 %v57
    %vm703 = vweird.f32 %v697
    %vm704 = vmor %vm702, %vm703
    %v705 = vsel %vm704, %v697, %v701
    %v706 = vand.u32 2147483647, %v57
    %vm707 = vcmp.eq.f32.partialorder %v706, 8.507059e+37
    %v708 = vand.u32 %v57, 2147483648
    %v709 = vor.u32 1.1754944e-38, %v708
    %v710 = vsel %vm707, %v709, %v705
    %v711 = vmul.f32 %v684, %v710
    %vm712 = vweird.f32 %v57
    %v713 = vsel %vm712, %v684, %v711
    %714 = vst [vmem:[#allocation1] sm:$0xff] %v713
    %v715 = vrcp.pop %v86
    %v716 = vmul.f32 %v86, %v715
    %v717 = vsub.f32 1.0, %v716
    %v718 = vmul.f32 %v715, %v717
    %v719 = vadd.f32 %v715, %v718
    %vm720 = vweird.f32 %v86
    %vm721 = vweird.f32 %v715
    %vm722 = vmor %vm720, %vm721
    %v723 = vsel %vm722, %v715, %v719
    %v724 = vand.u32 2147483647, %v86
    %vm725 = vcmp.eq.f32.partialorder %v724, 8.507059e+37
    %v726 = vand.u32 %v86, 2147483648
    %v727 = vor.u32 1.1754944e-38, %v726
    %v728 = vsel %vm725, %v727, %v723
    %v729 = vmul.f32 %v688, %v728
    %vm730 = vweird.f32 %v86
    %v731 = vsel %vm730, %v688, %v729
    %s732 = scalar_lea.vmem [#allocation1], 8
    %733 = vst [vmem:[%s732] sm:$0xff] %v731
    %v734 = vrcp.pop %v115
    %v735 = vmul.f32 %v115, %v734
    %v736 = vsub.f32 1.0, %v735
    %v737 = vmul.f32 %v734, %v736
    %v738 = vadd.f32 %v734, %v737
    %vm739 = vweird.f32 %v115
    %vm740 = vweird.f32 %v734
    %vm741 = vmor %vm739, %vm740
    %v742 = vsel %vm741, %v734, %v738
    %v743 = vand.u32 2147483647, %v115
    %vm744 = vcmp.eq.f32.partialorder %v743, 8.507059e+37
    %v745 = vand.u32 %v115, 2147483648
    %v746 = vor.u32 1.1754944e-38, %v745
    %v747 = vsel %vm744, %v746, %v742
    %v748 = vmul.f32 %v692, %v747
    %vm749 = vweird.f32 %v115
    %v750 = vsel %vm749, %v692, %v748
    %s751 = scalar_lea.vmem [#allocation1], 16
    %752 = vst [vmem:[%s751] sm:$0xff] %v750
    %v753 = vrcp.pop %v144
    %v754 = vmul.f32 %v144, %v753
    %v755 = vsub.f32 1.0, %v754
    %v756 = vmul.f32 %v753, %v755
    %v757 = vadd.f32 %v753, %v756
    %vm758 = vweird.f32 %v144
    %vm759 = vweird.f32 %v753
    %vm760 = vmor %vm758, %vm759
    %v761 = vsel %vm760, %v753, %v757
    %v762 = vand.u32 2147483647, %v144
    %vm763 = vcmp.eq.f32.partialorder %v762, 8.507059e+37
    %v764 = vand.u32 %v144, 2147483648
    %v765 = vor.u32 1.1754944e-38, %v764
    %v766 = vsel %vm763, %v765, %v761
    %v767 = vmul.f32 %v696, %v766
    %vm768 = vweird.f32 %v144
    %v769 = vsel %vm768, %v696, %v767
    %s770 = scalar_lea.vmem [#allocation1], 24
    %771 = vst [vmem:[%s770] sm:$0xff] %v769
    // Predicated region
    $region36: #{custom-call.10} parent=1 // pred_check
      _
    $region37: #{custom-call.10} parent=1 // pred_check_branch
      %773 = sbr.rel (0) target = $region39
    $region38: #{custom-call.10} parent=1 // pred_region
      // Predicated region
      $region40: #{custom-call.10} parent=38 // pred_check
        _
      $region41: #{custom-call.10} parent=38 // pred_check_branch
        %775 = sbr.rel (0) target = $region43
      $region42: #{custom-call.10} parent=38 // pred_region
        // Predicated region
        $region55: #{custom-call.10} parent=42 // pred_check
          _
        $region56: #{custom-call.10} parent=42 // pred_check_branch
          %797 = sbr.rel (0) target = $region58
        $region57: #{custom-call.10} parent=42 // pred_region
          loop: start=0, step=1, limit=1
          $region59: #{custom-call.10} parent=57 // loop_pre_header
            _
          $region60: #{custom-call.10} parent=57 // loop_header
            %s799 = sphi 0, %s803
            %p800 = scmp.ge.s32.totalorder %s799, 1
            %s804 = sphi [#allocation1], [#allocation1]
            %s805 = sphi %s1, %s1
          $region61: #{custom-call.10} parent=57 // loop_header_branch
            %802 = sbr.rel (%p800) target = $region65
          $region62: #{custom-call.10} parent=57 // loop_body
            %v806 = vld [vmem:[%s804] sm:$0xff]
            %807 = vst [vmem:[%s805] sm:$0xff] %v806
            %v808 = vld [vmem:[%s804 + $0x8] sm:$0xff]
            %809 = vst [vmem:[%s805 + $0x8] sm:$0xff] %v808
            %v810 = vld [vmem:[%s804 + $0x10] sm:$0xff]
            %811 = vst [vmem:[%s805 + $0x10] sm:$0xff] %v810
            %v812 = vld [vmem:[%s804 + $0x18] sm:$0xff]
            %813 = vst [vmem:[%s805 + $0x18] sm:$0xff] %v812
          $region63: #{custom-call.10} parent=57 // loop_footer
            %s803 = sadd.s32 1, %s799
          $region64: #{custom-call.10} parent=57 // loop_footer_branch
            %798 = sbr.rel target = $region60
          $region65: #{custom-call.10} parent=57 // loop_exit
            _
        $region58: #{custom-call.10} parent=42 // pred_fallthru
          _
        // Predicated region
        $region66: #{custom-call.10} parent=42 // pred_check
          _
        $region67: #{custom-call.10} parent=42 // pred_check_branch
          %815 = sbr.rel target = $region69
        $region68: #{custom-call.10} parent=42 // pred_region
          _
        $region69: #{custom-call.10} parent=42 // pred_fallthru
          _
      $region43: #{custom-call.10} parent=38 // pred_fallthru
        _
      // Predicated region
      $region44: #{custom-call.10} parent=38 // pred_check
        _
      $region45: #{custom-call.10} parent=38 // pred_check_branch
        %777 = sbr.rel target = $region47
      $region46: #{custom-call.10} parent=38 // pred_region
        %s779 = ssub.s32 256, 1
        loop: start=0, step=1, limit=1
        $region48: #{custom-call.10} parent=46 // loop_pre_header
          _
        $region49: #{custom-call.10} parent=46 // loop_header
          %s781 = sphi 0, %s785
          %p782 = scmp.ge.s32.totalorder %s781, 1
          %s786 = sphi [#allocation1], [#allocation1]
          %s787 = sphi %s1, %s1
        $region50: #{custom-call.10} parent=46 // loop_header_branch
          %784 = sbr.rel (%p782) target = $region54
        $region51: #{custom-call.10} parent=46 // loop_body
          %v788 = vld [vmem:[%s786] sm:%s779]
          %789 = vst [vmem:[%s787] sm:%s779] %v788
          %v790 = vld [vmem:[%s786 + $0x8] sm:%s779]
          %791 = vst [vmem:[%s787 + $0x8] sm:%s779] %v790
          %v792 = vld [vmem:[%s786 + $0x10] sm:%s779]
          %793 = vst [vmem:[%s787 + $0x10] sm:%s779] %v792
          %v794 = vld [vmem:[%s786 + $0x18] sm:%s779]
          %795 = vst [vmem:[%s787 + $0x18] sm:%s779] %v794
        $region52: #{custom-call.10} parent=46 // loop_footer
          %s785 = sadd.s32 1, %s781
        $region53: #{custom-call.10} parent=46 // loop_footer_branch
          %780 = sbr.rel target = $region49
        $region54: #{custom-call.10} parent=46 // loop_exit
          _
      $region47: #{custom-call.10} parent=38 // pred_fallthru
        _
    $region39: #{custom-call.10} parent=1 // pred_fallthru
      _
    %816 = vnop

// kernel: custom-call.11
$region0: #{custom-call.11}
  %s0 = inlined_call_operand.vmem [shape: f32[1,32,32], index: 0, kind: input, shape index: {}]
  %s1 = inlined_call_operand.vmem [shape: f32[1,32,32], index: 1, kind: output, shape index: {}]
  $region1: #{custom-call.11} parent=0
    #allocation0 [shape = 'u8[16384]{0}', space=vmem, size = 0x4000, scoped, tag = 'operand span for operand 0']
    #allocation1 [shape = 'u8[16384]{0}', space=vmem, size = 0x4000, scoped, tag = 'operand span for operand 1']
    #allocation2 [shape = 'f32[32,32]{1,0}', space=vmem, size = 0x4000, scoped, tag = 'rescaled input a']
    // Predicated region
    $region2: #{custom-call.11} parent=1 // pred_check
      _
    $region3: #{custom-call.11} parent=1 // pred_check_branch
      %3 = sbr.rel (0) target = $region5
    $region4: #{custom-call.11} parent=1 // pred_region
      // Predicated region
      $region6: #{custom-call.11} parent=4 // pred_check
        _
      $region7: #{custom-call.11} parent=4 // pred_check_branch
        %5 = sbr.rel (0) target = $region9
      $region8: #{custom-call.11} parent=4 // pred_region
        // Predicated region
        $region21: #{custom-call.11} parent=8 // pred_check
          _
        $region22: #{custom-call.11} parent=8 // pred_check_branch
          %27 = sbr.rel (0) target = $region24
        $region23: #{custom-call.11} parent=8 // pred_region
          loop: start=0, step=1, limit=1
          $region25: #{custom-call.11} parent=23 // loop_pre_header
            _
          $region26: #{custom-call.11} parent=23 // loop_header
            %s29 = sphi 0, %s33
            %p30 = scmp.ge.s32.totalorder %s29, 1
            %s34 = sphi %s0, %s0
            %s35 = sphi [#allocation0], [#allocation0]
          $region27: #{custom-call.11} parent=23 // loop_header_branch
            %32 = sbr.rel (%p30) target = $region31
          $region28: #{custom-call.11} parent=23 // loop_body
            %v36 = vld [vmem:[%s34] sm:$0xff]
            %37 = vst [vmem:[%s35] sm:$0xff] %v36
            %v38 = vld [vmem:[%s34 + $0x8] sm:$0xff]
            %39 = vst [vmem:[%s35 + $0x8] sm:$0xff] %v38
            %v40 = vld [vmem:[%s34 + $0x10] sm:$0xff]
            %41 = vst [vmem:[%s35 + $0x10] sm:$0xff] %v40
            %v42 = vld [vmem:[%s34 + $0x18] sm:$0xff]
            %43 = vst [vmem:[%s35 + $0x18] sm:$0xff] %v42
          $region29: #{custom-call.11} parent=23 // loop_footer
            %s33 = sadd.s32 1, %s29
          $region30: #{custom-call.11} parent=23 // loop_footer_branch
            %28 = sbr.rel target = $region26
          $region31: #{custom-call.11} parent=23 // loop_exit
            _
        $region24: #{custom-call.11} parent=8 // pred_fallthru
          _
        // Predicated region
        $region32: #{custom-call.11} parent=8 // pred_check
          _
        $region33: #{custom-call.11} parent=8 // pred_check_branch
          %45 = sbr.rel target = $region35
        $region34: #{custom-call.11} parent=8 // pred_region
          _
        $region35: #{custom-call.11} parent=8 // pred_fallthru
          _
      $region9: #{custom-call.11} parent=4 // pred_fallthru
        _
      // Predicated region
      $region10: #{custom-call.11} parent=4 // pred_check
        _
      $region11: #{custom-call.11} parent=4 // pred_check_branch
        %7 = sbr.rel target = $region13
      $region12: #{custom-call.11} parent=4 // pred_region
        %s9 = ssub.s32 256, 1
        loop: start=0, step=1, limit=1
        $region14: #{custom-call.11} parent=12 // loop_pre_header
          _
        $region15: #{custom-call.11} parent=12 // loop_header
          %s11 = sphi 0, %s15
          %p12 = scmp.ge.s32.totalorder %s11, 1
          %s16 = sphi %s0, %s0
          %s17 = sphi [#allocation0], [#allocation0]
        $region16: #{custom-call.11} parent=12 // loop_header_branch
          %14 = sbr.rel (%p12) target = $region20
        $region17: #{custom-call.11} parent=12 // loop_body
          %v18 = vld [vmem:[%s16] sm:%s9]
          %19 = vst [vmem:[%s17] sm:%s9] %v18
          %v20 = vld [vmem:[%s16 + $0x8] sm:%s9]
          %21 = vst [vmem:[%s17 + $0x8] sm:%s9] %v20
          %v22 = vld [vmem:[%s16 + $0x10] sm:%s9]
          %23 = vst [vmem:[%s17 + $0x10] sm:%s9] %v22
          %v24 = vld [vmem:[%s16 + $0x18] sm:%s9]
          %25 = vst [vmem:[%s17 + $0x18] sm:%s9] %v24
        $region18: #{custom-call.11} parent=12 // loop_footer
          %s15 = sadd.s32 1, %s11
        $region19: #{custom-call.11} parent=12 // loop_footer_branch
          %10 = sbr.rel target = $region15
        $region20: #{custom-call.11} parent=12 // loop_exit
          _
      $region13: #{custom-call.11} parent=4 // pred_fallthru
        _
    $region5: #{custom-call.11} parent=1 // pred_fallthru
      _
    %46 = vnop
    %v47 = vlaneseq
    %v48 = vand.u32 %v47, 127
    %vm49 = vcmp.lt.s32.totalorder %v48, 32
    %v50 = vlaneseq
    %v51 = vshrl.u32 %v50, 7
    %vm53 = vcmp.eq.s32.totalorder %v51, %v48
    %v54 = vld [vmem:[#allocation0] sm:$0xff]
    %v55 = vsel %vm53, %v54, 0.0
    %56 = vadd.xlane.f32.xlu0 %v55
    %v57 = vpop.xlane.xlu0 %56
    %vm58 = vcmp.ge.s32.totalorder %v51, %v48
    %vm59 = vmand %vm58, %vm49
    %v60 = vsel %vm59, %v54, 0.0
    %v61 = vrcp.pop %v57
    %v62 = vmul.f32 %v57, %v61
    %v63 = vsub.f32 1.0, %v62
    %v64 = vmul.f32 %v61, %v63
    %v65 = vadd.f32 %v61, %v64
    %vm66 = vweird.f32 %v57
    %vm67 = vweird.f32 %v61
    %vm68 = vmor %vm66, %vm67
    %v69 = vsel %vm68, %v61, %v65
    %v70 = vand.u32 2147483647, %v57
    %vm71 = vcmp.eq.f32.partialorder %v70, 8.507059e+37
    %v72 = vand.u32 %v57, 2147483648
    %v73 = vor.u32 1.1754944e-38, %v72
    %v74 = vsel %vm71, %v73, %v69
    %v75 = vmul.f32 %v60, %v74
    %76 = vst [vmem:[#allocation2] sm:$0xff] %v75
    %s77 = scalar_lea.vmem [#allocation0], 8
    %s78 = scalar_lea.vmem [#allocation2], 8
    %v79 = vlaneseq
    %v80 = vshrl.u32 %v79, 7
    %v81 = vadd.s32 %v80, 8
    %vm82 = vcmp.eq.s32.totalorder %v81, %v48
    %v83 = vld [vmem:[%s77] sm:$0xff]
    %v84 = vsel %vm82, %v83, 0.0
    %85 = vadd.xlane.f32.xlu0 %v84
    %v86 = vpop.xlane.xlu0 %85
    %vm87 = vcmp.ge.s32.totalorder %v81, %v48
    %vm88 = vmand %vm87, %vm49
    %v89 = vsel %vm88, %v83, 0.0
    %v90 = vrcp.pop %v86
    %v91 = vmul.f32 %v86, %v90
    %v92 = vsub.f32 1.0, %v91
    %v93 = vmul.f32 %v90, %v92
    %v94 = vadd.f32 %v90, %v93
    %vm95 = vweird.f32 %v86
    %vm96 = vweird.f32 %v90
    %vm97 = vmor %vm95, %vm96
    %v98 = vsel %vm97, %v90, %v94
    %v99 = vand.u32 2147483647, %v86
    %vm100 = vcmp.eq.f32.partialorder %v99, 8.507059e+37
    %v101 = vand.u32 %v86, 2147483648
    %v102 = vor.u32 1.1754944e-38, %v101
    %v103 = vsel %vm100, %v102, %v98
    %v104 = vmul.f32 %v89, %v103
    %105 = vst [vmem:[%s78] sm:$0xff] %v104
    %s106 = scalar_lea.vmem [#allocation0], 16
    %s107 = scalar_lea.vmem [#allocation2], 16
    %v108 = vlaneseq
    %v109 = vshrl.u32 %v108, 7
    %v110 = vadd.s32 %v109, 16
    %vm111 = vcmp.eq.s32.totalorder %v110, %v48
    %v112 = vld [vmem:[%s106] sm:$0xff]
    %v113 = vsel %vm111, %v112, 0.0
    %114 = vadd.xlane.f32.xlu0 %v113
    %v115 = vpop.xlane.xlu0 %114
    %vm116 = vcmp.ge.s32.totalorder %v110, %v48
    %vm117 = vmand %vm116, %vm49
    %v118 = vsel %vm117, %v112, 0.0
    %v119 = vrcp.pop %v115
    %v120 = vmul.f32 %v115, %v119
    %v121 = vsub.f32 1.0, %v120
    %v122 = vmul.f32 %v119, %v121
    %v123 = vadd.f32 %v119, %v122
    %vm124 = vweird.f32 %v115
    %vm125 = vweird.f32 %v119
    %vm126 = vmor %vm124, %vm125
    %v127 = vsel %vm126, %v119, %v123
    %v128 = vand.u32 2147483647, %v115
    %vm129 = vcmp.eq.f32.partialorder %v128, 8.507059e+37
    %v130 = vand.u32 %v115, 2147483648
    %v131 = vor.u32 1.1754944e-38, %v130
    %v132 = vsel %vm129, %v131, %v127
    %v133 = vmul.f32 %v118, %v132
    %134 = vst [vmem:[%s107] sm:$0xff] %v133
    %s135 = scalar_lea.vmem [#allocation0], 24
    %s136 = scalar_lea.vmem [#allocation2], 24
    %v137 = vlaneseq
    %v138 = vshrl.u32 %v137, 7
    %v139 = vadd.s32 %v138, 24
    %vm140 = vcmp.eq.s32.totalorder %v139, %v48
    %v141 = vld [vmem:[%s135] sm:$0xff]
    %v142 = vsel %vm140, %v141, 0.0
    %143 = vadd.xlane.f32.xlu0 %v142
    %v144 = vpop.xlane.xlu0 %143
    %vm145 = vcmp.ge.s32.totalorder %v139, %v48
    %vm146 = vmand %vm145, %vm49
    %v147 = vsel %vm146, %v141, 0.0
    %v148 = vrcp.pop %v144
    %v149 = vmul.f32 %v144, %v148
    %v150 = vsub.f32 1.0, %v149
    %v151 = vmul.f32 %v148, %v150
    %v152 = vadd.f32 %v148, %v151
    %vm153 = vweird.f32 %v144
    %vm154 = vweird.f32 %v148
    %vm155 = vmor %vm153, %vm154
    %v156 = vsel %vm155, %v148, %v152
    %v157 = vand.u32 2147483647, %v144
    %vm158 = vcmp.eq.f32.partialorder %v157, 8.507059e+37
    %v159 = vand.u32 %v144, 2147483648
    %v160 = vor.u32 1.1754944e-38, %v159
    %v161 = vsel %vm158, %v160, %v156
    %v162 = vmul.f32 %v147, %v161
    %163 = vst [vmem:[%s136] sm:$0xff] %v162
    %v164 = vlaneseq
    %v165 = vand.u32 %v164, 127
    %v166 = vlaneseq
    %v167 = vshrl.u32 %v166, 7
    %vm169 = vcmp.eq.s32.totalorder %v165, %v167
    %v170 = vlaneseq
    %v171 = vand.u32 %v170, 127
    %vm172 = vcmp.eq.s32.totalorder %v171, 0
    %v173 = vsel %vm172, 1.0, -1.0
    %v174 = vsel %vm169, %v173, 0.0
    %v175 = vlaneseq
    %v176 = vand.u32 %v175, 127
    %v177 = vlaneseq
    %v178 = vshrl.u32 %v177, 7
    %v179 = vadd.s32 %v178, 8
    %vm180 = vcmp.eq.s32.totalorder %v176, %v179
    %v181 = vsel %vm180, -1.0, 0.0
    %v182 = vlaneseq
    %v183 = vand.u32 %v182, 127
    %v184 = vlaneseq
    %v185 = vshrl.u32 %v184, 7
    %v186 = vadd.s32 %v185, 16
    %vm187 = vcmp.eq.s32.totalorder %v183, %v186
    %v188 = vsel %vm187, -1.0, 0.0
    %v189 = vlaneseq
    %v190 = vand.u32 %v189, 127
    %v191 = vlaneseq
    %v192 = vshrl.u32 %v191, 7
    %v193 = vadd.s32 %v192, 24
    %vm194 = vcmp.eq.s32.totalorder %v190, %v193
    %v195 = vsel %vm194, -1.0, 0.0
    %s196 = scalar_lea.vmem [#allocation2], 1
    %v197 = vld [vmem:[%s196] ss:$0 sm:$0xff]
    %v198 = vxor.u32 %v197, 2147483648
    %v199 = vlaneseq
    %v200 = vand.u32 %v199, 127
    %vm201 = vcmp.eq.s32.totalorder %v200, 1
    %v202 = vmul.f32 %v198, %v174
    %203 = vadd.xlane.f32.xlu0 %v202
    %v204 = vpop.xlane.xlu0 %203
    %v205 = vsel %vm201, %v204, %v174
    %s206 = scalar_lea.vmem [#allocation2], 2
    %v207 = vld [vmem:[%s206] ss:$0 sm:$0xff]
    %v208 = vxor.u32 %v207, 2147483648
    %v209 = vlaneseq
    %v210 = vand.u32 %v209, 127
    %vm211 = vcmp.eq.s32.totalorder %v210, 2
    %v212 = vmul.f32 %v208, %v205
    %213 = vadd.xlane.f32.xlu0 %v212
    %v214 = vpop.xlane.xlu0 %213
    %v215 = vsel %vm211, %v214, %v205
    %s216 = scalar_lea.vmem [#allocation2], 3
    %v217 = vld [vmem:[%s216] ss:$0 sm:$0xff]
    %v218 = vxor.u32 %v217, 2147483648
    %v219 = vlaneseq
    %v220 = vand.u32 %v219, 127
    %vm221 = vcmp.eq.s32.totalorder %v220, 3
    %v222 = vmul.f32 %v218, %v215
    %223 = vadd.xlane.f32.xlu0 %v222
    %v224 = vpop.xlane.xlu0 %223
    %v225 = vsel %vm221, %v224, %v215
    %s226 = scalar_lea.vmem [#allocation2], 4
    %v227 = vld [vmem:[%s226] ss:$0 sm:$0xff]
    %v228 = vxor.u32 %v227, 2147483648
    %v229 = vlaneseq
    %v230 = vand.u32 %v229, 127
    %vm231 = vcmp.eq.s32.totalorder %v230, 4
    %v232 = vmul.f32 %v228, %v225
    %233 = vadd.xlane.f32.xlu0 %v232
    %v234 = vpop.xlane.xlu0 %233
    %v235 = vsel %vm231, %v234, %v225
    %s236 = scalar_lea.vmem [#allocation2], 5
    %v237 = vld [vmem:[%s236] ss:$0 sm:$0xff]
    %v238 = vxor.u32 %v237, 2147483648
    %v239 = vlaneseq
    %v240 = vand.u32 %v239, 127
    %vm241 = vcmp.eq.s32.totalorder %v240, 5
    %v242 = vmul.f32 %v238, %v235
    %243 = vadd.xlane.f32.xlu0 %v242
    %v244 = vpop.xlane.xlu0 %243
    %v245 = vsel %vm241, %v244, %v235
    %s246 = scalar_lea.vmem [#allocation2], 6
    %v247 = vld [vmem:[%s246] ss:$0 sm:$0xff]
    %v248 = vxor.u32 %v247, 2147483648
    %v249 = vlaneseq
    %v250 = vand.u32 %v249, 127
    %vm251 = vcmp.eq.s32.totalorder %v250, 6
    %v252 = vmul.f32 %v248, %v245
    %253 = vadd.xlane.f32.xlu0 %v252
    %v254 = vpop.xlane.xlu0 %253
    %v255 = vsel %vm251, %v254, %v245
    %s256 = scalar_lea.vmem [#allocation2], 7
    %v257 = vld [vmem:[%s256] ss:$0 sm:$0xff]
    %v258 = vxor.u32 %v257, 2147483648
    %v259 = vlaneseq
    %v260 = vand.u32 %v259, 127
    %vm261 = vcmp.eq.s32.totalorder %v260, 7
    %v262 = vmul.f32 %v258, %v255
    %263 = vadd.xlane.f32.xlu0 %v262
    %v264 = vpop.xlane.xlu0 %263
    %v265 = vsel %vm261, %v264, %v255
    %s266 = scalar_lea.vmem [#allocation2], 8
    %v267 = vld [vmem:[%s266] ss:$0 sm:$0xff]
    %v268 = vxor.u32 %v267, 2147483648
    %v269 = vlaneseq
    %v270 = vand.u32 %v269, 127
    %vm271 = vcmp.eq.s32.totalorder %v270, 8
    %v272 = vmul.f32 %v268, %v265
    %273 = vadd.xlane.f32.xlu0 %v272
    %v274 = vpop.xlane.xlu0 %273
    %v275 = vsel %vm271, %v274, %v265
    %v276 = vmul.f32 %v268, %v181
    %277 = vadd.xlane.f32.xlu0 %v276
    %v278 = vpop.xlane.xlu0 %277
    %v279 = vsel %vm271, %v278, %v181
    %s280 = scalar_lea.vmem [#allocation2], 9
    %v281 = vld [vmem:[%s280] ss:$0 sm:$0xff]
    %v282 = vxor.u32 %v281, 2147483648
    %v283 = vlaneseq
    %v284 = vand.u32 %v283, 127
    %vm285 = vcmp.eq.s32.totalorder %v284, 9
    %v286 = vmul.f32 %v282, %v275
    %287 = vadd.xlane.f32.xlu0 %v286
    %v288 = vpop.xlane.xlu0 %287
    %v289 = vsel %vm285, %v288, %v275
    %v290 = vmul.f32 %v282, %v279
    %291 = vadd.xlane.f32.xlu0 %v290
    %v292 = vpop.xlane.xlu0 %291
    %v293 = vsel %vm285, %v292, %v279
    %s294 = scalar_lea.vmem [#allocation2], 10
    %v295 = vld [vmem:[%s294] ss:$0 sm:$0xff]
    %v296 = vxor.u32 %v295, 2147483648
    %v297 = vlaneseq
    %v298 = vand.u32 %v297, 127
    %vm299 = vcmp.eq.s32.totalorder %v298, 10
    %v300 = vmul.f32 %v296, %v289
    %301 = vadd.xlane.f32.xlu0 %v300
    %v302 = vpop.xlane.xlu0 %301
    %v303 = vsel %vm299, %v302, %v289
    %v304 = vmul.f32 %v296, %v293
    %305 = vadd.xlane.f32.xlu0 %v304
    %v306 = vpop.xlane.xlu0 %305
    %v307 = vsel %vm299, %v306, %v293
    %s308 = scalar_lea.vmem [#allocation2], 11
    %v309 = vld [vmem:[%s308] ss:$0 sm:$0xff]
    %v310 = vxor.u32 %v309, 2147483648
    %v311 = vlaneseq
    %v312 = vand.u32 %v311, 127
    %vm313 = vcmp.eq.s32.totalorder %v312, 11
    %v314 = vmul.f32 %v310, %v303
    %315 = vadd.xlane.f32.xlu0 %v314
    %v316 = vpop.xlane.xlu0 %315
    %v317 = vsel %vm313, %v316, %v303
    %v318 = vmul.f32 %v310, %v307
    %319 = vadd.xlane.f32.xlu0 %v318
    %v320 = vpop.xlane.xlu0 %319
    %v321 = vsel %vm313, %v320, %v307
    %s322 = scalar_lea.vmem [#allocation2], 12
    %v323 = vld [vmem:[%s322] ss:$0 sm:$0xff]
    %v324 = vxor.u32 %v323, 2147483648
    %v325 = vlaneseq
    %v326 = vand.u32 %v325, 127
    %vm327 = vcmp.eq.s32.totalorder %v326, 12
    %v328 = vmul.f32 %v324, %v317
    %329 = vadd.xlane.f32.xlu0 %v328
    %v330 = vpop.xlane.xlu0 %329
    %v331 = vsel %vm327, %v330, %v317
    %v332 = vmul.f32 %v324, %v321
    %333 = vadd.xlane.f32.xlu0 %v332
    %v334 = vpop.xlane.xlu0 %333
    %v335 = vsel %vm327, %v334, %v321
    %s336 = scalar_lea.vmem [#allocation2], 13
    %v337 = vld [vmem:[%s336] ss:$0 sm:$0xff]
    %v338 = vxor.u32 %v337, 2147483648
    %v339 = vlaneseq
    %v340 = vand.u32 %v339, 127
    %vm341 = vcmp.eq.s32.totalorder %v340, 13
    %v342 = vmul.f32 %v338, %v331
    %343 = vadd.xlane.f32.xlu0 %v342
    %v344 = vpop.xlane.xlu0 %343
    %v345 = vsel %vm341, %v344, %v331
    %v346 = vmul.f32 %v338, %v335
    %347 = vadd.xlane.f32.xlu0 %v346
    %v348 = vpop.xlane.xlu0 %347
    %v349 = vsel %vm341, %v348, %v335
    %s350 = scalar_lea.vmem [#allocation2], 14
    %v351 = vld [vmem:[%s350] ss:$0 sm:$0xff]
    %v352 = vxor.u32 %v351, 2147483648
    %v353 = vlaneseq
    %v354 = vand.u32 %v353, 127
    %vm355 = vcmp.eq.s32.totalorder %v354, 14
    %v356 = vmul.f32 %v352, %v345
    %357 = vadd.xlane.f32.xlu0 %v356
    %v358 = vpop.xlane.xlu0 %357
    %v359 = vsel %vm355, %v358, %v345
    %v360 = vmul.f32 %v352, %v349
    %361 = vadd.xlane.f32.xlu0 %v360
    %v362 = vpop.xlane.xlu0 %361
    %v363 = vsel %vm355, %v362, %v349
    %s364 = scalar_lea.vmem [#allocation2], 15
    %v365 = vld [vmem:[%s364] ss:$0 sm:$0xff]
    %v366 = vxor.u32 %v365, 2147483648
    %v367 = vlaneseq
    %v368 = vand.u32 %v367, 127
    %vm369 = vcmp.eq.s32.totalorder %v368, 15
    %v370 = vmul.f32 %v366, %v359
    %371 = vadd.xlane.f32.xlu0 %v370
    %v372 = vpop.xlane.xlu0 %371
    %v373 = vsel %vm369, %v372, %v359
    %v374 = vmul.f32 %v366, %v363
    %375 = vadd.xlane.f32.xlu0 %v374
    %v376 = vpop.xlane.xlu0 %375
    %v377 = vsel %vm369, %v376, %v363
    %s378 = scalar_lea.vmem [#allocation2], 16
    %v379 = vld [vmem:[%s378] ss:$0 sm:$0xff]
    %v380 = vxor.u32 %v379, 2147483648
    %v381 = vlaneseq
    %v382 = vand.u32 %v381, 127
    %vm383 = vcmp.eq.s32.totalorder %v382, 16
    %v384 = vmul.f32 %v380, %v373
    %385 = vadd.xlane.f32.xlu0 %v384
    %v386 = vpop.xlane.xlu0 %385
    %v387 = vsel %vm383, %v386, %v373
    %v388 = vmul.f32 %v380, %v377
    %389 = vadd.xlane.f32.xlu0 %v388
    %v390 = vpop.xlane.xlu0 %389
    %v391 = vsel %vm383, %v390, %v377
    %v392 = vmul.f32 %v380, %v188
    %393 = vadd.xlane.f32.xlu0 %v392
    %v394 = vpop.xlane.xlu0 %393
    %v395 = vsel %vm383, %v394, %v188
    %s396 = scalar_lea.vmem [#allocation2], 17
    %v397 = vld [vmem:[%s396] ss:$0 sm:$0xff]
    %v398 = vxor.u32 %v397, 2147483648
    %v399 = vlaneseq
    %v400 = vand.u32 %v399, 127
    %vm401 = vcmp.eq.s32.totalorder %v400, 17
    %v402 = vmul.f32 %v398, %v387
    %403 = vadd.xlane.f32.xlu0 %v402
    %v404 = vpop.xlane.xlu0 %403
    %v405 = vsel %vm401, %v404, %v387
    %v406 = vmul.f32 %v398, %v391
    %407 = vadd.xlane.f32.xlu0 %v406
    %v408 = vpop.xlane.xlu0 %407
    %v409 = vsel %vm401, %v408, %v391
    %v410 = vmul.f32 %v398, %v395
    %411 = vadd.xlane.f32.xlu0 %v410
    %v412 = vpop.xlane.xlu0 %411
    %v413 = vsel %vm401, %v412, %v395
    %s414 = scalar_lea.vmem [#allocation2], 18
    %v415 = vld [vmem:[%s414] ss:$0 sm:$0xff]
    %v416 = vxor.u32 %v415, 2147483648
    %v417 = vlaneseq
    %v418 = vand.u32 %v417, 127
    %vm419 = vcmp.eq.s32.totalorder %v418, 18
    %v420 = vmul.f32 %v416, %v405
    %421 = vadd.xlane.f32.xlu0 %v420
    %v422 = vpop.xlane.xlu0 %421
    %v423 = vsel %vm419, %v422, %v405
    %v424 = vmul.f32 %v416, %v409
    %425 = vadd.xlane.f32.xlu0 %v424
    %v426 = vpop.xlane.xlu0 %425
    %v427 = vsel %vm419, %v426, %v409
    %v428 = vmul.f32 %v416, %v413
    %429 = vadd.xlane.f32.xlu0 %v428
    %v430 = vpop.xlane.xlu0 %429
    %v431 = vsel %vm419, %v430, %v413
    %s432 = scalar_lea.vmem [#allocation2], 19
    %v433 = vld [vmem:[%s432] ss:$0 sm:$0xff]
    %v434 = vxor.u32 %v433, 2147483648
    %v435 = vlaneseq
    %v436 = vand.u32 %v435, 127
    %vm437 = vcmp.eq.s32.totalorder %v436, 19
    %v438 = vmul.f32 %v434, %v423
    %439 = vadd.xlane.f32.xlu0 %v438
    %v440 = vpop.xlane.xlu0 %439
    %v441 = vsel %vm437, %v440, %v423
    %v442 = vmul.f32 %v434, %v427
    %443 = vadd.xlane.f32.xlu0 %v442
    %v444 = vpop.xlane.xlu0 %443
    %v445 = vsel %vm437, %v444, %v427
    %v446 = vmul.f32 %v434, %v431
    %447 = vadd.xlane.f32.xlu0 %v446
    %v448 = vpop.xlane.xlu0 %447
    %v449 = vsel %vm437, %v448, %v431
    %s450 = scalar_lea.vmem [#allocation2], 20
    %v451 = vld [vmem:[%s450] ss:$0 sm:$0xff]
    %v452 = vxor.u32 %v451, 2147483648
    %v453 = vlaneseq
    %v454 = vand.u32 %v453, 127
    %vm455 = vcmp.eq.s32.totalorder %v454, 20
    %v456 = vmul.f32 %v452, %v441
    %457 = vadd.xlane.f32.xlu0 %v456
    %v458 = vpop.xlane.xlu0 %457
    %v459 = vsel %vm455, %v458, %v441
    %v460 = vmul.f32 %v452, %v445
    %461 = vadd.xlane.f32.xlu0 %v460
    %v462 = vpop.xlane.xlu0 %461
    %v463 = vsel %vm455, %v462, %v445
    %v464 = vmul.f32 %v452, %v449
    %465 = vadd.xlane.f32.xlu0 %v464
    %v466 = vpop.xlane.xlu0 %465
    %v467 = vsel %vm455, %v466, %v449
    %s468 = scalar_lea.vmem [#allocation2], 21
    %v469 = vld [vmem:[%s468] ss:$0 sm:$0xff]
    %v470 = vxor.u32 %v469, 2147483648
    %v471 = vlaneseq
    %v472 = vand.u32 %v471, 127
    %vm473 = vcmp.eq.s32.totalorder %v472, 21
    %v474 = vmul.f32 %v470, %v459
    %475 = vadd.xlane.f32.xlu0 %v474
    %v476 = vpop.xlane.xlu0 %475
    %v477 = vsel %vm473, %v476, %v459
    %v478 = vmul.f32 %v470, %v463
    %479 = vadd.xlane.f32.xlu0 %v478
    %v480 = vpop.xlane.xlu0 %479
    %v481 = vsel %vm473, %v480, %v463
    %v482 = vmul.f32 %v470, %v467
    %483 = vadd.xlane.f32.xlu0 %v482
    %v484 = vpop.xlane.xlu0 %483
    %v485 = vsel %vm473, %v484, %v467
    %s486 = scalar_lea.vmem [#allocation2], 22
    %v487 = vld [vmem:[%s486] ss:$0 sm:$0xff]
    %v488 = vxor.u32 %v487, 2147483648
    %v489 = vlaneseq
    %v490 = vand.u32 %v489, 127
    %vm491 = vcmp.eq.s32.totalorder %v490, 22
    %v492 = vmul.f32 %v488, %v477
    %493 = vadd.xlane.f32.xlu0 %v492
    %v494 = vpop.xlane.xlu0 %493
    %v495 = vsel %vm491, %v494, %v477
    %v496 = vmul.f32 %v488, %v481
    %497 = vadd.xlane.f32.xlu0 %v496
    %v498 = vpop.xlane.xlu0 %497
    %v499 = vsel %vm491, %v498, %v481
    %v500 = vmul.f32 %v488, %v485
    %501 = vadd.xlane.f32.xlu0 %v500
    %v502 = vpop.xlane.xlu0 %501
    %v503 = vsel %vm491, %v502, %v485
    %s504 = scalar_lea.vmem [#allocation2], 23
    %v505 = vld [vmem:[%s504] ss:$0 sm:$0xff]
    %v506 = vxor.u32 %v505, 2147483648
    %v507 = vlaneseq
    %v508 = vand.u32 %v507, 127
    %vm509 = vcmp.eq.s32.totalorder %v508, 23
    %v510 = vmul.f32 %v506, %v495
    %511 = vadd.xlane.f32.xlu0 %v510
    %v512 = vpop.xlane.xlu0 %511
    %v513 = vsel %vm509, %v512, %v495
    %v514 = vmul.f32 %v506, %v499
    %515 = vadd.xlane.f32.xlu0 %v514
    %v516 = vpop.xlane.xlu0 %515
    %v517 = vsel %vm509, %v516, %v499
    %v518 = vmul.f32 %v506, %v503
    %519 = vadd.xlane.f32.xlu0 %v518
    %v520 = vpop.xlane.xlu0 %519
    %v521 = vsel %vm509, %v520, %v503
    %s522 = scalar_lea.vmem [#allocation2], 24
    %v523 = vld [vmem:[%s522] ss:$0 sm:$0xff]
    %v524 = vxor.u32 %v523, 2147483648
    %v525 = vlaneseq
    %v526 = vand.u32 %v525, 127
    %vm527 = vcmp.eq.s32.totalorder %v526, 24
    %v528 = vmul.f32 %v524, %v513
    %529 = vadd.xlane.f32.xlu0 %v528
    %v530 = vpop.xlane.xlu0 %529
    %v531 = vsel %vm527, %v530, %v513
    %v532 = vmul.f32 %v524, %v517
    %533 = vadd.xlane.f32.xlu0 %v532
    %v534 = vpop.xlane.xlu0 %533
    %v535 = vsel %vm527, %v534, %v517
    %v536 = vmul.f32 %v524, %v521
    %537 = vadd.xlane.f32.xlu0 %v536
    %v538 = vpop.xlane.xlu0 %537
    %v539 = vsel %vm527, %v538, %v521
    %v540 = vmul.f32 %v524, %v195
    %541 = vadd.xlane.f32.xlu0 %v540
    %v542 = vpop.xlane.xlu0 %541
    %v543 = vsel %vm527, %v542, %v195
    %s544 = scalar_lea.vmem [#allocation2], 25
    %v545 = vld [vmem:[%s544] ss:$0 sm:$0xff]
    %v546 = vxor.u32 %v545, 2147483648
    %v547 = vlaneseq
    %v548 = vand.u32 %v547, 127
    %vm549 = vcmp.eq.s32.totalorder %v548, 25
    %v550 = vmul.f32 %v546, %v531
    %551 = vadd.xlane.f32.xlu0 %v550
    %v552 = vpop.xlane.xlu0 %551
    %v553 = vsel %vm549, %v552, %v531
    %v554 = vmul.f32 %v546, %v535
    %555 = vadd.xlane.f32.xlu0 %v554
    %v556 = vpop.xlane.xlu0 %555
    %v557 = vsel %vm549, %v556, %v535
    %v558 = vmul.f32 %v546, %v539
    %559 = vadd.xlane.f32.xlu0 %v558
    %v560 = vpop.xlane.xlu0 %559
    %v561 = vsel %vm549, %v560, %v539
    %v562 = vmul.f32 %v546, %v543
    %563 = vadd.xlane.f32.xlu0 %v562
    %v564 = vpop.xlane.xlu0 %563
    %v565 = vsel %vm549, %v564, %v543
    %s566 = scalar_lea.vmem [#allocation2], 26
    %v567 = vld [vmem:[%s566] ss:$0 sm:$0xff]
    %v568 = vxor.u32 %v567, 2147483648
    %v569 = vlaneseq
    %v570 = vand.u32 %v569, 127
    %vm571 = vcmp.eq.s32.totalorder %v570, 26
    %v572 = vmul.f32 %v568, %v553
    %573 = vadd.xlane.f32.xlu0 %v572
    %v574 = vpop.xlane.xlu0 %573
    %v575 = vsel %vm571, %v574, %v553
    %v576 = vmul.f32 %v568, %v557
    %577 = vadd.xlane.f32.xlu0 %v576
    %v578 = vpop.xlane.xlu0 %577
    %v579 = vsel %vm571, %v578, %v557
    %v580 = vmul.f32 %v568, %v561
    %581 = vadd.xlane.f32.xlu0 %v580
    %v582 = vpop.xlane.xlu0 %581
    %v583 = vsel %vm571, %v582, %v561
    %v584 = vmul.f32 %v568, %v565
    %585 = vadd.xlane.f32.xlu0 %v584
    %v586 = vpop.xlane.xlu0 %585
    %v587 = vsel %vm571, %v586, %v565
    %s588 = scalar_lea.vmem [#allocation2], 27
    %v589 = vld [vmem:[%s588] ss:$0 sm:$0xff]
    %v590 = vxor.u32 %v589, 2147483648
    %v591 = vlaneseq
    %v592 = vand.u32 %v591, 127
    %vm593 = vcmp.eq.s32.totalorder %v592, 27
    %v594 = vmul.f32 %v590, %v575
    %595 = vadd.xlane.f32.xlu0 %v594
    %v596 = vpop.xlane.xlu0 %595
    %v597 = vsel %vm593, %v596, %v575
    %v598 = vmul.f32 %v590, %v579
    %599 = vadd.xlane.f32.xlu0 %v598
    %v600 = vpop.xlane.xlu0 %599
    %v601 = vsel %vm593, %v600, %v579
    %v602 = vmul.f32 %v590, %v583
    %603 = vadd.xlane.f32.xlu0 %v602
    %v604 = vpop.xlane.xlu0 %603
    %v605 = vsel %vm593, %v604, %v583
    %v606 = vmul.f32 %v590, %v587
    %607 = vadd.xlane.f32.xlu0 %v606
    %v608 = vpop.xlane.xlu0 %607
    %v609 = vsel %vm593, %v608, %v587
    %s610 = scalar_lea.vmem [#allocation2], 28
    %v611 = vld [vmem:[%s610] ss:$0 sm:$0xff]
    %v612 = vxor.u32 %v611, 2147483648
    %v613 = vlaneseq
    %v614 = vand.u32 %v613, 127
    %vm615 = vcmp.eq.s32.totalorder %v614, 28
    %v616 = vmul.f32 %v612, %v597
    %617 = vadd.xlane.f32.xlu0 %v616
    %v618 = vpop.xlane.xlu0 %617
    %v619 = vsel %vm615, %v618, %v597
    %v620 = vmul.f32 %v612, %v601
    %621 = vadd.xlane.f32.xlu0 %v620
    %v622 = vpop.xlane.xlu0 %621
    %v623 = vsel %vm615, %v622, %v601
    %v624 = vmul.f32 %v612, %v605
    %625 = vadd.xlane.f32.xlu0 %v624
    %v626 = vpop.xlane.xlu0 %625
    %v627 = vsel %vm615, %v626, %v605
    %v628 = vmul.f32 %v612, %v609
    %629 = vadd.xlane.f32.xlu0 %v628
    %v630 = vpop.xlane.xlu0 %629
    %v631 = vsel %vm615, %v630, %v609
    %s632 = scalar_lea.vmem [#allocation2], 29
    %v633 = vld [vmem:[%s632] ss:$0 sm:$0xff]
    %v634 = vxor.u32 %v633, 2147483648
    %v635 = vlaneseq
    %v636 = vand.u32 %v635, 127
    %vm637 = vcmp.eq.s32.totalorder %v636, 29
    %v638 = vmul.f32 %v634, %v619
    %639 = vadd.xlane.f32.xlu0 %v638
    %v640 = vpop.xlane.xlu0 %639
    %v641 = vsel %vm637, %v640, %v619
    %v642 = vmul.f32 %v634, %v623
    %643 = vadd.xlane.f32.xlu0 %v642
    %v644 = vpop.xlane.xlu0 %643
    %v645 = vsel %vm637, %v644, %v623
    %v646 = vmul.f32 %v634, %v627
    %647 = vadd.xlane.f32.xlu0 %v646
    %v648 = vpop.xlane.xlu0 %647
    %v649 = vsel %vm637, %v648, %v627
    %v650 = vmul.f32 %v634, %v631
    %651 = vadd.xlane.f32.xlu0 %v650
    %v652 = vpop.xlane.xlu0 %651
    %v653 = vsel %vm637, %v652, %v631
    %s654 = scalar_lea.vmem [#allocation2], 30
    %v655 = vld [vmem:[%s654] ss:$0 sm:$0xff]
    %v656 = vxor.u32 %v655, 2147483648
    %v657 = vlaneseq
    %v658 = vand.u32 %v657, 127
    %vm659 = vcmp.eq.s32.totalorder %v658, 30
    %v660 = vmul.f32 %v656, %v641
    %661 = vadd.xlane.f32.xlu0 %v660
    %v662 = vpop.xlane.xlu0 %661
    %v663 = vsel %vm659, %v662, %v641
    %v664 = vmul.f32 %v656, %v645
    %665 = vadd.xlane.f32.xlu0 %v664
    %v666 = vpop.xlane.xlu0 %665
    %v667 = vsel %vm659, %v666, %v645
    %v668 = vmul.f32 %v656, %v649
    %669 = vadd.xlane.f32.xlu0 %v668
    %v670 = vpop.xlane.xlu0 %669
    %v671 = vsel %vm659, %v670, %v649
    %v672 = vmul.f32 %v656, %v653
    %673 = vadd.xlane.f32.xlu0 %v672
    %v674 = vpop.xlane.xlu0 %673
    %v675 = vsel %vm659, %v674, %v653
    %s676 = scalar_lea.vmem [#allocation2], 31
    %v677 = vld [vmem:[%s676] ss:$0 sm:$0xff]
    %v678 = vxor.u32 %v677, 2147483648
    %v679 = vlaneseq
    %v680 = vand.u32 %v679, 127
    %vm681 = vcmp.eq.s32.totalorder %v680, 31
    %v682 = vmul.f32 %v678, %v663
    %683 = vadd.xlane.f32.xlu0 %v682
    %v684 = vpop.xlane.xlu0 %683
    %v685 = vsel %vm681, %v684, %v663
    %v686 = vmul.f32 %v678, %v667
    %687 = vadd.xlane.f32.xlu0 %v686
    %v688 = vpop.xlane.xlu0 %687
    %v689 = vsel %vm681, %v688, %v667
    %v690 = vmul.f32 %v678, %v671
    %691 = vadd.xlane.f32.xlu0 %v690
    %v692 = vpop.xlane.xlu0 %691
    %v693 = vsel %vm681, %v692, %v671
    %v694 = vmul.f32 %v678, %v675
    %695 = vadd.xlane.f32.xlu0 %v694
    %v696 = vpop.xlane.xlu0 %695
    %v697 = vsel %vm681, %v696, %v675
    %v698 = vrcp.pop %v57
    %v699 = vmul.f32 %v57, %v698
    %v700 = vsub.f32 1.0, %v699
    %v701 = vmul.f32 %v698, %v700
    %v702 = vadd.f32 %v698, %v701
    %vm703 = vweird.f32 %v57
    %vm704 = vweird.f32 %v698
    %vm705 = vmor %vm703, %vm704
    %v706 = vsel %vm705, %v698, %v702
    %v707 = vand.u32 2147483647, %v57
    %vm708 = vcmp.eq.f32.partialorder %v707, 8.507059e+37
    %v709 = vand.u32 %v57, 2147483648
    %v710 = vor.u32 1.1754944e-38, %v709
    %v711 = vsel %vm708, %v710, %v706
    %v712 = vmul.f32 %v685, %v711
    %vm713 = vweird.f32 %v57
    %v714 = vsel %vm713, %v685, %v712
    %715 = vst [vmem:[#allocation1] sm:$0xff] %v714
    %v716 = vrcp.pop %v86
    %v717 = vmul.f32 %v86, %v716
    %v718 = vsub.f32 1.0, %v717
    %v719 = vmul.f32 %v716, %v718
    %v720 = vadd.f32 %v716, %v719
    %vm721 = vweird.f32 %v86
    %vm722 = vweird.f32 %v716
    %vm723 = vmor %vm721, %vm722
    %v724 = vsel %vm723, %v716, %v720
    %v725 = vand.u32 2147483647, %v86
    %vm726 = vcmp.eq.f32.partialorder %v725, 8.507059e+37
    %v727 = vand.u32 %v86, 2147483648
    %v728 = vor.u32 1.1754944e-38, %v727
    %v729 = vsel %vm726, %v728, %v724
    %v730 = vmul.f32 %v689, %v729
    %vm731 = vweird.f32 %v86
    %v732 = vsel %vm731, %v689, %v730
    %s733 = scalar_lea.vmem [#allocation1], 8
    %734 = vst [vmem:[%s733] sm:$0xff] %v732
    %v735 = vrcp.pop %v115
    %v736 = vmul.f32 %v115, %v735
    %v737 = vsub.f32 1.0, %v736
    %v738 = vmul.f32 %v735, %v737
    %v739 = vadd.f32 %v735, %v738
    %vm740 = vweird.f32 %v115
    %vm741 = vweird.f32 %v735
    %vm742 = vmor %vm740, %vm741
    %v743 = vsel %vm742, %v735, %v739
    %v744 = vand.u32 2147483647, %v115
    %vm745 = vcmp.eq.f32.partialorder %v744, 8.507059e+37
    %v746 = vand.u32 %v115, 2147483648
    %v747 = vor.u32 1.1754944e-38, %v746
    %v748 = vsel %vm745, %v747, %v743
    %v749 = vmul.f32 %v693, %v748
    %vm750 = vweird.f32 %v115
    %v751 = vsel %vm750, %v693, %v749
    %s752 = scalar_lea.vmem [#allocation1], 16
    %753 = vst [vmem:[%s752] sm:$0xff] %v751
    %v754 = vrcp.pop %v144
    %v755 = vmul.f32 %v144, %v754
    %v756 = vsub.f32 1.0, %v755
    %v757 = vmul.f32 %v754, %v756
    %v758 = vadd.f32 %v754, %v757
    %vm759 = vweird.f32 %v144
    %vm760 = vweird.f32 %v754
    %vm761 = vmor %vm759, %vm760
    %v762 = vsel %vm761, %v754, %v758
    %v763 = vand.u32 2147483647, %v144
    %vm764 = vcmp.eq.f32.partialorder %v763, 8.507059e+37
    %v765 = vand.u32 %v144, 2147483648
    %v766 = vor.u32 1.1754944e-38, %v765
    %v767 = vsel %vm764, %v766, %v762
    %v768 = vmul.f32 %v697, %v767
    %vm769 = vweird.f32 %v144
    %v770 = vsel %vm769, %v697, %v768
    %s771 = scalar_lea.vmem [#allocation1], 24
    %772 = vst [vmem:[%s771] sm:$0xff] %v770
    // Predicated region
    $region36: #{custom-call.11} parent=1 // pred_check
      _
    $region37: #{custom-call.11} parent=1 // pred_check_branch
      %774 = sbr.rel (0) target = $region39
    $region38: #{custom-call.11} parent=1 // pred_region
      // Predicated region
      $region40: #{custom-call.11} parent=38 // pred_check
        _
      $region41: #{custom-call.11} parent=38 // pred_check_branch
        %776 = sbr.rel (0) target = $region43
      $region42: #{custom-call.11} parent=38 // pred_region
        // Predicated region
        $region55: #{custom-call.11} parent=42 // pred_check
          _
        $region56: #{custom-call.11} parent=42 // pred_check_branch
          %798 = sbr.rel (0) target = $region58
        $region57: #{custom-call.11} parent=42 // pred_region
          loop: start=0, step=1, limit=1
          $region59: #{custom-call.11} parent=57 // loop_pre_header
            _
          $region60: #{custom-call.11} parent=57 // loop_header
            %s800 = sphi 0, %s804
            %p801 = scmp.ge.s32.totalorder %s800, 1
            %s805 = sphi [#allocation1], [#allocation1]
            %s806 = sphi %s1, %s1
          $region61: #{custom-call.11} parent=57 // loop_header_branch
            %803 = sbr.rel (%p801) target = $region65
          $region62: #{custom-call.11} parent=57 // loop_body
            %v807 = vld [vmem:[%s805] sm:$0xff]
            %808 = vst [vmem:[%s806] sm:$0xff] %v807
            %v809 = vld [vmem:[%s805 + $0x8] sm:$0xff]
            %810 = vst [vmem:[%s806 + $0x8] sm:$0xff] %v809
            %v811 = vld [vmem:[%s805 + $0x10] sm:$0xff]
            %812 = vst [vmem:[%s806 + $0x10] sm:$0xff] %v811
            %v813 = vld [vmem:[%s805 + $0x18] sm:$0xff]
            %814 = vst [vmem:[%s806 + $0x18] sm:$0xff] %v813
          $region63: #{custom-call.11} parent=57 // loop_footer
            %s804 = sadd.s32 1, %s800
          $region64: #{custom-call.11} parent=57 // loop_footer_branch
            %799 = sbr.rel target = $region60
          $region65: #{custom-call.11} parent=57 // loop_exit
            _
        $region58: #{custom-call.11} parent=42 // pred_fallthru
          _
        // Predicated region
        $region66: #{custom-call.11} parent=42 // pred_check
          _
        $region67: #{custom-call.11} parent=42 // pred_check_branch
          %816 = sbr.rel target = $region69
        $region68: #{custom-call.11} parent=42 // pred_region
          _
        $region69: #{custom-call.11} parent=42 // pred_fallthru
          _
      $region43: #{custom-call.11} parent=38 // pred_fallthru
        _
      // Predicated region
      $region44: #{custom-call.11} parent=38 // pred_check
        _
      $region45: #{custom-call.11} parent=38 // pred_check_branch
        %778 = sbr.rel target = $region47
      $region46: #{custom-call.11} parent=38 // pred_region
        %s780 = ssub.s32 256, 1
        loop: start=0, step=1, limit=1
        $region48: #{custom-call.11} parent=46 // loop_pre_header
          _
        $region49: #{custom-call.11} parent=46 // loop_header
          %s782 = sphi 0, %s786
          %p783 = scmp.ge.s32.totalorder %s782, 1
          %s787 = sphi [#allocation1], [#allocation1]
          %s788 = sphi %s1, %s1
        $region50: #{custom-call.11} parent=46 // loop_header_branch
          %785 = sbr.rel (%p783) target = $region54
        $region51: #{custom-call.11} parent=46 // loop_body
          %v789 = vld [vmem:[%s787] sm:%s780]
          %790 = vst [vmem:[%s788] sm:%s780] %v789
          %v791 = vld [vmem:[%s787 + $0x8] sm:%s780]
          %792 = vst [vmem:[%s788 + $0x8] sm:%s780] %v791
          %v793 = vld [vmem:[%s787 + $0x10] sm:%s780]
          %794 = vst [vmem:[%s788 + $0x10] sm:%s780] %v793
          %v795 = vld [vmem:[%s787 + $0x18] sm:%s780]
          %796 = vst [vmem:[%s788 + $0x18] sm:%s780] %v795
        $region52: #{custom-call.11} parent=46 // loop_footer
          %s786 = sadd.s32 1, %s782
        $region53: #{custom-call.11} parent=46 // loop_footer_branch
          %781 = sbr.rel target = $region49
        $region54: #{custom-call.11} parent=46 // loop_exit
          _
      $region47: #{custom-call.11} parent=38 // pred_fallthru
        _
    $region39: #{custom-call.11} parent=1 // pred_fallthru
      _
    %817 = vnop

// kernel: _lambda_.4
$region0: #{_lambda_.4}
  #allocation0 [shape = 'u32[]', space=smem, size = 0x4, offset = 0x4, fixed_abs, tag = 'smem constant byte address 0x4 - core index']
  #allocation1 [shape = 'u32[72,128]{1,0:T(1,128)}', space=vmem, size = 0x9000, scoped, tag = 'internal scratch']
  %s0 = inlined_call_operand.vmem [shape: f32[16,1], index: 0, kind: input, shape index: {}]
  %s1 = inlined_call_operand.vmem [shape: f32[16,48], index: 1, kind: input, shape index: {}]
  %s2 = inlined_call_operand.vmem [shape: f32[16,48], index: 2, kind: input, shape index: {}]
  %s3 = inlined_call_operand.hbm [shape: f32[216,128], index: 3, kind: input, shape index: {}]
  %s4 = inlined_call_operand.vmem [shape: f32[248,128], index: 4, kind: input, shape index: {}]
  %s5 = inlined_call_operand.hbm [shape: f32[192,16], index: 5, kind: input, shape index: {}]
  %s6 = inlined_call_operand.hbm [shape: f32[32,384], index: 6, kind: input, shape index: {}]
  %s7 = inlined_call_operand.vmem [shape: f32[384,32], index: 7, kind: input, shape index: {}]
  %s8 = inlined_call_operand.vmem [shape: f32[16,6], index: 8, kind: output, shape index: {0}]
  %s9 = inlined_call_operand.vmem [shape: f32[16,96], index: 9, kind: output, shape index: {1}]
  %s10 = inlined_call_operand.vmem [shape: f32[32,64], index: 10, kind: output, shape index: {2}]
  %11 = xla_tuple %s8, %s9, %s10
  %s12 = sld [smem:[#allocation0]]
  $region70: #{_lambda_.4} parent=0
    _
  %s14 = ssub.s32 1, %s12
  %s15 = scalar_select 0, %s14, %s12
  $region1: #{_lambda_.4} parent=0
    #allocation2 [shape = 'u8[110592]{0}', space=vmem, size = 0x1b000, scoped, tag = 'input window, operand 3, single buffered']
    #allocation3 [shape = 's32[1]{0}', space=sflag, size = 0x4, scoped, tag = 'scoped memory for _lambda_.4']
    #allocation4 [shape = 'u8[98304]{0}', space=vmem, size = 0x18000, scoped, tag = 'input window, operand 5, single buffered']
    #allocation5 [shape = 's32[1]{0}', space=sflag, size = 0x4, scoped, tag = 'scoped memory for _lambda_.4']
    #allocation6 [shape = 'u8[49152]{0}', space=vmem, size = 0xc000, scoped, tag = 'input window, operand 6, single buffered']
    %16 = vsyncpa [#allocation3], 0
    %17 = vsyncpa [#allocation5], 0
    // Predicated region
    $region2: #{_lambda_.4} parent=1 // pred_check
      _
    $region3: #{_lambda_.4} parent=1 // pred_check_branch
      %19 = sbr.rel (0) target = $region5
    $region4: #{_lambda_.4} parent=1 // pred_region
      _
    $region5: #{_lambda_.4} parent=1 // pred_fallthru
      _
    // Predicated region
    $region6: #{_lambda_.4} parent=1 // pred_check
      _
    $region7: #{_lambda_.4} parent=1 // pred_check_branch
      %21 = sbr.rel (0) target = $region9
    $region8: #{_lambda_.4} parent=1 // pred_region
      _
    $region9: #{_lambda_.4} parent=1 // pred_fallthru
      _
    // Predicated region
    $region10: #{_lambda_.4} parent=1 // pred_check
      _
    $region11: #{_lambda_.4} parent=1 // pred_check_branch
      %23 = sbr.rel (0) target = $region13
    $region12: #{_lambda_.4} parent=1 // pred_region
      _
    $region13: #{_lambda_.4} parent=1 // pred_fallthru
      _
    // Predicated region
    $region14: #{_lambda_.4} parent=1 // pred_check
      _
    $region15: #{_lambda_.4} parent=1 // pred_check_branch
      %25 = sbr.rel (0) target = $region17
    $region16: #{_lambda_.4} parent=1 // pred_region
      %27 = vsyncadd [#allocation3], 0
      %s28 = sshll.u32 %s3, 4
      %s29 = int_to_ptr.hbm [resolvable:$true] %s28
      %s30 = sshll.u32 [#allocation2], 4
      %s31 = int_to_ptr.vmem [resolvable:$true] %s30
      %36 = dma.hbm_to_vmem [thread:$0]  %s29, 3456, %s31, [#allocation3], 128, 128, 8
    $region17: #{_lambda_.4} parent=1 // pred_fallthru
      _
    // Predicated region
    $region18: #{_lambda_.4} parent=1 // pred_check
      _
    $region19: #{_lambda_.4} parent=1 // pred_check_branch
      %38 = sbr.rel (0) target = $region21
    $region20: #{_lambda_.4} parent=1 // pred_region
      _
    $region21: #{_lambda_.4} parent=1 // pred_fallthru
      _
    // Predicated region
    $region22: #{_lambda_.4} parent=1 // pred_check
      _
    $region23: #{_lambda_.4} parent=1 // pred_check_branch
      %40 = sbr.rel (0) target = $region25
    $region24: #{_lambda_.4} parent=1 // pred_region
      %42 = vsyncadd [#allocation5], 0
      %s43 = sshll.u32 %s5, 4
      %s44 = int_to_ptr.hbm [resolvable:$true] %s43
      %s45 = sshll.u32 [#allocation4], 4
      %s46 = int_to_ptr.vmem [resolvable:$true] %s45
      %51 = dma.hbm_to_vmem [thread:$0]  %s44, 3072, %s46, [#allocation5], 128, 128, 8
    $region25: #{_lambda_.4} parent=1 // pred_fallthru
      _
    // Predicated region
    $region26: #{_lambda_.4} parent=1 // pred_check
      _
    $region27: #{_lambda_.4} parent=1 // pred_check_branch
      %53 = sbr.rel (0) target = $region29
    $region28: #{_lambda_.4} parent=1 // pred_region
      %55 = vsyncadd [#allocation5], 0
      %s56 = sshll.u32 %s6, 4
      %s57 = int_to_ptr.hbm [resolvable:$true] %s56
      %s58 = sshll.u32 [#allocation6], 4
      %s59 = int_to_ptr.vmem [resolvable:$true] %s58
      %64 = dma.hbm_to_vmem [thread:$0]  %s57, 1536, %s59, [#allocation5], 384, 384, 24
    $region29: #{_lambda_.4} parent=1 // pred_fallthru
      _
    // Predicated region
    $region30: #{_lambda_.4} parent=1 // pred_check
      _
    $region31: #{_lambda_.4} parent=1 // pred_check_branch
      %66 = sbr.rel (0) target = $region33
    $region32: #{_lambda_.4} parent=1 // pred_region
      _
    $region33: #{_lambda_.4} parent=1 // pred_fallthru
      _
    // Predicated region
    $region34: #{_lambda_.4} parent=1 // pred_check
      _
    $region35: #{_lambda_.4} parent=1 // pred_check_branch
      %68 = sbr.rel (0) target = $region37
    $region36: #{_lambda_.4} parent=1 // pred_region
      %70 = dma.done [#allocation3], 3456
    $region37: #{_lambda_.4} parent=1 // pred_fallthru
      _
    // Predicated region
    $region38: #{_lambda_.4} parent=1 // pred_check
      _
    $region39: #{_lambda_.4} parent=1 // pred_check_branch
      %72 = sbr.rel (0) target = $region41
    $region40: #{_lambda_.4} parent=1 // pred_region
      %74 = dma.done [#allocation5], 3072
    $region41: #{_lambda_.4} parent=1 // pred_fallthru
      _
    // Predicated region
    $region42: #{_lambda_.4} parent=1 // pred_check
      _
    $region43: #{_lambda_.4} parent=1 // pred_check_branch
      %76 = sbr.rel (0) target = $region45
    $region44: #{_lambda_.4} parent=1 // pred_region
      %78 = dma.done [#allocation5], 1536
    $region45: #{_lambda_.4} parent=1 // pred_fallthru
      _
    %v79 = vld [vmem:[%s0] sm:$0xff]
    %v80 = vld [vmem:[%s0 + $0x8] sm:$0xff]
    %v81 = vsub.f32 0.0, %v79
    %v82 = vsub.f32 0.0, %v80
    %v83 = vmul.f32 %v81, 1.442695
    %v84 = vpow.pop %v83
    %v85 = vmul.f32 %v82, 1.442695
    %v86 = vpow.pop %v85
    %v87 = vadd.f32 %v84, 1.0
    %v88 = vadd.f32 %v86, 1.0
    %v89 = vrcp.pop %v87
    %v90 = vrcp.pop %v88
    %v91 = vmul.f32 %v89, 0.4
    %v92 = vmul.f32 %v90, 0.4
    %v93 = vadd.f32 %v91, 0.2
    %v94 = vadd.f32 %v92, 0.2
    %v95 = vld [vmem:[#allocation2] sm:$0x1]
    %v96 = vld [vmem:[#allocation2 + $0x1] sm:$0x1]
    %98 = vset.pattern.permute.xlu0 0
    %99 = vperm.xlu0 %98, %v93
    %v100 = vpop.permute.xlu0 %99
    %103 = vset.pattern.permute.xlu0 0
    %104 = vperm.xlu0 %103, %v94
    %v105 = vpop.permute.xlu0 %104
    %v107 = vperm.slane %v95, 0
    %v108 = vmul.f32 %v100, %v107
    %v109 = vmul.f32 %v105, %v107
    %v110 = vperm.slane %v96, 0
    %v111 = vadd.f32 %v108, %v110
    %v112 = vadd.f32 %v109, %v110
    %v113 = vmax.f32 %v111, 0.0
    %v114 = vmax.f32 %v112, 0.0
    %v115 = vld [vmem:[#allocation2 + $0x8] sm:$0xff]
    %v116 = vld [vmem:[#allocation2 + $0x10] sm:$0xff]
    %v117 = vld [vmem:[#allocation2 + $0x18] sm:$0xff]
    %v118 = vld [vmem:[#allocation2 + $0x20] sm:$0xff]
    %v119 = vld [vmem:[#allocation2 + $0x28] sm:$0xff]
    %v120 = vld [vmem:[#allocation2 + $0x30] sm:$0xff]
    %v121 = vld [vmem:[#allocation2 + $0x38] sm:$0xff]
    %v122 = vld [vmem:[#allocation2 + $0x40] sm:$0xff]
    %v123 = vld [vmem:[#allocation2 + $0x48] sm:$0xff]
    %v124 = vld [vmem:[#allocation2 + $0x50] sm:$0xff]
    %v125 = vld [vmem:[#allocation2 + $0x58] sm:$0xff]
    %v126 = vld [vmem:[#allocation2 + $0x60] sm:$0xff]
    %v127 = vld [vmem:[#allocation2 + $0x68] sm:$0x1]
    %v128 = vperm.slane %v127, 0
    %vm129 = vcmask 785408
    %v131 = vsel %vm129, %v113, 0
    %v134 = vsel %vm129, %v114, 0
    %136 = vmatpush.msra.mxu0 0.0
    %137 = vmatpush.msra.mxu0 0.0
    %138 = vmatpush.msra.mxu0 0.0
    %139 = vmatpush.msra.mxu0 0.0
    %140 = vmatpush.msra.mxu0 %v126
    %141 = vmatpush.msra.mxu0 %v125
    %142 = vmatpush.msra.mxu0 %v124
    %143 = vmatpush.msra.mxu0 %v123
    %144 = vmatpush.msra.mxu0 %v122
    %145 = vmatpush.msra.mxu0 %v121
    %146 = vmatpush.msra.mxu0 %v120
    %147 = vmatpush.msra.mxu0 %v119
    %148 = vmatpush.msra.mxu0 %v118
    %149 = vmatpush.msra.mxu0 %v117
    %150 = vmatpush.msra.mxu0 %v116
    %151 = vmatpush.msra.mxu0 %v115
    %152 = vmatmul.f32.gmra.mxu0 %v131
    %v153 = vpop.f32.mrf.mxu0
    %v154 = vadd.f32 %v128, %v153
    %155 = vmatmul.f32.gmra.mxu0 %v134
    %v156 = vpop.f32.mrf.mxu0
    %v157 = vadd.f32 %v128, %v156
    %158 = vdwg.mxu0
    %v159 = vmax.f32 %v154, 0.0
    %v160 = vmax.f32 %v157, 0.0
    %v161 = vld [vmem:[#allocation2 + $0x70] sm:$0xff]
    %v162 = vld [vmem:[#allocation2 + $0x78] sm:$0xff]
    %v163 = vld [vmem:[#allocation2 + $0x80] sm:$0xff]
    %v164 = vld [vmem:[#allocation2 + $0x88] sm:$0xff]
    %v165 = vld [vmem:[#allocation2 + $0x90] sm:$0xff]
    %v166 = vld [vmem:[#allocation2 + $0x98] sm:$0xff]
    %v167 = vld [vmem:[#allocation2 + $0xa0] sm:$0xff]
    %v168 = vld [vmem:[#allocation2 + $0xa8] sm:$0xff]
    %v169 = vld [vmem:[#allocation2 + $0xb0] sm:$0xff]
    %v170 = vld [vmem:[#allocation2 + $0xb8] sm:$0xff]
    %v171 = vld [vmem:[#allocation2 + $0xc0] sm:$0xff]
    %v172 = vld [vmem:[#allocation2 + $0xc8] sm:$0xff]
    %v173 = vld [vmem:[#allocation2 + $0xd0] sm:$0x1]
    %v174 = vperm.slane %v173, 0
    %v176 = vsel %vm129, %v159, 0
    %v179 = vsel %vm129, %v160, 0
    %181 = vmatpush.msra.mxu0 0.0
    %182 = vmatpush.msra.mxu0 0.0
    %183 = vmatpush.msra.mxu0 0.0
    %184 = vmatpush.msra.mxu0 0.0
    %185 = vmatpush.msra.mxu0 %v172
    %186 = vmatpush.msra.mxu0 %v171
    %187 = vmatpush.msra.mxu0 %v170
    %188 = vmatpush.msra.mxu0 %v169
    %189 = vmatpush.msra.mxu0 %v168
    %190 = vmatpush.msra.mxu0 %v167
    %191 = vmatpush.msra.mxu0 %v166
    %192 = vmatpush.msra.mxu0 %v165
    %193 = vmatpush.msra.mxu0 %v164
    %194 = vmatpush.msra.mxu0 %v163
    %195 = vmatpush.msra.mxu0 %v162
    %196 = vmatpush.msra.mxu0 %v161
    %197 = vmatmul.f32.gmra.mxu0 %v176
    %v198 = vpop.f32.mrf.mxu0
    %v199 = vadd.f32 %v174, %v198
    %200 = vmatmul.f32.gmra.mxu0 %v179
    %v201 = vpop.f32.mrf.mxu0
    %v202 = vadd.f32 %v174, %v201
    %203 = vdwg.mxu0
    %v204 = vld [vmem:[%s1] sm:$0xff]
    %v205 = vld [vmem:[%s1 + $0x8] sm:$0xff]
    %v206 = vld [vmem:[%s2] sm:$0xff]
    %v207 = vld [vmem:[%s2 + $0x8] sm:$0xff]
    %v208 = vmul.f32 %v199, %v204
    %v209 = vmul.f32 %v202, %v205
    %vm210 = vcmask 392192
    %v211 = vsel %vm210, %v208, 0.0
    %212 = vadd.xlane.f32.xlu0 %v211
    %v213 = vpop.xlane.xlu0 %212
    %v214 = vsel %vm210, %v209, 0.0
    %215 = vadd.xlane.f32.xlu0 %v214
    %v216 = vpop.xlane.xlu0 %215
    %v217 = vmul.f32 %v199, %v206
    %v218 = vmul.f32 %v202, %v207
    %v219 = vsel %vm210, %v217, 0.0
    %220 = vadd.xlane.f32.xlu0 %v219
    %v221 = vpop.xlane.xlu0 %220
    %v222 = vsel %vm210, %v218, 0.0
    %223 = vadd.xlane.f32.xlu0 %v222
    %v224 = vpop.xlane.xlu0 %223
    %227 = vrot.lane.b32.xlu0 %v204, 48
    %v228 = vpop.permute.xlu0 %227
    %229 = vrot.lane.b32.xlu0 %v205, 48
    %v230 = vpop.permute.xlu0 %229
    %v233 = vmul.f32 %v199, %v228
    %v234 = vmul.f32 %v202, %v230
    %237 = vrot.lane.b32.xlu0 %v233, 80
    %v238 = vpop.permute.xlu0 %237
    %239 = vrot.lane.b32.xlu0 %v234, 80
    %v240 = vpop.permute.xlu0 %239
    %v243 = vsel %vm210, %v238, 0.0
    %244 = vadd.xlane.f32.xlu0 %v243
    %v245 = vpop.xlane.xlu0 %244
    %v246 = vsel %vm210, %v240, 0.0
    %247 = vadd.xlane.f32.xlu0 %v246
    %v248 = vpop.xlane.xlu0 %247
    %251 = vrot.lane.b32.xlu0 %v206, 48
    %v252 = vpop.permute.xlu0 %251
    %253 = vrot.lane.b32.xlu0 %v207, 48
    %v254 = vpop.permute.xlu0 %253
    %v257 = vmul.f32 %v199, %v252
    %v258 = vmul.f32 %v202, %v254
    %261 = vrot.lane.b32.xlu0 %v257, 80
    %v262 = vpop.permute.xlu0 %261
    %263 = vrot.lane.b32.xlu0 %v258, 80
    %v264 = vpop.permute.xlu0 %263
    %v267 = vsel %vm210, %v262, 0.0
    %268 = vadd.xlane.f32.xlu0 %v267
    %v269 = vpop.xlane.xlu0 %268
    %v270 = vsel %vm210, %v264, 0.0
    %271 = vadd.xlane.f32.xlu0 %v270
    %v272 = vpop.xlane.xlu0 %271
    %vm273 = vcmask 7168
    %v274 = vsel %vm273, %v213, %v245
    %v275 = vsel %vm273, %v216, %v248
    %v276 = vsel %vm273, %v221, %v269
    %v277 = vsel %vm273, %v224, %v272
    %v278 = vadd.f32 %v199, 1.0
    %v279 = vadd.f32 %v202, 1.0
    %v280 = vrcp.pop %v278
    %v281 = vrcp.pop %v279
    %v282 = vmul.f32 %v199, %v280
    %v283 = vmul.f32 %v202, %v281
    %v284 = vmul.f32 %v282, 0.2
    %v285 = vmul.f32 %v283, 0.2
    %288 = vrot.lane.b32.xlu0 %v274, 98
    %v289 = vpop.permute.xlu0 %288
    %290 = vrot.lane.b32.xlu0 %v275, 98
    %v291 = vpop.permute.xlu0 %290
    %v294 = vmul.f32 %v284, %v289
    %v295 = vmul.f32 %v285, %v291
    %298 = vrot.lane.b32.xlu0 %v276, 98
    %v299 = vpop.permute.xlu0 %298
    %300 = vrot.lane.b32.xlu0 %v277, 98
    %v301 = vpop.permute.xlu0 %300
    %v304 = vmul.f32 %v284, %v299
    %v305 = vmul.f32 %v285, %v301
    %308 = vrot.lane.b32.xlu0 %v199, 32
    %v309 = vpop.permute.xlu0 %308
    %310 = vrot.lane.b32.xlu0 %v202, 32
    %v311 = vpop.permute.xlu0 %310
    %316 = vrot.lane.b32.xlu0 %v294, 32
    %v317 = vpop.permute.xlu0 %316
    %318 = vrot.lane.b32.xlu0 %v295, 32
    %v319 = vpop.permute.xlu0 %318
    %324 = vrot.lane.b32.xlu0 %v304, 34
    %v325 = vpop.permute.xlu0 %324
    %326 = vrot.lane.b32.xlu0 %v305, 34
    %v327 = vpop.permute.xlu0 %326
    %vm330 = vcmask 15360
    %v331 = vsel %vm330, %v309, %v317
    %v332 = vsel %vm330, %v311, %v319
    %vm333 = vcmask 31744
    %v334 = vsel %vm333, %v331, %v325
    %v335 = vsel %vm333, %v332, %v327
    %vm336 = vcmask 48128
    %337 = vst.msk [vmem:[%s8] sm:$0xff] %vm336, %v334
    %338 = vst.msk [vmem:[%s8 + $0x8] sm:$0xff] %vm336, %v335
    %339 = vst.msk [vmem:[%s9] sm:$0xff] %vm129, %v199
    %340 = vst.msk [vmem:[%s9 + $0x8] sm:$0xff] %vm129, %v202
    %v341 = vld [vmem:[#allocation4] sm:$0xff]
    %v342 = vld [vmem:[#allocation4 + $0x8] sm:$0xff]
    %v343 = vld [vmem:[#allocation4 + $0x10] sm:$0xff]
    %v344 = vld [vmem:[#allocation4 + $0x18] sm:$0xff]
    %v345 = vld [vmem:[#allocation4 + $0x20] sm:$0xff]
    %v346 = vld [vmem:[#allocation4 + $0x28] sm:$0xff]
    %v347 = vld [vmem:[#allocation4 + $0x30] sm:$0xff]
    %v348 = vld [vmem:[#allocation4 + $0x38] sm:$0xff]
    %v349 = vld [vmem:[#allocation4 + $0x40] sm:$0xff]
    %v350 = vld [vmem:[#allocation4 + $0x48] sm:$0xff]
    %v351 = vld [vmem:[#allocation4 + $0x50] sm:$0xff]
    %v352 = vld [vmem:[#allocation4 + $0x58] sm:$0xff]
    %v353 = vld [vmem:[#allocation4 + $0x60] sm:$0xff]
    %v354 = vld [vmem:[#allocation4 + $0x68] sm:$0xff]
    %v355 = vld [vmem:[#allocation4 + $0x70] sm:$0xff]
    %v356 = vld [vmem:[#allocation4 + $0x78] sm:$0xff]
    %v357 = vld [vmem:[#allocation4 + $0x80] sm:$0xff]
    %v358 = vld [vmem:[#allocation4 + $0x88] sm:$0xff]
    %v359 = vld [vmem:[#allocation4 + $0x90] sm:$0xff]
    %v360 = vld [vmem:[#allocation4 + $0x98] sm:$0xff]
    %v361 = vld [vmem:[#allocation4 + $0xa0] sm:$0xff]
    %v362 = vld [vmem:[#allocation4 + $0xa8] sm:$0xff]
    %v363 = vld [vmem:[#allocation4 + $0xb0] sm:$0xff]
    %v364 = vld [vmem:[#allocation4 + $0xb8] sm:$0xff]
    %vm365 = vcmask 130048
    %v367 = vsel %vm365, %v341, 0
    %v370 = vsel %vm365, %v342, 0
    %v373 = vsel %vm365, %v343, 0
    %v376 = vsel %vm365, %v344, 0
    %v379 = vsel %vm365, %v345, 0
    %v382 = vsel %vm365, %v346, 0
    %v385 = vsel %vm365, %v347, 0
    %v388 = vsel %vm365, %v348, 0
    %v391 = vsel %vm365, %v349, 0
    %v394 = vsel %vm365, %v350, 0
    %v397 = vsel %vm365, %v351, 0
    %v400 = vsel %vm365, %v352, 0
    %v403 = vsel %vm365, %v353, 0
    %v406 = vsel %vm365, %v354, 0
    %v409 = vsel %vm365, %v355, 0
    %v412 = vsel %vm365, %v356, 0
    %v415 = vsel %vm365, %v357, 0
    %v418 = vsel %vm365, %v358, 0
    %v421 = vsel %vm365, %v359, 0
    %v424 = vsel %vm365, %v360, 0
    %v427 = vsel %vm365, %v361, 0
    %v430 = vsel %vm365, %v362, 0
    %v433 = vsel %vm365, %v363, 0
    %v436 = vsel %vm365, %v364, 0
    %438 = vmatpush.msra.mxu0 0.0
    %439 = vmatpush.msra.mxu0 0.0
    %440 = vmatpush.msra.mxu0 0.0
    %441 = vmatpush.msra.mxu0 0.0
    %442 = vmatpush.msra.mxu0 0.0
    %443 = vmatpush.msra.mxu0 0.0
    %444 = vmatpush.msra.mxu0 0.0
    %445 = vmatpush.msra.mxu0 0.0
    %446 = vmatpush.msra.mxu0 0.0
    %447 = vmatpush.msra.mxu0 0.0
    %448 = vmatpush.msra.mxu0 0.0
    %449 = vmatpush.msra.mxu0 0.0
    %450 = vmatpush.msra.mxu0 0.0
    %451 = vmatpush.msra.mxu0 0.0
    %452 = vmatpush.msra.mxu0 %v94
    %453 = vmatpush.msra.mxu0 %v93
    %454 = vmatmul.f32.gmra.mxu0 %v367
    %v455 = vpop.f32.mrf.mxu0
    %v456 = vadd.f32 0.0, %v455
    %457 = vmatmul.f32.gmra.mxu0 %v370
    %v458 = vpop.f32.mrf.mxu0
    %v459 = vadd.f32 0.0, %v458
    %460 = vmatmul.f32.gmra.mxu0 %v373
    %v461 = vpop.f32.mrf.mxu0
    %v462 = vadd.f32 0.0, %v461
    %463 = vmatmul.f32.gmra.mxu0 %v376
    %v464 = vpop.f32.mrf.mxu0
    %v465 = vadd.f32 0.0, %v464
    %466 = vmatmul.f32.gmra.mxu0 %v379
    %v467 = vpop.f32.mrf.mxu0
    %v468 = vadd.f32 0.0, %v467
    %469 = vmatmul.f32.gmra.mxu0 %v382
    %v470 = vpop.f32.mrf.mxu0
    %v471 = vadd.f32 0.0, %v470
    %472 = vmatmul.f32.gmra.mxu0 %v385
    %v473 = vpop.f32.mrf.mxu0
    %v474 = vadd.f32 0.0, %v473
    %475 = vmatmul.f32.gmra.mxu0 %v388
    %v476 = vpop.f32.mrf.mxu0
    %v477 = vadd.f32 0.0, %v476
    %478 = vmatmul.f32.gmra.mxu0 %v391
    %v479 = vpop.f32.mrf.mxu0
    %v480 = vadd.f32 0.0, %v479
    %481 = vmatmul.f32.gmra.mxu0 %v394
    %v482 = vpop.f32.mrf.mxu0
    %v483 = vadd.f32 0.0, %v482
    %484 = vmatmul.f32.gmra.mxu0 %v397
    %v485 = vpop.f32.mrf.mxu0
    %v486 = vadd.f32 0.0, %v485
    %487 = vmatmul.f32.gmra.mxu0 %v400
    %v488 = vpop.f32.mrf.mxu0
    %v489 = vadd.f32 0.0, %v488
    %490 = vmatmul.f32.gmra.mxu0 %v403
    %v491 = vpop.f32.mrf.mxu0
    %v492 = vadd.f32 0.0, %v491
    %493 = vmatmul.f32.gmra.mxu0 %v406
    %v494 = vpop.f32.mrf.mxu0
    %v495 = vadd.f32 0.0, %v494
    %496 = vmatmul.f32.gmra.mxu0 %v409
    %v497 = vpop.f32.mrf.mxu0
    %v498 = vadd.f32 0.0, %v497
    %499 = vmatmul.f32.gmra.mxu0 %v412
    %v500 = vpop.f32.mrf.mxu0
    %v501 = vadd.f32 0.0, %v500
    %502 = vmatmul.f32.gmra.mxu0 %v415
    %v503 = vpop.f32.mrf.mxu0
    %v504 = vadd.f32 0.0, %v503
    %505 = vmatmul.f32.gmra.mxu0 %v418
    %v506 = vpop.f32.mrf.mxu0
    %v507 = vadd.f32 0.0, %v506
    %508 = vmatmul.f32.gmra.mxu0 %v421
    %v509 = vpop.f32.mrf.mxu0
    %v510 = vadd.f32 0.0, %v509
    %511 = vmatmul.f32.gmra.mxu0 %v424
    %v512 = vpop.f32.mrf.mxu0
    %v513 = vadd.f32 0.0, %v512
    %514 = vmatmul.f32.gmra.mxu0 %v427
    %v515 = vpop.f32.mrf.mxu0
    %v516 = vadd.f32 0.0, %v515
    %517 = vmatmul.f32.gmra.mxu0 %v430
    %v518 = vpop.f32.mrf.mxu0
    %v519 = vadd.f32 0.0, %v518
    %520 = vmatmul.f32.gmra.mxu0 %v433
    %v521 = vpop.f32.mrf.mxu0
    %v522 = vadd.f32 0.0, %v521
    %523 = vmatmul.f32.gmra.mxu0 %v436
    %v524 = vpop.f32.mrf.mxu0
    %v525 = vadd.f32 0.0, %v524
    %526 = vdwg.mxu0
    %v527 = vld [vmem:[%s4] sm:$0x1]
    %v528 = vld [vmem:[%s4 + $0x1] sm:$0x1]
    %v529 = vld [vmem:[%s4 + $0x8] sm:$0xff]
    %v530 = vld [vmem:[%s4 + $0x10] sm:$0xff]
    %v531 = vld [vmem:[%s4 + $0x18] sm:$0xff]
    %v532 = vld [vmem:[%s4 + $0x20] sm:$0xff]
    %v533 = vld [vmem:[%s4 + $0x28] sm:$0xff]
    %v534 = vld [vmem:[%s4 + $0x30] sm:$0xff]
    %v535 = vld [vmem:[%s4 + $0x38] sm:$0xff]
    %v536 = vld [vmem:[%s4 + $0x40] sm:$0xff]
    %v537 = vld [vmem:[%s4 + $0x48] sm:$0xff]
    %v538 = vld [vmem:[%s4 + $0x50] sm:$0xff]
    %v539 = vld [vmem:[%s4 + $0x58] sm:$0xff]
    %v540 = vld [vmem:[%s4 + $0x60] sm:$0xff]
    %542 = vset.pattern.permute.xlu0 0
    %543 = vperm.xlu0 %542, %v456
    %v544 = vpop.permute.xlu0 %543
    %547 = vset.pattern.permute.xlu0 0
    %548 = vperm.xlu0 %547, %v459
    %v549 = vpop.permute.xlu0 %548
    %552 = vset.pattern.permute.xlu0 0
    %553 = vperm.xlu0 %552, %v462
    %v554 = vpop.permute.xlu0 %553
    %557 = vset.pattern.permute.xlu0 0
    %558 = vperm.xlu0 %557, %v465
    %v559 = vpop.permute.xlu0 %558
    %562 = vset.pattern.permute.xlu0 0
    %563 = vperm.xlu0 %562, %v468
    %v564 = vpop.permute.xlu0 %563
    %567 = vset.pattern.permute.xlu0 0
    %568 = vperm.xlu0 %567, %v471
    %v569 = vpop.permute.xlu0 %568
    %572 = vset.pattern.permute.xlu0 0
    %573 = vperm.xlu0 %572, %v474
    %v574 = vpop.permute.xlu0 %573
    %577 = vset.pattern.permute.xlu0 0
    %578 = vperm.xlu0 %577, %v477
    %v579 = vpop.permute.xlu0 %578
    %582 = vset.pattern.permute.xlu0 0
    %583 = vperm.xlu0 %582, %v480
    %v584 = vpop.permute.xlu0 %583
    %587 = vset.pattern.permute.xlu0 0
    %588 = vperm.xlu0 %587, %v483
    %v589 = vpop.permute.xlu0 %588
    %592 = vset.pattern.permute.xlu0 0
    %593 = vperm.xlu0 %592, %v486
    %v594 = vpop.permute.xlu0 %593
    %597 = vset.pattern.permute.xlu0 0
    %598 = vperm.xlu0 %597, %v489
    %v599 = vpop.permute.xlu0 %598
    %v601 = vperm.slane %v527, 0
    %v602 = vmul.f32 %v544, %v601
    %v603 = vmul.f32 %v549, %v601
    %v604 = vmul.f32 %v554, %v601
    %v605 = vmul.f32 %v559, %v601
    %v606 = vmul.f32 %v564, %v601
    %v607 = vmul.f32 %v569, %v601
    %v608 = vmul.f32 %v574, %v601
    %v609 = vmul.f32 %v579, %v601
    %v610 = vmul.f32 %v584, %v601
    %v611 = vmul.f32 %v589, %v601
    %v612 = vmul.f32 %v594, %v601
    %v613 = vmul.f32 %v599, %v601
    %615 = vset.pattern.permute.xlu0 0
    %616 = vperm.xlu0 %615, %v492
    %v617 = vpop.permute.xlu0 %616
    %620 = vset.pattern.permute.xlu0 0
    %621 = vperm.xlu0 %620, %v495
    %v622 = vpop.permute.xlu0 %621
    %625 = vset.pattern.permute.xlu0 0
    %626 = vperm.xlu0 %625, %v498
    %v627 = vpop.permute.xlu0 %626
    %630 = vset.pattern.permute.xlu0 0
    %631 = vperm.xlu0 %630, %v501
    %v632 = vpop.permute.xlu0 %631
    %635 = vset.pattern.permute.xlu0 0
    %636 = vperm.xlu0 %635, %v504
    %v637 = vpop.permute.xlu0 %636
    %640 = vset.pattern.permute.xlu0 0
    %641 = vperm.xlu0 %640, %v507
    %v642 = vpop.permute.xlu0 %641
    %645 = vset.pattern.permute.xlu0 0
    %646 = vperm.xlu0 %645, %v510
    %v647 = vpop.permute.xlu0 %646
    %650 = vset.pattern.permute.xlu0 0
    %651 = vperm.xlu0 %650, %v513
    %v652 = vpop.permute.xlu0 %651
    %655 = vset.pattern.permute.xlu0 0
    %656 = vperm.xlu0 %655, %v516
    %v657 = vpop.permute.xlu0 %656
    %660 = vset.pattern.permute.xlu0 0
    %661 = vperm.xlu0 %660, %v519
    %v662 = vpop.permute.xlu0 %661
    %665 = vset.pattern.permute.xlu0 0
    %666 = vperm.xlu0 %665, %v522
    %v667 = vpop.permute.xlu0 %666
    %670 = vset.pattern.permute.xlu0 0
    %671 = vperm.xlu0 %670, %v525
    %v672 = vpop.permute.xlu0 %671
    %v674 = vperm.slane %v528, 0
    %v675 = vmul.f32 %v617, %v674
    %v676 = vmul.f32 %v622, %v674
    %v677 = vmul.f32 %v627, %v674
    %v678 = vmul.f32 %v632, %v674
    %v679 = vmul.f32 %v637, %v674
    %v680 = vmul.f32 %v642, %v674
    %v681 = vmul.f32 %v647, %v674
    %v682 = vmul.f32 %v652, %v674
    %v683 = vmul.f32 %v657, %v674
    %v684 = vmul.f32 %v662, %v674
    %v685 = vmul.f32 %v667, %v674
    %v686 = vmul.f32 %v672, %v674
    %v687 = vadd.f32 %v602, %v675
    %v688 = vadd.f32 %v603, %v676
    %v689 = vadd.f32 %v604, %v677
    %v690 = vadd.f32 %v605, %v678
    %v691 = vadd.f32 %v606, %v679
    %v692 = vadd.f32 %v607, %v680
    %v693 = vadd.f32 %v608, %v681
    %v694 = vadd.f32 %v609, %v682
    %v695 = vadd.f32 %v610, %v683
    %v696 = vadd.f32 %v611, %v684
    %v697 = vadd.f32 %v612, %v685
    %v698 = vadd.f32 %v613, %v686
    %v699 = vadd.f32 %v687, %v529
    %v700 = vadd.f32 %v688, %v530
    %v701 = vadd.f32 %v689, %v531
    %v702 = vadd.f32 %v690, %v532
    %v703 = vadd.f32 %v691, %v533
    %v704 = vadd.f32 %v692, %v534
    %v705 = vadd.f32 %v693, %v535
    %v706 = vadd.f32 %v694, %v536
    %v707 = vadd.f32 %v695, %v537
    %v708 = vadd.f32 %v696, %v538
    %v709 = vadd.f32 %v697, %v539
    %v710 = vadd.f32 %v698, %v540
    %v711 = vmax.f32 %v699, 0.0
    %v712 = vmax.f32 %v700, 0.0
    %v713 = vmax.f32 %v701, 0.0
    %v714 = vmax.f32 %v702, 0.0
    %v715 = vmax.f32 %v703, 0.0
    %v716 = vmax.f32 %v704, 0.0
    %v717 = vmax.f32 %v705, 0.0
    %v718 = vmax.f32 %v706, 0.0
    %v719 = vmax.f32 %v707, 0.0
    %v720 = vmax.f32 %v708, 0.0
    %v721 = vmax.f32 %v709, 0.0
    %v722 = vmax.f32 %v710, 0.0
    %v723 = vld [vmem:[%s4 + $0x68] sm:$0xff]
    %v724 = vld [vmem:[%s4 + $0x70] sm:$0xff]
    %v725 = vld [vmem:[%s4 + $0x78] sm:$0xff]
    %v726 = vld [vmem:[%s4 + $0x80] sm:$0xff]
    %v727 = vld [vmem:[%s4 + $0x88] sm:$0xff]
    %v728 = vld [vmem:[%s4 + $0x90] sm:$0xff]
    %v729 = vld [vmem:[%s4 + $0x98] sm:$0xff]
    %v730 = vld [vmem:[%s4 + $0xa0] sm:$0xff]
    %v731 = vld [vmem:[%s4 + $0xa8] sm:$0x1]
    %v732 = vperm.slane %v731, 0
    %vm733 = vcmask 523264
    %v735 = vsel %vm733, %v711, 0
    %v738 = vsel %vm733, %v712, 0
    %v741 = vsel %vm733, %v713, 0
    %v744 = vsel %vm733, %v714, 0
    %v747 = vsel %vm733, %v715, 0
    %v750 = vsel %vm733, %v716, 0
    %v753 = vsel %vm733, %v717, 0
    %v756 = vsel %vm733, %v718, 0
    %v759 = vsel %vm733, %v719, 0
    %v762 = vsel %vm733, %v720, 0
    %v765 = vsel %vm733, %v721, 0
    %v768 = vsel %vm733, %v722, 0
    %770 = vmatpush.msra.mxu0 0.0
    %771 = vmatpush.msra.mxu0 0.0
    %772 = vmatpush.msra.mxu0 0.0
    %773 = vmatpush.msra.mxu0 0.0
    %774 = vmatpush.msra.mxu0 0.0
    %775 = vmatpush.msra.mxu0 0.0
    %776 = vmatpush.msra.mxu0 0.0
    %777 = vmatpush.msra.mxu0 0.0
    %778 = vmatpush.msra.mxu0 %v730
    %779 = vmatpush.msra.mxu0 %v729
    %780 = vmatpush.msra.mxu0 %v728
    %781 = vmatpush.msra.mxu0 %v727
    %782 = vmatpush.msra.mxu0 %v726
    %783 = vmatpush.msra.mxu0 %v725
    %784 = vmatpush.msra.mxu0 %v724
    %785 = vmatpush.msra.mxu0 %v723
    %786 = vmatmul.f32.gmra.mxu0 %v735
    %v787 = vpop.f32.mrf.mxu0
    %v788 = vadd.f32 %v732, %v787
    %789 = vmatmul.f32.gmra.mxu0 %v738
    %v790 = vpop.f32.mrf.mxu0
    %v791 = vadd.f32 %v732, %v790
    %792 = vmatmul.f32.gmra.mxu0 %v741
    %v793 = vpop.f32.mrf.mxu0
    %v794 = vadd.f32 %v732, %v793
    %795 = vmatmul.f32.gmra.mxu0 %v744
    %v796 = vpop.f32.mrf.mxu0
    %v797 = vadd.f32 %v732, %v796
    %798 = vmatmul.f32.gmra.mxu0 %v747
    %v799 = vpop.f32.mrf.mxu0
    %v800 = vadd.f32 %v732, %v799
    %801 = vmatmul.f32.gmra.mxu0 %v750
    %v802 = vpop.f32.mrf.mxu0
    %v803 = vadd.f32 %v732, %v802
    %804 = vmatmul.f32.gmra.mxu0 %v753
    %v805 = vpop.f32.mrf.mxu0
    %v806 = vadd.f32 %v732, %v805
    %807 = vmatmul.f32.gmra.mxu0 %v756
    %v808 = vpop.f32.mrf.mxu0
    %v809 = vadd.f32 %v732, %v808
    %810 = vmatmul.f32.gmra.mxu0 %v759
    %v811 = vpop.f32.mrf.mxu0
    %v812 = vadd.f32 %v732, %v811
    %813 = vmatmul.f32.gmra.mxu0 %v762
    %v814 = vpop.f32.mrf.mxu0
    %v815 = vadd.f32 %v732, %v814
    %816 = vmatmul.f32.gmra.mxu0 %v765
    %v817 = vpop.f32.mrf.mxu0
    %v818 = vadd.f32 %v732, %v817
    %819 = vmatmul.f32.gmra.mxu0 %v768
    %v820 = vpop.f32.mrf.mxu0
    %v821 = vadd.f32 %v732, %v820
    %822 = vdwg.mxu0
    %v823 = vmax.f32 %v788, 0.0
    %v824 = vmax.f32 %v791, 0.0
    %v825 = vmax.f32 %v794, 0.0
    %v826 = vmax.f32 %v797, 0.0
    %v827 = vmax.f32 %v800, 0.0
    %v828 = vmax.f32 %v803, 0.0
    %v829 = vmax.f32 %v806, 0.0
    %v830 = vmax.f32 %v809, 0.0
    %v831 = vmax.f32 %v812, 0.0
    %v832 = vmax.f32 %v815, 0.0
    %v833 = vmax.f32 %v818, 0.0
    %v834 = vmax.f32 %v821, 0.0
    %v835 = vld [vmem:[%s4 + $0xb0] sm:$0xff]
    %v836 = vld [vmem:[%s4 + $0xb8] sm:$0xff]
    %v837 = vld [vmem:[%s4 + $0xc0] sm:$0xff]
    %v838 = vld [vmem:[%s4 + $0xc8] sm:$0xff]
    %v839 = vld [vmem:[%s4 + $0xd0] sm:$0xff]
    %v840 = vld [vmem:[%s4 + $0xd8] sm:$0xff]
    %v841 = vld [vmem:[%s4 + $0xe0] sm:$0xff]
    %v842 = vld [vmem:[%s4 + $0xe8] sm:$0xff]
    %v843 = vld [vmem:[%s4 + $0xf0] sm:$0x1]
    %v844 = vperm.slane %v843, 0
    %v846 = vsel %vm733, %v823, 0
    %v849 = vsel %vm733, %v824, 0
    %v852 = vsel %vm733, %v825, 0
    %v855 = vsel %vm733, %v826, 0
    %v858 = vsel %vm733, %v827, 0
    %v861 = vsel %vm733, %v828, 0
    %v864 = vsel %vm733, %v829, 0
    %v867 = vsel %vm733, %v830, 0
    %v870 = vsel %vm733, %v831, 0
    %v873 = vsel %vm733, %v832, 0
    %v876 = vsel %vm733, %v833, 0
    %v879 = vsel %vm733, %v834, 0
    %881 = vmatpush.msra.mxu0 0.0
    %882 = vmatpush.msra.mxu0 0.0
    %883 = vmatpush.msra.mxu0 0.0
    %884 = vmatpush.msra.mxu0 0.0
    %885 = vmatpush.msra.mxu0 0.0
    %886 = vmatpush.msra.mxu0 0.0
    %887 = vmatpush.msra.mxu0 0.0
    %888 = vmatpush.msra.mxu0 0.0
    %889 = vmatpush.msra.mxu0 %v842
    %890 = vmatpush.msra.mxu0 %v841
    %891 = vmatpush.msra.mxu0 %v840
    %892 = vmatpush.msra.mxu0 %v839
    %893 = vmatpush.msra.mxu0 %v838
    %894 = vmatpush.msra.mxu0 %v837
    %895 = vmatpush.msra.mxu0 %v836
    %896 = vmatpush.msra.mxu0 %v835
    %897 = vmatmul.f32.gmra.mxu0 %v846
    %v898 = vpop.f32.mrf.mxu0
    %v899 = vadd.f32 %v844, %v898
    %900 = vmatmul.f32.gmra.mxu0 %v849
    %v901 = vpop.f32.mrf.mxu0
    %v902 = vadd.f32 %v844, %v901
    %903 = vmatmul.f32.gmra.mxu0 %v852
    %v904 = vpop.f32.mrf.mxu0
    %v905 = vadd.f32 %v844, %v904
    %906 = vmatmul.f32.gmra.mxu0 %v855
    %v907 = vpop.f32.mrf.mxu0
    %v908 = vadd.f32 %v844, %v907
    %909 = vmatmul.f32.gmra.mxu0 %v858
    %v910 = vpop.f32.mrf.mxu0
    %v911 = vadd.f32 %v844, %v910
    %912 = vmatmul.f32.gmra.mxu0 %v861
    %v913 = vpop.f32.mrf.mxu0
    %v914 = vadd.f32 %v844, %v913
    %915 = vmatmul.f32.gmra.mxu0 %v864
    %v916 = vpop.f32.mrf.mxu0
    %v917 = vadd.f32 %v844, %v916
    %918 = vmatmul.f32.gmra.mxu0 %v867
    %v919 = vpop.f32.mrf.mxu0
    %v920 = vadd.f32 %v844, %v919
    %921 = vmatmul.f32.gmra.mxu0 %v870
    %v922 = vpop.f32.mrf.mxu0
    %v923 = vadd.f32 %v844, %v922
    %924 = vmatmul.f32.gmra.mxu0 %v873
    %v925 = vpop.f32.mrf.mxu0
    %v926 = vadd.f32 %v844, %v925
    %927 = vmatmul.f32.gmra.mxu0 %v876
    %v928 = vpop.f32.mrf.mxu0
    %v929 = vadd.f32 %v844, %v928
    %930 = vmatmul.f32.gmra.mxu0 %v879
    %v931 = vpop.f32.mrf.mxu0
    %v932 = vadd.f32 %v844, %v931
    %933 = vdwg.mxu0
    %v934 = vld [vmem:[%s7] sm:$0xff]
    %v935 = vld [vmem:[%s7 + $0x8] sm:$0xff]
    %v936 = vld [vmem:[%s7 + $0x10] sm:$0xff]
    %v937 = vld [vmem:[%s7 + $0x18] sm:$0xff]
    %v938 = vld [vmem:[%s7 + $0x20] sm:$0xff]
    %v939 = vld [vmem:[%s7 + $0x28] sm:$0xff]
    %v940 = vld [vmem:[%s7 + $0x30] sm:$0xff]
    %v941 = vld [vmem:[%s7 + $0x38] sm:$0xff]
    %v942 = vld [vmem:[%s7 + $0x40] sm:$0xff]
    %v943 = vld [vmem:[%s7 + $0x48] sm:$0xff]
    %v944 = vld [vmem:[%s7 + $0x50] sm:$0xff]
    %v945 = vld [vmem:[%s7 + $0x58] sm:$0xff]
    %v946 = vld [vmem:[%s7 + $0x60] sm:$0xff]
    %v947 = vld [vmem:[%s7 + $0x68] sm:$0xff]
    %v948 = vld [vmem:[%s7 + $0x70] sm:$0xff]
    %v949 = vld [vmem:[%s7 + $0x78] sm:$0xff]
    %v950 = vld [vmem:[%s7 + $0x80] sm:$0xff]
    %v951 = vld [vmem:[%s7 + $0x88] sm:$0xff]
    %v952 = vld [vmem:[%s7 + $0x90] sm:$0xff]
    %v953 = vld [vmem:[%s7 + $0x98] sm:$0xff]
    %v954 = vld [vmem:[%s7 + $0xa0] sm:$0xff]
    %v955 = vld [vmem:[%s7 + $0xa8] sm:$0xff]
    %v956 = vld [vmem:[%s7 + $0xb0] sm:$0xff]
    %v957 = vld [vmem:[%s7 + $0xb8] sm:$0xff]
    %v958 = vld [vmem:[%s7 + $0xc0] sm:$0xff]
    %v959 = vld [vmem:[%s7 + $0xc8] sm:$0xff]
    %v960 = vld [vmem:[%s7 + $0xd0] sm:$0xff]
    %v961 = vld [vmem:[%s7 + $0xd8] sm:$0xff]
    %v962 = vld [vmem:[%s7 + $0xe0] sm:$0xff]
    %v963 = vld [vmem:[%s7 + $0xe8] sm:$0xff]
    %v964 = vld [vmem:[%s7 + $0xf0] sm:$0xff]
    %v965 = vld [vmem:[%s7 + $0xf8] sm:$0xff]
    %v966 = vld [vmem:[%s7 + $0x100] sm:$0xff]
    %v967 = vld [vmem:[%s7 + $0x108] sm:$0xff]
    %v968 = vld [vmem:[%s7 + $0x110] sm:$0xff]
    %v969 = vld [vmem:[%s7 + $0x118] sm:$0xff]
    %v970 = vld [vmem:[%s7 + $0x120] sm:$0xff]
    %v971 = vld [vmem:[%s7 + $0x128] sm:$0xff]
    %v972 = vld [vmem:[%s7 + $0x130] sm:$0xff]
    %v973 = vld [vmem:[%s7 + $0x138] sm:$0xff]
    %v974 = vld [vmem:[%s7 + $0x140] sm:$0xff]
    %v975 = vld [vmem:[%s7 + $0x148] sm:$0xff]
    %v976 = vld [vmem:[%s7 + $0x150] sm:$0xff]
    %v977 = vld [vmem:[%s7 + $0x158] sm:$0xff]
    %v978 = vld [vmem:[%s7 + $0x160] sm:$0xff]
    %v979 = vld [vmem:[%s7 + $0x168] sm:$0xff]
    %v980 = vld [vmem:[%s7 + $0x170] sm:$0xff]
    %v981 = vld [vmem:[%s7 + $0x178] sm:$0xff]
    %983 = vset.pattern.permute.xlu0 0
    %984 = vperm.xlu0 %983, %v899
    %v985 = vpop.permute.xlu0 %984
    %988 = vset.pattern.permute.xlu0 0
    %989 = vperm.xlu0 %988, %v902
    %v990 = vpop.permute.xlu0 %989
    %993 = vset.pattern.permute.xlu0 0
    %994 = vperm.xlu0 %993, %v905
    %v995 = vpop.permute.xlu0 %994
    %998 = vset.pattern.permute.xlu0 0
    %999 = vperm.xlu0 %998, %v908
    %v1000 = vpop.permute.xlu0 %999
    %1003 = vset.pattern.permute.xlu0 0
    %1004 = vperm.xlu0 %1003, %v911
    %v1005 = vpop.permute.xlu0 %1004
    %1008 = vset.pattern.permute.xlu0 0
    %1009 = vperm.xlu0 %1008, %v914
    %v1010 = vpop.permute.xlu0 %1009
    %1013 = vset.pattern.permute.xlu0 0
    %1014 = vperm.xlu0 %1013, %v917
    %v1015 = vpop.permute.xlu0 %1014
    %1018 = vset.pattern.permute.xlu0 0
    %1019 = vperm.xlu0 %1018, %v920
    %v1020 = vpop.permute.xlu0 %1019
    %1023 = vset.pattern.permute.xlu0 0
    %1024 = vperm.xlu0 %1023, %v923
    %v1025 = vpop.permute.xlu0 %1024
    %1028 = vset.pattern.permute.xlu0 0
    %1029 = vperm.xlu0 %1028, %v926
    %v1030 = vpop.permute.xlu0 %1029
    %1033 = vset.pattern.permute.xlu0 0
    %1034 = vperm.xlu0 %1033, %v929
    %v1035 = vpop.permute.xlu0 %1034
    %1038 = vset.pattern.permute.xlu0 0
    %1039 = vperm.xlu0 %1038, %v932
    %v1040 = vpop.permute.xlu0 %1039
    %v1042 = vmul.f32 %v985, %v934
    %v1043 = vmul.f32 %v990, %v935
    %v1044 = vmul.f32 %v995, %v936
    %v1045 = vmul.f32 %v1000, %v937
    %v1046 = vmul.f32 %v1005, %v938
    %v1047 = vmul.f32 %v1010, %v939
    %v1048 = vmul.f32 %v1015, %v940
    %v1049 = vmul.f32 %v1020, %v941
    %v1050 = vmul.f32 %v1025, %v942
    %v1051 = vmul.f32 %v1030, %v943
    %v1052 = vmul.f32 %v1035, %v944
    %v1053 = vmul.f32 %v1040, %v945
    %1054 = vset.pattern.permute.xlu0 4
    %1055 = vperm.xlu0 %1054, %v899
    %v1056 = vpop.permute.xlu0 %1055
    %1058 = vset.pattern.permute.xlu0 4
    %1059 = vperm.xlu0 %1058, %v902
    %v1060 = vpop.permute.xlu0 %1059
    %1062 = vset.pattern.permute.xlu0 4
    %1063 = vperm.xlu0 %1062, %v905
    %v1064 = vpop.permute.xlu0 %1063
    %1066 = vset.pattern.permute.xlu0 4
    %1067 = vperm.xlu0 %1066, %v908
    %v1068 = vpop.permute.xlu0 %1067
    %1070 = vset.pattern.permute.xlu0 4
    %1071 = vperm.xlu0 %1070, %v911
    %v1072 = vpop.permute.xlu0 %1071
    %1074 = vset.pattern.permute.xlu0 4
    %1075 = vperm.xlu0 %1074, %v914
    %v1076 = vpop.permute.xlu0 %1075
    %1078 = vset.pattern.permute.xlu0 4
    %1079 = vperm.xlu0 %1078, %v917
    %v1080 = vpop.permute.xlu0 %1079
    %1082 = vset.pattern.permute.xlu0 4
    %1083 = vperm.xlu0 %1082, %v920
    %v1084 = vpop.permute.xlu0 %1083
    %1086 = vset.pattern.permute.xlu0 4
    %1087 = vperm.xlu0 %1086, %v923
    %v1088 = vpop.permute.xlu0 %1087
    %1090 = vset.pattern.permute.xlu0 4
    %1091 = vperm.xlu0 %1090, %v926
    %v1092 = vpop.permute.xlu0 %1091
    %1094 = vset.pattern.permute.xlu0 4
    %1095 = vperm.xlu0 %1094, %v929
    %v1096 = vpop.permute.xlu0 %1095
    %1098 = vset.pattern.permute.xlu0 4
    %1099 = vperm.xlu0 %1098, %v932
    %v1100 = vpop.permute.xlu0 %1099
    %v1102 = vmul.f32 %v1056, %v934
    %v1103 = vmul.f32 %v1060, %v935
    %v1104 = vmul.f32 %v1064, %v936
    %v1105 = vmul.f32 %v1068, %v937
    %v1106 = vmul.f32 %v1072, %v938
    %v1107 = vmul.f32 %v1076, %v939
    %v1108 = vmul.f32 %v1080, %v940
    %v1109 = vmul.f32 %v1084, %v941
    %v1110 = vmul.f32 %v1088, %v942
    %v1111 = vmul.f32 %v1092, %v943
    %v1112 = vmul.f32 %v1096, %v944
    %v1113 = vmul.f32 %v1100, %v945
    %1126 = vrot.lane.b32.xlu0 %v1102, 32
    %v1127 = vpop.permute.xlu0 %1126
    %1128 = vrot.lane.b32.xlu0 %v1103, 32
    %v1129 = vpop.permute.xlu0 %1128
    %1130 = vrot.lane.b32.xlu0 %v1104, 32
    %v1131 = vpop.permute.xlu0 %1130
    %1132 = vrot.lane.b32.xlu0 %v1105, 32
    %v1133 = vpop.permute.xlu0 %1132
    %1134 = vrot.lane.b32.xlu0 %v1106, 32
    %v1135 = vpop.permute.xlu0 %1134
    %1136 = vrot.lane.b32.xlu0 %v1107, 32
    %v1137 = vpop.permute.xlu0 %1136
    %1138 = vrot.lane.b32.xlu0 %v1108, 32
    %v1139 = vpop.permute.xlu0 %1138
    %1140 = vrot.lane.b32.xlu0 %v1109, 32
    %v1141 = vpop.permute.xlu0 %1140
    %1142 = vrot.lane.b32.xlu0 %v1110, 32
    %v1143 = vpop.permute.xlu0 %1142
    %1144 = vrot.lane.b32.xlu0 %v1111, 32
    %v1145 = vpop.permute.xlu0 %1144
    %1146 = vrot.lane.b32.xlu0 %v1112, 32
    %v1147 = vpop.permute.xlu0 %1146
    %1148 = vrot.lane.b32.xlu0 %v1113, 32
    %v1149 = vpop.permute.xlu0 %1148
    %vm1162 = vcmask 261120
    %v1163 = vsel %vm1162, %v1042, %v1127
    %v1164 = vsel %vm1162, %v1043, %v1129
    %v1165 = vsel %vm1162, %v1044, %v1131
    %v1166 = vsel %vm1162, %v1045, %v1133
    %v1167 = vsel %vm1162, %v1046, %v1135
    %v1168 = vsel %vm1162, %v1047, %v1137
    %v1169 = vsel %vm1162, %v1048, %v1139
    %v1170 = vsel %vm1162, %v1049, %v1141
    %v1171 = vsel %vm1162, %v1050, %v1143
    %v1172 = vsel %vm1162, %v1051, %v1145
    %v1173 = vsel %vm1162, %v1052, %v1147
    %v1174 = vsel %vm1162, %v1053, %v1149
    %1175 = vset.pattern.permute.xlu0 1
    %1176 = vperm.xlu0 %1175, %v899
    %v1177 = vpop.permute.xlu0 %1176
    %1179 = vset.pattern.permute.xlu0 1
    %1180 = vperm.xlu0 %1179, %v902
    %v1181 = vpop.permute.xlu0 %1180
    %1183 = vset.pattern.permute.xlu0 1
    %1184 = vperm.xlu0 %1183, %v905
    %v1185 = vpop.permute.xlu0 %1184
    %1187 = vset.pattern.permute.xlu0 1
    %1188 = vperm.xlu0 %1187, %v908
    %v1189 = vpop.permute.xlu0 %1188
    %1191 = vset.pattern.permute.xlu0 1
    %1192 = vperm.xlu0 %1191, %v911
    %v1193 = vpop.permute.xlu0 %1192
    %1195 = vset.pattern.permute.xlu0 1
    %1196 = vperm.xlu0 %1195, %v914
    %v1197 = vpop.permute.xlu0 %1196
    %1199 = vset.pattern.permute.xlu0 1
    %1200 = vperm.xlu0 %1199, %v917
    %v1201 = vpop.permute.xlu0 %1200
    %1203 = vset.pattern.permute.xlu0 1
    %1204 = vperm.xlu0 %1203, %v920
    %v1205 = vpop.permute.xlu0 %1204
    %1207 = vset.pattern.permute.xlu0 1
    %1208 = vperm.xlu0 %1207, %v923
    %v1209 = vpop.permute.xlu0 %1208
    %1211 = vset.pattern.permute.xlu0 1
    %1212 = vperm.xlu0 %1211, %v926
    %v1213 = vpop.permute.xlu0 %1212
    %1215 = vset.pattern.permute.xlu0 1
    %1216 = vperm.xlu0 %1215, %v929
    %v1217 = vpop.permute.xlu0 %1216
    %1219 = vset.pattern.permute.xlu0 1
    %1220 = vperm.xlu0 %1219, %v932
    %v1221 = vpop.permute.xlu0 %1220
    %v1223 = vmul.f32 %v1177, %v946
    %v1224 = vmul.f32 %v1181, %v947
    %v1225 = vmul.f32 %v1185, %v948
    %v1226 = vmul.f32 %v1189, %v949
    %v1227 = vmul.f32 %v1193, %v950
    %v1228 = vmul.f32 %v1197, %v951
    %v1229 = vmul.f32 %v1201, %v952
    %v1230 = vmul.f32 %v1205, %v953
    %v1231 = vmul.f32 %v1209, %v954
    %v1232 = vmul.f32 %v1213, %v955
    %v1233 = vmul.f32 %v1217, %v956
    %v1234 = vmul.f32 %v1221, %v957
    %1235 = vset.pattern.permute.xlu0 5
    %1236 = vperm.xlu0 %1235, %v899
    %v1237 = vpop.permute.xlu0 %1236
    %1239 = vset.pattern.permute.xlu0 5
    %1240 = vperm.xlu0 %1239, %v902
    %v1241 = vpop.permute.xlu0 %1240
    %1243 = vset.pattern.permute.xlu0 5
    %1244 = vperm.xlu0 %1243, %v905
    %v1245 = vpop.permute.xlu0 %1244
    %1247 = vset.pattern.permute.xlu0 5
    %1248 = vperm.xlu0 %1247, %v908
    %v1249 = vpop.permute.xlu0 %1248
    %1251 = vset.pattern.permute.xlu0 5
    %1252 = vperm.xlu0 %1251, %v911
    %v1253 = vpop.permute.xlu0 %1252
    %1255 = vset.pattern.permute.xlu0 5
    %1256 = vperm.xlu0 %1255, %v914
    %v1257 = vpop.permute.xlu0 %1256
    %1259 = vset.pattern.permute.xlu0 5
    %1260 = vperm.xlu0 %1259, %v917
    %v1261 = vpop.permute.xlu0 %1260
    %1263 = vset.pattern.permute.xlu0 5
    %1264 = vperm.xlu0 %1263, %v920
    %v1265 = vpop.permute.xlu0 %1264
    %1267 = vset.pattern.permute.xlu0 5
    %1268 = vperm.xlu0 %1267, %v923
    %v1269 = vpop.permute.xlu0 %1268
    %1271 = vset.pattern.permute.xlu0 5
    %1272 = vperm.xlu0 %1271, %v926
    %v1273 = vpop.permute.xlu0 %1272
    %1275 = vset.pattern.permute.xlu0 5
    %1276 = vperm.xlu0 %1275, %v929
    %v1277 = vpop.permute.xlu0 %1276
    %1279 = vset.pattern.permute.xlu0 5
    %1280 = vperm.xlu0 %1279, %v932
    %v1281 = vpop.permute.xlu0 %1280
    %v1283 = vmul.f32 %v1237, %v946
    %v1284 = vmul.f32 %v1241, %v947
    %v1285 = vmul.f32 %v1245, %v948
    %v1286 = vmul.f32 %v1249, %v949
    %v1287 = vmul.f32 %v1253, %v950
    %v1288 = vmul.f32 %v1257, %v951
    %v1289 = vmul.f32 %v1261, %v952
    %v1290 = vmul.f32 %v1265, %v953
    %v1291 = vmul.f32 %v1269, %v954
    %v1292 = vmul.f32 %v1273, %v955
    %v1293 = vmul.f32 %v1277, %v956
    %v1294 = vmul.f32 %v1281, %v957
    %1307 = vrot.lane.b32.xlu0 %v1283, 32
    %v1308 = vpop.permute.xlu0 %1307
    %1309 = vrot.lane.b32.xlu0 %v1284, 32
    %v1310 = vpop.permute.xlu0 %1309
    %1311 = vrot.lane.b32.xlu0 %v1285, 32
    %v1312 = vpop.permute.xlu0 %1311
    %1313 = vrot.lane.b32.xlu0 %v1286, 32
    %v1314 = vpop.permute.xlu0 %1313
    %1315 = vrot.lane.b32.xlu0 %v1287, 32
    %v1316 = vpop.permute.xlu0 %1315
    %1317 = vrot.lane.b32.xlu0 %v1288, 32
    %v1318 = vpop.permute.xlu0 %1317
    %1319 = vrot.lane.b32.xlu0 %v1289, 32
    %v1320 = vpop.permute.xlu0 %1319
    %1321 = vrot.lane.b32.xlu0 %v1290, 32
    %v1322 = vpop.permute.xlu0 %1321
    %1323 = vrot.lane.b32.xlu0 %v1291, 32
    %v1324 = vpop.permute.xlu0 %1323
    %1325 = vrot.lane.b32.xlu0 %v1292, 32
    %v1326 = vpop.permute.xlu0 %1325
    %1327 = vrot.lane.b32.xlu0 %v1293, 32
    %v1328 = vpop.permute.xlu0 %1327
    %1329 = vrot.lane.b32.xlu0 %v1294, 32
    %v1330 = vpop.permute.xlu0 %1329
    %v1343 = vsel %vm1162, %v1223, %v1308
    %v1344 = vsel %vm1162, %v1224, %v1310
    %v1345 = vsel %vm1162, %v1225, %v1312
    %v1346 = vsel %vm1162, %v1226, %v1314
    %v1347 = vsel %vm1162, %v1227, %v1316
    %v1348 = vsel %vm1162, %v1228, %v1318
    %v1349 = vsel %vm1162, %v1229, %v1320
    %v1350 = vsel %vm1162, %v1230, %v1322
    %v1351 = vsel %vm1162, %v1231, %v1324
    %v1352 = vsel %vm1162, %v1232, %v1326
    %v1353 = vsel %vm1162, %v1233, %v1328
    %v1354 = vsel %vm1162, %v1234, %v1330
    %1355 = vset.pattern.permute.xlu0 2
    %1356 = vperm.xlu0 %1355, %v899
    %v1357 = vpop.permute.xlu0 %1356
    %1359 = vset.pattern.permute.xlu0 2
    %1360 = vperm.xlu0 %1359, %v902
    %v1361 = vpop.permute.xlu0 %1360
    %1363 = vset.pattern.permute.xlu0 2
    %1364 = vperm.xlu0 %1363, %v905
    %v1365 = vpop.permute.xlu0 %1364
    %1367 = vset.pattern.permute.xlu0 2
    %1368 = vperm.xlu0 %1367, %v908
    %v1369 = vpop.permute.xlu0 %1368
    %1371 = vset.pattern.permute.xlu0 2
    %1372 = vperm.xlu0 %1371, %v911
    %v1373 = vpop.permute.xlu0 %1372
    %1375 = vset.pattern.permute.xlu0 2
    %1376 = vperm.xlu0 %1375, %v914
    %v1377 = vpop.permute.xlu0 %1376
    %1379 = vset.pattern.permute.xlu0 2
    %1380 = vperm.xlu0 %1379, %v917
    %v1381 = vpop.permute.xlu0 %1380
    %1383 = vset.pattern.permute.xlu0 2
    %1384 = vperm.xlu0 %1383, %v920
    %v1385 = vpop.permute.xlu0 %1384
    %1387 = vset.pattern.permute.xlu0 2
    %1388 = vperm.xlu0 %1387, %v923
    %v1389 = vpop.permute.xlu0 %1388
    %1391 = vset.pattern.permute.xlu0 2
    %1392 = vperm.xlu0 %1391, %v926
    %v1393 = vpop.permute.xlu0 %1392
    %1395 = vset.pattern.permute.xlu0 2
    %1396 = vperm.xlu0 %1395, %v929
    %v1397 = vpop.permute.xlu0 %1396
    %1399 = vset.pattern.permute.xlu0 2
    %1400 = vperm.xlu0 %1399, %v932
    %v1401 = vpop.permute.xlu0 %1400
    %v1403 = vmul.f32 %v1357, %v958
    %v1404 = vmul.f32 %v1361, %v959
    %v1405 = vmul.f32 %v1365, %v960
    %v1406 = vmul.f32 %v1369, %v961
    %v1407 = vmul.f32 %v1373, %v962
    %v1408 = vmul.f32 %v1377, %v963
    %v1409 = vmul.f32 %v1381, %v964
    %v1410 = vmul.f32 %v1385, %v965
    %v1411 = vmul.f32 %v1389, %v966
    %v1412 = vmul.f32 %v1393, %v967
    %v1413 = vmul.f32 %v1397, %v968
    %v1414 = vmul.f32 %v1401, %v969
    %1415 = vset.pattern.permute.xlu0 6
    %1416 = vperm.xlu0 %1415, %v899
    %v1417 = vpop.permute.xlu0 %1416
    %1419 = vset.pattern.permute.xlu0 6
    %1420 = vperm.xlu0 %1419, %v902
    %v1421 = vpop.permute.xlu0 %1420
    %1423 = vset.pattern.permute.xlu0 6
    %1424 = vperm.xlu0 %1423, %v905
    %v1425 = vpop.permute.xlu0 %1424
    %1427 = vset.pattern.permute.xlu0 6
    %1428 = vperm.xlu0 %1427, %v908
    %v1429 = vpop.permute.xlu0 %1428
    %1431 = vset.pattern.permute.xlu0 6
    %1432 = vperm.xlu0 %1431, %v911
    %v1433 = vpop.permute.xlu0 %1432
    %1435 = vset.pattern.permute.xlu0 6
    %1436 = vperm.xlu0 %1435, %v914
    %v1437 = vpop.permute.xlu0 %1436
    %1439 = vset.pattern.permute.xlu0 6
    %1440 = vperm.xlu0 %1439, %v917
    %v1441 = vpop.permute.xlu0 %1440
    %1443 = vset.pattern.permute.xlu0 6
    %1444 = vperm.xlu0 %1443, %v920
    %v1445 = vpop.permute.xlu0 %1444
    %1447 = vset.pattern.permute.xlu0 6
    %1448 = vperm.xlu0 %1447, %v923
    %v1449 = vpop.permute.xlu0 %1448
    %1451 = vset.pattern.permute.xlu0 6
    %1452 = vperm.xlu0 %1451, %v926
    %v1453 = vpop.permute.xlu0 %1452
    %1455 = vset.pattern.permute.xlu0 6
    %1456 = vperm.xlu0 %1455, %v929
    %v1457 = vpop.permute.xlu0 %1456
    %1459 = vset.pattern.permute.xlu0 6
    %1460 = vperm.xlu0 %1459, %v932
    %v1461 = vpop.permute.xlu0 %1460
    %v1463 = vmul.f32 %v1417, %v958
    %v1464 = vmul.f32 %v1421, %v959
    %v1465 = vmul.f32 %v1425, %v960
    %v1466 = vmul.f32 %v1429, %v961
    %v1467 = vmul.f32 %v1433, %v962
    %v1468 = vmul.f32 %v1437, %v963
    %v1469 = vmul.f32 %v1441, %v964
    %v1470 = vmul.f32 %v1445, %v965
    %v1471 = vmul.f32 %v1449, %v966
    %v1472 = vmul.f32 %v1453, %v967
    %v1473 = vmul.f32 %v1457, %v968
    %v1474 = vmul.f32 %v1461, %v969
    %1487 = vrot.lane.b32.xlu0 %v1463, 32
    %v1488 = vpop.permute.xlu0 %1487
    %1489 = vrot.lane.b32.xlu0 %v1464, 32
    %v1490 = vpop.permute.xlu0 %1489
    %1491 = vrot.lane.b32.xlu0 %v1465, 32
    %v1492 = vpop.permute.xlu0 %1491
    %1493 = vrot.lane.b32.xlu0 %v1466, 32
    %v1494 = vpop.permute.xlu0 %1493
    %1495 = vrot.lane.b32.xlu0 %v1467, 32
    %v1496 = vpop.permute.xlu0 %1495
    %1497 = vrot.lane.b32.xlu0 %v1468, 32
    %v1498 = vpop.permute.xlu0 %1497
    %1499 = vrot.lane.b32.xlu0 %v1469, 32
    %v1500 = vpop.permute.xlu0 %1499
    %1501 = vrot.lane.b32.xlu0 %v1470, 32
    %v1502 = vpop.permute.xlu0 %1501
    %1503 = vrot.lane.b32.xlu0 %v1471, 32
    %v1504 = vpop.permute.xlu0 %1503
    %1505 = vrot.lane.b32.xlu0 %v1472, 32
    %v1506 = vpop.permute.xlu0 %1505
    %1507 = vrot.lane.b32.xlu0 %v1473, 32
    %v1508 = vpop.permute.xlu0 %1507
    %1509 = vrot.lane.b32.xlu0 %v1474, 32
    %v1510 = vpop.permute.xlu0 %1509
    %v1523 = vsel %vm1162, %v1403, %v1488
    %v1524 = vsel %vm1162, %v1404, %v1490
    %v1525 = vsel %vm1162, %v1405, %v1492
    %v1526 = vsel %vm1162, %v1406, %v1494
    %v1527 = vsel %vm1162, %v1407, %v1496
    %v1528 = vsel %vm1162, %v1408, %v1498
    %v1529 = vsel %vm1162, %v1409, %v1500
    %v1530 = vsel %vm1162, %v1410, %v1502
    %v1531 = vsel %vm1162, %v1411, %v1504
    %v1532 = vsel %vm1162, %v1412, %v1506
    %v1533 = vsel %vm1162, %v1413, %v1508
    %v1534 = vsel %vm1162, %v1414, %v1510
    %1535 = vset.pattern.permute.xlu0 3
    %1536 = vperm.xlu0 %1535, %v899
    %v1537 = vpop.permute.xlu0 %1536
    %1539 = vset.pattern.permute.xlu0 3
    %1540 = vperm.xlu0 %1539, %v902
    %v1541 = vpop.permute.xlu0 %1540
    %1543 = vset.pattern.permute.xlu0 3
    %1544 = vperm.xlu0 %1543, %v905
    %v1545 = vpop.permute.xlu0 %1544
    %1547 = vset.pattern.permute.xlu0 3
    %1548 = vperm.xlu0 %1547, %v908
    %v1549 = vpop.permute.xlu0 %1548
    %1551 = vset.pattern.permute.xlu0 3
    %1552 = vperm.xlu0 %1551, %v911
    %v1553 = vpop.permute.xlu0 %1552
    %1555 = vset.pattern.permute.xlu0 3
    %1556 = vperm.xlu0 %1555, %v914
    %v1557 = vpop.permute.xlu0 %1556
    %1559 = vset.pattern.permute.xlu0 3
    %1560 = vperm.xlu0 %1559, %v917
    %v1561 = vpop.permute.xlu0 %1560
    %1563 = vset.pattern.permute.xlu0 3
    %1564 = vperm.xlu0 %1563, %v920
    %v1565 = vpop.permute.xlu0 %1564
    %1567 = vset.pattern.permute.xlu0 3
    %1568 = vperm.xlu0 %1567, %v923
    %v1569 = vpop.permute.xlu0 %1568
    %1571 = vset.pattern.permute.xlu0 3
    %1572 = vperm.xlu0 %1571, %v926
    %v1573 = vpop.permute.xlu0 %1572
    %1575 = vset.pattern.permute.xlu0 3
    %1576 = vperm.xlu0 %1575, %v929
    %v1577 = vpop.permute.xlu0 %1576
    %1579 = vset.pattern.permute.xlu0 3
    %1580 = vperm.xlu0 %1579, %v932
    %v1581 = vpop.permute.xlu0 %1580
    %v1583 = vmul.f32 %v1537, %v970
    %v1584 = vmul.f32 %v1541, %v971
    %v1585 = vmul.f32 %v1545, %v972
    %v1586 = vmul.f32 %v1549, %v973
    %v1587 = vmul.f32 %v1553, %v974
    %v1588 = vmul.f32 %v1557, %v975
    %v1589 = vmul.f32 %v1561, %v976
    %v1590 = vmul.f32 %v1565, %v977
    %v1591 = vmul.f32 %v1569, %v978
    %v1592 = vmul.f32 %v1573, %v979
    %v1593 = vmul.f32 %v1577, %v980
    %v1594 = vmul.f32 %v1581, %v981
    %1595 = vset.pattern.permute.xlu0 7
    %1596 = vperm.xlu0 %1595, %v899
    %v1597 = vpop.permute.xlu0 %1596
    %1599 = vset.pattern.permute.xlu0 7
    %1600 = vperm.xlu0 %1599, %v902
    %v1601 = vpop.permute.xlu0 %1600
    %1603 = vset.pattern.permute.xlu0 7
    %1604 = vperm.xlu0 %1603, %v905
    %v1605 = vpop.permute.xlu0 %1604
    %1607 = vset.pattern.permute.xlu0 7
    %1608 = vperm.xlu0 %1607, %v908
    %v1609 = vpop.permute.xlu0 %1608
    %1611 = vset.pattern.permute.xlu0 7
    %1612 = vperm.xlu0 %1611, %v911
    %v1613 = vpop.permute.xlu0 %1612
    %1615 = vset.pattern.permute.xlu0 7
    %1616 = vperm.xlu0 %1615, %v914
    %v1617 = vpop.permute.xlu0 %1616
    %1619 = vset.pattern.permute.xlu0 7
    %1620 = vperm.xlu0 %1619, %v917
    %v1621 = vpop.permute.xlu0 %1620
    %1623 = vset.pattern.permute.xlu0 7
    %1624 = vperm.xlu0 %1623, %v920
    %v1625 = vpop.permute.xlu0 %1624
    %1627 = vset.pattern.permute.xlu0 7
    %1628 = vperm.xlu0 %1627, %v923
    %v1629 = vpop.permute.xlu0 %1628
    %1631 = vset.pattern.permute.xlu0 7
    %1632 = vperm.xlu0 %1631, %v926
    %v1633 = vpop.permute.xlu0 %1632
    %1635 = vset.pattern.permute.xlu0 7
    %1636 = vperm.xlu0 %1635, %v929
    %v1637 = vpop.permute.xlu0 %1636
    %1639 = vset.pattern.permute.xlu0 7
    %1640 = vperm.xlu0 %1639, %v932
    %v1641 = vpop.permute.xlu0 %1640
    %v1643 = vmul.f32 %v1597, %v970
    %v1644 = vmul.f32 %v1601, %v971
    %v1645 = vmul.f32 %v1605, %v972
    %v1646 = vmul.f32 %v1609, %v973
    %v1647 = vmul.f32 %v1613, %v974
    %v1648 = vmul.f32 %v1617, %v975
    %v1649 = vmul.f32 %v1621, %v976
    %v1650 = vmul.f32 %v1625, %v977
    %v1651 = vmul.f32 %v1629, %v978
    %v1652 = vmul.f32 %v1633, %v979
    %v1653 = vmul.f32 %v1637, %v980
    %v1654 = vmul.f32 %v1641, %v981
    %1667 = vrot.lane.b32.xlu0 %v1643, 32
    %v1668 = vpop.permute.xlu0 %1667
    %1669 = vrot.lane.b32.xlu0 %v1644, 32
    %v1670 = vpop.permute.xlu0 %1669
    %1671 = vrot.lane.b32.xlu0 %v1645, 32
    %v1672 = vpop.permute.xlu0 %1671
    %1673 = vrot.lane.b32.xlu0 %v1646, 32
    %v1674 = vpop.permute.xlu0 %1673
    %1675 = vrot.lane.b32.xlu0 %v1647, 32
    %v1676 = vpop.permute.xlu0 %1675
    %1677 = vrot.lane.b32.xlu0 %v1648, 32
    %v1678 = vpop.permute.xlu0 %1677
    %1679 = vrot.lane.b32.xlu0 %v1649, 32
    %v1680 = vpop.permute.xlu0 %1679
    %1681 = vrot.lane.b32.xlu0 %v1650, 32
    %v1682 = vpop.permute.xlu0 %1681
    %1683 = vrot.lane.b32.xlu0 %v1651, 32
    %v1684 = vpop.permute.xlu0 %1683
    %1685 = vrot.lane.b32.xlu0 %v1652, 32
    %v1686 = vpop.permute.xlu0 %1685
    %1687 = vrot.lane.b32.xlu0 %v1653, 32
    %v1688 = vpop.permute.xlu0 %1687
    %1689 = vrot.lane.b32.xlu0 %v1654, 32
    %v1690 = vpop.permute.xlu0 %1689
    %v1703 = vsel %vm1162, %v1583, %v1668
    %v1704 = vsel %vm1162, %v1584, %v1670
    %v1705 = vsel %vm1162, %v1585, %v1672
    %v1706 = vsel %vm1162, %v1586, %v1674
    %v1707 = vsel %vm1162, %v1587, %v1676
    %v1708 = vsel %vm1162, %v1588, %v1678
    %v1709 = vsel %vm1162, %v1589, %v1680
    %v1710 = vsel %vm1162, %v1590, %v1682
    %v1711 = vsel %vm1162, %v1591, %v1684
    %v1712 = vsel %vm1162, %v1592, %v1686
    %v1713 = vsel %vm1162, %v1593, %v1688
    %v1714 = vsel %vm1162, %v1594, %v1690
    %v1715 = vld [vmem:[#allocation6] sm:$0xff]
    %v1716 = vld [vmem:[#allocation6 + $0x8] sm:$0xff]
    %v1717 = vld [vmem:[#allocation6 + $0x10] sm:$0xff]
    %v1718 = vld [vmem:[#allocation6 + $0x18] sm:$0xff]
    %v1719 = vld [vmem:[#allocation6 + $0x20] sm:$0xff]
    %v1720 = vld [vmem:[#allocation6 + $0x28] sm:$0xff]
    %v1721 = vld [vmem:[#allocation6 + $0x30] sm:$0xff]
    %v1722 = vld [vmem:[#allocation6 + $0x38] sm:$0xff]
    %v1723 = vld [vmem:[#allocation6 + $0x40] sm:$0xff]
    %v1724 = vld [vmem:[#allocation6 + $0x48] sm:$0xff]
    %v1725 = vld [vmem:[#allocation6 + $0x50] sm:$0xff]
    %v1726 = vld [vmem:[#allocation6 + $0x58] sm:$0xff]
    %1727 = vmatpush.msra.mxu0 %v1346
    %1728 = vmatpush.msra.mxu0 %v1345
    %1729 = vmatpush.msra.mxu0 %v1344
    %1730 = vmatpush.msra.mxu0 %v1343
    %1731 = vmatpush.msra.mxu0 %v1174
    %1732 = vmatpush.msra.mxu0 %v1173
    %1733 = vmatpush.msra.mxu0 %v1172
    %1734 = vmatpush.msra.mxu0 %v1171
    %1735 = vmatpush.msra.mxu0 %v1170
    %1736 = vmatpush.msra.mxu0 %v1169
    %1737 = vmatpush.msra.mxu0 %v1168
    %1738 = vmatpush.msra.mxu0 %v1167
    %1739 = vmatpush.msra.mxu0 %v1166
    %1740 = vmatpush.msra.mxu0 %v1165
    %1741 = vmatpush.msra.mxu0 %v1164
    %1742 = vmatpush.msra.mxu0 %v1163
    %1743 = vmatmul.f32.gmra.mxu0 %v1715
    %v1744 = vpop.f32.mrf.mxu0
    %v1745 = vadd.f32 0.0, %v1744
    %1746 = vmatmul.f32.gmra.mxu0 %v1718
    %v1747 = vpop.f32.mrf.mxu0
    %v1748 = vadd.f32 0.0, %v1747
    %1749 = vmatmul.f32.gmra.mxu0 %v1721
    %v1750 = vpop.f32.mrf.mxu0
    %v1751 = vadd.f32 0.0, %v1750
    %1752 = vmatmul.f32.gmra.mxu0 %v1724
    %v1753 = vpop.f32.mrf.mxu0
    %v1754 = vadd.f32 0.0, %v1753
    %1755 = vdwg.mxu0
    %1756 = vmatpush.msra.mxu0 %v1530
    %1757 = vmatpush.msra.mxu0 %v1529
    %1758 = vmatpush.msra.mxu0 %v1528
    %1759 = vmatpush.msra.mxu0 %v1527
    %1760 = vmatpush.msra.mxu0 %v1526
    %1761 = vmatpush.msra.mxu0 %v1525
    %1762 = vmatpush.msra.mxu0 %v1524
    %1763 = vmatpush.msra.mxu0 %v1523
    %1764 = vmatpush.msra.mxu0 %v1354
    %1765 = vmatpush.msra.mxu0 %v1353
    %1766 = vmatpush.msra.mxu0 %v1352
    %1767 = vmatpush.msra.mxu0 %v1351
    %1768 = vmatpush.msra.mxu0 %v1350
    %1769 = vmatpush.msra.mxu0 %v1349
    %1770 = vmatpush.msra.mxu0 %v1348
    %1771 = vmatpush.msra.mxu0 %v1347
    %1772 = vmatmul.f32.gmra.mxu0 %v1716
    %v1773 = vpop.f32.mrf.mxu0
    %v1774 = vadd.f32 %v1745, %v1773
    %1775 = vmatmul.f32.gmra.mxu0 %v1719
    %v1776 = vpop.f32.mrf.mxu0
    %v1777 = vadd.f32 %v1748, %v1776
    %1778 = vmatmul.f32.gmra.mxu0 %v1722
    %v1779 = vpop.f32.mrf.mxu0
    %v1780 = vadd.f32 %v1751, %v1779
    %1781 = vmatmul.f32.gmra.mxu0 %v1725
    %v1782 = vpop.f32.mrf.mxu0
    %v1783 = vadd.f32 %v1754, %v1782
    %1784 = vdwg.mxu0
    %1785 = vmatpush.msra.mxu0 %v1714
    %1786 = vmatpush.msra.mxu0 %v1713
    %1787 = vmatpush.msra.mxu0 %v1712
    %1788 = vmatpush.msra.mxu0 %v1711
    %1789 = vmatpush.msra.mxu0 %v1710
    %1790 = vmatpush.msra.mxu0 %v1709
    %1791 = vmatpush.msra.mxu0 %v1708
    %1792 = vmatpush.msra.mxu0 %v1707
    %1793 = vmatpush.msra.mxu0 %v1706
    %1794 = vmatpush.msra.mxu0 %v1705
    %1795 = vmatpush.msra.mxu0 %v1704
    %1796 = vmatpush.msra.mxu0 %v1703
    %1797 = vmatpush.msra.mxu0 %v1534
    %1798 = vmatpush.msra.mxu0 %v1533
    %1799 = vmatpush.msra.mxu0 %v1532
    %1800 = vmatpush.msra.mxu0 %v1531
    %1801 = vmatmul.f32.gmra.mxu0 %v1717
    %v1802 = vpop.f32.mrf.mxu0
    %v1803 = vadd.f32 %v1774, %v1802
    %1804 = vmatmul.f32.gmra.mxu0 %v1720
    %v1805 = vpop.f32.mrf.mxu0
    %v1806 = vadd.f32 %v1777, %v1805
    %1807 = vmatmul.f32.gmra.mxu0 %v1723
    %v1808 = vpop.f32.mrf.mxu0
    %v1809 = vadd.f32 %v1780, %v1808
    %1810 = vmatmul.f32.gmra.mxu0 %v1726
    %v1811 = vpop.f32.mrf.mxu0
    %v1812 = vadd.f32 %v1783, %v1811
    %1813 = vdwg.mxu0
    %1814 = vst.msk [vmem:[%s10] sm:$0xff] %vm733, %v1803
    %1815 = vst.msk [vmem:[%s10 + $0x8] sm:$0xff] %vm733, %v1806
    %1816 = vst.msk [vmem:[%s10 + $0x10] sm:$0xff] %vm733, %v1809
    %1817 = vst.msk [vmem:[%s10 + $0x18] sm:$0xff] %vm733, %v1812
    // Predicated region
    $region46: #{_lambda_.4} parent=1 // pred_check
      _
    $region47: #{_lambda_.4} parent=1 // pred_check_branch
      %1819 = sbr.rel (0) target = $region49
    $region48: #{_lambda_.4} parent=1 // pred_region
      _
    $region49: #{_lambda_.4} parent=1 // pred_fallthru
      _
    // Predicated region
    $region50: #{_lambda_.4} parent=1 // pred_check
      _
    $region51: #{_lambda_.4} parent=1 // pred_check_branch
      %1821 = sbr.rel (0) target = $region53
    $region52: #{_lambda_.4} parent=1 // pred_region
      _
    $region53: #{_lambda_.4} parent=1 // pred_fallthru
      _
    // Predicated region
    $region54: #{_lambda_.4} parent=1 // pred_check
      _
    $region55: #{_lambda_.4} parent=1 // pred_check_branch
      %1823 = sbr.rel (0) target = $region57
    $region56: #{_lambda_.4} parent=1 // pred_region
      _
    $region57: #{_lambda_.4} parent=1 // pred_fallthru
      _
    // Predicated region
    $region58: #{_lambda_.4} parent=1 // pred_check
      _
    $region59: #{_lambda_.4} parent=1 // pred_check_branch
      %1825 = sbr.rel (0) target = $region61
    $region60: #{_lambda_.4} parent=1 // pred_region
      _
    $region61: #{_lambda_.4} parent=1 // pred_fallthru
      _
    // Predicated region
    $region62: #{_lambda_.4} parent=1 // pred_check
      _
    $region63: #{_lambda_.4} parent=1 // pred_check_branch
      %1827 = sbr.rel (0) target = $region65
    $region64: #{_lambda_.4} parent=1 // pred_region
      _
    $region65: #{_lambda_.4} parent=1 // pred_fallthru
      _
    // Predicated region
    $region66: #{_lambda_.4} parent=1 // pred_check
      _
    $region67: #{_lambda_.4} parent=1 // pred_check_branch
      %1829 = sbr.rel (0) target = $region69
    $region68: #{_lambda_.4} parent=1 // pred_region
      _
    $region69: #{_lambda_.4} parent=1 // pred_fallthru
      _
    %1830 = vsyncpa [#allocation3], 1
    %1831 = vsyncpa [#allocation5], 1

// kernel: custom-call.2
$region0: #{custom-call.2}
  %s0 = inlined_call_operand.vmem [shape: f32[128], index: 0, kind: input, shape index: {}]
  %s1 = inlined_call_operand.vmem [shape: f32[128], index: 1, kind: input, shape index: {}]
  %s2 = inlined_call_operand.hbm [shape: c64[128], index: 2, kind: output, shape index: {}]
  %s3 = scalar_lea.hbm %s2, 1
  $region1: #{custom-call.2} parent=0
    #allocation0 [shape = 's32[1]{0}', space=sflag, size = 0x4, scoped, tag = 'scoped memory for custom-call.2']
    %4 = vsyncpa [#allocation0], 0
    %s6 = sshll.u32 %s0, 4
    %s7 = int_to_ptr.vmem [resolvable:$true] %s6
    %s8 = sshll.u32 %s2, 4
    %s9 = int_to_ptr.hbm [resolvable:$true] %s8
    %11 = dma.vmem_to_hbm [thread:$0]  %s7, 16, %s9, [#allocation0]
    %13 = dma.done [#allocation0], 16
    %14 = vsyncpa [#allocation0], 1
  $region2: #{custom-call.2} parent=0
    #allocation1 [shape = 's32[1]{0}', space=sflag, size = 0x4, scoped, tag = 'scoped memory for custom-call.2']
    %15 = vsyncpa [#allocation1], 0
    %s17 = sshll.u32 %s1, 4
    %s18 = int_to_ptr.vmem [resolvable:$true] %s17
    %s19 = sshll.u32 %s3, 4
    %s20 = int_to_ptr.hbm [resolvable:$true] %s19
    %22 = dma.vmem_to_hbm [thread:$0]  %s18, 16, %s20, [#allocation1]
    %24 = dma.done [#allocation1], 16
    %25 = vsyncpa [#allocation1], 1

// kernel: _lambda_.6
$region0: #{_lambda_.6}
  #allocation0 [shape = 'u32[]', space=smem, size = 0x4, offset = 0x4, fixed_abs, tag = 'smem constant byte address 0x4 - core index']
  #allocation1 [shape = 'u32[72,128]{1,0:T(1,128)}', space=vmem, size = 0x9000, scoped, tag = 'internal scratch']
  %s0 = inlined_call_operand.vmem [shape: f32[16,1], index: 0, kind: input, shape index: {}]
  %s1 = inlined_call_operand.vmem [shape: f32[16,48], index: 1, kind: input, shape index: {}]
  %s2 = inlined_call_operand.vmem [shape: f32[16,48], index: 2, kind: input, shape index: {}]
  %s3 = inlined_call_operand.vmem [shape: f32[216,128], index: 3, kind: input, shape index: {}]
  %s4 = inlined_call_operand.vmem [shape: f32[248,128], index: 4, kind: input, shape index: {}]
  %s5 = inlined_call_operand.vmem [shape: f32[192,16], index: 5, kind: input, shape index: {}]
  %s6 = inlined_call_operand.vmem [shape: f32[32,384], index: 6, kind: input, shape index: {}]
  %s7 = inlined_call_operand.vmem [shape: f32[384,32], index: 7, kind: input, shape index: {}]
  %s8 = inlined_call_operand.vmem [shape: f32[16,6], index: 8, kind: output, shape index: {0}]
  %s9 = inlined_call_operand.vmem [shape: f32[16,96], index: 9, kind: output, shape index: {1}]
  %s10 = inlined_call_operand.vmem [shape: f32[32,64], index: 10, kind: output, shape index: {2}]
  %11 = xla_tuple %s8, %s9, %s10
  %s12 = sld [smem:[#allocation0]]
  $region58: #{_lambda_.6} parent=0
    _
  %s14 = ssub.s32 1, %s12
  %s15 = scalar_select 0, %s14, %s12
  // Predicated region
  $region2: #{_lambda_.6} parent=0 // pred_check
    _
  $region3: #{_lambda_.6} parent=0 // pred_check_branch
    %17 = sbr.rel (0) target = $region5
  $region4: #{_lambda_.6} parent=0 // pred_region
    _
  $region5: #{_lambda_.6} parent=0 // pred_fallthru
    _
  // Predicated region
  $region6: #{_lambda_.6} parent=0 // pred_check
    _
  $region7: #{_lambda_.6} parent=0 // pred_check_branch
    %19 = sbr.rel (0) target = $region9
  $region8: #{_lambda_.6} parent=0 // pred_region
    _
  $region9: #{_lambda_.6} parent=0 // pred_fallthru
    _
  // Predicated region
  $region10: #{_lambda_.6} parent=0 // pred_check
    _
  $region11: #{_lambda_.6} parent=0 // pred_check_branch
    %21 = sbr.rel (0) target = $region13
  $region12: #{_lambda_.6} parent=0 // pred_region
    _
  $region13: #{_lambda_.6} parent=0 // pred_fallthru
    _
  // Predicated region
  $region14: #{_lambda_.6} parent=0 // pred_check
    _
  $region15: #{_lambda_.6} parent=0 // pred_check_branch
    %23 = sbr.rel (0) target = $region17
  $region16: #{_lambda_.6} parent=0 // pred_region
    _
  $region17: #{_lambda_.6} parent=0 // pred_fallthru
    _
  // Predicated region
  $region18: #{_lambda_.6} parent=0 // pred_check
    _
  $region19: #{_lambda_.6} parent=0 // pred_check_branch
    %25 = sbr.rel (0) target = $region21
  $region20: #{_lambda_.6} parent=0 // pred_region
    _
  $region21: #{_lambda_.6} parent=0 // pred_fallthru
    _
  // Predicated region
  $region22: #{_lambda_.6} parent=0 // pred_check
    _
  $region23: #{_lambda_.6} parent=0 // pred_check_branch
    %27 = sbr.rel (0) target = $region25
  $region24: #{_lambda_.6} parent=0 // pred_region
    _
  $region25: #{_lambda_.6} parent=0 // pred_fallthru
    _
  // Predicated region
  $region26: #{_lambda_.6} parent=0 // pred_check
    _
  $region27: #{_lambda_.6} parent=0 // pred_check_branch
    %29 = sbr.rel (0) target = $region29
  $region28: #{_lambda_.6} parent=0 // pred_region
    _
  $region29: #{_lambda_.6} parent=0 // pred_fallthru
    _
  // Predicated region
  $region30: #{_lambda_.6} parent=0 // pred_check
    _
  $region31: #{_lambda_.6} parent=0 // pred_check_branch
    %31 = sbr.rel (0) target = $region33
  $region32: #{_lambda_.6} parent=0 // pred_region
    _
  $region33: #{_lambda_.6} parent=0 // pred_fallthru
    _
  %v32 = vld [vmem:[%s0] sm:$0xff]
  %v33 = vld [vmem:[%s0 + $0x8] sm:$0xff]
  %v34 = vsub.f32 0.0, %v32
  %v35 = vsub.f32 0.0, %v33
  %v36 = vmul.f32 %v34, 1.442695
  %v37 = vpow.pop %v36
  %v38 = vmul.f32 %v35, 1.442695
  %v39 = vpow.pop %v38
  %v40 = vadd.f32 %v37, 1.0
  %v41 = vadd.f32 %v39, 1.0
  %v42 = vrcp.pop %v40
  %v43 = vrcp.pop %v41
  %v44 = vmul.f32 %v42, 0.4
  %v45 = vmul.f32 %v43, 0.4
  %v46 = vadd.f32 %v44, 0.2
  %v47 = vadd.f32 %v45, 0.2
  %v48 = vld [vmem:[%s3] sm:$0x1]
  %v49 = vld [vmem:[%s3 + $0x1] sm:$0x1]
  %51 = vset.pattern.permute.xlu0 0
  %52 = vperm.xlu0 %51, %v46
  %v53 = vpop.permute.xlu0 %52
  %56 = vset.pattern.permute.xlu0 0
  %57 = vperm.xlu0 %56, %v47
  %v58 = vpop.permute.xlu0 %57
  %v60 = vperm.slane %v48, 0
  %v61 = vmul.f32 %v53, %v60
  %v62 = vmul.f32 %v58, %v60
  %v63 = vperm.slane %v49, 0
  %v64 = vadd.f32 %v61, %v63
  %v65 = vadd.f32 %v62, %v63
  %v66 = vmax.f32 %v64, 0.0
  %v67 = vmax.f32 %v65, 0.0
  %v68 = vld [vmem:[%s3 + $0x8] sm:$0xff]
  %v69 = vld [vmem:[%s3 + $0x10] sm:$0xff]
  %v70 = vld [vmem:[%s3 + $0x18] sm:$0xff]
  %v71 = vld [vmem:[%s3 + $0x20] sm:$0xff]
  %v72 = vld [vmem:[%s3 + $0x28] sm:$0xff]
  %v73 = vld [vmem:[%s3 + $0x30] sm:$0xff]
  %v74 = vld [vmem:[%s3 + $0x38] sm:$0xff]
  %v75 = vld [vmem:[%s3 + $0x40] sm:$0xff]
  %v76 = vld [vmem:[%s3 + $0x48] sm:$0xff]
  %v77 = vld [vmem:[%s3 + $0x50] sm:$0xff]
  %v78 = vld [vmem:[%s3 + $0x58] sm:$0xff]
  %v79 = vld [vmem:[%s3 + $0x60] sm:$0xff]
  %v80 = vld [vmem:[%s3 + $0x68] sm:$0x1]
  %v81 = vperm.slane %v80, 0
  %vm82 = vcmask 785408
  %v84 = vsel %vm82, %v66, 0
  %v87 = vsel %vm82, %v67, 0
  %89 = vmatpush.msra.mxu0 0.0
  %90 = vmatpush.msra.mxu0 0.0
  %91 = vmatpush.msra.mxu0 0.0
  %92 = vmatpush.msra.mxu0 0.0
  %93 = vmatpush.msra.mxu0 %v79
  %94 = vmatpush.msra.mxu0 %v78
  %95 = vmatpush.msra.mxu0 %v77
  %96 = vmatpush.msra.mxu0 %v76
  %97 = vmatpush.msra.mxu0 %v75
  %98 = vmatpush.msra.mxu0 %v74
  %99 = vmatpush.msra.mxu0 %v73
  %100 = vmatpush.msra.mxu0 %v72
  %101 = vmatpush.msra.mxu0 %v71
  %102 = vmatpush.msra.mxu0 %v70
  %103 = vmatpush.msra.mxu0 %v69
  %104 = vmatpush.msra.mxu0 %v68
  %105 = vmatmul.f32.gmra.mxu0 %v84
  %v106 = vpop.f32.mrf.mxu0
  %v107 = vadd.f32 %v81, %v106
  %108 = vmatmul.f32.gmra.mxu0 %v87
  %v109 = vpop.f32.mrf.mxu0
  %v110 = vadd.f32 %v81, %v109
  %111 = vdwg.mxu0
  %v112 = vmax.f32 %v107, 0.0
  %v113 = vmax.f32 %v110, 0.0
  %v114 = vld [vmem:[%s3 + $0x70] sm:$0xff]
  %v115 = vld [vmem:[%s3 + $0x78] sm:$0xff]
  %v116 = vld [vmem:[%s3 + $0x80] sm:$0xff]
  %v117 = vld [vmem:[%s3 + $0x88] sm:$0xff]
  %v118 = vld [vmem:[%s3 + $0x90] sm:$0xff]
  %v119 = vld [vmem:[%s3 + $0x98] sm:$0xff]
  %v120 = vld [vmem:[%s3 + $0xa0] sm:$0xff]
  %v121 = vld [vmem:[%s3 + $0xa8] sm:$0xff]
  %v122 = vld [vmem:[%s3 + $0xb0] sm:$0xff]
  %v123 = vld [vmem:[%s3 + $0xb8] sm:$0xff]
  %v124 = vld [vmem:[%s3 + $0xc0] sm:$0xff]
  %v125 = vld [vmem:[%s3 + $0xc8] sm:$0xff]
  %v126 = vld [vmem:[%s3 + $0xd0] sm:$0x1]
  %v127 = vperm.slane %v126, 0
  %v129 = vsel %vm82, %v112, 0
  %v132 = vsel %vm82, %v113, 0
  %134 = vmatpush.msra.mxu0 0.0
  %135 = vmatpush.msra.mxu0 0.0
  %136 = vmatpush.msra.mxu0 0.0
  %137 = vmatpush.msra.mxu0 0.0
  %138 = vmatpush.msra.mxu0 %v125
  %139 = vmatpush.msra.mxu0 %v124
  %140 = vmatpush.msra.mxu0 %v123
  %141 = vmatpush.msra.mxu0 %v122
  %142 = vmatpush.msra.mxu0 %v121
  %143 = vmatpush.msra.mxu0 %v120
  %144 = vmatpush.msra.mxu0 %v119
  %145 = vmatpush.msra.mxu0 %v118
  %146 = vmatpush.msra.mxu0 %v117
  %147 = vmatpush.msra.mxu0 %v116
  %148 = vmatpush.msra.mxu0 %v115
  %149 = vmatpush.msra.mxu0 %v114
  %150 = vmatmul.f32.gmra.mxu0 %v129
  %v151 = vpop.f32.mrf.mxu0
  %v152 = vadd.f32 %v127, %v151
  %153 = vmatmul.f32.gmra.mxu0 %v132
  %v154 = vpop.f32.mrf.mxu0
  %v155 = vadd.f32 %v127, %v154
  %156 = vdwg.mxu0
  %v157 = vld [vmem:[%s1] sm:$0xff]
  %v158 = vld [vmem:[%s1 + $0x8] sm:$0xff]
  %v159 = vld [vmem:[%s2] sm:$0xff]
  %v160 = vld [vmem:[%s2 + $0x8] sm:$0xff]
  %v161 = vmul.f32 %v152, %v157
  %v162 = vmul.f32 %v155, %v158
  %vm163 = vcmask 392192
  %v164 = vsel %vm163, %v161, 0.0
  %165 = vadd.xlane.f32.xlu0 %v164
  %v166 = vpop.xlane.xlu0 %165
  %v167 = vsel %vm163, %v162, 0.0
  %168 = vadd.xlane.f32.xlu0 %v167
  %v169 = vpop.xlane.xlu0 %168
  %v170 = vmul.f32 %v152, %v159
  %v171 = vmul.f32 %v155, %v160
  %v172 = vsel %vm163, %v170, 0.0
  %173 = vadd.xlane.f32.xlu0 %v172
  %v174 = vpop.xlane.xlu0 %173
  %v175 = vsel %vm163, %v171, 0.0
  %176 = vadd.xlane.f32.xlu0 %v175
  %v177 = vpop.xlane.xlu0 %176
  %180 = vrot.lane.b32.xlu0 %v157, 48
  %v181 = vpop.permute.xlu0 %180
  %182 = vrot.lane.b32.xlu0 %v158, 48
  %v183 = vpop.permute.xlu0 %182
  %v186 = vmul.f32 %v152, %v181
  %v187 = vmul.f32 %v155, %v183
  %190 = vrot.lane.b32.xlu0 %v186, 80
  %v191 = vpop.permute.xlu0 %190
  %192 = vrot.lane.b32.xlu0 %v187, 80
  %v193 = vpop.permute.xlu0 %192
  %v196 = vsel %vm163, %v191, 0.0
  %197 = vadd.xlane.f32.xlu0 %v196
  %v198 = vpop.xlane.xlu0 %197
  %v199 = vsel %vm163, %v193, 0.0
  %200 = vadd.xlane.f32.xlu0 %v199
  %v201 = vpop.xlane.xlu0 %200
  %204 = vrot.lane.b32.xlu0 %v159, 48
  %v205 = vpop.permute.xlu0 %204
  %206 = vrot.lane.b32.xlu0 %v160, 48
  %v207 = vpop.permute.xlu0 %206
  %v210 = vmul.f32 %v152, %v205
  %v211 = vmul.f32 %v155, %v207
  %214 = vrot.lane.b32.xlu0 %v210, 80
  %v215 = vpop.permute.xlu0 %214
  %216 = vrot.lane.b32.xlu0 %v211, 80
  %v217 = vpop.permute.xlu0 %216
  %v220 = vsel %vm163, %v215, 0.0
  %221 = vadd.xlane.f32.xlu0 %v220
  %v222 = vpop.xlane.xlu0 %221
  %v223 = vsel %vm163, %v217, 0.0
  %224 = vadd.xlane.f32.xlu0 %v223
  %v225 = vpop.xlane.xlu0 %224
  %vm226 = vcmask 7168
  %v227 = vsel %vm226, %v166, %v198
  %v228 = vsel %vm226, %v169, %v201
  %v229 = vsel %vm226, %v174, %v222
  %v230 = vsel %vm226, %v177, %v225
  %v231 = vmul.f32 %v152, 1.46
  %v232 = vmul.f32 %v155, 1.46
  %v233 = vadd.f32 %v152, 1.46
  %v234 = vadd.f32 %v155, 1.46
  %v235 = vrcp.pop %v233
  %v236 = vrcp.pop %v234
  %v237 = vmul.f32 %v231, %v235
  %v238 = vmul.f32 %v232, %v236
  %v239 = vmul.f32 %v237, 0.2
  %v240 = vmul.f32 %v238, 0.2
  %243 = vrot.lane.b32.xlu0 %v227, 98
  %v244 = vpop.permute.xlu0 %243
  %245 = vrot.lane.b32.xlu0 %v228, 98
  %v246 = vpop.permute.xlu0 %245
  %v249 = vmul.f32 %v239, %v244
  %v250 = vmul.f32 %v240, %v246
  %253 = vrot.lane.b32.xlu0 %v229, 98
  %v254 = vpop.permute.xlu0 %253
  %255 = vrot.lane.b32.xlu0 %v230, 98
  %v256 = vpop.permute.xlu0 %255
  %v259 = vmul.f32 %v239, %v254
  %v260 = vmul.f32 %v240, %v256
  %263 = vrot.lane.b32.xlu0 %v152, 32
  %v264 = vpop.permute.xlu0 %263
  %265 = vrot.lane.b32.xlu0 %v155, 32
  %v266 = vpop.permute.xlu0 %265
  %271 = vrot.lane.b32.xlu0 %v249, 32
  %v272 = vpop.permute.xlu0 %271
  %273 = vrot.lane.b32.xlu0 %v250, 32
  %v274 = vpop.permute.xlu0 %273
  %279 = vrot.lane.b32.xlu0 %v259, 34
  %v280 = vpop.permute.xlu0 %279
  %281 = vrot.lane.b32.xlu0 %v260, 34
  %v282 = vpop.permute.xlu0 %281
  %vm285 = vcmask 15360
  %v286 = vsel %vm285, %v264, %v272
  %v287 = vsel %vm285, %v266, %v274
  %vm288 = vcmask 31744
  %v289 = vsel %vm288, %v286, %v280
  %v290 = vsel %vm288, %v287, %v282
  %vm291 = vcmask 48128
  %292 = vst.msk [vmem:[%s8] sm:$0xff] %vm291, %v289
  %293 = vst.msk [vmem:[%s8 + $0x8] sm:$0xff] %vm291, %v290
  %294 = vst.msk [vmem:[%s9] sm:$0xff] %vm82, %v152
  %295 = vst.msk [vmem:[%s9 + $0x8] sm:$0xff] %vm82, %v155
  %v296 = vld [vmem:[%s5] sm:$0xff]
  %v297 = vld [vmem:[%s5 + $0x8] sm:$0xff]
  %v298 = vld [vmem:[%s5 + $0x10] sm:$0xff]
  %v299 = vld [vmem:[%s5 + $0x18] sm:$0xff]
  %v300 = vld [vmem:[%s5 + $0x20] sm:$0xff]
  %v301 = vld [vmem:[%s5 + $0x28] sm:$0xff]
  %v302 = vld [vmem:[%s5 + $0x30] sm:$0xff]
  %v303 = vld [vmem:[%s5 + $0x38] sm:$0xff]
  %v304 = vld [vmem:[%s5 + $0x40] sm:$0xff]
  %v305 = vld [vmem:[%s5 + $0x48] sm:$0xff]
  %v306 = vld [vmem:[%s5 + $0x50] sm:$0xff]
  %v307 = vld [vmem:[%s5 + $0x58] sm:$0xff]
  %v308 = vld [vmem:[%s5 + $0x60] sm:$0xff]
  %v309 = vld [vmem:[%s5 + $0x68] sm:$0xff]
  %v310 = vld [vmem:[%s5 + $0x70] sm:$0xff]
  %v311 = vld [vmem:[%s5 + $0x78] sm:$0xff]
  %v312 = vld [vmem:[%s5 + $0x80] sm:$0xff]
  %v313 = vld [vmem:[%s5 + $0x88] sm:$0xff]
  %v314 = vld [vmem:[%s5 + $0x90] sm:$0xff]
  %v315 = vld [vmem:[%s5 + $0x98] sm:$0xff]
  %v316 = vld [vmem:[%s5 + $0xa0] sm:$0xff]
  %v317 = vld [vmem:[%s5 + $0xa8] sm:$0xff]
  %v318 = vld [vmem:[%s5 + $0xb0] sm:$0xff]
  %v319 = vld [vmem:[%s5 + $0xb8] sm:$0xff]
  %vm320 = vcmask 130048
  %v322 = vsel %vm320, %v296, 0
  %v325 = vsel %vm320, %v297, 0
  %v328 = vsel %vm320, %v298, 0
  %v331 = vsel %vm320, %v299, 0
  %v334 = vsel %vm320, %v300, 0
  %v337 = vsel %vm320, %v301, 0
  %v340 = vsel %vm320, %v302, 0
  %v343 = vsel %vm320, %v303, 0
  %v346 = vsel %vm320, %v304, 0
  %v349 = vsel %vm320, %v305, 0
  %v352 = vsel %vm320, %v306, 0
  %v355 = vsel %vm320, %v307, 0
  %v358 = vsel %vm320, %v308, 0
  %v361 = vsel %vm320, %v309, 0
  %v364 = vsel %vm320, %v310, 0
  %v367 = vsel %vm320, %v311, 0
  %v370 = vsel %vm320, %v312, 0
  %v373 = vsel %vm320, %v313, 0
  %v376 = vsel %vm320, %v314, 0
  %v379 = vsel %vm320, %v315, 0
  %v382 = vsel %vm320, %v316, 0
  %v385 = vsel %vm320, %v317, 0
  %v388 = vsel %vm320, %v318, 0
  %v391 = vsel %vm320, %v319, 0
  %393 = vmatpush.msra.mxu0 0.0
  %394 = vmatpush.msra.mxu0 0.0
  %395 = vmatpush.msra.mxu0 0.0
  %396 = vmatpush.msra.mxu0 0.0
  %397 = vmatpush.msra.mxu0 0.0
  %398 = vmatpush.msra.mxu0 0.0
  %399 = vmatpush.msra.mxu0 0.0
  %400 = vmatpush.msra.mxu0 0.0
  %401 = vmatpush.msra.mxu0 0.0
  %402 = vmatpush.msra.mxu0 0.0
  %403 = vmatpush.msra.mxu0 0.0
  %404 = vmatpush.msra.mxu0 0.0
  %405 = vmatpush.msra.mxu0 0.0
  %406 = vmatpush.msra.mxu0 0.0
  %407 = vmatpush.msra.mxu0 %v47
  %408 = vmatpush.msra.mxu0 %v46
  %409 = vmatmul.f32.gmra.mxu0 %v322
  %v410 = vpop.f32.mrf.mxu0
  %v411 = vadd.f32 0.0, %v410
  %412 = vmatmul.f32.gmra.mxu0 %v325
  %v413 = vpop.f32.mrf.mxu0
  %v414 = vadd.f32 0.0, %v413
  %415 = vmatmul.f32.gmra.mxu0 %v328
  %v416 = vpop.f32.mrf.mxu0
  %v417 = vadd.f32 0.0, %v416
  %418 = vmatmul.f32.gmra.mxu0 %v331
  %v419 = vpop.f32.mrf.mxu0
  %v420 = vadd.f32 0.0, %v419
  %421 = vmatmul.f32.gmra.mxu0 %v334
  %v422 = vpop.f32.mrf.mxu0
  %v423 = vadd.f32 0.0, %v422
  %424 = vmatmul.f32.gmra.mxu0 %v337
  %v425 = vpop.f32.mrf.mxu0
  %v426 = vadd.f32 0.0, %v425
  %427 = vmatmul.f32.gmra.mxu0 %v340
  %v428 = vpop.f32.mrf.mxu0
  %v429 = vadd.f32 0.0, %v428
  %430 = vmatmul.f32.gmra.mxu0 %v343
  %v431 = vpop.f32.mrf.mxu0
  %v432 = vadd.f32 0.0, %v431
  %433 = vmatmul.f32.gmra.mxu0 %v346
  %v434 = vpop.f32.mrf.mxu0
  %v435 = vadd.f32 0.0, %v434
  %436 = vmatmul.f32.gmra.mxu0 %v349
  %v437 = vpop.f32.mrf.mxu0
  %v438 = vadd.f32 0.0, %v437
  %439 = vmatmul.f32.gmra.mxu0 %v352
  %v440 = vpop.f32.mrf.mxu0
  %v441 = vadd.f32 0.0, %v440
  %442 = vmatmul.f32.gmra.mxu0 %v355
  %v443 = vpop.f32.mrf.mxu0
  %v444 = vadd.f32 0.0, %v443
  %445 = vmatmul.f32.gmra.mxu0 %v358
  %v446 = vpop.f32.mrf.mxu0
  %v447 = vadd.f32 0.0, %v446
  %448 = vmatmul.f32.gmra.mxu0 %v361
  %v449 = vpop.f32.mrf.mxu0
  %v450 = vadd.f32 0.0, %v449
  %451 = vmatmul.f32.gmra.mxu0 %v364
  %v452 = vpop.f32.mrf.mxu0
  %v453 = vadd.f32 0.0, %v452
  %454 = vmatmul.f32.gmra.mxu0 %v367
  %v455 = vpop.f32.mrf.mxu0
  %v456 = vadd.f32 0.0, %v455
  %457 = vmatmul.f32.gmra.mxu0 %v370
  %v458 = vpop.f32.mrf.mxu0
  %v459 = vadd.f32 0.0, %v458
  %460 = vmatmul.f32.gmra.mxu0 %v373
  %v461 = vpop.f32.mrf.mxu0
  %v462 = vadd.f32 0.0, %v461
  %463 = vmatmul.f32.gmra.mxu0 %v376
  %v464 = vpop.f32.mrf.mxu0
  %v465 = vadd.f32 0.0, %v464
  %466 = vmatmul.f32.gmra.mxu0 %v379
  %v467 = vpop.f32.mrf.mxu0
  %v468 = vadd.f32 0.0, %v467
  %469 = vmatmul.f32.gmra.mxu0 %v382
  %v470 = vpop.f32.mrf.mxu0
  %v471 = vadd.f32 0.0, %v470
  %472 = vmatmul.f32.gmra.mxu0 %v385
  %v473 = vpop.f32.mrf.mxu0
  %v474 = vadd.f32 0.0, %v473
  %475 = vmatmul.f32.gmra.mxu0 %v388
  %v476 = vpop.f32.mrf.mxu0
  %v477 = vadd.f32 0.0, %v476
  %478 = vmatmul.f32.gmra.mxu0 %v391
  %v479 = vpop.f32.mrf.mxu0
  %v480 = vadd.f32 0.0, %v479
  %481 = vdwg.mxu0
  %v482 = vld [vmem:[%s4] sm:$0x1]
  %v483 = vld [vmem:[%s4 + $0x1] sm:$0x1]
  %v484 = vld [vmem:[%s4 + $0x8] sm:$0xff]
  %v485 = vld [vmem:[%s4 + $0x10] sm:$0xff]
  %v486 = vld [vmem:[%s4 + $0x18] sm:$0xff]
  %v487 = vld [vmem:[%s4 + $0x20] sm:$0xff]
  %v488 = vld [vmem:[%s4 + $0x28] sm:$0xff]
  %v489 = vld [vmem:[%s4 + $0x30] sm:$0xff]
  %v490 = vld [vmem:[%s4 + $0x38] sm:$0xff]
  %v491 = vld [vmem:[%s4 + $0x40] sm:$0xff]
  %v492 = vld [vmem:[%s4 + $0x48] sm:$0xff]
  %v493 = vld [vmem:[%s4 + $0x50] sm:$0xff]
  %v494 = vld [vmem:[%s4 + $0x58] sm:$0xff]
  %v495 = vld [vmem:[%s4 + $0x60] sm:$0xff]
  %497 = vset.pattern.permute.xlu0 0
  %498 = vperm.xlu0 %497, %v411
  %v499 = vpop.permute.xlu0 %498
  %502 = vset.pattern.permute.xlu0 0
  %503 = vperm.xlu0 %502, %v414
  %v504 = vpop.permute.xlu0 %503
  %507 = vset.pattern.permute.xlu0 0
  %508 = vperm.xlu0 %507, %v417
  %v509 = vpop.permute.xlu0 %508
  %512 = vset.pattern.permute.xlu0 0
  %513 = vperm.xlu0 %512, %v420
  %v514 = vpop.permute.xlu0 %513
  %517 = vset.pattern.permute.xlu0 0
  %518 = vperm.xlu0 %517, %v423
  %v519 = vpop.permute.xlu0 %518
  %522 = vset.pattern.permute.xlu0 0
  %523 = vperm.xlu0 %522, %v426
  %v524 = vpop.permute.xlu0 %523
  %527 = vset.pattern.permute.xlu0 0
  %528 = vperm.xlu0 %527, %v429
  %v529 = vpop.permute.xlu0 %528
  %532 = vset.pattern.permute.xlu0 0
  %533 = vperm.xlu0 %532, %v432
  %v534 = vpop.permute.xlu0 %533
  %537 = vset.pattern.permute.xlu0 0
  %538 = vperm.xlu0 %537, %v435
  %v539 = vpop.permute.xlu0 %538
  %542 = vset.pattern.permute.xlu0 0
  %543 = vperm.xlu0 %542, %v438
  %v544 = vpop.permute.xlu0 %543
  %547 = vset.pattern.permute.xlu0 0
  %548 = vperm.xlu0 %547, %v441
  %v549 = vpop.permute.xlu0 %548
  %552 = vset.pattern.permute.xlu0 0
  %553 = vperm.xlu0 %552, %v444
  %v554 = vpop.permute.xlu0 %553
  %v556 = vperm.slane %v482, 0
  %v557 = vmul.f32 %v499, %v556
  %v558 = vmul.f32 %v504, %v556
  %v559 = vmul.f32 %v509, %v556
  %v560 = vmul.f32 %v514, %v556
  %v561 = vmul.f32 %v519, %v556
  %v562 = vmul.f32 %v524, %v556
  %v563 = vmul.f32 %v529, %v556
  %v564 = vmul.f32 %v534, %v556
  %v565 = vmul.f32 %v539, %v556
  %v566 = vmul.f32 %v544, %v556
  %v567 = vmul.f32 %v549, %v556
  %v568 = vmul.f32 %v554, %v556
  %570 = vset.pattern.permute.xlu0 0
  %571 = vperm.xlu0 %570, %v447
  %v572 = vpop.permute.xlu0 %571
  %575 = vset.pattern.permute.xlu0 0
  %576 = vperm.xlu0 %575, %v450
  %v577 = vpop.permute.xlu0 %576
  %580 = vset.pattern.permute.xlu0 0
  %581 = vperm.xlu0 %580, %v453
  %v582 = vpop.permute.xlu0 %581
  %585 = vset.pattern.permute.xlu0 0
  %586 = vperm.xlu0 %585, %v456
  %v587 = vpop.permute.xlu0 %586
  %590 = vset.pattern.permute.xlu0 0
  %591 = vperm.xlu0 %590, %v459
  %v592 = vpop.permute.xlu0 %591
  %595 = vset.pattern.permute.xlu0 0
  %596 = vperm.xlu0 %595, %v462
  %v597 = vpop.permute.xlu0 %596
  %600 = vset.pattern.permute.xlu0 0
  %601 = vperm.xlu0 %600, %v465
  %v602 = vpop.permute.xlu0 %601
  %605 = vset.pattern.permute.xlu0 0
  %606 = vperm.xlu0 %605, %v468
  %v607 = vpop.permute.xlu0 %606
  %610 = vset.pattern.permute.xlu0 0
  %611 = vperm.xlu0 %610, %v471
  %v612 = vpop.permute.xlu0 %611
  %615 = vset.pattern.permute.xlu0 0
  %616 = vperm.xlu0 %615, %v474
  %v617 = vpop.permute.xlu0 %616
  %620 = vset.pattern.permute.xlu0 0
  %621 = vperm.xlu0 %620, %v477
  %v622 = vpop.permute.xlu0 %621
  %625 = vset.pattern.permute.xlu0 0
  %626 = vperm.xlu0 %625, %v480
  %v627 = vpop.permute.xlu0 %626
  %v629 = vperm.slane %v483, 0
  %v630 = vmul.f32 %v572, %v629
  %v631 = vmul.f32 %v577, %v629
  %v632 = vmul.f32 %v582, %v629
  %v633 = vmul.f32 %v587, %v629
  %v634 = vmul.f32 %v592, %v629
  %v635 = vmul.f32 %v597, %v629
  %v636 = vmul.f32 %v602, %v629
  %v637 = vmul.f32 %v607, %v629
  %v638 = vmul.f32 %v612, %v629
  %v639 = vmul.f32 %v617, %v629
  %v640 = vmul.f32 %v622, %v629
  %v641 = vmul.f32 %v627, %v629
  %v642 = vadd.f32 %v557, %v630
  %v643 = vadd.f32 %v558, %v631
  %v644 = vadd.f32 %v559, %v632
  %v645 = vadd.f32 %v560, %v633
  %v646 = vadd.f32 %v561, %v634
  %v647 = vadd.f32 %v562, %v635
  %v648 = vadd.f32 %v563, %v636
  %v649 = vadd.f32 %v564, %v637
  %v650 = vadd.f32 %v565, %v638
  %v651 = vadd.f32 %v566, %v639
  %v652 = vadd.f32 %v567, %v640
  %v653 = vadd.f32 %v568, %v641
  %v654 = vadd.f32 %v642, %v484
  %v655 = vadd.f32 %v643, %v485
  %v656 = vadd.f32 %v644, %v486
  %v657 = vadd.f32 %v645, %v487
  %v658 = vadd.f32 %v646, %v488
  %v659 = vadd.f32 %v647, %v489
  %v660 = vadd.f32 %v648, %v490
  %v661 = vadd.f32 %v649, %v491
  %v662 = vadd.f32 %v650, %v492
  %v663 = vadd.f32 %v651, %v493
  %v664 = vadd.f32 %v652, %v494
  %v665 = vadd.f32 %v653, %v495
  %v666 = vmax.f32 %v654, 0.0
  %v667 = vmax.f32 %v655, 0.0
  %v668 = vmax.f32 %v656, 0.0
  %v669 = vmax.f32 %v657, 0.0
  %v670 = vmax.f32 %v658, 0.0
  %v671 = vmax.f32 %v659, 0.0
  %v672 = vmax.f32 %v660, 0.0
  %v673 = vmax.f32 %v661, 0.0
  %v674 = vmax.f32 %v662, 0.0
  %v675 = vmax.f32 %v663, 0.0
  %v676 = vmax.f32 %v664, 0.0
  %v677 = vmax.f32 %v665, 0.0
  %v678 = vld [vmem:[%s4 + $0x68] sm:$0xff]
  %v679 = vld [vmem:[%s4 + $0x70] sm:$0xff]
  %v680 = vld [vmem:[%s4 + $0x78] sm:$0xff]
  %v681 = vld [vmem:[%s4 + $0x80] sm:$0xff]
  %v682 = vld [vmem:[%s4 + $0x88] sm:$0xff]
  %v683 = vld [vmem:[%s4 + $0x90] sm:$0xff]
  %v684 = vld [vmem:[%s4 + $0x98] sm:$0xff]
  %v685 = vld [vmem:[%s4 + $0xa0] sm:$0xff]
  %v686 = vld [vmem:[%s4 + $0xa8] sm:$0x1]
  %v687 = vperm.slane %v686, 0
  %vm688 = vcmask 523264
  %v690 = vsel %vm688, %v666, 0
  %v693 = vsel %vm688, %v667, 0
  %v696 = vsel %vm688, %v668, 0
  %v699 = vsel %vm688, %v669, 0
  %v702 = vsel %vm688, %v670, 0
  %v705 = vsel %vm688, %v671, 0
  %v708 = vsel %vm688, %v672, 0
  %v711 = vsel %vm688, %v673, 0
  %v714 = vsel %vm688, %v674, 0
  %v717 = vsel %vm688, %v675, 0
  %v720 = vsel %vm688, %v676, 0
  %v723 = vsel %vm688, %v677, 0
  %725 = vmatpush.msra.mxu0 0.0
  %726 = vmatpush.msra.mxu0 0.0
  %727 = vmatpush.msra.mxu0 0.0
  %728 = vmatpush.msra.mxu0 0.0
  %729 = vmatpush.msra.mxu0 0.0
  %730 = vmatpush.msra.mxu0 0.0
  %731 = vmatpush.msra.mxu0 0.0
  %732 = vmatpush.msra.mxu0 0.0
  %733 = vmatpush.msra.mxu0 %v685
  %734 = vmatpush.msra.mxu0 %v684
  %735 = vmatpush.msra.mxu0 %v683
  %736 = vmatpush.msra.mxu0 %v682
  %737 = vmatpush.msra.mxu0 %v681
  %738 = vmatpush.msra.mxu0 %v680
  %739 = vmatpush.msra.mxu0 %v679
  %740 = vmatpush.msra.mxu0 %v678
  %741 = vmatmul.f32.gmra.mxu0 %v690
  %v742 = vpop.f32.mrf.mxu0
  %v743 = vadd.f32 %v687, %v742
  %744 = vmatmul.f32.gmra.mxu0 %v693
  %v745 = vpop.f32.mrf.mxu0
  %v746 = vadd.f32 %v687, %v745
  %747 = vmatmul.f32.gmra.mxu0 %v696
  %v748 = vpop.f32.mrf.mxu0
  %v749 = vadd.f32 %v687, %v748
  %750 = vmatmul.f32.gmra.mxu0 %v699
  %v751 = vpop.f32.mrf.mxu0
  %v752 = vadd.f32 %v687, %v751
  %753 = vmatmul.f32.gmra.mxu0 %v702
  %v754 = vpop.f32.mrf.mxu0
  %v755 = vadd.f32 %v687, %v754
  %756 = vmatmul.f32.gmra.mxu0 %v705
  %v757 = vpop.f32.mrf.mxu0
  %v758 = vadd.f32 %v687, %v757
  %759 = vmatmul.f32.gmra.mxu0 %v708
  %v760 = vpop.f32.mrf.mxu0
  %v761 = vadd.f32 %v687, %v760
  %762 = vmatmul.f32.gmra.mxu0 %v711
  %v763 = vpop.f32.mrf.mxu0
  %v764 = vadd.f32 %v687, %v763
  %765 = vmatmul.f32.gmra.mxu0 %v714
  %v766 = vpop.f32.mrf.mxu0
  %v767 = vadd.f32 %v687, %v766
  %768 = vmatmul.f32.gmra.mxu0 %v717
  %v769 = vpop.f32.mrf.mxu0
  %v770 = vadd.f32 %v687, %v769
  %771 = vmatmul.f32.gmra.mxu0 %v720
  %v772 = vpop.f32.mrf.mxu0
  %v773 = vadd.f32 %v687, %v772
  %774 = vmatmul.f32.gmra.mxu0 %v723
  %v775 = vpop.f32.mrf.mxu0
  %v776 = vadd.f32 %v687, %v775
  %777 = vdwg.mxu0
  %v778 = vmax.f32 %v743, 0.0
  %v779 = vmax.f32 %v746, 0.0
  %v780 = vmax.f32 %v749, 0.0
  %v781 = vmax.f32 %v752, 0.0
  %v782 = vmax.f32 %v755, 0.0
  %v783 = vmax.f32 %v758, 0.0
  %v784 = vmax.f32 %v761, 0.0
  %v785 = vmax.f32 %v764, 0.0
  %v786 = vmax.f32 %v767, 0.0
  %v787 = vmax.f32 %v770, 0.0
  %v788 = vmax.f32 %v773, 0.0
  %v789 = vmax.f32 %v776, 0.0
  %v790 = vld [vmem:[%s4 + $0xb0] sm:$0xff]
  %v791 = vld [vmem:[%s4 + $0xb8] sm:$0xff]
  %v792 = vld [vmem:[%s4 + $0xc0] sm:$0xff]
  %v793 = vld [vmem:[%s4 + $0xc8] sm:$0xff]
  %v794 = vld [vmem:[%s4 + $0xd0] sm:$0xff]
  %v795 = vld [vmem:[%s4 + $0xd8] sm:$0xff]
  %v796 = vld [vmem:[%s4 + $0xe0] sm:$0xff]
  %v797 = vld [vmem:[%s4 + $0xe8] sm:$0xff]
  %v798 = vld [vmem:[%s4 + $0xf0] sm:$0x1]
  %v799 = vperm.slane %v798, 0
  %v801 = vsel %vm688, %v778, 0
  %v804 = vsel %vm688, %v779, 0
  %v807 = vsel %vm688, %v780, 0
  %v810 = vsel %vm688, %v781, 0
  %v813 = vsel %vm688, %v782, 0
  %v816 = vsel %vm688, %v783, 0
  %v819 = vsel %vm688, %v784, 0
  %v822 = vsel %vm688, %v785, 0
  %v825 = vsel %vm688, %v786, 0
  %v828 = vsel %vm688, %v787, 0
  %v831 = vsel %vm688, %v788, 0
  %v834 = vsel %vm688, %v789, 0
  %836 = vmatpush.msra.mxu0 0.0
  %837 = vmatpush.msra.mxu0 0.0
  %838 = vmatpush.msra.mxu0 0.0
  %839 = vmatpush.msra.mxu0 0.0
  %840 = vmatpush.msra.mxu0 0.0
  %841 = vmatpush.msra.mxu0 0.0
  %842 = vmatpush.msra.mxu0 0.0
  %843 = vmatpush.msra.mxu0 0.0
  %844 = vmatpush.msra.mxu0 %v797
  %845 = vmatpush.msra.mxu0 %v796
  %846 = vmatpush.msra.mxu0 %v795
  %847 = vmatpush.msra.mxu0 %v794
  %848 = vmatpush.msra.mxu0 %v793
  %849 = vmatpush.msra.mxu0 %v792
  %850 = vmatpush.msra.mxu0 %v791
  %851 = vmatpush.msra.mxu0 %v790
  %852 = vmatmul.f32.gmra.mxu0 %v801
  %v853 = vpop.f32.mrf.mxu0
  %v854 = vadd.f32 %v799, %v853
  %855 = vmatmul.f32.gmra.mxu0 %v804
  %v856 = vpop.f32.mrf.mxu0
  %v857 = vadd.f32 %v799, %v856
  %858 = vmatmul.f32.gmra.mxu0 %v807
  %v859 = vpop.f32.mrf.mxu0
  %v860 = vadd.f32 %v799, %v859
  %861 = vmatmul.f32.gmra.mxu0 %v810
  %v862 = vpop.f32.mrf.mxu0
  %v863 = vadd.f32 %v799, %v862
  %864 = vmatmul.f32.gmra.mxu0 %v813
  %v865 = vpop.f32.mrf.mxu0
  %v866 = vadd.f32 %v799, %v865
  %867 = vmatmul.f32.gmra.mxu0 %v816
  %v868 = vpop.f32.mrf.mxu0
  %v869 = vadd.f32 %v799, %v868
  %870 = vmatmul.f32.gmra.mxu0 %v819
  %v871 = vpop.f32.mrf.mxu0
  %v872 = vadd.f32 %v799, %v871
  %873 = vmatmul.f32.gmra.mxu0 %v822
  %v874 = vpop.f32.mrf.mxu0
  %v875 = vadd.f32 %v799, %v874
  %876 = vmatmul.f32.gmra.mxu0 %v825
  %v877 = vpop.f32.mrf.mxu0
  %v878 = vadd.f32 %v799, %v877
  %879 = vmatmul.f32.gmra.mxu0 %v828
  %v880 = vpop.f32.mrf.mxu0
  %v881 = vadd.f32 %v799, %v880
  %882 = vmatmul.f32.gmra.mxu0 %v831
  %v883 = vpop.f32.mrf.mxu0
  %v884 = vadd.f32 %v799, %v883
  %885 = vmatmul.f32.gmra.mxu0 %v834
  %v886 = vpop.f32.mrf.mxu0
  %v887 = vadd.f32 %v799, %v886
  %888 = vdwg.mxu0
  %v889 = vld [vmem:[%s7] sm:$0xff]
  %v890 = vld [vmem:[%s7 + $0x8] sm:$0xff]
  %v891 = vld [vmem:[%s7 + $0x10] sm:$0xff]
  %v892 = vld [vmem:[%s7 + $0x18] sm:$0xff]
  %v893 = vld [vmem:[%s7 + $0x20] sm:$0xff]
  %v894 = vld [vmem:[%s7 + $0x28] sm:$0xff]
  %v895 = vld [vmem:[%s7 + $0x30] sm:$0xff]
  %v896 = vld [vmem:[%s7 + $0x38] sm:$0xff]
  %v897 = vld [vmem:[%s7 + $0x40] sm:$0xff]
  %v898 = vld [vmem:[%s7 + $0x48] sm:$0xff]
  %v899 = vld [vmem:[%s7 + $0x50] sm:$0xff]
  %v900 = vld [vmem:[%s7 + $0x58] sm:$0xff]
  %v901 = vld [vmem:[%s7 + $0x60] sm:$0xff]
  %v902 = vld [vmem:[%s7 + $0x68] sm:$0xff]
  %v903 = vld [vmem:[%s7 + $0x70] sm:$0xff]
  %v904 = vld [vmem:[%s7 + $0x78] sm:$0xff]
  %v905 = vld [vmem:[%s7 + $0x80] sm:$0xff]
  %v906 = vld [vmem:[%s7 + $0x88] sm:$0xff]
  %v907 = vld [vmem:[%s7 + $0x90] sm:$0xff]
  %v908 = vld [vmem:[%s7 + $0x98] sm:$0xff]
  %v909 = vld [vmem:[%s7 + $0xa0] sm:$0xff]
  %v910 = vld [vmem:[%s7 + $0xa8] sm:$0xff]
  %v911 = vld [vmem:[%s7 + $0xb0] sm:$0xff]
  %v912 = vld [vmem:[%s7 + $0xb8] sm:$0xff]
  %v913 = vld [vmem:[%s7 + $0xc0] sm:$0xff]
  %v914 = vld [vmem:[%s7 + $0xc8] sm:$0xff]
  %v915 = vld [vmem:[%s7 + $0xd0] sm:$0xff]
  %v916 = vld [vmem:[%s7 + $0xd8] sm:$0xff]
  %v917 = vld [vmem:[%s7 + $0xe0] sm:$0xff]
  %v918 = vld [vmem:[%s7 + $0xe8] sm:$0xff]
  %v919 = vld [vmem:[%s7 + $0xf0] sm:$0xff]
  %v920 = vld [vmem:[%s7 + $0xf8] sm:$0xff]
  %v921 = vld [vmem:[%s7 + $0x100] sm:$0xff]
  %v922 = vld [vmem:[%s7 + $0x108] sm:$0xff]
  %v923 = vld [vmem:[%s7 + $0x110] sm:$0xff]
  %v924 = vld [vmem:[%s7 + $0x118] sm:$0xff]
  %v925 = vld [vmem:[%s7 + $0x120] sm:$0xff]
  %v926 = vld [vmem:[%s7 + $0x128] sm:$0xff]
  %v927 = vld [vmem:[%s7 + $0x130] sm:$0xff]
  %v928 = vld [vmem:[%s7 + $0x138] sm:$0xff]
  %v929 = vld [vmem:[%s7 + $0x140] sm:$0xff]
  %v930 = vld [vmem:[%s7 + $0x148] sm:$0xff]
  %v931 = vld [vmem:[%s7 + $0x150] sm:$0xff]
  %v932 = vld [vmem:[%s7 + $0x158] sm:$0xff]
  %v933 = vld [vmem:[%s7 + $0x160] sm:$0xff]
  %v934 = vld [vmem:[%s7 + $0x168] sm:$0xff]
  %v935 = vld [vmem:[%s7 + $0x170] sm:$0xff]
  %v936 = vld [vmem:[%s7 + $0x178] sm:$0xff]
  %938 = vset.pattern.permute.xlu0 0
  %939 = vperm.xlu0 %938, %v854
  %v940 = vpop.permute.xlu0 %939
  %943 = vset.pattern.permute.xlu0 0
  %944 = vperm.xlu0 %943, %v857
  %v945 = vpop.permute.xlu0 %944
  %948 = vset.pattern.permute.xlu0 0
  %949 = vperm.xlu0 %948, %v860
  %v950 = vpop.permute.xlu0 %949
  %953 = vset.pattern.permute.xlu0 0
  %954 = vperm.xlu0 %953, %v863
  %v955 = vpop.permute.xlu0 %954
  %958 = vset.pattern.permute.xlu0 0
  %959 = vperm.xlu0 %958, %v866
  %v960 = vpop.permute.xlu0 %959
  %963 = vset.pattern.permute.xlu0 0
  %964 = vperm.xlu0 %963, %v869
  %v965 = vpop.permute.xlu0 %964
  %968 = vset.pattern.permute.xlu0 0
  %969 = vperm.xlu0 %968, %v872
  %v970 = vpop.permute.xlu0 %969
  %973 = vset.pattern.permute.xlu0 0
  %974 = vperm.xlu0 %973, %v875
  %v975 = vpop.permute.xlu0 %974
  %978 = vset.pattern.permute.xlu0 0
  %979 = vperm.xlu0 %978, %v878
  %v980 = vpop.permute.xlu0 %979
  %983 = vset.pattern.permute.xlu0 0
  %984 = vperm.xlu0 %983, %v881
  %v985 = vpop.permute.xlu0 %984
  %988 = vset.pattern.permute.xlu0 0
  %989 = vperm.xlu0 %988, %v884
  %v990 = vpop.permute.xlu0 %989
  %993 = vset.pattern.permute.xlu0 0
  %994 = vperm.xlu0 %993, %v887
  %v995 = vpop.permute.xlu0 %994
  %v997 = vmul.f32 %v940, %v889
  %v998 = vmul.f32 %v945, %v890
  %v999 = vmul.f32 %v950, %v891
  %v1000 = vmul.f32 %v955, %v892
  %v1001 = vmul.f32 %v960, %v893
  %v1002 = vmul.f32 %v965, %v894
  %v1003 = vmul.f32 %v970, %v895
  %v1004 = vmul.f32 %v975, %v896
  %v1005 = vmul.f32 %v980, %v897
  %v1006 = vmul.f32 %v985, %v898
  %v1007 = vmul.f32 %v990, %v899
  %v1008 = vmul.f32 %v995, %v900
  %1009 = vset.pattern.permute.xlu0 4
  %1010 = vperm.xlu0 %1009, %v854
  %v1011 = vpop.permute.xlu0 %1010
  %1013 = vset.pattern.permute.xlu0 4
  %1014 = vperm.xlu0 %1013, %v857
  %v1015 = vpop.permute.xlu0 %1014
  %1017 = vset.pattern.permute.xlu0 4
  %1018 = vperm.xlu0 %1017, %v860
  %v1019 = vpop.permute.xlu0 %1018
  %1021 = vset.pattern.permute.xlu0 4
  %1022 = vperm.xlu0 %1021, %v863
  %v1023 = vpop.permute.xlu0 %1022
  %1025 = vset.pattern.permute.xlu0 4
  %1026 = vperm.xlu0 %1025, %v866
  %v1027 = vpop.permute.xlu0 %1026
  %1029 = vset.pattern.permute.xlu0 4
  %1030 = vperm.xlu0 %1029, %v869
  %v1031 = vpop.permute.xlu0 %1030
  %1033 = vset.pattern.permute.xlu0 4
  %1034 = vperm.xlu0 %1033, %v872
  %v1035 = vpop.permute.xlu0 %1034
  %1037 = vset.pattern.permute.xlu0 4
  %1038 = vperm.xlu0 %1037, %v875
  %v1039 = vpop.permute.xlu0 %1038
  %1041 = vset.pattern.permute.xlu0 4
  %1042 = vperm.xlu0 %1041, %v878
  %v1043 = vpop.permute.xlu0 %1042
  %1045 = vset.pattern.permute.xlu0 4
  %1046 = vperm.xlu0 %1045, %v881
  %v1047 = vpop.permute.xlu0 %1046
  %1049 = vset.pattern.permute.xlu0 4
  %1050 = vperm.xlu0 %1049, %v884
  %v1051 = vpop.permute.xlu0 %1050
  %1053 = vset.pattern.permute.xlu0 4
  %1054 = vperm.xlu0 %1053, %v887
  %v1055 = vpop.permute.xlu0 %1054
  %v1057 = vmul.f32 %v1011, %v889
  %v1058 = vmul.f32 %v1015, %v890
  %v1059 = vmul.f32 %v1019, %v891
  %v1060 = vmul.f32 %v1023, %v892
  %v1061 = vmul.f32 %v1027, %v893
  %v1062 = vmul.f32 %v1031, %v894
  %v1063 = vmul.f32 %v1035, %v895
  %v1064 = vmul.f32 %v1039, %v896
  %v1065 = vmul.f32 %v1043, %v897
  %v1066 = vmul.f32 %v1047, %v898
  %v1067 = vmul.f32 %v1051, %v899
  %v1068 = vmul.f32 %v1055, %v900
  %1081 = vrot.lane.b32.xlu0 %v1057, 32
  %v1082 = vpop.permute.xlu0 %1081
  %1083 = vrot.lane.b32.xlu0 %v1058, 32
  %v1084 = vpop.permute.xlu0 %1083
  %1085 = vrot.lane.b32.xlu0 %v1059, 32
  %v1086 = vpop.permute.xlu0 %1085
  %1087 = vrot.lane.b32.xlu0 %v1060, 32
  %v1088 = vpop.permute.xlu0 %1087
  %1089 = vrot.lane.b32.xlu0 %v1061, 32
  %v1090 = vpop.permute.xlu0 %1089
  %1091 = vrot.lane.b32.xlu0 %v1062, 32
  %v1092 = vpop.permute.xlu0 %1091
  %1093 = vrot.lane.b32.xlu0 %v1063, 32
  %v1094 = vpop.permute.xlu0 %1093
  %1095 = vrot.lane.b32.xlu0 %v1064, 32
  %v1096 = vpop.permute.xlu0 %1095
  %1097 = vrot.lane.b32.xlu0 %v1065, 32
  %v1098 = vpop.permute.xlu0 %1097
  %1099 = vrot.lane.b32.xlu0 %v1066, 32
  %v1100 = vpop.permute.xlu0 %1099
  %1101 = vrot.lane.b32.xlu0 %v1067, 32
  %v1102 = vpop.permute.xlu0 %1101
  %1103 = vrot.lane.b32.xlu0 %v1068, 32
  %v1104 = vpop.permute.xlu0 %1103
  %vm1117 = vcmask 261120
  %v1118 = vsel %vm1117, %v997, %v1082
  %v1119 = vsel %vm1117, %v998, %v1084
  %v1120 = vsel %vm1117, %v999, %v1086
  %v1121 = vsel %vm1117, %v1000, %v1088
  %v1122 = vsel %vm1117, %v1001, %v1090
  %v1123 = vsel %vm1117, %v1002, %v1092
  %v1124 = vsel %vm1117, %v1003, %v1094
  %v1125 = vsel %vm1117, %v1004, %v1096
  %v1126 = vsel %vm1117, %v1005, %v1098
  %v1127 = vsel %vm1117, %v1006, %v1100
  %v1128 = vsel %vm1117, %v1007, %v1102
  %v1129 = vsel %vm1117, %v1008, %v1104
  %1130 = vset.pattern.permute.xlu0 1
  %1131 = vperm.xlu0 %1130, %v854
  %v1132 = vpop.permute.xlu0 %1131
  %1134 = vset.pattern.permute.xlu0 1
  %1135 = vperm.xlu0 %1134, %v857
  %v1136 = vpop.permute.xlu0 %1135
  %1138 = vset.pattern.permute.xlu0 1
  %1139 = vperm.xlu0 %1138, %v860
  %v1140 = vpop.permute.xlu0 %1139
  %1142 = vset.pattern.permute.xlu0 1
  %1143 = vperm.xlu0 %1142, %v863
  %v1144 = vpop.permute.xlu0 %1143
  %1146 = vset.pattern.permute.xlu0 1
  %1147 = vperm.xlu0 %1146, %v866
  %v1148 = vpop.permute.xlu0 %1147
  %1150 = vset.pattern.permute.xlu0 1
  %1151 = vperm.xlu0 %1150, %v869
  %v1152 = vpop.permute.xlu0 %1151
  %1154 = vset.pattern.permute.xlu0 1
  %1155 = vperm.xlu0 %1154, %v872
  %v1156 = vpop.permute.xlu0 %1155
  %1158 = vset.pattern.permute.xlu0 1
  %1159 = vperm.xlu0 %1158, %v875
  %v1160 = vpop.permute.xlu0 %1159
  %1162 = vset.pattern.permute.xlu0 1
  %1163 = vperm.xlu0 %1162, %v878
  %v1164 = vpop.permute.xlu0 %1163
  %1166 = vset.pattern.permute.xlu0 1
  %1167 = vperm.xlu0 %1166, %v881
  %v1168 = vpop.permute.xlu0 %1167
  %1170 = vset.pattern.permute.xlu0 1
  %1171 = vperm.xlu0 %1170, %v884
  %v1172 = vpop.permute.xlu0 %1171
  %1174 = vset.pattern.permute.xlu0 1
  %1175 = vperm.xlu0 %1174, %v887
  %v1176 = vpop.permute.xlu0 %1175
  %v1178 = vmul.f32 %v1132, %v901
  %v1179 = vmul.f32 %v1136, %v902
  %v1180 = vmul.f32 %v1140, %v903
  %v1181 = vmul.f32 %v1144, %v904
  %v1182 = vmul.f32 %v1148, %v905
  %v1183 = vmul.f32 %v1152, %v906
  %v1184 = vmul.f32 %v1156, %v907
  %v1185 = vmul.f32 %v1160, %v908
  %v1186 = vmul.f32 %v1164, %v909
  %v1187 = vmul.f32 %v1168, %v910
  %v1188 = vmul.f32 %v1172, %v911
  %v1189 = vmul.f32 %v1176, %v912
  %1190 = vset.pattern.permute.xlu0 5
  %1191 = vperm.xlu0 %1190, %v854
  %v1192 = vpop.permute.xlu0 %1191
  %1194 = vset.pattern.permute.xlu0 5
  %1195 = vperm.xlu0 %1194, %v857
  %v1196 = vpop.permute.xlu0 %1195
  %1198 = vset.pattern.permute.xlu0 5
  %1199 = vperm.xlu0 %1198, %v860
  %v1200 = vpop.permute.xlu0 %1199
  %1202 = vset.pattern.permute.xlu0 5
  %1203 = vperm.xlu0 %1202, %v863
  %v1204 = vpop.permute.xlu0 %1203
  %1206 = vset.pattern.permute.xlu0 5
  %1207 = vperm.xlu0 %1206, %v866
  %v1208 = vpop.permute.xlu0 %1207
  %1210 = vset.pattern.permute.xlu0 5
  %1211 = vperm.xlu0 %1210, %v869
  %v1212 = vpop.permute.xlu0 %1211
  %1214 = vset.pattern.permute.xlu0 5
  %1215 = vperm.xlu0 %1214, %v872
  %v1216 = vpop.permute.xlu0 %1215
  %1218 = vset.pattern.permute.xlu0 5
  %1219 = vperm.xlu0 %1218, %v875
  %v1220 = vpop.permute.xlu0 %1219
  %1222 = vset.pattern.permute.xlu0 5
  %1223 = vperm.xlu0 %1222, %v878
  %v1224 = vpop.permute.xlu0 %1223
  %1226 = vset.pattern.permute.xlu0 5
  %1227 = vperm.xlu0 %1226, %v881
  %v1228 = vpop.permute.xlu0 %1227
  %1230 = vset.pattern.permute.xlu0 5
  %1231 = vperm.xlu0 %1230, %v884
  %v1232 = vpop.permute.xlu0 %1231
  %1234 = vset.pattern.permute.xlu0 5
  %1235 = vperm.xlu0 %1234, %v887
  %v1236 = vpop.permute.xlu0 %1235
  %v1238 = vmul.f32 %v1192, %v901
  %v1239 = vmul.f32 %v1196, %v902
  %v1240 = vmul.f32 %v1200, %v903
  %v1241 = vmul.f32 %v1204, %v904
  %v1242 = vmul.f32 %v1208, %v905
  %v1243 = vmul.f32 %v1212, %v906
  %v1244 = vmul.f32 %v1216, %v907
  %v1245 = vmul.f32 %v1220, %v908
  %v1246 = vmul.f32 %v1224, %v909
  %v1247 = vmul.f32 %v1228, %v910
  %v1248 = vmul.f32 %v1232, %v911
  %v1249 = vmul.f32 %v1236, %v912
  %1262 = vrot.lane.b32.xlu0 %v1238, 32
  %v1263 = vpop.permute.xlu0 %1262
  %1264 = vrot.lane.b32.xlu0 %v1239, 32
  %v1265 = vpop.permute.xlu0 %1264
  %1266 = vrot.lane.b32.xlu0 %v1240, 32
  %v1267 = vpop.permute.xlu0 %1266
  %1268 = vrot.lane.b32.xlu0 %v1241, 32
  %v1269 = vpop.permute.xlu0 %1268
  %1270 = vrot.lane.b32.xlu0 %v1242, 32
  %v1271 = vpop.permute.xlu0 %1270
  %1272 = vrot.lane.b32.xlu0 %v1243, 32
  %v1273 = vpop.permute.xlu0 %1272
  %1274 = vrot.lane.b32.xlu0 %v1244, 32
  %v1275 = vpop.permute.xlu0 %1274
  %1276 = vrot.lane.b32.xlu0 %v1245, 32
  %v1277 = vpop.permute.xlu0 %1276
  %1278 = vrot.lane.b32.xlu0 %v1246, 32
  %v1279 = vpop.permute.xlu0 %1278
  %1280 = vrot.lane.b32.xlu0 %v1247, 32
  %v1281 = vpop.permute.xlu0 %1280
  %1282 = vrot.lane.b32.xlu0 %v1248, 32
  %v1283 = vpop.permute.xlu0 %1282
  %1284 = vrot.lane.b32.xlu0 %v1249, 32
  %v1285 = vpop.permute.xlu0 %1284
  %v1298 = vsel %vm1117, %v1178, %v1263
  %v1299 = vsel %vm1117, %v1179, %v1265
  %v1300 = vsel %vm1117, %v1180, %v1267
  %v1301 = vsel %vm1117, %v1181, %v1269
  %v1302 = vsel %vm1117, %v1182, %v1271
  %v1303 = vsel %vm1117, %v1183, %v1273
  %v1304 = vsel %vm1117, %v1184, %v1275
  %v1305 = vsel %vm1117, %v1185, %v1277
  %v1306 = vsel %vm1117, %v1186, %v1279
  %v1307 = vsel %vm1117, %v1187, %v1281
  %v1308 = vsel %vm1117, %v1188, %v1283
  %v1309 = vsel %vm1117, %v1189, %v1285
  %1310 = vset.pattern.permute.xlu0 2
  %1311 = vperm.xlu0 %1310, %v854
  %v1312 = vpop.permute.xlu0 %1311
  %1314 = vset.pattern.permute.xlu0 2
  %1315 = vperm.xlu0 %1314, %v857
  %v1316 = vpop.permute.xlu0 %1315
  %1318 = vset.pattern.permute.xlu0 2
  %1319 = vperm.xlu0 %1318, %v860
  %v1320 = vpop.permute.xlu0 %1319
  %1322 = vset.pattern.permute.xlu0 2
  %1323 = vperm.xlu0 %1322, %v863
  %v1324 = vpop.permute.xlu0 %1323
  %1326 = vset.pattern.permute.xlu0 2
  %1327 = vperm.xlu0 %1326, %v866
  %v1328 = vpop.permute.xlu0 %1327
  %1330 = vset.pattern.permute.xlu0 2
  %1331 = vperm.xlu0 %1330, %v869
  %v1332 = vpop.permute.xlu0 %1331
  %1334 = vset.pattern.permute.xlu0 2
  %1335 = vperm.xlu0 %1334, %v872
  %v1336 = vpop.permute.xlu0 %1335
  %1338 = vset.pattern.permute.xlu0 2
  %1339 = vperm.xlu0 %1338, %v875
  %v1340 = vpop.permute.xlu0 %1339
  %1342 = vset.pattern.permute.xlu0 2
  %1343 = vperm.xlu0 %1342, %v878
  %v1344 = vpop.permute.xlu0 %1343
  %1346 = vset.pattern.permute.xlu0 2
  %1347 = vperm.xlu0 %1346, %v881
  %v1348 = vpop.permute.xlu0 %1347
  %1350 = vset.pattern.permute.xlu0 2
  %1351 = vperm.xlu0 %1350, %v884
  %v1352 = vpop.permute.xlu0 %1351
  %1354 = vset.pattern.permute.xlu0 2
  %1355 = vperm.xlu0 %1354, %v887
  %v1356 = vpop.permute.xlu0 %1355
  %v1358 = vmul.f32 %v1312, %v913
  %v1359 = vmul.f32 %v1316, %v914
  %v1360 = vmul.f32 %v1320, %v915
  %v1361 = vmul.f32 %v1324, %v916
  %v1362 = vmul.f32 %v1328, %v917
  %v1363 = vmul.f32 %v1332, %v918
  %v1364 = vmul.f32 %v1336, %v919
  %v1365 = vmul.f32 %v1340, %v920
  %v1366 = vmul.f32 %v1344, %v921
  %v1367 = vmul.f32 %v1348, %v922
  %v1368 = vmul.f32 %v1352, %v923
  %v1369 = vmul.f32 %v1356, %v924
  %1370 = vset.pattern.permute.xlu0 6
  %1371 = vperm.xlu0 %1370, %v854
  %v1372 = vpop.permute.xlu0 %1371
  %1374 = vset.pattern.permute.xlu0 6
  %1375 = vperm.xlu0 %1374, %v857
  %v1376 = vpop.permute.xlu0 %1375
  %1378 = vset.pattern.permute.xlu0 6
  %1379 = vperm.xlu0 %1378, %v860
  %v1380 = vpop.permute.xlu0 %1379
  %1382 = vset.pattern.permute.xlu0 6
  %1383 = vperm.xlu0 %1382, %v863
  %v1384 = vpop.permute.xlu0 %1383
  %1386 = vset.pattern.permute.xlu0 6
  %1387 = vperm.xlu0 %1386, %v866
  %v1388 = vpop.permute.xlu0 %1387
  %1390 = vset.pattern.permute.xlu0 6
  %1391 = vperm.xlu0 %1390, %v869
  %v1392 = vpop.permute.xlu0 %1391
  %1394 = vset.pattern.permute.xlu0 6
  %1395 = vperm.xlu0 %1394, %v872
  %v1396 = vpop.permute.xlu0 %1395
  %1398 = vset.pattern.permute.xlu0 6
  %1399 = vperm.xlu0 %1398, %v875
  %v1400 = vpop.permute.xlu0 %1399
  %1402 = vset.pattern.permute.xlu0 6
  %1403 = vperm.xlu0 %1402, %v878
  %v1404 = vpop.permute.xlu0 %1403
  %1406 = vset.pattern.permute.xlu0 6
  %1407 = vperm.xlu0 %1406, %v881
  %v1408 = vpop.permute.xlu0 %1407
  %1410 = vset.pattern.permute.xlu0 6
  %1411 = vperm.xlu0 %1410, %v884
  %v1412 = vpop.permute.xlu0 %1411
  %1414 = vset.pattern.permute.xlu0 6
  %1415 = vperm.xlu0 %1414, %v887
  %v1416 = vpop.permute.xlu0 %1415
  %v1418 = vmul.f32 %v1372, %v913
  %v1419 = vmul.f32 %v1376, %v914
  %v1420 = vmul.f32 %v1380, %v915
  %v1421 = vmul.f32 %v1384, %v916
  %v1422 = vmul.f32 %v1388, %v917
  %v1423 = vmul.f32 %v1392, %v918
  %v1424 = vmul.f32 %v1396, %v919
  %v1425 = vmul.f32 %v1400, %v920
  %v1426 = vmul.f32 %v1404, %v921
  %v1427 = vmul.f32 %v1408, %v922
  %v1428 = vmul.f32 %v1412, %v923
  %v1429 = vmul.f32 %v1416, %v924
  %1442 = vrot.lane.b32.xlu0 %v1418, 32
  %v1443 = vpop.permute.xlu0 %1442
  %1444 = vrot.lane.b32.xlu0 %v1419, 32
  %v1445 = vpop.permute.xlu0 %1444
  %1446 = vrot.lane.b32.xlu0 %v1420, 32
  %v1447 = vpop.permute.xlu0 %1446
  %1448 = vrot.lane.b32.xlu0 %v1421, 32
  %v1449 = vpop.permute.xlu0 %1448
  %1450 = vrot.lane.b32.xlu0 %v1422, 32
  %v1451 = vpop.permute.xlu0 %1450
  %1452 = vrot.lane.b32.xlu0 %v1423, 32
  %v1453 = vpop.permute.xlu0 %1452
  %1454 = vrot.lane.b32.xlu0 %v1424, 32
  %v1455 = vpop.permute.xlu0 %1454
  %1456 = vrot.lane.b32.xlu0 %v1425, 32
  %v1457 = vpop.permute.xlu0 %1456
  %1458 = vrot.lane.b32.xlu0 %v1426, 32
  %v1459 = vpop.permute.xlu0 %1458
  %1460 = vrot.lane.b32.xlu0 %v1427, 32
  %v1461 = vpop.permute.xlu0 %1460
  %1462 = vrot.lane.b32.xlu0 %v1428, 32
  %v1463 = vpop.permute.xlu0 %1462
  %1464 = vrot.lane.b32.xlu0 %v1429, 32
  %v1465 = vpop.permute.xlu0 %1464
  %v1478 = vsel %vm1117, %v1358, %v1443
  %v1479 = vsel %vm1117, %v1359, %v1445
  %v1480 = vsel %vm1117, %v1360, %v1447
  %v1481 = vsel %vm1117, %v1361, %v1449
  %v1482 = vsel %vm1117, %v1362, %v1451
  %v1483 = vsel %vm1117, %v1363, %v1453
  %v1484 = vsel %vm1117, %v1364, %v1455
  %v1485 = vsel %vm1117, %v1365, %v1457
  %v1486 = vsel %vm1117, %v1366, %v1459
  %v1487 = vsel %vm1117, %v1367, %v1461
  %v1488 = vsel %vm1117, %v1368, %v1463
  %v1489 = vsel %vm1117, %v1369, %v1465
  %1490 = vset.pattern.permute.xlu0 3
  %1491 = vperm.xlu0 %1490, %v854
  %v1492 = vpop.permute.xlu0 %1491
  %1494 = vset.pattern.permute.xlu0 3
  %1495 = vperm.xlu0 %1494, %v857
  %v1496 = vpop.permute.xlu0 %1495
  %1498 = vset.pattern.permute.xlu0 3
  %1499 = vperm.xlu0 %1498, %v860
  %v1500 = vpop.permute.xlu0 %1499
  %1502 = vset.pattern.permute.xlu0 3
  %1503 = vperm.xlu0 %1502, %v863
  %v1504 = vpop.permute.xlu0 %1503
  %1506 = vset.pattern.permute.xlu0 3
  %1507 = vperm.xlu0 %1506, %v866
  %v1508 = vpop.permute.xlu0 %1507
  %1510 = vset.pattern.permute.xlu0 3
  %1511 = vperm.xlu0 %1510, %v869
  %v1512 = vpop.permute.xlu0 %1511
  %1514 = vset.pattern.permute.xlu0 3
  %1515 = vperm.xlu0 %1514, %v872
  %v1516 = vpop.permute.xlu0 %1515
  %1518 = vset.pattern.permute.xlu0 3
  %1519 = vperm.xlu0 %1518, %v875
  %v1520 = vpop.permute.xlu0 %1519
  %1522 = vset.pattern.permute.xlu0 3
  %1523 = vperm.xlu0 %1522, %v878
  %v1524 = vpop.permute.xlu0 %1523
  %1526 = vset.pattern.permute.xlu0 3
  %1527 = vperm.xlu0 %1526, %v881
  %v1528 = vpop.permute.xlu0 %1527
  %1530 = vset.pattern.permute.xlu0 3
  %1531 = vperm.xlu0 %1530, %v884
  %v1532 = vpop.permute.xlu0 %1531
  %1534 = vset.pattern.permute.xlu0 3
  %1535 = vperm.xlu0 %1534, %v887
  %v1536 = vpop.permute.xlu0 %1535
  %v1538 = vmul.f32 %v1492, %v925
  %v1539 = vmul.f32 %v1496, %v926
  %v1540 = vmul.f32 %v1500, %v927
  %v1541 = vmul.f32 %v1504, %v928
  %v1542 = vmul.f32 %v1508, %v929
  %v1543 = vmul.f32 %v1512, %v930
  %v1544 = vmul.f32 %v1516, %v931
  %v1545 = vmul.f32 %v1520, %v932
  %v1546 = vmul.f32 %v1524, %v933
  %v1547 = vmul.f32 %v1528, %v934
  %v1548 = vmul.f32 %v1532, %v935
  %v1549 = vmul.f32 %v1536, %v936
  %1550 = vset.pattern.permute.xlu0 7
  %1551 = vperm.xlu0 %1550, %v854
  %v1552 = vpop.permute.xlu0 %1551
  %1554 = vset.pattern.permute.xlu0 7
  %1555 = vperm.xlu0 %1554, %v857
  %v1556 = vpop.permute.xlu0 %1555
  %1558 = vset.pattern.permute.xlu0 7
  %1559 = vperm.xlu0 %1558, %v860
  %v1560 = vpop.permute.xlu0 %1559
  %1562 = vset.pattern.permute.xlu0 7
  %1563 = vperm.xlu0 %1562, %v863
  %v1564 = vpop.permute.xlu0 %1563
  %1566 = vset.pattern.permute.xlu0 7
  %1567 = vperm.xlu0 %1566, %v866
  %v1568 = vpop.permute.xlu0 %1567
  %1570 = vset.pattern.permute.xlu0 7
  %1571 = vperm.xlu0 %1570, %v869
  %v1572 = vpop.permute.xlu0 %1571
  %1574 = vset.pattern.permute.xlu0 7
  %1575 = vperm.xlu0 %1574, %v872
  %v1576 = vpop.permute.xlu0 %1575
  %1578 = vset.pattern.permute.xlu0 7
  %1579 = vperm.xlu0 %1578, %v875
  %v1580 = vpop.permute.xlu0 %1579
  %1582 = vset.pattern.permute.xlu0 7
  %1583 = vperm.xlu0 %1582, %v878
  %v1584 = vpop.permute.xlu0 %1583
  %1586 = vset.pattern.permute.xlu0 7
  %1587 = vperm.xlu0 %1586, %v881
  %v1588 = vpop.permute.xlu0 %1587
  %1590 = vset.pattern.permute.xlu0 7
  %1591 = vperm.xlu0 %1590, %v884
  %v1592 = vpop.permute.xlu0 %1591
  %1594 = vset.pattern.permute.xlu0 7
  %1595 = vperm.xlu0 %1594, %v887
  %v1596 = vpop.permute.xlu0 %1595
  %v1598 = vmul.f32 %v1552, %v925
  %v1599 = vmul.f32 %v1556, %v926
  %v1600 = vmul.f32 %v1560, %v927
  %v1601 = vmul.f32 %v1564, %v928
  %v1602 = vmul.f32 %v1568, %v929
  %v1603 = vmul.f32 %v1572, %v930
  %v1604 = vmul.f32 %v1576, %v931
  %v1605 = vmul.f32 %v1580, %v932
  %v1606 = vmul.f32 %v1584, %v933
  %v1607 = vmul.f32 %v1588, %v934
  %v1608 = vmul.f32 %v1592, %v935
  %v1609 = vmul.f32 %v1596, %v936
  %1622 = vrot.lane.b32.xlu0 %v1598, 32
  %v1623 = vpop.permute.xlu0 %1622
  %1624 = vrot.lane.b32.xlu0 %v1599, 32
  %v1625 = vpop.permute.xlu0 %1624
  %1626 = vrot.lane.b32.xlu0 %v1600, 32
  %v1627 = vpop.permute.xlu0 %1626
  %1628 = vrot.lane.b32.xlu0 %v1601, 32
  %v1629 = vpop.permute.xlu0 %1628
  %1630 = vrot.lane.b32.xlu0 %v1602, 32
  %v1631 = vpop.permute.xlu0 %1630
  %1632 = vrot.lane.b32.xlu0 %v1603, 32
  %v1633 = vpop.permute.xlu0 %1632
  %1634 = vrot.lane.b32.xlu0 %v1604, 32
  %v1635 = vpop.permute.xlu0 %1634
  %1636 = vrot.lane.b32.xlu0 %v1605, 32
  %v1637 = vpop.permute.xlu0 %1636
  %1638 = vrot.lane.b32.xlu0 %v1606, 32
  %v1639 = vpop.permute.xlu0 %1638
  %1640 = vrot.lane.b32.xlu0 %v1607, 32
  %v1641 = vpop.permute.xlu0 %1640
  %1642 = vrot.lane.b32.xlu0 %v1608, 32
  %v1643 = vpop.permute.xlu0 %1642
  %1644 = vrot.lane.b32.xlu0 %v1609, 32
  %v1645 = vpop.permute.xlu0 %1644
  %v1658 = vsel %vm1117, %v1538, %v1623
  %v1659 = vsel %vm1117, %v1539, %v1625
  %v1660 = vsel %vm1117, %v1540, %v1627
  %v1661 = vsel %vm1117, %v1541, %v1629
  %v1662 = vsel %vm1117, %v1542, %v1631
  %v1663 = vsel %vm1117, %v1543, %v1633
  %v1664 = vsel %vm1117, %v1544, %v1635
  %v1665 = vsel %vm1117, %v1545, %v1637
  %v1666 = vsel %vm1117, %v1546, %v1639
  %v1667 = vsel %vm1117, %v1547, %v1641
  %v1668 = vsel %vm1117, %v1548, %v1643
  %v1669 = vsel %vm1117, %v1549, %v1645
  %v1670 = vld [vmem:[%s6] sm:$0xff]
  %v1671 = vld [vmem:[%s6 + $0x8] sm:$0xff]
  %v1672 = vld [vmem:[%s6 + $0x10] sm:$0xff]
  %v1673 = vld [vmem:[%s6 + $0x18] sm:$0xff]
  %v1674 = vld [vmem:[%s6 + $0x20] sm:$0xff]
  %v1675 = vld [vmem:[%s6 + $0x28] sm:$0xff]
  %v1676 = vld [vmem:[%s6 + $0x30] sm:$0xff]
  %v1677 = vld [vmem:[%s6 + $0x38] sm:$0xff]
  %v1678 = vld [vmem:[%s6 + $0x40] sm:$0xff]
  %v1679 = vld [vmem:[%s6 + $0x48] sm:$0xff]
  %v1680 = vld [vmem:[%s6 + $0x50] sm:$0xff]
  %v1681 = vld [vmem:[%s6 + $0x58] sm:$0xff]
  %1682 = vmatpush.msra.mxu0 %v1301
  %1683 = vmatpush.msra.mxu0 %v1300
  %1684 = vmatpush.msra.mxu0 %v1299
  %1685 = vmatpush.msra.mxu0 %v1298
  %1686 = vmatpush.msra.mxu0 %v1129
  %1687 = vmatpush.msra.mxu0 %v1128
  %1688 = vmatpush.msra.mxu0 %v1127
  %1689 = vmatpush.msra.mxu0 %v1126
  %1690 = vmatpush.msra.mxu0 %v1125
  %1691 = vmatpush.msra.mxu0 %v1124
  %1692 = vmatpush.msra.mxu0 %v1123
  %1693 = vmatpush.msra.mxu0 %v1122
  %1694 = vmatpush.msra.mxu0 %v1121
  %1695 = vmatpush.msra.mxu0 %v1120
  %1696 = vmatpush.msra.mxu0 %v1119
  %1697 = vmatpush.msra.mxu0 %v1118
  %1698 = vmatmul.f32.gmra.mxu0 %v1670
  %v1699 = vpop.f32.mrf.mxu0
  %v1700 = vadd.f32 0.0, %v1699
  %1701 = vmatmul.f32.gmra.mxu0 %v1673
  %v1702 = vpop.f32.mrf.mxu0
  %v1703 = vadd.f32 0.0, %v1702
  %1704 = vmatmul.f32.gmra.mxu0 %v1676
  %v1705 = vpop.f32.mrf.mxu0
  %v1706 = vadd.f32 0.0, %v1705
  %1707 = vmatmul.f32.gmra.mxu0 %v1679
  %v1708 = vpop.f32.mrf.mxu0
  %v1709 = vadd.f32 0.0, %v1708
  %1710 = vdwg.mxu0
  %1711 = vmatpush.msra.mxu0 %v1485
  %1712 = vmatpush.msra.mxu0 %v1484
  %1713 = vmatpush.msra.mxu0 %v1483
  %1714 = vmatpush.msra.mxu0 %v1482
  %1715 = vmatpush.msra.mxu0 %v1481
  %1716 = vmatpush.msra.mxu0 %v1480
  %1717 = vmatpush.msra.mxu0 %v1479
  %1718 = vmatpush.msra.mxu0 %v1478
  %1719 = vmatpush.msra.mxu0 %v1309
  %1720 = vmatpush.msra.mxu0 %v1308
  %1721 = vmatpush.msra.mxu0 %v1307
  %1722 = vmatpush.msra.mxu0 %v1306
  %1723 = vmatpush.msra.mxu0 %v1305
  %1724 = vmatpush.msra.mxu0 %v1304
  %1725 = vmatpush.msra.mxu0 %v1303
  %1726 = vmatpush.msra.mxu0 %v1302
  %1727 = vmatmul.f32.gmra.mxu0 %v1671
  %v1728 = vpop.f32.mrf.mxu0
  %v1729 = vadd.f32 %v1700, %v1728
  %1730 = vmatmul.f32.gmra.mxu0 %v1674
  %v1731 = vpop.f32.mrf.mxu0
  %v1732 = vadd.f32 %v1703, %v1731
  %1733 = vmatmul.f32.gmra.mxu0 %v1677
  %v1734 = vpop.f32.mrf.mxu0
  %v1735 = vadd.f32 %v1706, %v1734
  %1736 = vmatmul.f32.gmra.mxu0 %v1680
  %v1737 = vpop.f32.mrf.mxu0
  %v1738 = vadd.f32 %v1709, %v1737
  %1739 = vdwg.mxu0
  %1740 = vmatpush.msra.mxu0 %v1669
  %1741 = vmatpush.msra.mxu0 %v1668
  %1742 = vmatpush.msra.mxu0 %v1667
  %1743 = vmatpush.msra.mxu0 %v1666
  %1744 = vmatpush.msra.mxu0 %v1665
  %1745 = vmatpush.msra.mxu0 %v1664
  %1746 = vmatpush.msra.mxu0 %v1663
  %1747 = vmatpush.msra.mxu0 %v1662
  %1748 = vmatpush.msra.mxu0 %v1661
  %1749 = vmatpush.msra.mxu0 %v1660
  %1750 = vmatpush.msra.mxu0 %v1659
  %1751 = vmatpush.msra.mxu0 %v1658
  %1752 = vmatpush.msra.mxu0 %v1489
  %1753 = vmatpush.msra.mxu0 %v1488
  %1754 = vmatpush.msra.mxu0 %v1487
  %1755 = vmatpush.msra.mxu0 %v1486
  %1756 = vmatmul.f32.gmra.mxu0 %v1672
  %v1757 = vpop.f32.mrf.mxu0
  %v1758 = vadd.f32 %v1729, %v1757
  %1759 = vmatmul.f32.gmra.mxu0 %v1675
  %v1760 = vpop.f32.mrf.mxu0
  %v1761 = vadd.f32 %v1732, %v1760
  %1762 = vmatmul.f32.gmra.mxu0 %v1678
  %v1763 = vpop.f32.mrf.mxu0
  %v1764 = vadd.f32 %v1735, %v1763
  %1765 = vmatmul.f32.gmra.mxu0 %v1681
  %v1766 = vpop.f32.mrf.mxu0
  %v1767 = vadd.f32 %v1738, %v1766
  %1768 = vdwg.mxu0
  %1769 = vst.msk [vmem:[%s10] sm:$0xff] %vm688, %v1758
  %1770 = vst.msk [vmem:[%s10 + $0x8] sm:$0xff] %vm688, %v1761
  %1771 = vst.msk [vmem:[%s10 + $0x10] sm:$0xff] %vm688, %v1764
  %1772 = vst.msk [vmem:[%s10 + $0x18] sm:$0xff] %vm688, %v1767
  // Predicated region
  $region34: #{_lambda_.6} parent=0 // pred_check
    _
  $region35: #{_lambda_.6} parent=0 // pred_check_branch
    %1774 = sbr.rel (0) target = $region37
  $region36: #{_lambda_.6} parent=0 // pred_region
    _
  $region37: #{_lambda_.6} parent=0 // pred_fallthru
    _
  // Predicated region
  $region38: #{_lambda_.6} parent=0 // pred_check
    _
  $region39: #{_lambda_.6} parent=0 // pred_check_branch
    %1776 = sbr.rel (0) target = $region41
  $region40: #{_lambda_.6} parent=0 // pred_region
    _
  $region41: #{_lambda_.6} parent=0 // pred_fallthru
    _
  // Predicated region
  $region42: #{_lambda_.6} parent=0 // pred_check
    _
  $region43: #{_lambda_.6} parent=0 // pred_check_branch
    %1778 = sbr.rel (0) target = $region45
  $region44: #{_lambda_.6} parent=0 // pred_region
    _
  $region45: #{_lambda_.6} parent=0 // pred_fallthru
    _
  // Predicated region
  $region46: #{_lambda_.6} parent=0 // pred_check
    _
  $region47: #{_lambda_.6} parent=0 // pred_check_branch
    %1780 = sbr.rel (0) target = $region49
  $region48: #{_lambda_.6} parent=0 // pred_region
    _
  $region49: #{_lambda_.6} parent=0 // pred_fallthru
    _
  // Predicated region
  $region50: #{_lambda_.6} parent=0 // pred_check
    _
  $region51: #{_lambda_.6} parent=0 // pred_check_branch
    %1782 = sbr.rel (0) target = $region53
  $region52: #{_lambda_.6} parent=0 // pred_region
    _
  $region53: #{_lambda_.6} parent=0 // pred_fallthru
    _
  // Predicated region
  $region54: #{_lambda_.6} parent=0 // pred_check
    _
  $region55: #{_lambda_.6} parent=0 // pred_check_branch
    %1784 = sbr.rel (0) target = $region57
  $region56: #{_lambda_.6} parent=0 // pred_region
    _
  $region57: #{_lambda_.6} parent=0 // pred_fallthru
    _

// kernel: _lambda_.5
$region0: #{_lambda_.5}
  #allocation0 [shape = 'u32[]', space=smem, size = 0x4, offset = 0x4, fixed_abs, tag = 'smem constant byte address 0x4 - core index']
  #allocation1 [shape = 'u32[72,128]{1,0:T(1,128)}', space=vmem, size = 0x9000, scoped, tag = 'internal scratch']
  #allocation2 [shape = 's32[1]{0}', space=sflag, size = 0x4, scoped, tag = 'scoped memory for _lambda_.5']
  #allocation3 [shape = 's32[1]{0:T(128)S(6)}', space=smem, size = 0x200, scoped, tag = 'prefetched SMEM operand 0']
  %s0 = inlined_call_operand.<no memory space> [shape: s32[1], index: 0, kind: input, shape index: {}]
  %s1 = inlined_call_operand.vmem [shape: f32[16,96], index: 1, kind: input, shape index: {}]
  %s2 = inlined_call_operand.vmem [shape: f32[16,2], index: 2, kind: input, shape index: {}]
  %s3 = inlined_call_operand.vmem [shape: f32[32,32], index: 3, kind: input, shape index: {}]
  %s4 = inlined_call_operand.vmem [shape: f32[32,2], index: 4, kind: input, shape index: {}]
  %s5 = inlined_call_operand.vmem [shape: f32[32,32], index: 5, kind: input, shape index: {}]
  %s6 = inlined_call_operand.vmem [shape: f32[16,48,256], index: 6, kind: input, shape index: {}]
  %s7 = inlined_call_operand.vmem [shape: f32[1,128], index: 7, kind: output, shape index: {0}]
  %s8 = inlined_call_operand.vmem [shape: f32[1,128], index: 8, kind: output, shape index: {1}]
  %9 = xla_tuple %s7, %s8
  %s10 = sld [smem:[#allocation0]]
  $region49: #{_lambda_.5} parent=0
    _
  %s12 = ssub.s32 1, %s10
  %s13 = scalar_select 0, %s12, %s10
  %14 = sst [smem:[#allocation3]] %s0
  // Predicated region
  $region2: #{_lambda_.5} parent=0 // pred_check
    _
  $region3: #{_lambda_.5} parent=0 // pred_check_branch
    %16 = sbr.rel (0) target = $region5
  $region4: #{_lambda_.5} parent=0 // pred_region
    _
  $region5: #{_lambda_.5} parent=0 // pred_fallthru
    _
  // Predicated region
  $region6: #{_lambda_.5} parent=0 // pred_check
    _
  $region7: #{_lambda_.5} parent=0 // pred_check_branch
    %18 = sbr.rel (0) target = $region9
  $region8: #{_lambda_.5} parent=0 // pred_region
    _
  $region9: #{_lambda_.5} parent=0 // pred_fallthru
    _
  // Predicated region
  $region10: #{_lambda_.5} parent=0 // pred_check
    _
  $region11: #{_lambda_.5} parent=0 // pred_check_branch
    %20 = sbr.rel (0) target = $region13
  $region12: #{_lambda_.5} parent=0 // pred_region
    _
  $region13: #{_lambda_.5} parent=0 // pred_fallthru
    _
  // Predicated region
  $region14: #{_lambda_.5} parent=0 // pred_check
    _
  $region15: #{_lambda_.5} parent=0 // pred_check_branch
    %22 = sbr.rel (0) target = $region17
  $region16: #{_lambda_.5} parent=0 // pred_region
    _
  $region17: #{_lambda_.5} parent=0 // pred_fallthru
    _
  // Predicated region
  $region18: #{_lambda_.5} parent=0 // pred_check
    _
  $region19: #{_lambda_.5} parent=0 // pred_check_branch
    %24 = sbr.rel (0) target = $region21
  $region20: #{_lambda_.5} parent=0 // pred_region
    _
  $region21: #{_lambda_.5} parent=0 // pred_fallthru
    _
  // Predicated region
  $region22: #{_lambda_.5} parent=0 // pred_check
    _
  $region23: #{_lambda_.5} parent=0 // pred_check_branch
    %26 = sbr.rel (0) target = $region25
  $region24: #{_lambda_.5} parent=0 // pred_region
    _
  $region25: #{_lambda_.5} parent=0 // pred_fallthru
    _
  %v27 = vld [vmem:[%s3] sm:$0xff]
  %v28 = vld [vmem:[%s3 + $0x8] sm:$0xff]
  %v29 = vld [vmem:[%s3 + $0x10] sm:$0xff]
  %v30 = vld [vmem:[%s3 + $0x18] sm:$0xff]
  %v31 = vld [vmem:[%s4] sm:$0xff]
  %v32 = vld [vmem:[%s4 + $0x8] sm:$0xff]
  %v33 = vld [vmem:[%s4 + $0x10] sm:$0xff]
  %v34 = vld [vmem:[%s4 + $0x18] sm:$0xff]
  %s35 = sld [smem:[#allocation3]]
  // While loop
  $region26: #{_lambda_.5} parent=0 // loop_pre_header
    _
  $region27: #{_lambda_.5} parent=0 // loop_header
    %s37 = sphi 0, %s39
    %p38 = scmp.ge.s32.totalorder %s37, %s35
    %v42 = vphi %v31, %v976
    %v43 = vphi %v32, %v977
    %v44 = vphi %v33, %v978
    %v45 = vphi %v34, %v979
  $region28: #{_lambda_.5} parent=0 // loop_header_branch
    %41 = sbr.rel (%p38) target = $region32
  $region29: #{_lambda_.5} parent=0 // loop_body
    %vm46 = vcmask 261120
    %v48 = vsel %vm46, %v27, 0
    %v51 = vsel %vm46, %v28, 0
    %v54 = vsel %vm46, %v29, 0
    %v57 = vsel %vm46, %v30, 0
    %59 = vmatpush.msra.mxu0 0.0
    %60 = vmatpush.msra.mxu0 0.0
    %61 = vmatpush.msra.mxu0 0.0
    %62 = vmatpush.msra.mxu0 0.0
    %63 = vmatpush.msra.mxu0 0.0
    %64 = vmatpush.msra.mxu0 0.0
    %65 = vmatpush.msra.mxu0 0.0
    %66 = vmatpush.msra.mxu0 0.0
    %67 = vmatpush.msra.mxu0 0.0
    %68 = vmatpush.msra.mxu0 0.0
    %69 = vmatpush.msra.mxu0 0.0
    %70 = vmatpush.msra.mxu0 0.0
    %71 = vmatpush.msra.mxu0 %v45
    %72 = vmatpush.msra.mxu0 %v44
    %73 = vmatpush.msra.mxu0 %v43
    %74 = vmatpush.msra.mxu0 %v42
    %75 = vmatmul.f32.gmra.mxu0 %v48
    %v76 = vpop.f32.mrf.mxu0
    %v77 = vadd.f32 0.0, %v76
    %78 = vmatmul.f32.gmra.mxu0 %v51
    %v79 = vpop.f32.mrf.mxu0
    %v80 = vadd.f32 0.0, %v79
    %81 = vmatmul.f32.gmra.mxu0 %v54
    %v82 = vpop.f32.mrf.mxu0
    %v83 = vadd.f32 0.0, %v82
    %84 = vmatmul.f32.gmra.mxu0 %v57
    %v85 = vpop.f32.mrf.mxu0
    %v86 = vadd.f32 0.0, %v85
    %87 = vdwg.mxu0
    %v88 = vsub.f32 0.0, %v77
    %v89 = vsub.f32 0.0, %v80
    %v90 = vsub.f32 0.0, %v83
    %v91 = vsub.f32 0.0, %v86
    %96 = vrot.lane.b32.xlu0 %v88, 127
    %v97 = vpop.permute.xlu0 %96
    %98 = vrot.lane.b32.xlu0 %v89, 127
    %v99 = vpop.permute.xlu0 %98
    %100 = vrot.lane.b32.xlu0 %v90, 127
    %v101 = vpop.permute.xlu0 %100
    %102 = vrot.lane.b32.xlu0 %v91, 127
    %v103 = vpop.permute.xlu0 %102
    %112 = vrot.lane.b32.xlu0 %v77, 1
    %v113 = vpop.permute.xlu0 %112
    %114 = vrot.lane.b32.xlu0 %v80, 1
    %v115 = vpop.permute.xlu0 %114
    %116 = vrot.lane.b32.xlu0 %v83, 1
    %v117 = vpop.permute.xlu0 %116
    %118 = vrot.lane.b32.xlu0 %v86, 1
    %v119 = vpop.permute.xlu0 %118
    %vm124 = vcmask 7168
    %v125 = vsel %vm124, %v97, %v113
    %v126 = vsel %vm124, %v99, %v115
    %v127 = vsel %vm124, %v101, %v117
    %v128 = vsel %vm124, %v103, %v119
    %v129 = vadd.f32 %v42, %v125
    %v130 = vadd.f32 %v43, %v126
    %v131 = vadd.f32 %v44, %v127
    %v132 = vadd.f32 %v45, %v128
    %133 = vmatpush.msra.mxu0 0.0
    %134 = vmatpush.msra.mxu0 0.0
    %135 = vmatpush.msra.mxu0 0.0
    %136 = vmatpush.msra.mxu0 0.0
    %137 = vmatpush.msra.mxu0 0.0
    %138 = vmatpush.msra.mxu0 0.0
    %139 = vmatpush.msra.mxu0 0.0
    %140 = vmatpush.msra.mxu0 0.0
    %141 = vmatpush.msra.mxu0 0.0
    %142 = vmatpush.msra.mxu0 0.0
    %143 = vmatpush.msra.mxu0 0.0
    %144 = vmatpush.msra.mxu0 0.0
    %145 = vmatpush.msra.mxu0 %v128
    %146 = vmatpush.msra.mxu0 %v127
    %147 = vmatpush.msra.mxu0 %v126
    %148 = vmatpush.msra.mxu0 %v125
    %149 = vmatmul.f32.gmra.mxu0 %v48
    %v150 = vpop.f32.mrf.mxu0
    %v151 = vadd.f32 0.0, %v150
    %152 = vmatmul.f32.gmra.mxu0 %v51
    %v153 = vpop.f32.mrf.mxu0
    %v154 = vadd.f32 0.0, %v153
    %155 = vmatmul.f32.gmra.mxu0 %v54
    %v156 = vpop.f32.mrf.mxu0
    %v157 = vadd.f32 0.0, %v156
    %158 = vmatmul.f32.gmra.mxu0 %v57
    %v159 = vpop.f32.mrf.mxu0
    %v160 = vadd.f32 0.0, %v159
    %161 = vdwg.mxu0
    %v162 = vsub.f32 0.0, %v151
    %v163 = vsub.f32 0.0, %v154
    %v164 = vsub.f32 0.0, %v157
    %v165 = vsub.f32 0.0, %v160
    %170 = vrot.lane.b32.xlu0 %v162, 127
    %v171 = vpop.permute.xlu0 %170
    %172 = vrot.lane.b32.xlu0 %v163, 127
    %v173 = vpop.permute.xlu0 %172
    %174 = vrot.lane.b32.xlu0 %v164, 127
    %v175 = vpop.permute.xlu0 %174
    %176 = vrot.lane.b32.xlu0 %v165, 127
    %v177 = vpop.permute.xlu0 %176
    %186 = vrot.lane.b32.xlu0 %v151, 1
    %v187 = vpop.permute.xlu0 %186
    %188 = vrot.lane.b32.xlu0 %v154, 1
    %v189 = vpop.permute.xlu0 %188
    %190 = vrot.lane.b32.xlu0 %v157, 1
    %v191 = vpop.permute.xlu0 %190
    %192 = vrot.lane.b32.xlu0 %v160, 1
    %v193 = vpop.permute.xlu0 %192
    %v198 = vsel %vm124, %v171, %v187
    %v199 = vsel %vm124, %v173, %v189
    %v200 = vsel %vm124, %v175, %v191
    %v201 = vsel %vm124, %v177, %v193
    %v202 = vmul.f32 %v198, 0.5
    %v203 = vmul.f32 %v199, 0.5
    %v204 = vmul.f32 %v200, 0.5
    %v205 = vmul.f32 %v201, 0.5
    %v206 = vadd.f32 %v129, %v202
    %v207 = vadd.f32 %v130, %v203
    %v208 = vadd.f32 %v131, %v204
    %v209 = vadd.f32 %v132, %v205
    %210 = vmatpush.msra.mxu0 0.0
    %211 = vmatpush.msra.mxu0 0.0
    %212 = vmatpush.msra.mxu0 0.0
    %213 = vmatpush.msra.mxu0 0.0
    %214 = vmatpush.msra.mxu0 0.0
    %215 = vmatpush.msra.mxu0 0.0
    %216 = vmatpush.msra.mxu0 0.0
    %217 = vmatpush.msra.mxu0 0.0
    %218 = vmatpush.msra.mxu0 0.0
    %219 = vmatpush.msra.mxu0 0.0
    %220 = vmatpush.msra.mxu0 0.0
    %221 = vmatpush.msra.mxu0 0.0
    %222 = vmatpush.msra.mxu0 %v205
    %223 = vmatpush.msra.mxu0 %v204
    %224 = vmatpush.msra.mxu0 %v203
    %225 = vmatpush.msra.mxu0 %v202
    %226 = vmatmul.f32.gmra.mxu0 %v48
    %v227 = vpop.f32.mrf.mxu0
    %v228 = vadd.f32 0.0, %v227
    %229 = vmatmul.f32.gmra.mxu0 %v51
    %v230 = vpop.f32.mrf.mxu0
    %v231 = vadd.f32 0.0, %v230
    %232 = vmatmul.f32.gmra.mxu0 %v54
    %v233 = vpop.f32.mrf.mxu0
    %v234 = vadd.f32 0.0, %v233
    %235 = vmatmul.f32.gmra.mxu0 %v57
    %v236 = vpop.f32.mrf.mxu0
    %v237 = vadd.f32 0.0, %v236
    %238 = vdwg.mxu0
    %v239 = vsub.f32 0.0, %v228
    %v240 = vsub.f32 0.0, %v231
    %v241 = vsub.f32 0.0, %v234
    %v242 = vsub.f32 0.0, %v237
    %247 = vrot.lane.b32.xlu0 %v239, 127
    %v248 = vpop.permute.xlu0 %247
    %249 = vrot.lane.b32.xlu0 %v240, 127
    %v250 = vpop.permute.xlu0 %249
    %251 = vrot.lane.b32.xlu0 %v241, 127
    %v252 = vpop.permute.xlu0 %251
    %253 = vrot.lane.b32.xlu0 %v242, 127
    %v254 = vpop.permute.xlu0 %253
    %263 = vrot.lane.b32.xlu0 %v228, 1
    %v264 = vpop.permute.xlu0 %263
    %265 = vrot.lane.b32.xlu0 %v231, 1
    %v266 = vpop.permute.xlu0 %265
    %267 = vrot.lane.b32.xlu0 %v234, 1
    %v268 = vpop.permute.xlu0 %267
    %269 = vrot.lane.b32.xlu0 %v237, 1
    %v270 = vpop.permute.xlu0 %269
    %v275 = vsel %vm124, %v248, %v264
    %v276 = vsel %vm124, %v250, %v266
    %v277 = vsel %vm124, %v252, %v268
    %v278 = vsel %vm124, %v254, %v270
    %v279 = vmul.f32 %v275, 0.33333334
    %v280 = vmul.f32 %v276, 0.33333334
    %v281 = vmul.f32 %v277, 0.33333334
    %v282 = vmul.f32 %v278, 0.33333334
    %v283 = vadd.f32 %v206, %v279
    %v284 = vadd.f32 %v207, %v280
    %v285 = vadd.f32 %v208, %v281
    %v286 = vadd.f32 %v209, %v282
    %287 = vmatpush.msra.mxu0 0.0
    %288 = vmatpush.msra.mxu0 0.0
    %289 = vmatpush.msra.mxu0 0.0
    %290 = vmatpush.msra.mxu0 0.0
    %291 = vmatpush.msra.mxu0 0.0
    %292 = vmatpush.msra.mxu0 0.0
    %293 = vmatpush.msra.mxu0 0.0
    %294 = vmatpush.msra.mxu0 0.0
    %295 = vmatpush.msra.mxu0 0.0
    %296 = vmatpush.msra.mxu0 0.0
    %297 = vmatpush.msra.mxu0 0.0
    %298 = vmatpush.msra.mxu0 0.0
    %299 = vmatpush.msra.mxu0 %v282
    %300 = vmatpush.msra.mxu0 %v281
    %301 = vmatpush.msra.mxu0 %v280
    %302 = vmatpush.msra.mxu0 %v279
    %303 = vmatmul.f32.gmra.mxu0 %v48
    %v304 = vpop.f32.mrf.mxu0
    %v305 = vadd.f32 0.0, %v304
    %306 = vmatmul.f32.gmra.mxu0 %v51
    %v307 = vpop.f32.mrf.mxu0
    %v308 = vadd.f32 0.0, %v307
    %309 = vmatmul.f32.gmra.mxu0 %v54
    %v310 = vpop.f32.mrf.mxu0
    %v311 = vadd.f32 0.0, %v310
    %312 = vmatmul.f32.gmra.mxu0 %v57
    %v313 = vpop.f32.mrf.mxu0
    %v314 = vadd.f32 0.0, %v313
    %315 = vdwg.mxu0
    %v316 = vsub.f32 0.0, %v305
    %v317 = vsub.f32 0.0, %v308
    %v318 = vsub.f32 0.0, %v311
    %v319 = vsub.f32 0.0, %v314
    %324 = vrot.lane.b32.xlu0 %v316, 127
    %v325 = vpop.permute.xlu0 %324
    %326 = vrot.lane.b32.xlu0 %v317, 127
    %v327 = vpop.permute.xlu0 %326
    %328 = vrot.lane.b32.xlu0 %v318, 127
    %v329 = vpop.permute.xlu0 %328
    %330 = vrot.lane.b32.xlu0 %v319, 127
    %v331 = vpop.permute.xlu0 %330
    %340 = vrot.lane.b32.xlu0 %v305, 1
    %v341 = vpop.permute.xlu0 %340
    %342 = vrot.lane.b32.xlu0 %v308, 1
    %v343 = vpop.permute.xlu0 %342
    %344 = vrot.lane.b32.xlu0 %v311, 1
    %v345 = vpop.permute.xlu0 %344
    %346 = vrot.lane.b32.xlu0 %v314, 1
    %v347 = vpop.permute.xlu0 %346
    %v352 = vsel %vm124, %v325, %v341
    %v353 = vsel %vm124, %v327, %v343
    %v354 = vsel %vm124, %v329, %v345
    %v355 = vsel %vm124, %v331, %v347
    %v356 = vmul.f32 %v352, 0.25
    %v357 = vmul.f32 %v353, 0.25
    %v358 = vmul.f32 %v354, 0.25
    %v359 = vmul.f32 %v355, 0.25
    %v360 = vadd.f32 %v283, %v356
    %v361 = vadd.f32 %v284, %v357
    %v362 = vadd.f32 %v285, %v358
    %v363 = vadd.f32 %v286, %v359
    %364 = vmatpush.msra.mxu0 0.0
    %365 = vmatpush.msra.mxu0 0.0
    %366 = vmatpush.msra.mxu0 0.0
    %367 = vmatpush.msra.mxu0 0.0
    %368 = vmatpush.msra.mxu0 0.0
    %369 = vmatpush.msra.mxu0 0.0
    %370 = vmatpush.msra.mxu0 0.0
    %371 = vmatpush.msra.mxu0 0.0
    %372 = vmatpush.msra.mxu0 0.0
    %373 = vmatpush.msra.mxu0 0.0
    %374 = vmatpush.msra.mxu0 0.0
    %375 = vmatpush.msra.mxu0 0.0
    %376 = vmatpush.msra.mxu0 %v359
    %377 = vmatpush.msra.mxu0 %v358
    %378 = vmatpush.msra.mxu0 %v357
    %379 = vmatpush.msra.mxu0 %v356
    %380 = vmatmul.f32.gmra.mxu0 %v48
    %v381 = vpop.f32.mrf.mxu0
    %v382 = vadd.f32 0.0, %v381
    %383 = vmatmul.f32.gmra.mxu0 %v51
    %v384 = vpop.f32.mrf.mxu0
    %v385 = vadd.f32 0.0, %v384
    %386 = vmatmul.f32.gmra.mxu0 %v54
    %v387 = vpop.f32.mrf.mxu0
    %v388 = vadd.f32 0.0, %v387
    %389 = vmatmul.f32.gmra.mxu0 %v57
    %v390 = vpop.f32.mrf.mxu0
    %v391 = vadd.f32 0.0, %v390
    %392 = vdwg.mxu0
    %v393 = vsub.f32 0.0, %v382
    %v394 = vsub.f32 0.0, %v385
    %v395 = vsub.f32 0.0, %v388
    %v396 = vsub.f32 0.0, %v391
    %401 = vrot.lane.b32.xlu0 %v393, 127
    %v402 = vpop.permute.xlu0 %401
    %403 = vrot.lane.b32.xlu0 %v394, 127
    %v404 = vpop.permute.xlu0 %403
    %405 = vrot.lane.b32.xlu0 %v395, 127
    %v406 = vpop.permute.xlu0 %405
    %407 = vrot.lane.b32.xlu0 %v396, 127
    %v408 = vpop.permute.xlu0 %407
    %417 = vrot.lane.b32.xlu0 %v382, 1
    %v418 = vpop.permute.xlu0 %417
    %419 = vrot.lane.b32.xlu0 %v385, 1
    %v420 = vpop.permute.xlu0 %419
    %421 = vrot.lane.b32.xlu0 %v388, 1
    %v422 = vpop.permute.xlu0 %421
    %423 = vrot.lane.b32.xlu0 %v391, 1
    %v424 = vpop.permute.xlu0 %423
    %v429 = vsel %vm124, %v402, %v418
    %v430 = vsel %vm124, %v404, %v420
    %v431 = vsel %vm124, %v406, %v422
    %v432 = vsel %vm124, %v408, %v424
    %v433 = vmul.f32 %v429, 0.2
    %v434 = vmul.f32 %v430, 0.2
    %v435 = vmul.f32 %v431, 0.2
    %v436 = vmul.f32 %v432, 0.2
    %v437 = vadd.f32 %v360, %v433
    %v438 = vadd.f32 %v361, %v434
    %v439 = vadd.f32 %v362, %v435
    %v440 = vadd.f32 %v363, %v436
    %441 = vmatpush.msra.mxu0 0.0
    %442 = vmatpush.msra.mxu0 0.0
    %443 = vmatpush.msra.mxu0 0.0
    %444 = vmatpush.msra.mxu0 0.0
    %445 = vmatpush.msra.mxu0 0.0
    %446 = vmatpush.msra.mxu0 0.0
    %447 = vmatpush.msra.mxu0 0.0
    %448 = vmatpush.msra.mxu0 0.0
    %449 = vmatpush.msra.mxu0 0.0
    %450 = vmatpush.msra.mxu0 0.0
    %451 = vmatpush.msra.mxu0 0.0
    %452 = vmatpush.msra.mxu0 0.0
    %453 = vmatpush.msra.mxu0 %v436
    %454 = vmatpush.msra.mxu0 %v435
    %455 = vmatpush.msra.mxu0 %v434
    %456 = vmatpush.msra.mxu0 %v433
    %457 = vmatmul.f32.gmra.mxu0 %v48
    %v458 = vpop.f32.mrf.mxu0
    %v459 = vadd.f32 0.0, %v458
    %460 = vmatmul.f32.gmra.mxu0 %v51
    %v461 = vpop.f32.mrf.mxu0
    %v462 = vadd.f32 0.0, %v461
    %463 = vmatmul.f32.gmra.mxu0 %v54
    %v464 = vpop.f32.mrf.mxu0
    %v465 = vadd.f32 0.0, %v464
    %466 = vmatmul.f32.gmra.mxu0 %v57
    %v467 = vpop.f32.mrf.mxu0
    %v468 = vadd.f32 0.0, %v467
    %469 = vdwg.mxu0
    %v470 = vsub.f32 0.0, %v459
    %v471 = vsub.f32 0.0, %v462
    %v472 = vsub.f32 0.0, %v465
    %v473 = vsub.f32 0.0, %v468
    %478 = vrot.lane.b32.xlu0 %v470, 127
    %v479 = vpop.permute.xlu0 %478
    %480 = vrot.lane.b32.xlu0 %v471, 127
    %v481 = vpop.permute.xlu0 %480
    %482 = vrot.lane.b32.xlu0 %v472, 127
    %v483 = vpop.permute.xlu0 %482
    %484 = vrot.lane.b32.xlu0 %v473, 127
    %v485 = vpop.permute.xlu0 %484
    %494 = vrot.lane.b32.xlu0 %v459, 1
    %v495 = vpop.permute.xlu0 %494
    %496 = vrot.lane.b32.xlu0 %v462, 1
    %v497 = vpop.permute.xlu0 %496
    %498 = vrot.lane.b32.xlu0 %v465, 1
    %v499 = vpop.permute.xlu0 %498
    %500 = vrot.lane.b32.xlu0 %v468, 1
    %v501 = vpop.permute.xlu0 %500
    %v506 = vsel %vm124, %v479, %v495
    %v507 = vsel %vm124, %v481, %v497
    %v508 = vsel %vm124, %v483, %v499
    %v509 = vsel %vm124, %v485, %v501
    %v510 = vmul.f32 %v506, 0.16666667
    %v511 = vmul.f32 %v507, 0.16666667
    %v512 = vmul.f32 %v508, 0.16666667
    %v513 = vmul.f32 %v509, 0.16666667
    %v514 = vadd.f32 %v437, %v510
    %v515 = vadd.f32 %v438, %v511
    %v516 = vadd.f32 %v439, %v512
    %v517 = vadd.f32 %v440, %v513
    %518 = vmatpush.msra.mxu0 0.0
    %519 = vmatpush.msra.mxu0 0.0
    %520 = vmatpush.msra.mxu0 0.0
    %521 = vmatpush.msra.mxu0 0.0
    %522 = vmatpush.msra.mxu0 0.0
    %523 = vmatpush.msra.mxu0 0.0
    %524 = vmatpush.msra.mxu0 0.0
    %525 = vmatpush.msra.mxu0 0.0
    %526 = vmatpush.msra.mxu0 0.0
    %527 = vmatpush.msra.mxu0 0.0
    %528 = vmatpush.msra.mxu0 0.0
    %529 = vmatpush.msra.mxu0 0.0
    %530 = vmatpush.msra.mxu0 %v513
    %531 = vmatpush.msra.mxu0 %v512
    %532 = vmatpush.msra.mxu0 %v511
    %533 = vmatpush.msra.mxu0 %v510
    %534 = vmatmul.f32.gmra.mxu0 %v48
    %v535 = vpop.f32.mrf.mxu0
    %v536 = vadd.f32 0.0, %v535
    %537 = vmatmul.f32.gmra.mxu0 %v51
    %v538 = vpop.f32.mrf.mxu0
    %v539 = vadd.f32 0.0, %v538
    %540 = vmatmul.f32.gmra.mxu0 %v54
    %v541 = vpop.f32.mrf.mxu0
    %v542 = vadd.f32 0.0, %v541
    %543 = vmatmul.f32.gmra.mxu0 %v57
    %v544 = vpop.f32.mrf.mxu0
    %v545 = vadd.f32 0.0, %v544
    %546 = vdwg.mxu0
    %v547 = vsub.f32 0.0, %v536
    %v548 = vsub.f32 0.0, %v539
    %v549 = vsub.f32 0.0, %v542
    %v550 = vsub.f32 0.0, %v545
    %555 = vrot.lane.b32.xlu0 %v547, 127
    %v556 = vpop.permute.xlu0 %555
    %557 = vrot.lane.b32.xlu0 %v548, 127
    %v558 = vpop.permute.xlu0 %557
    %559 = vrot.lane.b32.xlu0 %v549, 127
    %v560 = vpop.permute.xlu0 %559
    %561 = vrot.lane.b32.xlu0 %v550, 127
    %v562 = vpop.permute.xlu0 %561
    %571 = vrot.lane.b32.xlu0 %v536, 1
    %v572 = vpop.permute.xlu0 %571
    %573 = vrot.lane.b32.xlu0 %v539, 1
    %v574 = vpop.permute.xlu0 %573
    %575 = vrot.lane.b32.xlu0 %v542, 1
    %v576 = vpop.permute.xlu0 %575
    %577 = vrot.lane.b32.xlu0 %v545, 1
    %v578 = vpop.permute.xlu0 %577
    %v583 = vsel %vm124, %v556, %v572
    %v584 = vsel %vm124, %v558, %v574
    %v585 = vsel %vm124, %v560, %v576
    %v586 = vsel %vm124, %v562, %v578
    %v587 = vmul.f32 %v583, 0.14285715
    %v588 = vmul.f32 %v584, 0.14285715
    %v589 = vmul.f32 %v585, 0.14285715
    %v590 = vmul.f32 %v586, 0.14285715
    %v591 = vadd.f32 %v514, %v587
    %v592 = vadd.f32 %v515, %v588
    %v593 = vadd.f32 %v516, %v589
    %v594 = vadd.f32 %v517, %v590
    %595 = vmatpush.msra.mxu0 0.0
    %596 = vmatpush.msra.mxu0 0.0
    %597 = vmatpush.msra.mxu0 0.0
    %598 = vmatpush.msra.mxu0 0.0
    %599 = vmatpush.msra.mxu0 0.0
    %600 = vmatpush.msra.mxu0 0.0
    %601 = vmatpush.msra.mxu0 0.0
    %602 = vmatpush.msra.mxu0 0.0
    %603 = vmatpush.msra.mxu0 0.0
    %604 = vmatpush.msra.mxu0 0.0
    %605 = vmatpush.msra.mxu0 0.0
    %606 = vmatpush.msra.mxu0 0.0
    %607 = vmatpush.msra.mxu0 %v590
    %608 = vmatpush.msra.mxu0 %v589
    %609 = vmatpush.msra.mxu0 %v588
    %610 = vmatpush.msra.mxu0 %v587
    %611 = vmatmul.f32.gmra.mxu0 %v48
    %v612 = vpop.f32.mrf.mxu0
    %v613 = vadd.f32 0.0, %v612
    %614 = vmatmul.f32.gmra.mxu0 %v51
    %v615 = vpop.f32.mrf.mxu0
    %v616 = vadd.f32 0.0, %v615
    %617 = vmatmul.f32.gmra.mxu0 %v54
    %v618 = vpop.f32.mrf.mxu0
    %v619 = vadd.f32 0.0, %v618
    %620 = vmatmul.f32.gmra.mxu0 %v57
    %v621 = vpop.f32.mrf.mxu0
    %v622 = vadd.f32 0.0, %v621
    %623 = vdwg.mxu0
    %v624 = vsub.f32 0.0, %v613
    %v625 = vsub.f32 0.0, %v616
    %v626 = vsub.f32 0.0, %v619
    %v627 = vsub.f32 0.0, %v622
    %632 = vrot.lane.b32.xlu0 %v624, 127
    %v633 = vpop.permute.xlu0 %632
    %634 = vrot.lane.b32.xlu0 %v625, 127
    %v635 = vpop.permute.xlu0 %634
    %636 = vrot.lane.b32.xlu0 %v626, 127
    %v637 = vpop.permute.xlu0 %636
    %638 = vrot.lane.b32.xlu0 %v627, 127
    %v639 = vpop.permute.xlu0 %638
    %648 = vrot.lane.b32.xlu0 %v613, 1
    %v649 = vpop.permute.xlu0 %648
    %650 = vrot.lane.b32.xlu0 %v616, 1
    %v651 = vpop.permute.xlu0 %650
    %652 = vrot.lane.b32.xlu0 %v619, 1
    %v653 = vpop.permute.xlu0 %652
    %654 = vrot.lane.b32.xlu0 %v622, 1
    %v655 = vpop.permute.xlu0 %654
    %v660 = vsel %vm124, %v633, %v649
    %v661 = vsel %vm124, %v635, %v651
    %v662 = vsel %vm124, %v637, %v653
    %v663 = vsel %vm124, %v639, %v655
    %v664 = vmul.f32 %v660, 0.125
    %v665 = vmul.f32 %v661, 0.125
    %v666 = vmul.f32 %v662, 0.125
    %v667 = vmul.f32 %v663, 0.125
    %v668 = vadd.f32 %v591, %v664
    %v669 = vadd.f32 %v592, %v665
    %v670 = vadd.f32 %v593, %v666
    %v671 = vadd.f32 %v594, %v667
    %672 = vmatpush.msra.mxu0 0.0
    %673 = vmatpush.msra.mxu0 0.0
    %674 = vmatpush.msra.mxu0 0.0
    %675 = vmatpush.msra.mxu0 0.0
    %676 = vmatpush.msra.mxu0 0.0
    %677 = vmatpush.msra.mxu0 0.0
    %678 = vmatpush.msra.mxu0 0.0
    %679 = vmatpush.msra.mxu0 0.0
    %680 = vmatpush.msra.mxu0 0.0
    %681 = vmatpush.msra.mxu0 0.0
    %682 = vmatpush.msra.mxu0 0.0
    %683 = vmatpush.msra.mxu0 0.0
    %684 = vmatpush.msra.mxu0 %v667
    %685 = vmatpush.msra.mxu0 %v666
    %686 = vmatpush.msra.mxu0 %v665
    %687 = vmatpush.msra.mxu0 %v664
    %688 = vmatmul.f32.gmra.mxu0 %v48
    %v689 = vpop.f32.mrf.mxu0
    %v690 = vadd.f32 0.0, %v689
    %691 = vmatmul.f32.gmra.mxu0 %v51
    %v692 = vpop.f32.mrf.mxu0
    %v693 = vadd.f32 0.0, %v692
    %694 = vmatmul.f32.gmra.mxu0 %v54
    %v695 = vpop.f32.mrf.mxu0
    %v696 = vadd.f32 0.0, %v695
    %697 = vmatmul.f32.gmra.mxu0 %v57
    %v698 = vpop.f32.mrf.mxu0
    %v699 = vadd.f32 0.0, %v698
    %700 = vdwg.mxu0
    %v701 = vsub.f32 0.0, %v690
    %v702 = vsub.f32 0.0, %v693
    %v703 = vsub.f32 0.0, %v696
    %v704 = vsub.f32 0.0, %v699
    %709 = vrot.lane.b32.xlu0 %v701, 127
    %v710 = vpop.permute.xlu0 %709
    %711 = vrot.lane.b32.xlu0 %v702, 127
    %v712 = vpop.permute.xlu0 %711
    %713 = vrot.lane.b32.xlu0 %v703, 127
    %v714 = vpop.permute.xlu0 %713
    %715 = vrot.lane.b32.xlu0 %v704, 127
    %v716 = vpop.permute.xlu0 %715
    %725 = vrot.lane.b32.xlu0 %v690, 1
    %v726 = vpop.permute.xlu0 %725
    %727 = vrot.lane.b32.xlu0 %v693, 1
    %v728 = vpop.permute.xlu0 %727
    %729 = vrot.lane.b32.xlu0 %v696, 1
    %v730 = vpop.permute.xlu0 %729
    %731 = vrot.lane.b32.xlu0 %v699, 1
    %v732 = vpop.permute.xlu0 %731
    %v737 = vsel %vm124, %v710, %v726
    %v738 = vsel %vm124, %v712, %v728
    %v739 = vsel %vm124, %v714, %v730
    %v740 = vsel %vm124, %v716, %v732
    %v741 = vmul.f32 %v737, 0.11111111
    %v742 = vmul.f32 %v738, 0.11111111
    %v743 = vmul.f32 %v739, 0.11111111
    %v744 = vmul.f32 %v740, 0.11111111
    %v745 = vadd.f32 %v668, %v741
    %v746 = vadd.f32 %v669, %v742
    %v747 = vadd.f32 %v670, %v743
    %v748 = vadd.f32 %v671, %v744
    %749 = vmatpush.msra.mxu0 0.0
    %750 = vmatpush.msra.mxu0 0.0
    %751 = vmatpush.msra.mxu0 0.0
    %752 = vmatpush.msra.mxu0 0.0
    %753 = vmatpush.msra.mxu0 0.0
    %754 = vmatpush.msra.mxu0 0.0
    %755 = vmatpush.msra.mxu0 0.0
    %756 = vmatpush.msra.mxu0 0.0
    %757 = vmatpush.msra.mxu0 0.0
    %758 = vmatpush.msra.mxu0 0.0
    %759 = vmatpush.msra.mxu0 0.0
    %760 = vmatpush.msra.mxu0 0.0
    %761 = vmatpush.msra.mxu0 %v744
    %762 = vmatpush.msra.mxu0 %v743
    %763 = vmatpush.msra.mxu0 %v742
    %764 = vmatpush.msra.mxu0 %v741
    %765 = vmatmul.f32.gmra.mxu0 %v48
    %v766 = vpop.f32.mrf.mxu0
    %v767 = vadd.f32 0.0, %v766
    %768 = vmatmul.f32.gmra.mxu0 %v51
    %v769 = vpop.f32.mrf.mxu0
    %v770 = vadd.f32 0.0, %v769
    %771 = vmatmul.f32.gmra.mxu0 %v54
    %v772 = vpop.f32.mrf.mxu0
    %v773 = vadd.f32 0.0, %v772
    %774 = vmatmul.f32.gmra.mxu0 %v57
    %v775 = vpop.f32.mrf.mxu0
    %v776 = vadd.f32 0.0, %v775
    %777 = vdwg.mxu0
    %v778 = vsub.f32 0.0, %v767
    %v779 = vsub.f32 0.0, %v770
    %v780 = vsub.f32 0.0, %v773
    %v781 = vsub.f32 0.0, %v776
    %786 = vrot.lane.b32.xlu0 %v778, 127
    %v787 = vpop.permute.xlu0 %786
    %788 = vrot.lane.b32.xlu0 %v779, 127
    %v789 = vpop.permute.xlu0 %788
    %790 = vrot.lane.b32.xlu0 %v780, 127
    %v791 = vpop.permute.xlu0 %790
    %792 = vrot.lane.b32.xlu0 %v781, 127
    %v793 = vpop.permute.xlu0 %792
    %802 = vrot.lane.b32.xlu0 %v767, 1
    %v803 = vpop.permute.xlu0 %802
    %804 = vrot.lane.b32.xlu0 %v770, 1
    %v805 = vpop.permute.xlu0 %804
    %806 = vrot.lane.b32.xlu0 %v773, 1
    %v807 = vpop.permute.xlu0 %806
    %808 = vrot.lane.b32.xlu0 %v776, 1
    %v809 = vpop.permute.xlu0 %808
    %v814 = vsel %vm124, %v787, %v803
    %v815 = vsel %vm124, %v789, %v805
    %v816 = vsel %vm124, %v791, %v807
    %v817 = vsel %vm124, %v793, %v809
    %v818 = vmul.f32 %v814, 0.1
    %v819 = vmul.f32 %v815, 0.1
    %v820 = vmul.f32 %v816, 0.1
    %v821 = vmul.f32 %v817, 0.1
    %v822 = vadd.f32 %v745, %v818
    %v823 = vadd.f32 %v746, %v819
    %v824 = vadd.f32 %v747, %v820
    %v825 = vadd.f32 %v748, %v821
    %826 = vmatpush.msra.mxu0 0.0
    %827 = vmatpush.msra.mxu0 0.0
    %828 = vmatpush.msra.mxu0 0.0
    %829 = vmatpush.msra.mxu0 0.0
    %830 = vmatpush.msra.mxu0 0.0
    %831 = vmatpush.msra.mxu0 0.0
    %832 = vmatpush.msra.mxu0 0.0
    %833 = vmatpush.msra.mxu0 0.0
    %834 = vmatpush.msra.mxu0 0.0
    %835 = vmatpush.msra.mxu0 0.0
    %836 = vmatpush.msra.mxu0 0.0
    %837 = vmatpush.msra.mxu0 0.0
    %838 = vmatpush.msra.mxu0 %v821
    %839 = vmatpush.msra.mxu0 %v820
    %840 = vmatpush.msra.mxu0 %v819
    %841 = vmatpush.msra.mxu0 %v818
    %842 = vmatmul.f32.gmra.mxu0 %v48
    %v843 = vpop.f32.mrf.mxu0
    %v844 = vadd.f32 0.0, %v843
    %845 = vmatmul.f32.gmra.mxu0 %v51
    %v846 = vpop.f32.mrf.mxu0
    %v847 = vadd.f32 0.0, %v846
    %848 = vmatmul.f32.gmra.mxu0 %v54
    %v849 = vpop.f32.mrf.mxu0
    %v850 = vadd.f32 0.0, %v849
    %851 = vmatmul.f32.gmra.mxu0 %v57
    %v852 = vpop.f32.mrf.mxu0
    %v853 = vadd.f32 0.0, %v852
    %854 = vdwg.mxu0
    %v855 = vsub.f32 0.0, %v844
    %v856 = vsub.f32 0.0, %v847
    %v857 = vsub.f32 0.0, %v850
    %v858 = vsub.f32 0.0, %v853
    %863 = vrot.lane.b32.xlu0 %v855, 127
    %v864 = vpop.permute.xlu0 %863
    %865 = vrot.lane.b32.xlu0 %v856, 127
    %v866 = vpop.permute.xlu0 %865
    %867 = vrot.lane.b32.xlu0 %v857, 127
    %v868 = vpop.permute.xlu0 %867
    %869 = vrot.lane.b32.xlu0 %v858, 127
    %v870 = vpop.permute.xlu0 %869
    %879 = vrot.lane.b32.xlu0 %v844, 1
    %v880 = vpop.permute.xlu0 %879
    %881 = vrot.lane.b32.xlu0 %v847, 1
    %v882 = vpop.permute.xlu0 %881
    %883 = vrot.lane.b32.xlu0 %v850, 1
    %v884 = vpop.permute.xlu0 %883
    %885 = vrot.lane.b32.xlu0 %v853, 1
    %v886 = vpop.permute.xlu0 %885
    %v891 = vsel %vm124, %v864, %v880
    %v892 = vsel %vm124, %v866, %v882
    %v893 = vsel %vm124, %v868, %v884
    %v894 = vsel %vm124, %v870, %v886
    %v895 = vmul.f32 %v891, 0.09090909
    %v896 = vmul.f32 %v892, 0.09090909
    %v897 = vmul.f32 %v893, 0.09090909
    %v898 = vmul.f32 %v894, 0.09090909
    %v899 = vadd.f32 %v822, %v895
    %v900 = vadd.f32 %v823, %v896
    %v901 = vadd.f32 %v824, %v897
    %v902 = vadd.f32 %v825, %v898
    %903 = vmatpush.msra.mxu0 0.0
    %904 = vmatpush.msra.mxu0 0.0
    %905 = vmatpush.msra.mxu0 0.0
    %906 = vmatpush.msra.mxu0 0.0
    %907 = vmatpush.msra.mxu0 0.0
    %908 = vmatpush.msra.mxu0 0.0
    %909 = vmatpush.msra.mxu0 0.0
    %910 = vmatpush.msra.mxu0 0.0
    %911 = vmatpush.msra.mxu0 0.0
    %912 = vmatpush.msra.mxu0 0.0
    %913 = vmatpush.msra.mxu0 0.0
    %914 = vmatpush.msra.mxu0 0.0
    %915 = vmatpush.msra.mxu0 %v898
    %916 = vmatpush.msra.mxu0 %v897
    %917 = vmatpush.msra.mxu0 %v896
    %918 = vmatpush.msra.mxu0 %v895
    %919 = vmatmul.f32.gmra.mxu0 %v48
    %v920 = vpop.f32.mrf.mxu0
    %v921 = vadd.f32 0.0, %v920
    %922 = vmatmul.f32.gmra.mxu0 %v51
    %v923 = vpop.f32.mrf.mxu0
    %v924 = vadd.f32 0.0, %v923
    %925 = vmatmul.f32.gmra.mxu0 %v54
    %v926 = vpop.f32.mrf.mxu0
    %v927 = vadd.f32 0.0, %v926
    %928 = vmatmul.f32.gmra.mxu0 %v57
    %v929 = vpop.f32.mrf.mxu0
    %v930 = vadd.f32 0.0, %v929
    %931 = vdwg.mxu0
    %v932 = vsub.f32 0.0, %v921
    %v933 = vsub.f32 0.0, %v924
    %v934 = vsub.f32 0.0, %v927
    %v935 = vsub.f32 0.0, %v930
    %940 = vrot.lane.b32.xlu0 %v932, 127
    %v941 = vpop.permute.xlu0 %940
    %942 = vrot.lane.b32.xlu0 %v933, 127
    %v943 = vpop.permute.xlu0 %942
    %944 = vrot.lane.b32.xlu0 %v934, 127
    %v945 = vpop.permute.xlu0 %944
    %946 = vrot.lane.b32.xlu0 %v935, 127
    %v947 = vpop.permute.xlu0 %946
    %956 = vrot.lane.b32.xlu0 %v921, 1
    %v957 = vpop.permute.xlu0 %956
    %958 = vrot.lane.b32.xlu0 %v924, 1
    %v959 = vpop.permute.xlu0 %958
    %960 = vrot.lane.b32.xlu0 %v927, 1
    %v961 = vpop.permute.xlu0 %960
    %962 = vrot.lane.b32.xlu0 %v930, 1
    %v963 = vpop.permute.xlu0 %962
    %v968 = vsel %vm124, %v941, %v957
    %v969 = vsel %vm124, %v943, %v959
    %v970 = vsel %vm124, %v945, %v961
    %v971 = vsel %vm124, %v947, %v963
    %v972 = vmul.f32 %v968, 0.083333336
    %v973 = vmul.f32 %v969, 0.083333336
    %v974 = vmul.f32 %v970, 0.083333336
    %v975 = vmul.f32 %v971, 0.083333336
    %v976 = vadd.f32 %v899, %v972
    %v977 = vadd.f32 %v900, %v973
    %v978 = vadd.f32 %v901, %v974
    %v979 = vadd.f32 %v902, %v975
  $region30: #{_lambda_.5} parent=0 // loop_footer
    %s39 = sadd.s32 %s37, 1
  $region31: #{_lambda_.5} parent=0 // loop_footer_branch
    %36 = sbr.rel target = $region27
  $region32: #{_lambda_.5} parent=0 // loop_exit
    _
  %v980 = vld [vmem:[%s5] sm:$0xff]
  %v981 = vld [vmem:[%s5 + $0x8] sm:$0xff]
  %v982 = vld [vmem:[%s5 + $0x10] sm:$0xff]
  %v983 = vld [vmem:[%s5 + $0x18] sm:$0xff]
  %vm984 = vcmask 261120
  %v986 = vsel %vm984, %v980, 0
  %v989 = vsel %vm984, %v981, 0
  %v992 = vsel %vm984, %v982, 0
  %v995 = vsel %vm984, %v983, 0
  %997 = vmatpush.msra.mxu0 0.0
  %998 = vmatpush.msra.mxu0 0.0
  %999 = vmatpush.msra.mxu0 0.0
  %1000 = vmatpush.msra.mxu0 0.0
  %1001 = vmatpush.msra.mxu0 0.0
  %1002 = vmatpush.msra.mxu0 0.0
  %1003 = vmatpush.msra.mxu0 0.0
  %1004 = vmatpush.msra.mxu0 0.0
  %1005 = vmatpush.msra.mxu0 0.0
  %1006 = vmatpush.msra.mxu0 0.0
  %1007 = vmatpush.msra.mxu0 0.0
  %1008 = vmatpush.msra.mxu0 0.0
  %1009 = vmatpush.msra.mxu0 %v45
  %1010 = vmatpush.msra.mxu0 %v44
  %1011 = vmatpush.msra.mxu0 %v43
  %1012 = vmatpush.msra.mxu0 %v42
  %1013 = vmatmul.f32.gmra.mxu0 %v986
  %v1014 = vpop.f32.mrf.mxu0
  %v1015 = vadd.f32 0.0, %v1014
  %1016 = vmatmul.f32.gmra.mxu0 %v989
  %v1017 = vpop.f32.mrf.mxu0
  %v1018 = vadd.f32 0.0, %v1017
  %1019 = vmatmul.f32.gmra.mxu0 %v992
  %v1020 = vpop.f32.mrf.mxu0
  %v1021 = vadd.f32 0.0, %v1020
  %1022 = vmatmul.f32.gmra.mxu0 %v995
  %v1023 = vpop.f32.mrf.mxu0
  %v1024 = vadd.f32 0.0, %v1023
  %1025 = vdwg.mxu0
  %1028 = vrot.lane.b32.xlu0 %v1021, 1
  %v1029 = vpop.permute.xlu0 %1028
  %1030 = vrot.lane.b32.xlu0 %v1024, 1
  %v1031 = vpop.permute.xlu0 %1030
  %vm1034 = vcmask 7168
  %v1035 = vsel %vm1034, %v1015, %v1029
  %v1036 = vsel %vm1034, %v1018, %v1031
  %1039 = vrot.lane.b32.xlu0 %v1015, 127
  %v1040 = vpop.permute.xlu0 %1039
  %1041 = vrot.lane.b32.xlu0 %v1018, 127
  %v1042 = vpop.permute.xlu0 %1041
  %v1045 = vsel %vm1034, %v1040, %v1021
  %v1046 = vsel %vm1034, %v1042, %v1024
  %v1047 = vld [vmem:[%s1] sm:$0xff]
  %v1048 = vld [vmem:[%s1 + $0x8] sm:$0xff]
  %v1049 = vld [vmem:[%s2] sm:$0xff]
  %v1050 = vld [vmem:[%s2 + $0x8] sm:$0xff]
  %v1051 = vmul.f32 %v1049, 1.46
  %v1052 = vmul.f32 %v1050, 1.46
  %v1053 = vadd.f32 %v1049, 1.46
  %v1054 = vadd.f32 %v1050, 1.46
  %v1055 = vrcp.pop %v1053
  %v1056 = vrcp.pop %v1054
  %v1057 = vmul.f32 %v1051, %v1055
  %v1058 = vmul.f32 %v1052, %v1056
  %v1059 = vmul.f32 %v1057, %v1035
  %v1060 = vmul.f32 %v1058, %v1036
  %v1061 = vmul.f32 %v1057, %v1045
  %v1062 = vmul.f32 %v1058, %v1046
  %1064 = vset.pattern.permute.xlu0 0
  %1065 = vperm.xlu0 %1064, %v1059
  %v1066 = vpop.permute.xlu0 %1065
  %1069 = vset.pattern.permute.xlu0 0
  %1070 = vperm.xlu0 %1069, %v1060
  %v1071 = vpop.permute.xlu0 %1070
  %v1073 = vmul.f32 %v1066, %v1047
  %v1074 = vmul.f32 %v1071, %v1048
  %1076 = vset.pattern.permute.xlu0 0
  %1077 = vperm.xlu0 %1076, %v1061
  %v1078 = vpop.permute.xlu0 %1077
  %1081 = vset.pattern.permute.xlu0 0
  %1082 = vperm.xlu0 %1081, %v1062
  %v1083 = vpop.permute.xlu0 %1082
  %v1085 = vmul.f32 %v1078, %v1047
  %v1086 = vmul.f32 %v1083, %v1048
  %1087 = vset.pattern.permute.xlu0 1
  %1088 = vperm.xlu0 %1087, %v1059
  %v1089 = vpop.permute.xlu0 %1088
  %1091 = vset.pattern.permute.xlu0 1
  %1092 = vperm.xlu0 %1091, %v1060
  %v1093 = vpop.permute.xlu0 %1092
  %v1095 = vmul.f32 %v1089, %v1047
  %v1096 = vmul.f32 %v1093, %v1048
  %1099 = vrot.lane.b32.xlu0 %v1095, 80
  %v1100 = vpop.permute.xlu0 %1099
  %1101 = vrot.lane.b32.xlu0 %v1096, 80
  %v1102 = vpop.permute.xlu0 %1101
  %v1105 = vadd.f32 %v1073, %v1100
  %v1106 = vadd.f32 %v1074, %v1102
  %1107 = vset.pattern.permute.xlu0 1
  %1108 = vperm.xlu0 %1107, %v1061
  %v1109 = vpop.permute.xlu0 %1108
  %1111 = vset.pattern.permute.xlu0 1
  %1112 = vperm.xlu0 %1111, %v1062
  %v1113 = vpop.permute.xlu0 %1112
  %v1115 = vmul.f32 %v1109, %v1047
  %v1116 = vmul.f32 %v1113, %v1048
  %1119 = vrot.lane.b32.xlu0 %v1115, 80
  %v1120 = vpop.permute.xlu0 %1119
  %1121 = vrot.lane.b32.xlu0 %v1116, 80
  %v1122 = vpop.permute.xlu0 %1121
  %v1125 = vadd.f32 %v1085, %v1120
  %v1126 = vadd.f32 %v1086, %v1122
  %v1129 = vrot.slane %v1105, 1
  %v1130 = vrot.slane %v1105, 2
  %v1131 = vrot.slane %v1105, 3
  %v1132 = vrot.slane %v1105, 4
  %v1133 = vrot.slane %v1105, 5
  %v1134 = vrot.slane %v1105, 6
  %v1135 = vrot.slane %v1105, 7
  %v1136 = vrot.slane %v1106, 1
  %v1137 = vrot.slane %v1106, 2
  %v1138 = vrot.slane %v1106, 3
  %v1139 = vrot.slane %v1106, 4
  %v1140 = vrot.slane %v1106, 5
  %v1141 = vrot.slane %v1106, 6
  %v1142 = vrot.slane %v1106, 7
  %v1159 = vrot.slane %v1125, 1
  %v1160 = vrot.slane %v1125, 2
  %v1161 = vrot.slane %v1125, 3
  %v1162 = vrot.slane %v1125, 4
  %v1163 = vrot.slane %v1125, 5
  %v1164 = vrot.slane %v1125, 6
  %v1165 = vrot.slane %v1125, 7
  %v1166 = vrot.slane %v1126, 1
  %v1167 = vrot.slane %v1126, 2
  %v1168 = vrot.slane %v1126, 3
  %v1169 = vrot.slane %v1126, 4
  %v1170 = vrot.slane %v1126, 5
  %v1171 = vrot.slane %v1126, 6
  %v1172 = vrot.slane %v1126, 7
  %v1173 = vperm.slane %v1125, 0
  %v1174 = vperm.slane %v1159, 0
  %v1175 = vperm.slane %v1160, 0
  %v1176 = vperm.slane %v1161, 0
  %v1177 = vperm.slane %v1162, 0
  %v1178 = vperm.slane %v1163, 0
  %v1179 = vperm.slane %v1164, 0
  %v1180 = vperm.slane %v1165, 0
  %v1181 = vperm.slane %v1126, 0
  %v1182 = vperm.slane %v1166, 0
  %v1183 = vperm.slane %v1167, 0
  %v1184 = vperm.slane %v1168, 0
  %v1185 = vperm.slane %v1169, 0
  %v1186 = vperm.slane %v1170, 0
  %v1187 = vperm.slane %v1171, 0
  %v1188 = vperm.slane %v1172, 0
  %vm1205 = vcmask 1040384
  %v1206 = vsel %vm1205, %v1105, %v1173
  %v1207 = vsel %vm1205, %v1129, %v1174
  %v1208 = vsel %vm1205, %v1130, %v1175
  %v1209 = vsel %vm1205, %v1131, %v1176
  %v1210 = vsel %vm1205, %v1132, %v1177
  %v1211 = vsel %vm1205, %v1133, %v1178
  %v1212 = vsel %vm1205, %v1134, %v1179
  %v1213 = vsel %vm1205, %v1135, %v1180
  %v1214 = vsel %vm1205, %v1106, %v1181
  %v1215 = vsel %vm1205, %v1136, %v1182
  %v1216 = vsel %vm1205, %v1137, %v1183
  %v1217 = vsel %vm1205, %v1138, %v1184
  %v1218 = vsel %vm1205, %v1139, %v1185
  %v1219 = vsel %vm1205, %v1140, %v1186
  %v1220 = vsel %vm1205, %v1141, %v1187
  %v1221 = vsel %vm1205, %v1142, %v1188
  %v1222 = vld [vmem:[%s6] sm:$0xff]
  %v1223 = vld [vmem:[%s6 + $0x8] sm:$0xff]
  %v1224 = vld [vmem:[%s6 + $0x10] sm:$0xff]
  %v1225 = vld [vmem:[%s6 + $0x18] sm:$0xff]
  %v1226 = vld [vmem:[%s6 + $0x20] sm:$0xff]
  %v1227 = vld [vmem:[%s6 + $0x28] sm:$0xff]
  %v1228 = vld [vmem:[%s6 + $0x30] sm:$0xff]
  %v1229 = vld [vmem:[%s6 + $0x38] sm:$0xff]
  %v1230 = vld [vmem:[%s6 + $0x40] sm:$0xff]
  %v1231 = vld [vmem:[%s6 + $0x48] sm:$0xff]
  %v1232 = vld [vmem:[%s6 + $0x50] sm:$0xff]
  %v1233 = vld [vmem:[%s6 + $0x58] sm:$0xff]
  %v1234 = vld [vmem:[%s6 + $0x60] sm:$0xff]
  %v1235 = vld [vmem:[%s6 + $0x68] sm:$0xff]
  %v1236 = vld [vmem:[%s6 + $0x70] sm:$0xff]
  %v1237 = vld [vmem:[%s6 + $0x78] sm:$0xff]
  %v1238 = vld [vmem:[%s6 + $0x80] sm:$0xff]
  %v1239 = vld [vmem:[%s6 + $0x88] sm:$0xff]
  %v1240 = vld [vmem:[%s6 + $0x90] sm:$0xff]
  %v1241 = vld [vmem:[%s6 + $0x98] sm:$0xff]
  %v1242 = vld [vmem:[%s6 + $0xa0] sm:$0xff]
  %v1243 = vld [vmem:[%s6 + $0xa8] sm:$0xff]
  %v1244 = vld [vmem:[%s6 + $0xb0] sm:$0xff]
  %v1245 = vld [vmem:[%s6 + $0xb8] sm:$0xff]
  %v1246 = vld [vmem:[%s6 + $0xc0] sm:$0xff]
  %v1247 = vld [vmem:[%s6 + $0xc8] sm:$0xff]
  %v1248 = vld [vmem:[%s6 + $0xd0] sm:$0xff]
  %v1249 = vld [vmem:[%s6 + $0xd8] sm:$0xff]
  %v1250 = vld [vmem:[%s6 + $0xe0] sm:$0xff]
  %v1251 = vld [vmem:[%s6 + $0xe8] sm:$0xff]
  %v1252 = vld [vmem:[%s6 + $0xf0] sm:$0xff]
  %v1253 = vld [vmem:[%s6 + $0xf8] sm:$0xff]
  %v1254 = vld [vmem:[%s6 + $0x100] sm:$0xff]
  %v1255 = vld [vmem:[%s6 + $0x108] sm:$0xff]
  %v1256 = vld [vmem:[%s6 + $0x110] sm:$0xff]
  %v1257 = vld [vmem:[%s6 + $0x118] sm:$0xff]
  %v1258 = vld [vmem:[%s6 + $0x120] sm:$0xff]
  %v1259 = vld [vmem:[%s6 + $0x128] sm:$0xff]
  %v1260 = vld [vmem:[%s6 + $0x130] sm:$0xff]
  %v1261 = vld [vmem:[%s6 + $0x138] sm:$0xff]
  %v1262 = vld [vmem:[%s6 + $0x140] sm:$0xff]
  %v1263 = vld [vmem:[%s6 + $0x148] sm:$0xff]
  %v1264 = vld [vmem:[%s6 + $0x150] sm:$0xff]
  %v1265 = vld [vmem:[%s6 + $0x158] sm:$0xff]
  %v1266 = vld [vmem:[%s6 + $0x160] sm:$0xff]
  %v1267 = vld [vmem:[%s6 + $0x168] sm:$0xff]
  %v1268 = vld [vmem:[%s6 + $0x170] sm:$0xff]
  %v1269 = vld [vmem:[%s6 + $0x178] sm:$0xff]
  %v1270 = vld [vmem:[%s6 + $0x180] sm:$0xff]
  %v1271 = vld [vmem:[%s6 + $0x188] sm:$0xff]
  %v1272 = vld [vmem:[%s6 + $0x190] sm:$0xff]
  %v1273 = vld [vmem:[%s6 + $0x198] sm:$0xff]
  %v1274 = vld [vmem:[%s6 + $0x1a0] sm:$0xff]
  %v1275 = vld [vmem:[%s6 + $0x1a8] sm:$0xff]
  %v1276 = vld [vmem:[%s6 + $0x1b0] sm:$0xff]
  %v1277 = vld [vmem:[%s6 + $0x1b8] sm:$0xff]
  %v1278 = vld [vmem:[%s6 + $0x1c0] sm:$0xff]
  %v1279 = vld [vmem:[%s6 + $0x1c8] sm:$0xff]
  %v1280 = vld [vmem:[%s6 + $0x1d0] sm:$0xff]
  %v1281 = vld [vmem:[%s6 + $0x1d8] sm:$0xff]
  %v1282 = vld [vmem:[%s6 + $0x1e0] sm:$0xff]
  %v1283 = vld [vmem:[%s6 + $0x1e8] sm:$0xff]
  %v1284 = vld [vmem:[%s6 + $0x1f0] sm:$0xff]
  %v1285 = vld [vmem:[%s6 + $0x1f8] sm:$0xff]
  %v1286 = vld [vmem:[%s6 + $0x200] sm:$0xff]
  %v1287 = vld [vmem:[%s6 + $0x208] sm:$0xff]
  %v1288 = vld [vmem:[%s6 + $0x210] sm:$0xff]
  %v1289 = vld [vmem:[%s6 + $0x218] sm:$0xff]
  %v1290 = vld [vmem:[%s6 + $0x220] sm:$0xff]
  %v1291 = vld [vmem:[%s6 + $0x228] sm:$0xff]
  %v1292 = vld [vmem:[%s6 + $0x230] sm:$0xff]
  %v1293 = vld [vmem:[%s6 + $0x238] sm:$0xff]
  %v1294 = vld [vmem:[%s6 + $0x240] sm:$0xff]
  %v1295 = vld [vmem:[%s6 + $0x248] sm:$0xff]
  %v1296 = vld [vmem:[%s6 + $0x250] sm:$0xff]
  %v1297 = vld [vmem:[%s6 + $0x258] sm:$0xff]
  %v1298 = vld [vmem:[%s6 + $0x260] sm:$0xff]
  %v1299 = vld [vmem:[%s6 + $0x268] sm:$0xff]
  %v1300 = vld [vmem:[%s6 + $0x270] sm:$0xff]
  %v1301 = vld [vmem:[%s6 + $0x278] sm:$0xff]
  %v1302 = vld [vmem:[%s6 + $0x280] sm:$0xff]
  %v1303 = vld [vmem:[%s6 + $0x288] sm:$0xff]
  %v1304 = vld [vmem:[%s6 + $0x290] sm:$0xff]
  %v1305 = vld [vmem:[%s6 + $0x298] sm:$0xff]
  %v1306 = vld [vmem:[%s6 + $0x2a0] sm:$0xff]
  %v1307 = vld [vmem:[%s6 + $0x2a8] sm:$0xff]
  %v1308 = vld [vmem:[%s6 + $0x2b0] sm:$0xff]
  %v1309 = vld [vmem:[%s6 + $0x2b8] sm:$0xff]
  %v1310 = vld [vmem:[%s6 + $0x2c0] sm:$0xff]
  %v1311 = vld [vmem:[%s6 + $0x2c8] sm:$0xff]
  %v1312 = vld [vmem:[%s6 + $0x2d0] sm:$0xff]
  %v1313 = vld [vmem:[%s6 + $0x2d8] sm:$0xff]
  %v1314 = vld [vmem:[%s6 + $0x2e0] sm:$0xff]
  %v1315 = vld [vmem:[%s6 + $0x2e8] sm:$0xff]
  %v1316 = vld [vmem:[%s6 + $0x2f0] sm:$0xff]
  %v1317 = vld [vmem:[%s6 + $0x2f8] sm:$0xff]
  %v1318 = vld [vmem:[%s6 + $0x300] sm:$0xff]
  %v1319 = vld [vmem:[%s6 + $0x308] sm:$0xff]
  %v1320 = vld [vmem:[%s6 + $0x310] sm:$0xff]
  %v1321 = vld [vmem:[%s6 + $0x318] sm:$0xff]
  %v1322 = vld [vmem:[%s6 + $0x320] sm:$0xff]
  %v1323 = vld [vmem:[%s6 + $0x328] sm:$0xff]
  %v1324 = vld [vmem:[%s6 + $0x330] sm:$0xff]
  %v1325 = vld [vmem:[%s6 + $0x338] sm:$0xff]
  %v1326 = vld [vmem:[%s6 + $0x340] sm:$0xff]
  %v1327 = vld [vmem:[%s6 + $0x348] sm:$0xff]
  %v1328 = vld [vmem:[%s6 + $0x350] sm:$0xff]
  %v1329 = vld [vmem:[%s6 + $0x358] sm:$0xff]
  %v1330 = vld [vmem:[%s6 + $0x360] sm:$0xff]
  %v1331 = vld [vmem:[%s6 + $0x368] sm:$0xff]
  %v1332 = vld [vmem:[%s6 + $0x370] sm:$0xff]
  %v1333 = vld [vmem:[%s6 + $0x378] sm:$0xff]
  %v1334 = vld [vmem:[%s6 + $0x380] sm:$0xff]
  %v1335 = vld [vmem:[%s6 + $0x388] sm:$0xff]
  %v1336 = vld [vmem:[%s6 + $0x390] sm:$0xff]
  %v1337 = vld [vmem:[%s6 + $0x398] sm:$0xff]
  %v1338 = vld [vmem:[%s6 + $0x3a0] sm:$0xff]
  %v1339 = vld [vmem:[%s6 + $0x3a8] sm:$0xff]
  %v1340 = vld [vmem:[%s6 + $0x3b0] sm:$0xff]
  %v1341 = vld [vmem:[%s6 + $0x3b8] sm:$0xff]
  %v1342 = vld [vmem:[%s6 + $0x3c0] sm:$0xff]
  %v1343 = vld [vmem:[%s6 + $0x3c8] sm:$0xff]
  %v1344 = vld [vmem:[%s6 + $0x3d0] sm:$0xff]
  %v1345 = vld [vmem:[%s6 + $0x3d8] sm:$0xff]
  %v1346 = vld [vmem:[%s6 + $0x3e0] sm:$0xff]
  %v1347 = vld [vmem:[%s6 + $0x3e8] sm:$0xff]
  %v1348 = vld [vmem:[%s6 + $0x3f0] sm:$0xff]
  %v1349 = vld [vmem:[%s6 + $0x3f8] sm:$0xff]
  %v1350 = vld [vmem:[%s6 + $0x400] sm:$0xff]
  %v1351 = vld [vmem:[%s6 + $0x408] sm:$0xff]
  %v1352 = vld [vmem:[%s6 + $0x410] sm:$0xff]
  %v1353 = vld [vmem:[%s6 + $0x418] sm:$0xff]
  %v1354 = vld [vmem:[%s6 + $0x420] sm:$0xff]
  %v1355 = vld [vmem:[%s6 + $0x428] sm:$0xff]
  %v1356 = vld [vmem:[%s6 + $0x430] sm:$0xff]
  %v1357 = vld [vmem:[%s6 + $0x438] sm:$0xff]
  %v1358 = vld [vmem:[%s6 + $0x440] sm:$0xff]
  %v1359 = vld [vmem:[%s6 + $0x448] sm:$0xff]
  %v1360 = vld [vmem:[%s6 + $0x450] sm:$0xff]
  %v1361 = vld [vmem:[%s6 + $0x458] sm:$0xff]
  %v1362 = vld [vmem:[%s6 + $0x460] sm:$0xff]
  %v1363 = vld [vmem:[%s6 + $0x468] sm:$0xff]
  %v1364 = vld [vmem:[%s6 + $0x470] sm:$0xff]
  %v1365 = vld [vmem:[%s6 + $0x478] sm:$0xff]
  %v1366 = vld [vmem:[%s6 + $0x480] sm:$0xff]
  %v1367 = vld [vmem:[%s6 + $0x488] sm:$0xff]
  %v1368 = vld [vmem:[%s6 + $0x490] sm:$0xff]
  %v1369 = vld [vmem:[%s6 + $0x498] sm:$0xff]
  %v1370 = vld [vmem:[%s6 + $0x4a0] sm:$0xff]
  %v1371 = vld [vmem:[%s6 + $0x4a8] sm:$0xff]
  %v1372 = vld [vmem:[%s6 + $0x4b0] sm:$0xff]
  %v1373 = vld [vmem:[%s6 + $0x4b8] sm:$0xff]
  %v1374 = vld [vmem:[%s6 + $0x4c0] sm:$0xff]
  %v1375 = vld [vmem:[%s6 + $0x4c8] sm:$0xff]
  %v1376 = vld [vmem:[%s6 + $0x4d0] sm:$0xff]
  %v1377 = vld [vmem:[%s6 + $0x4d8] sm:$0xff]
  %v1378 = vld [vmem:[%s6 + $0x4e0] sm:$0xff]
  %v1379 = vld [vmem:[%s6 + $0x4e8] sm:$0xff]
  %v1380 = vld [vmem:[%s6 + $0x4f0] sm:$0xff]
  %v1381 = vld [vmem:[%s6 + $0x4f8] sm:$0xff]
  %v1382 = vld [vmem:[%s6 + $0x500] sm:$0xff]
  %v1383 = vld [vmem:[%s6 + $0x508] sm:$0xff]
  %v1384 = vld [vmem:[%s6 + $0x510] sm:$0xff]
  %v1385 = vld [vmem:[%s6 + $0x518] sm:$0xff]
  %v1386 = vld [vmem:[%s6 + $0x520] sm:$0xff]
  %v1387 = vld [vmem:[%s6 + $0x528] sm:$0xff]
  %v1388 = vld [vmem:[%s6 + $0x530] sm:$0xff]
  %v1389 = vld [vmem:[%s6 + $0x538] sm:$0xff]
  %v1390 = vld [vmem:[%s6 + $0x540] sm:$0xff]
  %v1391 = vld [vmem:[%s6 + $0x548] sm:$0xff]
  %v1392 = vld [vmem:[%s6 + $0x550] sm:$0xff]
  %v1393 = vld [vmem:[%s6 + $0x558] sm:$0xff]
  %v1394 = vld [vmem:[%s6 + $0x560] sm:$0xff]
  %v1395 = vld [vmem:[%s6 + $0x568] sm:$0xff]
  %v1396 = vld [vmem:[%s6 + $0x570] sm:$0xff]
  %v1397 = vld [vmem:[%s6 + $0x578] sm:$0xff]
  %v1398 = vld [vmem:[%s6 + $0x580] sm:$0xff]
  %v1399 = vld [vmem:[%s6 + $0x588] sm:$0xff]
  %v1400 = vld [vmem:[%s6 + $0x590] sm:$0xff]
  %v1401 = vld [vmem:[%s6 + $0x598] sm:$0xff]
  %v1402 = vld [vmem:[%s6 + $0x5a0] sm:$0xff]
  %v1403 = vld [vmem:[%s6 + $0x5a8] sm:$0xff]
  %v1404 = vld [vmem:[%s6 + $0x5b0] sm:$0xff]
  %v1405 = vld [vmem:[%s6 + $0x5b8] sm:$0xff]
  %v1406 = vld [vmem:[%s6 + $0x5c0] sm:$0xff]
  %v1407 = vld [vmem:[%s6 + $0x5c8] sm:$0xff]
  %v1408 = vld [vmem:[%s6 + $0x5d0] sm:$0xff]
  %v1409 = vld [vmem:[%s6 + $0x5d8] sm:$0xff]
  %v1410 = vld [vmem:[%s6 + $0x5e0] sm:$0xff]
  %v1411 = vld [vmem:[%s6 + $0x5e8] sm:$0xff]
  %v1412 = vld [vmem:[%s6 + $0x5f0] sm:$0xff]
  %v1413 = vld [vmem:[%s6 + $0x5f8] sm:$0xff]
  %vm1414 = vcmask 392192
  %v1416 = vsel %vm1414, %v1206, 0
  %1418 = vmatpush.msra.mxu0 0.0
  %1419 = vmatpush.msra.mxu0 0.0
  %1420 = vmatpush.msra.mxu0 0.0
  %1421 = vmatpush.msra.mxu0 0.0
  %1422 = vmatpush.msra.mxu0 0.0
  %1423 = vmatpush.msra.mxu0 0.0
  %1424 = vmatpush.msra.mxu0 0.0
  %1425 = vmatpush.msra.mxu0 0.0
  %1426 = vmatpush.msra.mxu0 0.0
  %1427 = vmatpush.msra.mxu0 0.0
  %1428 = vmatpush.msra.mxu0 %v1232
  %1429 = vmatpush.msra.mxu0 %v1230
  %1430 = vmatpush.msra.mxu0 %v1228
  %1431 = vmatpush.msra.mxu0 %v1226
  %1432 = vmatpush.msra.mxu0 %v1224
  %1433 = vmatpush.msra.mxu0 %v1222
  %1434 = vmatmul.f32.gmra.mxu0 %v1416
  %v1435 = vpop.f32.mrf.mxu0
  %v1436 = vadd.f32 0.0, %v1435
  %1437 = vdwg.mxu0
  %1438 = vmatpush.msra.mxu0 0.0
  %1439 = vmatpush.msra.mxu0 0.0
  %1440 = vmatpush.msra.mxu0 0.0
  %1441 = vmatpush.msra.mxu0 0.0
  %1442 = vmatpush.msra.mxu0 0.0
  %1443 = vmatpush.msra.mxu0 0.0
  %1444 = vmatpush.msra.mxu0 0.0
  %1445 = vmatpush.msra.mxu0 0.0
  %1446 = vmatpush.msra.mxu0 0.0
  %1447 = vmatpush.msra.mxu0 0.0
  %1448 = vmatpush.msra.mxu0 %v1233
  %1449 = vmatpush.msra.mxu0 %v1231
  %1450 = vmatpush.msra.mxu0 %v1229
  %1451 = vmatpush.msra.mxu0 %v1227
  %1452 = vmatpush.msra.mxu0 %v1225
  %1453 = vmatpush.msra.mxu0 %v1223
  %1454 = vmatmul.f32.gmra.mxu0 %v1416
  %v1455 = vpop.f32.mrf.mxu0
  %v1456 = vadd.f32 0.0, %v1455
  %1457 = vdwg.mxu0
  %v1459 = vsel %vm1414, %v1207, 0
  %1461 = vmatpush.msra.mxu0 0.0
  %1462 = vmatpush.msra.mxu0 0.0
  %1463 = vmatpush.msra.mxu0 0.0
  %1464 = vmatpush.msra.mxu0 0.0
  %1465 = vmatpush.msra.mxu0 0.0
  %1466 = vmatpush.msra.mxu0 0.0
  %1467 = vmatpush.msra.mxu0 0.0
  %1468 = vmatpush.msra.mxu0 0.0
  %1469 = vmatpush.msra.mxu0 0.0
  %1470 = vmatpush.msra.mxu0 0.0
  %1471 = vmatpush.msra.mxu0 %v1244
  %1472 = vmatpush.msra.mxu0 %v1242
  %1473 = vmatpush.msra.mxu0 %v1240
  %1474 = vmatpush.msra.mxu0 %v1238
  %1475 = vmatpush.msra.mxu0 %v1236
  %1476 = vmatpush.msra.mxu0 %v1234
  %1477 = vmatmul.f32.gmra.mxu0 %v1459
  %v1478 = vpop.f32.mrf.mxu0
  %v1479 = vadd.f32 0.0, %v1478
  %1480 = vdwg.mxu0
  %1481 = vmatpush.msra.mxu0 0.0
  %1482 = vmatpush.msra.mxu0 0.0
  %1483 = vmatpush.msra.mxu0 0.0
  %1484 = vmatpush.msra.mxu0 0.0
  %1485 = vmatpush.msra.mxu0 0.0
  %1486 = vmatpush.msra.mxu0 0.0
  %1487 = vmatpush.msra.mxu0 0.0
  %1488 = vmatpush.msra.mxu0 0.0
  %1489 = vmatpush.msra.mxu0 0.0
  %1490 = vmatpush.msra.mxu0 0.0
  %1491 = vmatpush.msra.mxu0 %v1245
  %1492 = vmatpush.msra.mxu0 %v1243
  %1493 = vmatpush.msra.mxu0 %v1241
  %1494 = vmatpush.msra.mxu0 %v1239
  %1495 = vmatpush.msra.mxu0 %v1237
  %1496 = vmatpush.msra.mxu0 %v1235
  %1497 = vmatmul.f32.gmra.mxu0 %v1459
  %v1498 = vpop.f32.mrf.mxu0
  %v1499 = vadd.f32 0.0, %v1498
  %1500 = vdwg.mxu0
  %v1502 = vsel %vm1414, %v1208, 0
  %1504 = vmatpush.msra.mxu0 0.0
  %1505 = vmatpush.msra.mxu0 0.0
  %1506 = vmatpush.msra.mxu0 0.0
  %1507 = vmatpush.msra.mxu0 0.0
  %1508 = vmatpush.msra.mxu0 0.0
  %1509 = vmatpush.msra.mxu0 0.0
  %1510 = vmatpush.msra.mxu0 0.0
  %1511 = vmatpush.msra.mxu0 0.0
  %1512 = vmatpush.msra.mxu0 0.0
  %1513 = vmatpush.msra.mxu0 0.0
  %1514 = vmatpush.msra.mxu0 %v1256
  %1515 = vmatpush.msra.mxu0 %v1254
  %1516 = vmatpush.msra.mxu0 %v1252
  %1517 = vmatpush.msra.mxu0 %v1250
  %1518 = vmatpush.msra.mxu0 %v1248
  %1519 = vmatpush.msra.mxu0 %v1246
  %1520 = vmatmul.f32.gmra.mxu0 %v1502
  %v1521 = vpop.f32.mrf.mxu0
  %v1522 = vadd.f32 0.0, %v1521
  %1523 = vdwg.mxu0
  %1524 = vmatpush.msra.mxu0 0.0
  %1525 = vmatpush.msra.mxu0 0.0
  %1526 = vmatpush.msra.mxu0 0.0
  %1527 = vmatpush.msra.mxu0 0.0
  %1528 = vmatpush.msra.mxu0 0.0
  %1529 = vmatpush.msra.mxu0 0.0
  %1530 = vmatpush.msra.mxu0 0.0
  %1531 = vmatpush.msra.mxu0 0.0
  %1532 = vmatpush.msra.mxu0 0.0
  %1533 = vmatpush.msra.mxu0 0.0
  %1534 = vmatpush.msra.mxu0 %v1257
  %1535 = vmatpush.msra.mxu0 %v1255
  %1536 = vmatpush.msra.mxu0 %v1253
  %1537 = vmatpush.msra.mxu0 %v1251
  %1538 = vmatpush.msra.mxu0 %v1249
  %1539 = vmatpush.msra.mxu0 %v1247
  %1540 = vmatmul.f32.gmra.mxu0 %v1502
  %v1541 = vpop.f32.mrf.mxu0
  %v1542 = vadd.f32 0.0, %v1541
  %1543 = vdwg.mxu0
  %v1545 = vsel %vm1414, %v1209, 0
  %1547 = vmatpush.msra.mxu0 0.0
  %1548 = vmatpush.msra.mxu0 0.0
  %1549 = vmatpush.msra.mxu0 0.0
  %1550 = vmatpush.msra.mxu0 0.0
  %1551 = vmatpush.msra.mxu0 0.0
  %1552 = vmatpush.msra.mxu0 0.0
  %1553 = vmatpush.msra.mxu0 0.0
  %1554 = vmatpush.msra.mxu0 0.0
  %1555 = vmatpush.msra.mxu0 0.0
  %1556 = vmatpush.msra.mxu0 0.0
  %1557 = vmatpush.msra.mxu0 %v1268
  %1558 = vmatpush.msra.mxu0 %v1266
  %1559 = vmatpush.msra.mxu0 %v1264
  %1560 = vmatpush.msra.mxu0 %v1262
  %1561 = vmatpush.msra.mxu0 %v1260
  %1562 = vmatpush.msra.mxu0 %v1258
  %1563 = vmatmul.f32.gmra.mxu0 %v1545
  %v1564 = vpop.f32.mrf.mxu0
  %v1565 = vadd.f32 0.0, %v1564
  %1566 = vdwg.mxu0
  %1567 = vmatpush.msra.mxu0 0.0
  %1568 = vmatpush.msra.mxu0 0.0
  %1569 = vmatpush.msra.mxu0 0.0
  %1570 = vmatpush.msra.mxu0 0.0
  %1571 = vmatpush.msra.mxu0 0.0
  %1572 = vmatpush.msra.mxu0 0.0
  %1573 = vmatpush.msra.mxu0 0.0
  %1574 = vmatpush.msra.mxu0 0.0
  %1575 = vmatpush.msra.mxu0 0.0
  %1576 = vmatpush.msra.mxu0 0.0
  %1577 = vmatpush.msra.mxu0 %v1269
  %1578 = vmatpush.msra.mxu0 %v1267
  %1579 = vmatpush.msra.mxu0 %v1265
  %1580 = vmatpush.msra.mxu0 %v1263
  %1581 = vmatpush.msra.mxu0 %v1261
  %1582 = vmatpush.msra.mxu0 %v1259
  %1583 = vmatmul.f32.gmra.mxu0 %v1545
  %v1584 = vpop.f32.mrf.mxu0
  %v1585 = vadd.f32 0.0, %v1584
  %1586 = vdwg.mxu0
  %v1588 = vsel %vm1414, %v1210, 0
  %1590 = vmatpush.msra.mxu0 0.0
  %1591 = vmatpush.msra.mxu0 0.0
  %1592 = vmatpush.msra.mxu0 0.0
  %1593 = vmatpush.msra.mxu0 0.0
  %1594 = vmatpush.msra.mxu0 0.0
  %1595 = vmatpush.msra.mxu0 0.0
  %1596 = vmatpush.msra.mxu0 0.0
  %1597 = vmatpush.msra.mxu0 0.0
  %1598 = vmatpush.msra.mxu0 0.0
  %1599 = vmatpush.msra.mxu0 0.0
  %1600 = vmatpush.msra.mxu0 %v1280
  %1601 = vmatpush.msra.mxu0 %v1278
  %1602 = vmatpush.msra.mxu0 %v1276
  %1603 = vmatpush.msra.mxu0 %v1274
  %1604 = vmatpush.msra.mxu0 %v1272
  %1605 = vmatpush.msra.mxu0 %v1270
  %1606 = vmatmul.f32.gmra.mxu0 %v1588
  %v1607 = vpop.f32.mrf.mxu0
  %v1608 = vadd.f32 0.0, %v1607
  %1609 = vdwg.mxu0
  %1610 = vmatpush.msra.mxu0 0.0
  %1611 = vmatpush.msra.mxu0 0.0
  %1612 = vmatpush.msra.mxu0 0.0
  %1613 = vmatpush.msra.mxu0 0.0
  %1614 = vmatpush.msra.mxu0 0.0
  %1615 = vmatpush.msra.mxu0 0.0
  %1616 = vmatpush.msra.mxu0 0.0
  %1617 = vmatpush.msra.mxu0 0.0
  %1618 = vmatpush.msra.mxu0 0.0
  %1619 = vmatpush.msra.mxu0 0.0
  %1620 = vmatpush.msra.mxu0 %v1281
  %1621 = vmatpush.msra.mxu0 %v1279
  %1622 = vmatpush.msra.mxu0 %v1277
  %1623 = vmatpush.msra.mxu0 %v1275
  %1624 = vmatpush.msra.mxu0 %v1273
  %1625 = vmatpush.msra.mxu0 %v1271
  %1626 = vmatmul.f32.gmra.mxu0 %v1588
  %v1627 = vpop.f32.mrf.mxu0
  %v1628 = vadd.f32 0.0, %v1627
  %1629 = vdwg.mxu0
  %v1631 = vsel %vm1414, %v1211, 0
  %1633 = vmatpush.msra.mxu0 0.0
  %1634 = vmatpush.msra.mxu0 0.0
  %1635 = vmatpush.msra.mxu0 0.0
  %1636 = vmatpush.msra.mxu0 0.0
  %1637 = vmatpush.msra.mxu0 0.0
  %1638 = vmatpush.msra.mxu0 0.0
  %1639 = vmatpush.msra.mxu0 0.0
  %1640 = vmatpush.msra.mxu0 0.0
  %1641 = vmatpush.msra.mxu0 0.0
  %1642 = vmatpush.msra.mxu0 0.0
  %1643 = vmatpush.msra.mxu0 %v1292
  %1644 = vmatpush.msra.mxu0 %v1290
  %1645 = vmatpush.msra.mxu0 %v1288
  %1646 = vmatpush.msra.mxu0 %v1286
  %1647 = vmatpush.msra.mxu0 %v1284
  %1648 = vmatpush.msra.mxu0 %v1282
  %1649 = vmatmul.f32.gmra.mxu0 %v1631
  %v1650 = vpop.f32.mrf.mxu0
  %v1651 = vadd.f32 0.0, %v1650
  %1652 = vdwg.mxu0
  %1653 = vmatpush.msra.mxu0 0.0
  %1654 = vmatpush.msra.mxu0 0.0
  %1655 = vmatpush.msra.mxu0 0.0
  %1656 = vmatpush.msra.mxu0 0.0
  %1657 = vmatpush.msra.mxu0 0.0
  %1658 = vmatpush.msra.mxu0 0.0
  %1659 = vmatpush.msra.mxu0 0.0
  %1660 = vmatpush.msra.mxu0 0.0
  %1661 = vmatpush.msra.mxu0 0.0
  %1662 = vmatpush.msra.mxu0 0.0
  %1663 = vmatpush.msra.mxu0 %v1293
  %1664 = vmatpush.msra.mxu0 %v1291
  %1665 = vmatpush.msra.mxu0 %v1289
  %1666 = vmatpush.msra.mxu0 %v1287
  %1667 = vmatpush.msra.mxu0 %v1285
  %1668 = vmatpush.msra.mxu0 %v1283
  %1669 = vmatmul.f32.gmra.mxu0 %v1631
  %v1670 = vpop.f32.mrf.mxu0
  %v1671 = vadd.f32 0.0, %v1670
  %1672 = vdwg.mxu0
  %v1674 = vsel %vm1414, %v1212, 0
  %1676 = vmatpush.msra.mxu0 0.0
  %1677 = vmatpush.msra.mxu0 0.0
  %1678 = vmatpush.msra.mxu0 0.0
  %1679 = vmatpush.msra.mxu0 0.0
  %1680 = vmatpush.msra.mxu0 0.0
  %1681 = vmatpush.msra.mxu0 0.0
  %1682 = vmatpush.msra.mxu0 0.0
  %1683 = vmatpush.msra.mxu0 0.0
  %1684 = vmatpush.msra.mxu0 0.0
  %1685 = vmatpush.msra.mxu0 0.0
  %1686 = vmatpush.msra.mxu0 %v1304
  %1687 = vmatpush.msra.mxu0 %v1302
  %1688 = vmatpush.msra.mxu0 %v1300
  %1689 = vmatpush.msra.mxu0 %v1298
  %1690 = vmatpush.msra.mxu0 %v1296
  %1691 = vmatpush.msra.mxu0 %v1294
  %1692 = vmatmul.f32.gmra.mxu0 %v1674
  %v1693 = vpop.f32.mrf.mxu0
  %v1694 = vadd.f32 0.0, %v1693
  %1695 = vdwg.mxu0
  %1696 = vmatpush.msra.mxu0 0.0
  %1697 = vmatpush.msra.mxu0 0.0
  %1698 = vmatpush.msra.mxu0 0.0
  %1699 = vmatpush.msra.mxu0 0.0
  %1700 = vmatpush.msra.mxu0 0.0
  %1701 = vmatpush.msra.mxu0 0.0
  %1702 = vmatpush.msra.mxu0 0.0
  %1703 = vmatpush.msra.mxu0 0.0
  %1704 = vmatpush.msra.mxu0 0.0
  %1705 = vmatpush.msra.mxu0 0.0
  %1706 = vmatpush.msra.mxu0 %v1305
  %1707 = vmatpush.msra.mxu0 %v1303
  %1708 = vmatpush.msra.mxu0 %v1301
  %1709 = vmatpush.msra.mxu0 %v1299
  %1710 = vmatpush.msra.mxu0 %v1297
  %1711 = vmatpush.msra.mxu0 %v1295
  %1712 = vmatmul.f32.gmra.mxu0 %v1674
  %v1713 = vpop.f32.mrf.mxu0
  %v1714 = vadd.f32 0.0, %v1713
  %1715 = vdwg.mxu0
  %v1717 = vsel %vm1414, %v1213, 0
  %1719 = vmatpush.msra.mxu0 0.0
  %1720 = vmatpush.msra.mxu0 0.0
  %1721 = vmatpush.msra.mxu0 0.0
  %1722 = vmatpush.msra.mxu0 0.0
  %1723 = vmatpush.msra.mxu0 0.0
  %1724 = vmatpush.msra.mxu0 0.0
  %1725 = vmatpush.msra.mxu0 0.0
  %1726 = vmatpush.msra.mxu0 0.0
  %1727 = vmatpush.msra.mxu0 0.0
  %1728 = vmatpush.msra.mxu0 0.0
  %1729 = vmatpush.msra.mxu0 %v1316
  %1730 = vmatpush.msra.mxu0 %v1314
  %1731 = vmatpush.msra.mxu0 %v1312
  %1732 = vmatpush.msra.mxu0 %v1310
  %1733 = vmatpush.msra.mxu0 %v1308
  %1734 = vmatpush.msra.mxu0 %v1306
  %1735 = vmatmul.f32.gmra.mxu0 %v1717
  %v1736 = vpop.f32.mrf.mxu0
  %v1737 = vadd.f32 0.0, %v1736
  %1738 = vdwg.mxu0
  %1739 = vmatpush.msra.mxu0 0.0
  %1740 = vmatpush.msra.mxu0 0.0
  %1741 = vmatpush.msra.mxu0 0.0
  %1742 = vmatpush.msra.mxu0 0.0
  %1743 = vmatpush.msra.mxu0 0.0
  %1744 = vmatpush.msra.mxu0 0.0
  %1745 = vmatpush.msra.mxu0 0.0
  %1746 = vmatpush.msra.mxu0 0.0
  %1747 = vmatpush.msra.mxu0 0.0
  %1748 = vmatpush.msra.mxu0 0.0
  %1749 = vmatpush.msra.mxu0 %v1317
  %1750 = vmatpush.msra.mxu0 %v1315
  %1751 = vmatpush.msra.mxu0 %v1313
  %1752 = vmatpush.msra.mxu0 %v1311
  %1753 = vmatpush.msra.mxu0 %v1309
  %1754 = vmatpush.msra.mxu0 %v1307
  %1755 = vmatmul.f32.gmra.mxu0 %v1717
  %v1756 = vpop.f32.mrf.mxu0
  %v1757 = vadd.f32 0.0, %v1756
  %1758 = vdwg.mxu0
  %v1760 = vsel %vm1414, %v1214, 0
  %1762 = vmatpush.msra.mxu0 0.0
  %1763 = vmatpush.msra.mxu0 0.0
  %1764 = vmatpush.msra.mxu0 0.0
  %1765 = vmatpush.msra.mxu0 0.0
  %1766 = vmatpush.msra.mxu0 0.0
  %1767 = vmatpush.msra.mxu0 0.0
  %1768 = vmatpush.msra.mxu0 0.0
  %1769 = vmatpush.msra.mxu0 0.0
  %1770 = vmatpush.msra.mxu0 0.0
  %1771 = vmatpush.msra.mxu0 0.0
  %1772 = vmatpush.msra.mxu0 %v1328
  %1773 = vmatpush.msra.mxu0 %v1326
  %1774 = vmatpush.msra.mxu0 %v1324
  %1775 = vmatpush.msra.mxu0 %v1322
  %1776 = vmatpush.msra.mxu0 %v1320
  %1777 = vmatpush.msra.mxu0 %v1318
  %1778 = vmatmul.f32.gmra.mxu0 %v1760
  %v1779 = vpop.f32.mrf.mxu0
  %v1780 = vadd.f32 0.0, %v1779
  %1781 = vdwg.mxu0
  %1782 = vmatpush.msra.mxu0 0.0
  %1783 = vmatpush.msra.mxu0 0.0
  %1784 = vmatpush.msra.mxu0 0.0
  %1785 = vmatpush.msra.mxu0 0.0
  %1786 = vmatpush.msra.mxu0 0.0
  %1787 = vmatpush.msra.mxu0 0.0
  %1788 = vmatpush.msra.mxu0 0.0
  %1789 = vmatpush.msra.mxu0 0.0
  %1790 = vmatpush.msra.mxu0 0.0
  %1791 = vmatpush.msra.mxu0 0.0
  %1792 = vmatpush.msra.mxu0 %v1329
  %1793 = vmatpush.msra.mxu0 %v1327
  %1794 = vmatpush.msra.mxu0 %v1325
  %1795 = vmatpush.msra.mxu0 %v1323
  %1796 = vmatpush.msra.mxu0 %v1321
  %1797 = vmatpush.msra.mxu0 %v1319
  %1798 = vmatmul.f32.gmra.mxu0 %v1760
  %v1799 = vpop.f32.mrf.mxu0
  %v1800 = vadd.f32 0.0, %v1799
  %1801 = vdwg.mxu0
  %v1803 = vsel %vm1414, %v1215, 0
  %1805 = vmatpush.msra.mxu0 0.0
  %1806 = vmatpush.msra.mxu0 0.0
  %1807 = vmatpush.msra.mxu0 0.0
  %1808 = vmatpush.msra.mxu0 0.0
  %1809 = vmatpush.msra.mxu0 0.0
  %1810 = vmatpush.msra.mxu0 0.0
  %1811 = vmatpush.msra.mxu0 0.0
  %1812 = vmatpush.msra.mxu0 0.0
  %1813 = vmatpush.msra.mxu0 0.0
  %1814 = vmatpush.msra.mxu0 0.0
  %1815 = vmatpush.msra.mxu0 %v1340
  %1816 = vmatpush.msra.mxu0 %v1338
  %1817 = vmatpush.msra.mxu0 %v1336
  %1818 = vmatpush.msra.mxu0 %v1334
  %1819 = vmatpush.msra.mxu0 %v1332
  %1820 = vmatpush.msra.mxu0 %v1330
  %1821 = vmatmul.f32.gmra.mxu0 %v1803
  %v1822 = vpop.f32.mrf.mxu0
  %v1823 = vadd.f32 0.0, %v1822
  %1824 = vdwg.mxu0
  %1825 = vmatpush.msra.mxu0 0.0
  %1826 = vmatpush.msra.mxu0 0.0
  %1827 = vmatpush.msra.mxu0 0.0
  %1828 = vmatpush.msra.mxu0 0.0
  %1829 = vmatpush.msra.mxu0 0.0
  %1830 = vmatpush.msra.mxu0 0.0
  %1831 = vmatpush.msra.mxu0 0.0
  %1832 = vmatpush.msra.mxu0 0.0
  %1833 = vmatpush.msra.mxu0 0.0
  %1834 = vmatpush.msra.mxu0 0.0
  %1835 = vmatpush.msra.mxu0 %v1341
  %1836 = vmatpush.msra.mxu0 %v1339
  %1837 = vmatpush.msra.mxu0 %v1337
  %1838 = vmatpush.msra.mxu0 %v1335
  %1839 = vmatpush.msra.mxu0 %v1333
  %1840 = vmatpush.msra.mxu0 %v1331
  %1841 = vmatmul.f32.gmra.mxu0 %v1803
  %v1842 = vpop.f32.mrf.mxu0
  %v1843 = vadd.f32 0.0, %v1842
  %1844 = vdwg.mxu0
  %v1846 = vsel %vm1414, %v1216, 0
  %1848 = vmatpush.msra.mxu0 0.0
  %1849 = vmatpush.msra.mxu0 0.0
  %1850 = vmatpush.msra.mxu0 0.0
  %1851 = vmatpush.msra.mxu0 0.0
  %1852 = vmatpush.msra.mxu0 0.0
  %1853 = vmatpush.msra.mxu0 0.0
  %1854 = vmatpush.msra.mxu0 0.0
  %1855 = vmatpush.msra.mxu0 0.0
  %1856 = vmatpush.msra.mxu0 0.0
  %1857 = vmatpush.msra.mxu0 0.0
  %1858 = vmatpush.msra.mxu0 %v1352
  %1859 = vmatpush.msra.mxu0 %v1350
  %1860 = vmatpush.msra.mxu0 %v1348
  %1861 = vmatpush.msra.mxu0 %v1346
  %1862 = vmatpush.msra.mxu0 %v1344
  %1863 = vmatpush.msra.mxu0 %v1342
  %1864 = vmatmul.f32.gmra.mxu0 %v1846
  %v1865 = vpop.f32.mrf.mxu0
  %v1866 = vadd.f32 0.0, %v1865
  %1867 = vdwg.mxu0
  %1868 = vmatpush.msra.mxu0 0.0
  %1869 = vmatpush.msra.mxu0 0.0
  %1870 = vmatpush.msra.mxu0 0.0
  %1871 = vmatpush.msra.mxu0 0.0
  %1872 = vmatpush.msra.mxu0 0.0
  %1873 = vmatpush.msra.mxu0 0.0
  %1874 = vmatpush.msra.mxu0 0.0
  %1875 = vmatpush.msra.mxu0 0.0
  %1876 = vmatpush.msra.mxu0 0.0
  %1877 = vmatpush.msra.mxu0 0.0
  %1878 = vmatpush.msra.mxu0 %v1353
  %1879 = vmatpush.msra.mxu0 %v1351
  %1880 = vmatpush.msra.mxu0 %v1349
  %1881 = vmatpush.msra.mxu0 %v1347
  %1882 = vmatpush.msra.mxu0 %v1345
  %1883 = vmatpush.msra.mxu0 %v1343
  %1884 = vmatmul.f32.gmra.mxu0 %v1846
  %v1885 = vpop.f32.mrf.mxu0
  %v1886 = vadd.f32 0.0, %v1885
  %1887 = vdwg.mxu0
  %v1889 = vsel %vm1414, %v1217, 0
  %1891 = vmatpush.msra.mxu0 0.0
  %1892 = vmatpush.msra.mxu0 0.0
  %1893 = vmatpush.msra.mxu0 0.0
  %1894 = vmatpush.msra.mxu0 0.0
  %1895 = vmatpush.msra.mxu0 0.0
  %1896 = vmatpush.msra.mxu0 0.0
  %1897 = vmatpush.msra.mxu0 0.0
  %1898 = vmatpush.msra.mxu0 0.0
  %1899 = vmatpush.msra.mxu0 0.0
  %1900 = vmatpush.msra.mxu0 0.0
  %1901 = vmatpush.msra.mxu0 %v1364
  %1902 = vmatpush.msra.mxu0 %v1362
  %1903 = vmatpush.msra.mxu0 %v1360
  %1904 = vmatpush.msra.mxu0 %v1358
  %1905 = vmatpush.msra.mxu0 %v1356
  %1906 = vmatpush.msra.mxu0 %v1354
  %1907 = vmatmul.f32.gmra.mxu0 %v1889
  %v1908 = vpop.f32.mrf.mxu0
  %v1909 = vadd.f32 0.0, %v1908
  %1910 = vdwg.mxu0
  %1911 = vmatpush.msra.mxu0 0.0
  %1912 = vmatpush.msra.mxu0 0.0
  %1913 = vmatpush.msra.mxu0 0.0
  %1914 = vmatpush.msra.mxu0 0.0
  %1915 = vmatpush.msra.mxu0 0.0
  %1916 = vmatpush.msra.mxu0 0.0
  %1917 = vmatpush.msra.mxu0 0.0
  %1918 = vmatpush.msra.mxu0 0.0
  %1919 = vmatpush.msra.mxu0 0.0
  %1920 = vmatpush.msra.mxu0 0.0
  %1921 = vmatpush.msra.mxu0 %v1365
  %1922 = vmatpush.msra.mxu0 %v1363
  %1923 = vmatpush.msra.mxu0 %v1361
  %1924 = vmatpush.msra.mxu0 %v1359
  %1925 = vmatpush.msra.mxu0 %v1357
  %1926 = vmatpush.msra.mxu0 %v1355
  %1927 = vmatmul.f32.gmra.mxu0 %v1889
  %v1928 = vpop.f32.mrf.mxu0
  %v1929 = vadd.f32 0.0, %v1928
  %1930 = vdwg.mxu0
  %v1932 = vsel %vm1414, %v1218, 0
  %1934 = vmatpush.msra.mxu0 0.0
  %1935 = vmatpush.msra.mxu0 0.0
  %1936 = vmatpush.msra.mxu0 0.0
  %1937 = vmatpush.msra.mxu0 0.0
  %1938 = vmatpush.msra.mxu0 0.0
  %1939 = vmatpush.msra.mxu0 0.0
  %1940 = vmatpush.msra.mxu0 0.0
  %1941 = vmatpush.msra.mxu0 0.0
  %1942 = vmatpush.msra.mxu0 0.0
  %1943 = vmatpush.msra.mxu0 0.0
  %1944 = vmatpush.msra.mxu0 %v1376
  %1945 = vmatpush.msra.mxu0 %v1374
  %1946 = vmatpush.msra.mxu0 %v1372
  %1947 = vmatpush.msra.mxu0 %v1370
  %1948 = vmatpush.msra.mxu0 %v1368
  %1949 = vmatpush.msra.mxu0 %v1366
  %1950 = vmatmul.f32.gmra.mxu0 %v1932
  %v1951 = vpop.f32.mrf.mxu0
  %v1952 = vadd.f32 0.0, %v1951
  %1953 = vdwg.mxu0
  %1954 = vmatpush.msra.mxu0 0.0
  %1955 = vmatpush.msra.mxu0 0.0
  %1956 = vmatpush.msra.mxu0 0.0
  %1957 = vmatpush.msra.mxu0 0.0
  %1958 = vmatpush.msra.mxu0 0.0
  %1959 = vmatpush.msra.mxu0 0.0
  %1960 = vmatpush.msra.mxu0 0.0
  %1961 = vmatpush.msra.mxu0 0.0
  %1962 = vmatpush.msra.mxu0 0.0
  %1963 = vmatpush.msra.mxu0 0.0
  %1964 = vmatpush.msra.mxu0 %v1377
  %1965 = vmatpush.msra.mxu0 %v1375
  %1966 = vmatpush.msra.mxu0 %v1373
  %1967 = vmatpush.msra.mxu0 %v1371
  %1968 = vmatpush.msra.mxu0 %v1369
  %1969 = vmatpush.msra.mxu0 %v1367
  %1970 = vmatmul.f32.gmra.mxu0 %v1932
  %v1971 = vpop.f32.mrf.mxu0
  %v1972 = vadd.f32 0.0, %v1971
  %1973 = vdwg.mxu0
  %v1975 = vsel %vm1414, %v1219, 0
  %1977 = vmatpush.msra.mxu0 0.0
  %1978 = vmatpush.msra.mxu0 0.0
  %1979 = vmatpush.msra.mxu0 0.0
  %1980 = vmatpush.msra.mxu0 0.0
  %1981 = vmatpush.msra.mxu0 0.0
  %1982 = vmatpush.msra.mxu0 0.0
  %1983 = vmatpush.msra.mxu0 0.0
  %1984 = vmatpush.msra.mxu0 0.0
  %1985 = vmatpush.msra.mxu0 0.0
  %1986 = vmatpush.msra.mxu0 0.0
  %1987 = vmatpush.msra.mxu0 %v1388
  %1988 = vmatpush.msra.mxu0 %v1386
  %1989 = vmatpush.msra.mxu0 %v1384
  %1990 = vmatpush.msra.mxu0 %v1382
  %1991 = vmatpush.msra.mxu0 %v1380
  %1992 = vmatpush.msra.mxu0 %v1378
  %1993 = vmatmul.f32.gmra.mxu0 %v1975
  %v1994 = vpop.f32.mrf.mxu0
  %v1995 = vadd.f32 0.0, %v1994
  %1996 = vdwg.mxu0
  %1997 = vmatpush.msra.mxu0 0.0
  %1998 = vmatpush.msra.mxu0 0.0
  %1999 = vmatpush.msra.mxu0 0.0
  %2000 = vmatpush.msra.mxu0 0.0
  %2001 = vmatpush.msra.mxu0 0.0
  %2002 = vmatpush.msra.mxu0 0.0
  %2003 = vmatpush.msra.mxu0 0.0
  %2004 = vmatpush.msra.mxu0 0.0
  %2005 = vmatpush.msra.mxu0 0.0
  %2006 = vmatpush.msra.mxu0 0.0
  %2007 = vmatpush.msra.mxu0 %v1389
  %2008 = vmatpush.msra.mxu0 %v1387
  %2009 = vmatpush.msra.mxu0 %v1385
  %2010 = vmatpush.msra.mxu0 %v1383
  %2011 = vmatpush.msra.mxu0 %v1381
  %2012 = vmatpush.msra.mxu0 %v1379
  %2013 = vmatmul.f32.gmra.mxu0 %v1975
  %v2014 = vpop.f32.mrf.mxu0
  %v2015 = vadd.f32 0.0, %v2014
  %2016 = vdwg.mxu0
  %v2018 = vsel %vm1414, %v1220, 0
  %2020 = vmatpush.msra.mxu0 0.0
  %2021 = vmatpush.msra.mxu0 0.0
  %2022 = vmatpush.msra.mxu0 0.0
  %2023 = vmatpush.msra.mxu0 0.0
  %2024 = vmatpush.msra.mxu0 0.0
  %2025 = vmatpush.msra.mxu0 0.0
  %2026 = vmatpush.msra.mxu0 0.0
  %2027 = vmatpush.msra.mxu0 0.0
  %2028 = vmatpush.msra.mxu0 0.0
  %2029 = vmatpush.msra.mxu0 0.0
  %2030 = vmatpush.msra.mxu0 %v1400
  %2031 = vmatpush.msra.mxu0 %v1398
  %2032 = vmatpush.msra.mxu0 %v1396
  %2033 = vmatpush.msra.mxu0 %v1394
  %2034 = vmatpush.msra.mxu0 %v1392
  %2035 = vmatpush.msra.mxu0 %v1390
  %2036 = vmatmul.f32.gmra.mxu0 %v2018
  %v2037 = vpop.f32.mrf.mxu0
  %v2038 = vadd.f32 0.0, %v2037
  %2039 = vdwg.mxu0
  %2040 = vmatpush.msra.mxu0 0.0
  %2041 = vmatpush.msra.mxu0 0.0
  %2042 = vmatpush.msra.mxu0 0.0
  %2043 = vmatpush.msra.mxu0 0.0
  %2044 = vmatpush.msra.mxu0 0.0
  %2045 = vmatpush.msra.mxu0 0.0
  %2046 = vmatpush.msra.mxu0 0.0
  %2047 = vmatpush.msra.mxu0 0.0
  %2048 = vmatpush.msra.mxu0 0.0
  %2049 = vmatpush.msra.mxu0 0.0
  %2050 = vmatpush.msra.mxu0 %v1401
  %2051 = vmatpush.msra.mxu0 %v1399
  %2052 = vmatpush.msra.mxu0 %v1397
  %2053 = vmatpush.msra.mxu0 %v1395
  %2054 = vmatpush.msra.mxu0 %v1393
  %2055 = vmatpush.msra.mxu0 %v1391
  %2056 = vmatmul.f32.gmra.mxu0 %v2018
  %v2057 = vpop.f32.mrf.mxu0
  %v2058 = vadd.f32 0.0, %v2057
  %2059 = vdwg.mxu0
  %v2061 = vsel %vm1414, %v1221, 0
  %2063 = vmatpush.msra.mxu0 0.0
  %2064 = vmatpush.msra.mxu0 0.0
  %2065 = vmatpush.msra.mxu0 0.0
  %2066 = vmatpush.msra.mxu0 0.0
  %2067 = vmatpush.msra.mxu0 0.0
  %2068 = vmatpush.msra.mxu0 0.0
  %2069 = vmatpush.msra.mxu0 0.0
  %2070 = vmatpush.msra.mxu0 0.0
  %2071 = vmatpush.msra.mxu0 0.0
  %2072 = vmatpush.msra.mxu0 0.0
  %2073 = vmatpush.msra.mxu0 %v1412
  %2074 = vmatpush.msra.mxu0 %v1410
  %2075 = vmatpush.msra.mxu0 %v1408
  %2076 = vmatpush.msra.mxu0 %v1406
  %2077 = vmatpush.msra.mxu0 %v1404
  %2078 = vmatpush.msra.mxu0 %v1402
  %2079 = vmatmul.f32.gmra.mxu0 %v2061
  %v2080 = vpop.f32.mrf.mxu0
  %v2081 = vadd.f32 0.0, %v2080
  %2082 = vdwg.mxu0
  %2083 = vmatpush.msra.mxu0 0.0
  %2084 = vmatpush.msra.mxu0 0.0
  %2085 = vmatpush.msra.mxu0 0.0
  %2086 = vmatpush.msra.mxu0 0.0
  %2087 = vmatpush.msra.mxu0 0.0
  %2088 = vmatpush.msra.mxu0 0.0
  %2089 = vmatpush.msra.mxu0 0.0
  %2090 = vmatpush.msra.mxu0 0.0
  %2091 = vmatpush.msra.mxu0 0.0
  %2092 = vmatpush.msra.mxu0 0.0
  %2093 = vmatpush.msra.mxu0 %v1413
  %2094 = vmatpush.msra.mxu0 %v1411
  %2095 = vmatpush.msra.mxu0 %v1409
  %2096 = vmatpush.msra.mxu0 %v1407
  %2097 = vmatpush.msra.mxu0 %v1405
  %2098 = vmatpush.msra.mxu0 %v1403
  %2099 = vmatmul.f32.gmra.mxu0 %v2061
  %v2100 = vpop.f32.mrf.mxu0
  %v2101 = vadd.f32 0.0, %v2100
  %2102 = vdwg.mxu0
  %vm2103 = vcmask 1041408
  %v2104 = vsel %vm2103, %v1436, 0.0
  %v2105 = vsel %vm2103, %v1479, 0.0
  %v2106 = vadd.f32 %v2104, %v2105
  %v2107 = vsel %vm2103, %v1522, 0.0
  %v2108 = vadd.f32 %v2106, %v2107
  %v2109 = vsel %vm2103, %v1565, 0.0
  %v2110 = vadd.f32 %v2108, %v2109
  %v2111 = vsel %vm2103, %v1608, 0.0
  %v2112 = vadd.f32 %v2110, %v2111
  %v2113 = vsel %vm2103, %v1651, 0.0
  %v2114 = vadd.f32 %v2112, %v2113
  %v2115 = vsel %vm2103, %v1694, 0.0
  %v2116 = vadd.f32 %v2114, %v2115
  %v2117 = vsel %vm2103, %v1737, 0.0
  %v2118 = vadd.f32 %v2116, %v2117
  %v2119 = vsel %vm2103, %v1780, 0.0
  %v2120 = vadd.f32 %v2118, %v2119
  %v2121 = vsel %vm2103, %v1823, 0.0
  %v2122 = vadd.f32 %v2120, %v2121
  %v2123 = vsel %vm2103, %v1866, 0.0
  %v2124 = vadd.f32 %v2122, %v2123
  %v2125 = vsel %vm2103, %v1909, 0.0
  %v2126 = vadd.f32 %v2124, %v2125
  %v2127 = vsel %vm2103, %v1952, 0.0
  %v2128 = vadd.f32 %v2126, %v2127
  %v2129 = vsel %vm2103, %v1995, 0.0
  %v2130 = vadd.f32 %v2128, %v2129
  %v2131 = vsel %vm2103, %v2038, 0.0
  %v2132 = vadd.f32 %v2130, %v2131
  %v2133 = vsel %vm2103, %v2081, 0.0
  %v2134 = vadd.f32 %v2132, %v2133
  %v2135 = vsel %vm2103, %v1456, 0.0
  %v2136 = vsel %vm2103, %v1499, 0.0
  %v2137 = vadd.f32 %v2135, %v2136
  %v2138 = vsel %vm2103, %v1542, 0.0
  %v2139 = vadd.f32 %v2137, %v2138
  %v2140 = vsel %vm2103, %v1585, 0.0
  %v2141 = vadd.f32 %v2139, %v2140
  %v2142 = vsel %vm2103, %v1628, 0.0
  %v2143 = vadd.f32 %v2141, %v2142
  %v2144 = vsel %vm2103, %v1671, 0.0
  %v2145 = vadd.f32 %v2143, %v2144
  %v2146 = vsel %vm2103, %v1714, 0.0
  %v2147 = vadd.f32 %v2145, %v2146
  %v2148 = vsel %vm2103, %v1757, 0.0
  %v2149 = vadd.f32 %v2147, %v2148
  %v2150 = vsel %vm2103, %v1800, 0.0
  %v2151 = vadd.f32 %v2149, %v2150
  %v2152 = vsel %vm2103, %v1843, 0.0
  %v2153 = vadd.f32 %v2151, %v2152
  %v2154 = vsel %vm2103, %v1886, 0.0
  %v2155 = vadd.f32 %v2153, %v2154
  %v2156 = vsel %vm2103, %v1929, 0.0
  %v2157 = vadd.f32 %v2155, %v2156
  %v2158 = vsel %vm2103, %v1972, 0.0
  %v2159 = vadd.f32 %v2157, %v2158
  %v2160 = vsel %vm2103, %v2015, 0.0
  %v2161 = vadd.f32 %v2159, %v2160
  %v2162 = vsel %vm2103, %v2058, 0.0
  %v2163 = vadd.f32 %v2161, %v2162
  %v2164 = vsel %vm2103, %v2101, 0.0
  %v2165 = vadd.f32 %v2163, %v2164
  %v2167 = vrot.slane %v2165, 1
  %v2169 = vsub.f32 %v2134, %v2167
  %2170 = vst [vmem:[%s7] sm:$0x1] %v2169
  %v2172 = vrot.slane %v2134, 1
  %v2174 = vadd.f32 %v2165, %v2172
  %2175 = vst [vmem:[%s8] sm:$0x1] %v2174
  // Predicated region
  $region33: #{_lambda_.5} parent=0 // pred_check
    _
  $region34: #{_lambda_.5} parent=0 // pred_check_branch
    %2177 = sbr.rel (0) target = $region36
  $region35: #{_lambda_.5} parent=0 // pred_region
    _
  $region36: #{_lambda_.5} parent=0 // pred_fallthru
    _
  // Predicated region
  $region37: #{_lambda_.5} parent=0 // pred_check
    _
  $region38: #{_lambda_.5} parent=0 // pred_check_branch
    %2179 = sbr.rel (0) target = $region40
  $region39: #{_lambda_.5} parent=0 // pred_region
    _
  $region40: #{_lambda_.5} parent=0 // pred_fallthru
    _
  // Predicated region
  $region41: #{_lambda_.5} parent=0 // pred_check
    _
  $region42: #{_lambda_.5} parent=0 // pred_check_branch
    %2181 = sbr.rel (0) target = $region44
  $region43: #{_lambda_.5} parent=0 // pred_region
    _
  $region44: #{_lambda_.5} parent=0 // pred_fallthru
    _
  // Predicated region
  $region45: #{_lambda_.5} parent=0 // pred_check
    _
  $region46: #{_lambda_.5} parent=0 // pred_check_branch
    %2183 = sbr.rel (0) target = $region48
  $region47: #{_lambda_.5} parent=0 // pred_region
    _
  $region48: #{_lambda_.5} parent=0 // pred_fallthru
    _

// kernel: _lambda_.7
$region0: #{_lambda_.7}
  #allocation0 [shape = 'u32[]', space=smem, size = 0x4, offset = 0x4, fixed_abs, tag = 'smem constant byte address 0x4 - core index']
  #allocation1 [shape = 'u32[72,128]{1,0:T(1,128)}', space=vmem, size = 0x9000, scoped, tag = 'internal scratch']
  #allocation2 [shape = 's32[1]{0}', space=sflag, size = 0x4, scoped, tag = 'scoped memory for _lambda_.7']
  #allocation3 [shape = 's32[1]{0:T(128)S(6)}', space=smem, size = 0x200, scoped, tag = 'prefetched SMEM operand 0']
  %s0 = inlined_call_operand.<no memory space> [shape: s32[1], index: 0, kind: input, shape index: {}]
  %s1 = inlined_call_operand.vmem [shape: f32[16,96], index: 1, kind: input, shape index: {}]
  %s2 = inlined_call_operand.vmem [shape: f32[16,2], index: 2, kind: input, shape index: {}]
  %s3 = inlined_call_operand.vmem [shape: f32[32,32], index: 3, kind: input, shape index: {}]
  %s4 = inlined_call_operand.vmem [shape: f32[32,2], index: 4, kind: input, shape index: {}]
  %s5 = inlined_call_operand.vmem [shape: f32[32,32], index: 5, kind: input, shape index: {}]
  %s6 = inlined_call_operand.vmem [shape: f32[16,48,256], index: 6, kind: input, shape index: {}]
  %s7 = inlined_call_operand.vmem [shape: f32[1,128], index: 7, kind: output, shape index: {0}]
  %s8 = inlined_call_operand.vmem [shape: f32[1,128], index: 8, kind: output, shape index: {1}]
  %9 = xla_tuple %s7, %s8
  %s10 = sld [smem:[#allocation0]]
  $region49: #{_lambda_.7} parent=0
    _
  %s12 = ssub.s32 1, %s10
  %s13 = scalar_select 0, %s12, %s10
  %14 = sst [smem:[#allocation3]] %s0
  // Predicated region
  $region2: #{_lambda_.7} parent=0 // pred_check
    _
  $region3: #{_lambda_.7} parent=0 // pred_check_branch
    %16 = sbr.rel (0) target = $region5
  $region4: #{_lambda_.7} parent=0 // pred_region
    _
  $region5: #{_lambda_.7} parent=0 // pred_fallthru
    _
  // Predicated region
  $region6: #{_lambda_.7} parent=0 // pred_check
    _
  $region7: #{_lambda_.7} parent=0 // pred_check_branch
    %18 = sbr.rel (0) target = $region9
  $region8: #{_lambda_.7} parent=0 // pred_region
    _
  $region9: #{_lambda_.7} parent=0 // pred_fallthru
    _
  // Predicated region
  $region10: #{_lambda_.7} parent=0 // pred_check
    _
  $region11: #{_lambda_.7} parent=0 // pred_check_branch
    %20 = sbr.rel (0) target = $region13
  $region12: #{_lambda_.7} parent=0 // pred_region
    _
  $region13: #{_lambda_.7} parent=0 // pred_fallthru
    _
  // Predicated region
  $region14: #{_lambda_.7} parent=0 // pred_check
    _
  $region15: #{_lambda_.7} parent=0 // pred_check_branch
    %22 = sbr.rel (0) target = $region17
  $region16: #{_lambda_.7} parent=0 // pred_region
    _
  $region17: #{_lambda_.7} parent=0 // pred_fallthru
    _
  // Predicated region
  $region18: #{_lambda_.7} parent=0 // pred_check
    _
  $region19: #{_lambda_.7} parent=0 // pred_check_branch
    %24 = sbr.rel (0) target = $region21
  $region20: #{_lambda_.7} parent=0 // pred_region
    _
  $region21: #{_lambda_.7} parent=0 // pred_fallthru
    _
  // Predicated region
  $region22: #{_lambda_.7} parent=0 // pred_check
    _
  $region23: #{_lambda_.7} parent=0 // pred_check_branch
    %26 = sbr.rel (0) target = $region25
  $region24: #{_lambda_.7} parent=0 // pred_region
    _
  $region25: #{_lambda_.7} parent=0 // pred_fallthru
    _
  %v27 = vld [vmem:[%s3] sm:$0xff]
  %v28 = vld [vmem:[%s3 + $0x8] sm:$0xff]
  %v29 = vld [vmem:[%s3 + $0x10] sm:$0xff]
  %v30 = vld [vmem:[%s3 + $0x18] sm:$0xff]
  %v31 = vld [vmem:[%s4] sm:$0xff]
  %v32 = vld [vmem:[%s4 + $0x8] sm:$0xff]
  %v33 = vld [vmem:[%s4 + $0x10] sm:$0xff]
  %v34 = vld [vmem:[%s4 + $0x18] sm:$0xff]
  %s35 = sld [smem:[#allocation3]]
  // While loop
  $region26: #{_lambda_.7} parent=0 // loop_pre_header
    _
  $region27: #{_lambda_.7} parent=0 // loop_header
    %s37 = sphi 0, %s39
    %p38 = scmp.ge.s32.totalorder %s37, %s35
    %v42 = vphi %v31, %v976
    %v43 = vphi %v32, %v977
    %v44 = vphi %v33, %v978
    %v45 = vphi %v34, %v979
  $region28: #{_lambda_.7} parent=0 // loop_header_branch
    %41 = sbr.rel (%p38) target = $region32
  $region29: #{_lambda_.7} parent=0 // loop_body
    %vm46 = vcmask 261120
    %v48 = vsel %vm46, %v27, 0
    %v51 = vsel %vm46, %v28, 0
    %v54 = vsel %vm46, %v29, 0
    %v57 = vsel %vm46, %v30, 0
    %59 = vmatpush.msra.mxu0 0.0
    %60 = vmatpush.msra.mxu0 0.0
    %61 = vmatpush.msra.mxu0 0.0
    %62 = vmatpush.msra.mxu0 0.0
    %63 = vmatpush.msra.mxu0 0.0
    %64 = vmatpush.msra.mxu0 0.0
    %65 = vmatpush.msra.mxu0 0.0
    %66 = vmatpush.msra.mxu0 0.0
    %67 = vmatpush.msra.mxu0 0.0
    %68 = vmatpush.msra.mxu0 0.0
    %69 = vmatpush.msra.mxu0 0.0
    %70 = vmatpush.msra.mxu0 0.0
    %71 = vmatpush.msra.mxu0 %v45
    %72 = vmatpush.msra.mxu0 %v44
    %73 = vmatpush.msra.mxu0 %v43
    %74 = vmatpush.msra.mxu0 %v42
    %75 = vmatmul.f32.gmra.mxu0 %v48
    %v76 = vpop.f32.mrf.mxu0
    %v77 = vadd.f32 0.0, %v76
    %78 = vmatmul.f32.gmra.mxu0 %v51
    %v79 = vpop.f32.mrf.mxu0
    %v80 = vadd.f32 0.0, %v79
    %81 = vmatmul.f32.gmra.mxu0 %v54
    %v82 = vpop.f32.mrf.mxu0
    %v83 = vadd.f32 0.0, %v82
    %84 = vmatmul.f32.gmra.mxu0 %v57
    %v85 = vpop.f32.mrf.mxu0
    %v86 = vadd.f32 0.0, %v85
    %87 = vdwg.mxu0
    %v88 = vsub.f32 0.0, %v77
    %v89 = vsub.f32 0.0, %v80
    %v90 = vsub.f32 0.0, %v83
    %v91 = vsub.f32 0.0, %v86
    %96 = vrot.lane.b32.xlu0 %v88, 127
    %v97 = vpop.permute.xlu0 %96
    %98 = vrot.lane.b32.xlu0 %v89, 127
    %v99 = vpop.permute.xlu0 %98
    %100 = vrot.lane.b32.xlu0 %v90, 127
    %v101 = vpop.permute.xlu0 %100
    %102 = vrot.lane.b32.xlu0 %v91, 127
    %v103 = vpop.permute.xlu0 %102
    %112 = vrot.lane.b32.xlu0 %v77, 1
    %v113 = vpop.permute.xlu0 %112
    %114 = vrot.lane.b32.xlu0 %v80, 1
    %v115 = vpop.permute.xlu0 %114
    %116 = vrot.lane.b32.xlu0 %v83, 1
    %v117 = vpop.permute.xlu0 %116
    %118 = vrot.lane.b32.xlu0 %v86, 1
    %v119 = vpop.permute.xlu0 %118
    %vm124 = vcmask 7168
    %v125 = vsel %vm124, %v97, %v113
    %v126 = vsel %vm124, %v99, %v115
    %v127 = vsel %vm124, %v101, %v117
    %v128 = vsel %vm124, %v103, %v119
    %v129 = vadd.f32 %v42, %v125
    %v130 = vadd.f32 %v43, %v126
    %v131 = vadd.f32 %v44, %v127
    %v132 = vadd.f32 %v45, %v128
    %133 = vmatpush.msra.mxu0 0.0
    %134 = vmatpush.msra.mxu0 0.0
    %135 = vmatpush.msra.mxu0 0.0
    %136 = vmatpush.msra.mxu0 0.0
    %137 = vmatpush.msra.mxu0 0.0
    %138 = vmatpush.msra.mxu0 0.0
    %139 = vmatpush.msra.mxu0 0.0
    %140 = vmatpush.msra.mxu0 0.0
    %141 = vmatpush.msra.mxu0 0.0
    %142 = vmatpush.msra.mxu0 0.0
    %143 = vmatpush.msra.mxu0 0.0
    %144 = vmatpush.msra.mxu0 0.0
    %145 = vmatpush.msra.mxu0 %v128
    %146 = vmatpush.msra.mxu0 %v127
    %147 = vmatpush.msra.mxu0 %v126
    %148 = vmatpush.msra.mxu0 %v125
    %149 = vmatmul.f32.gmra.mxu0 %v48
    %v150 = vpop.f32.mrf.mxu0
    %v151 = vadd.f32 0.0, %v150
    %152 = vmatmul.f32.gmra.mxu0 %v51
    %v153 = vpop.f32.mrf.mxu0
    %v154 = vadd.f32 0.0, %v153
    %155 = vmatmul.f32.gmra.mxu0 %v54
    %v156 = vpop.f32.mrf.mxu0
    %v157 = vadd.f32 0.0, %v156
    %158 = vmatmul.f32.gmra.mxu0 %v57
    %v159 = vpop.f32.mrf.mxu0
    %v160 = vadd.f32 0.0, %v159
    %161 = vdwg.mxu0
    %v162 = vsub.f32 0.0, %v151
    %v163 = vsub.f32 0.0, %v154
    %v164 = vsub.f32 0.0, %v157
    %v165 = vsub.f32 0.0, %v160
    %170 = vrot.lane.b32.xlu0 %v162, 127
    %v171 = vpop.permute.xlu0 %170
    %172 = vrot.lane.b32.xlu0 %v163, 127
    %v173 = vpop.permute.xlu0 %172
    %174 = vrot.lane.b32.xlu0 %v164, 127
    %v175 = vpop.permute.xlu0 %174
    %176 = vrot.lane.b32.xlu0 %v165, 127
    %v177 = vpop.permute.xlu0 %176
    %186 = vrot.lane.b32.xlu0 %v151, 1
    %v187 = vpop.permute.xlu0 %186
    %188 = vrot.lane.b32.xlu0 %v154, 1
    %v189 = vpop.permute.xlu0 %188
    %190 = vrot.lane.b32.xlu0 %v157, 1
    %v191 = vpop.permute.xlu0 %190
    %192 = vrot.lane.b32.xlu0 %v160, 1
    %v193 = vpop.permute.xlu0 %192
    %v198 = vsel %vm124, %v171, %v187
    %v199 = vsel %vm124, %v173, %v189
    %v200 = vsel %vm124, %v175, %v191
    %v201 = vsel %vm124, %v177, %v193
    %v202 = vmul.f32 %v198, 0.5
    %v203 = vmul.f32 %v199, 0.5
    %v204 = vmul.f32 %v200, 0.5
    %v205 = vmul.f32 %v201, 0.5
    %v206 = vadd.f32 %v129, %v202
    %v207 = vadd.f32 %v130, %v203
    %v208 = vadd.f32 %v131, %v204
    %v209 = vadd.f32 %v132, %v205
    %210 = vmatpush.msra.mxu0 0.0
    %211 = vmatpush.msra.mxu0 0.0
    %212 = vmatpush.msra.mxu0 0.0
    %213 = vmatpush.msra.mxu0 0.0
    %214 = vmatpush.msra.mxu0 0.0
    %215 = vmatpush.msra.mxu0 0.0
    %216 = vmatpush.msra.mxu0 0.0
    %217 = vmatpush.msra.mxu0 0.0
    %218 = vmatpush.msra.mxu0 0.0
    %219 = vmatpush.msra.mxu0 0.0
    %220 = vmatpush.msra.mxu0 0.0
    %221 = vmatpush.msra.mxu0 0.0
    %222 = vmatpush.msra.mxu0 %v205
    %223 = vmatpush.msra.mxu0 %v204
    %224 = vmatpush.msra.mxu0 %v203
    %225 = vmatpush.msra.mxu0 %v202
    %226 = vmatmul.f32.gmra.mxu0 %v48
    %v227 = vpop.f32.mrf.mxu0
    %v228 = vadd.f32 0.0, %v227
    %229 = vmatmul.f32.gmra.mxu0 %v51
    %v230 = vpop.f32.mrf.mxu0
    %v231 = vadd.f32 0.0, %v230
    %232 = vmatmul.f32.gmra.mxu0 %v54
    %v233 = vpop.f32.mrf.mxu0
    %v234 = vadd.f32 0.0, %v233
    %235 = vmatmul.f32.gmra.mxu0 %v57
    %v236 = vpop.f32.mrf.mxu0
    %v237 = vadd.f32 0.0, %v236
    %238 = vdwg.mxu0
    %v239 = vsub.f32 0.0, %v228
    %v240 = vsub.f32 0.0, %v231
    %v241 = vsub.f32 0.0, %v234
    %v242 = vsub.f32 0.0, %v237
    %247 = vrot.lane.b32.xlu0 %v239, 127
    %v248 = vpop.permute.xlu0 %247
    %249 = vrot.lane.b32.xlu0 %v240, 127
    %v250 = vpop.permute.xlu0 %249
    %251 = vrot.lane.b32.xlu0 %v241, 127
    %v252 = vpop.permute.xlu0 %251
    %253 = vrot.lane.b32.xlu0 %v242, 127
    %v254 = vpop.permute.xlu0 %253
    %263 = vrot.lane.b32.xlu0 %v228, 1
    %v264 = vpop.permute.xlu0 %263
    %265 = vrot.lane.b32.xlu0 %v231, 1
    %v266 = vpop.permute.xlu0 %265
    %267 = vrot.lane.b32.xlu0 %v234, 1
    %v268 = vpop.permute.xlu0 %267
    %269 = vrot.lane.b32.xlu0 %v237, 1
    %v270 = vpop.permute.xlu0 %269
    %v275 = vsel %vm124, %v248, %v264
    %v276 = vsel %vm124, %v250, %v266
    %v277 = vsel %vm124, %v252, %v268
    %v278 = vsel %vm124, %v254, %v270
    %v279 = vmul.f32 %v275, 0.33333334
    %v280 = vmul.f32 %v276, 0.33333334
    %v281 = vmul.f32 %v277, 0.33333334
    %v282 = vmul.f32 %v278, 0.33333334
    %v283 = vadd.f32 %v206, %v279
    %v284 = vadd.f32 %v207, %v280
    %v285 = vadd.f32 %v208, %v281
    %v286 = vadd.f32 %v209, %v282
    %287 = vmatpush.msra.mxu0 0.0
    %288 = vmatpush.msra.mxu0 0.0
    %289 = vmatpush.msra.mxu0 0.0
    %290 = vmatpush.msra.mxu0 0.0
    %291 = vmatpush.msra.mxu0 0.0
    %292 = vmatpush.msra.mxu0 0.0
    %293 = vmatpush.msra.mxu0 0.0
    %294 = vmatpush.msra.mxu0 0.0
    %295 = vmatpush.msra.mxu0 0.0
    %296 = vmatpush.msra.mxu0 0.0
    %297 = vmatpush.msra.mxu0 0.0
    %298 = vmatpush.msra.mxu0 0.0
    %299 = vmatpush.msra.mxu0 %v282
    %300 = vmatpush.msra.mxu0 %v281
    %301 = vmatpush.msra.mxu0 %v280
    %302 = vmatpush.msra.mxu0 %v279
    %303 = vmatmul.f32.gmra.mxu0 %v48
    %v304 = vpop.f32.mrf.mxu0
    %v305 = vadd.f32 0.0, %v304
    %306 = vmatmul.f32.gmra.mxu0 %v51
    %v307 = vpop.f32.mrf.mxu0
    %v308 = vadd.f32 0.0, %v307
    %309 = vmatmul.f32.gmra.mxu0 %v54
    %v310 = vpop.f32.mrf.mxu0
    %v311 = vadd.f32 0.0, %v310
    %312 = vmatmul.f32.gmra.mxu0 %v57
    %v313 = vpop.f32.mrf.mxu0
    %v314 = vadd.f32 0.0, %v313
    %315 = vdwg.mxu0
    %v316 = vsub.f32 0.0, %v305
    %v317 = vsub.f32 0.0, %v308
    %v318 = vsub.f32 0.0, %v311
    %v319 = vsub.f32 0.0, %v314
    %324 = vrot.lane.b32.xlu0 %v316, 127
    %v325 = vpop.permute.xlu0 %324
    %326 = vrot.lane.b32.xlu0 %v317, 127
    %v327 = vpop.permute.xlu0 %326
    %328 = vrot.lane.b32.xlu0 %v318, 127
    %v329 = vpop.permute.xlu0 %328
    %330 = vrot.lane.b32.xlu0 %v319, 127
    %v331 = vpop.permute.xlu0 %330
    %340 = vrot.lane.b32.xlu0 %v305, 1
    %v341 = vpop.permute.xlu0 %340
    %342 = vrot.lane.b32.xlu0 %v308, 1
    %v343 = vpop.permute.xlu0 %342
    %344 = vrot.lane.b32.xlu0 %v311, 1
    %v345 = vpop.permute.xlu0 %344
    %346 = vrot.lane.b32.xlu0 %v314, 1
    %v347 = vpop.permute.xlu0 %346
    %v352 = vsel %vm124, %v325, %v341
    %v353 = vsel %vm124, %v327, %v343
    %v354 = vsel %vm124, %v329, %v345
    %v355 = vsel %vm124, %v331, %v347
    %v356 = vmul.f32 %v352, 0.25
    %v357 = vmul.f32 %v353, 0.25
    %v358 = vmul.f32 %v354, 0.25
    %v359 = vmul.f32 %v355, 0.25
    %v360 = vadd.f32 %v283, %v356
    %v361 = vadd.f32 %v284, %v357
    %v362 = vadd.f32 %v285, %v358
    %v363 = vadd.f32 %v286, %v359
    %364 = vmatpush.msra.mxu0 0.0
    %365 = vmatpush.msra.mxu0 0.0
    %366 = vmatpush.msra.mxu0 0.0
    %367 = vmatpush.msra.mxu0 0.0
    %368 = vmatpush.msra.mxu0 0.0
    %369 = vmatpush.msra.mxu0 0.0
    %370 = vmatpush.msra.mxu0 0.0
    %371 = vmatpush.msra.mxu0 0.0
    %372 = vmatpush.msra.mxu0 0.0
    %373 = vmatpush.msra.mxu0 0.0
    %374 = vmatpush.msra.mxu0 0.0
    %375 = vmatpush.msra.mxu0 0.0
    %376 = vmatpush.msra.mxu0 %v359
    %377 = vmatpush.msra.mxu0 %v358
    %378 = vmatpush.msra.mxu0 %v357
    %379 = vmatpush.msra.mxu0 %v356
    %380 = vmatmul.f32.gmra.mxu0 %v48
    %v381 = vpop.f32.mrf.mxu0
    %v382 = vadd.f32 0.0, %v381
    %383 = vmatmul.f32.gmra.mxu0 %v51
    %v384 = vpop.f32.mrf.mxu0
    %v385 = vadd.f32 0.0, %v384
    %386 = vmatmul.f32.gmra.mxu0 %v54
    %v387 = vpop.f32.mrf.mxu0
    %v388 = vadd.f32 0.0, %v387
    %389 = vmatmul.f32.gmra.mxu0 %v57
    %v390 = vpop.f32.mrf.mxu0
    %v391 = vadd.f32 0.0, %v390
    %392 = vdwg.mxu0
    %v393 = vsub.f32 0.0, %v382
    %v394 = vsub.f32 0.0, %v385
    %v395 = vsub.f32 0.0, %v388
    %v396 = vsub.f32 0.0, %v391
    %401 = vrot.lane.b32.xlu0 %v393, 127
    %v402 = vpop.permute.xlu0 %401
    %403 = vrot.lane.b32.xlu0 %v394, 127
    %v404 = vpop.permute.xlu0 %403
    %405 = vrot.lane.b32.xlu0 %v395, 127
    %v406 = vpop.permute.xlu0 %405
    %407 = vrot.lane.b32.xlu0 %v396, 127
    %v408 = vpop.permute.xlu0 %407
    %417 = vrot.lane.b32.xlu0 %v382, 1
    %v418 = vpop.permute.xlu0 %417
    %419 = vrot.lane.b32.xlu0 %v385, 1
    %v420 = vpop.permute.xlu0 %419
    %421 = vrot.lane.b32.xlu0 %v388, 1
    %v422 = vpop.permute.xlu0 %421
    %423 = vrot.lane.b32.xlu0 %v391, 1
    %v424 = vpop.permute.xlu0 %423
    %v429 = vsel %vm124, %v402, %v418
    %v430 = vsel %vm124, %v404, %v420
    %v431 = vsel %vm124, %v406, %v422
    %v432 = vsel %vm124, %v408, %v424
    %v433 = vmul.f32 %v429, 0.2
    %v434 = vmul.f32 %v430, 0.2
    %v435 = vmul.f32 %v431, 0.2
    %v436 = vmul.f32 %v432, 0.2
    %v437 = vadd.f32 %v360, %v433
    %v438 = vadd.f32 %v361, %v434
    %v439 = vadd.f32 %v362, %v435
    %v440 = vadd.f32 %v363, %v436
    %441 = vmatpush.msra.mxu0 0.0
    %442 = vmatpush.msra.mxu0 0.0
    %443 = vmatpush.msra.mxu0 0.0
    %444 = vmatpush.msra.mxu0 0.0
    %445 = vmatpush.msra.mxu0 0.0
    %446 = vmatpush.msra.mxu0 0.0
    %447 = vmatpush.msra.mxu0 0.0
    %448 = vmatpush.msra.mxu0 0.0
    %449 = vmatpush.msra.mxu0 0.0
    %450 = vmatpush.msra.mxu0 0.0
    %451 = vmatpush.msra.mxu0 0.0
    %452 = vmatpush.msra.mxu0 0.0
    %453 = vmatpush.msra.mxu0 %v436
    %454 = vmatpush.msra.mxu0 %v435
    %455 = vmatpush.msra.mxu0 %v434
    %456 = vmatpush.msra.mxu0 %v433
    %457 = vmatmul.f32.gmra.mxu0 %v48
    %v458 = vpop.f32.mrf.mxu0
    %v459 = vadd.f32 0.0, %v458
    %460 = vmatmul.f32.gmra.mxu0 %v51
    %v461 = vpop.f32.mrf.mxu0
    %v462 = vadd.f32 0.0, %v461
    %463 = vmatmul.f32.gmra.mxu0 %v54
    %v464 = vpop.f32.mrf.mxu0
    %v465 = vadd.f32 0.0, %v464
    %466 = vmatmul.f32.gmra.mxu0 %v57
    %v467 = vpop.f32.mrf.mxu0
    %v468 = vadd.f32 0.0, %v467
    %469 = vdwg.mxu0
    %v470 = vsub.f32 0.0, %v459
    %v471 = vsub.f32 0.0, %v462
    %v472 = vsub.f32 0.0, %v465
    %v473 = vsub.f32 0.0, %v468
    %478 = vrot.lane.b32.xlu0 %v470, 127
    %v479 = vpop.permute.xlu0 %478
    %480 = vrot.lane.b32.xlu0 %v471, 127
    %v481 = vpop.permute.xlu0 %480
    %482 = vrot.lane.b32.xlu0 %v472, 127
    %v483 = vpop.permute.xlu0 %482
    %484 = vrot.lane.b32.xlu0 %v473, 127
    %v485 = vpop.permute.xlu0 %484
    %494 = vrot.lane.b32.xlu0 %v459, 1
    %v495 = vpop.permute.xlu0 %494
    %496 = vrot.lane.b32.xlu0 %v462, 1
    %v497 = vpop.permute.xlu0 %496
    %498 = vrot.lane.b32.xlu0 %v465, 1
    %v499 = vpop.permute.xlu0 %498
    %500 = vrot.lane.b32.xlu0 %v468, 1
    %v501 = vpop.permute.xlu0 %500
    %v506 = vsel %vm124, %v479, %v495
    %v507 = vsel %vm124, %v481, %v497
    %v508 = vsel %vm124, %v483, %v499
    %v509 = vsel %vm124, %v485, %v501
    %v510 = vmul.f32 %v506, 0.16666667
    %v511 = vmul.f32 %v507, 0.16666667
    %v512 = vmul.f32 %v508, 0.16666667
    %v513 = vmul.f32 %v509, 0.16666667
    %v514 = vadd.f32 %v437, %v510
    %v515 = vadd.f32 %v438, %v511
    %v516 = vadd.f32 %v439, %v512
    %v517 = vadd.f32 %v440, %v513
    %518 = vmatpush.msra.mxu0 0.0
    %519 = vmatpush.msra.mxu0 0.0
    %520 = vmatpush.msra.mxu0 0.0
    %521 = vmatpush.msra.mxu0 0.0
    %522 = vmatpush.msra.mxu0 0.0
    %523 = vmatpush.msra.mxu0 0.0
    %524 = vmatpush.msra.mxu0 0.0
    %525 = vmatpush.msra.mxu0 0.0
    %526 = vmatpush.msra.mxu0 0.0
    %527 = vmatpush.msra.mxu0 0.0
    %528 = vmatpush.msra.mxu0 0.0
    %529 = vmatpush.msra.mxu0 0.0
    %530 = vmatpush.msra.mxu0 %v513
    %531 = vmatpush.msra.mxu0 %v512
    %532 = vmatpush.msra.mxu0 %v511
    %533 = vmatpush.msra.mxu0 %v510
    %534 = vmatmul.f32.gmra.mxu0 %v48
    %v535 = vpop.f32.mrf.mxu0
    %v536 = vadd.f32 0.0, %v535
    %537 = vmatmul.f32.gmra.mxu0 %v51
    %v538 = vpop.f32.mrf.mxu0
    %v539 = vadd.f32 0.0, %v538
    %540 = vmatmul.f32.gmra.mxu0 %v54
    %v541 = vpop.f32.mrf.mxu0
    %v542 = vadd.f32 0.0, %v541
    %543 = vmatmul.f32.gmra.mxu0 %v57
    %v544 = vpop.f32.mrf.mxu0
    %v545 = vadd.f32 0.0, %v544
    %546 = vdwg.mxu0
    %v547 = vsub.f32 0.0, %v536
    %v548 = vsub.f32 0.0, %v539
    %v549 = vsub.f32 0.0, %v542
    %v550 = vsub.f32 0.0, %v545
    %555 = vrot.lane.b32.xlu0 %v547, 127
    %v556 = vpop.permute.xlu0 %555
    %557 = vrot.lane.b32.xlu0 %v548, 127
    %v558 = vpop.permute.xlu0 %557
    %559 = vrot.lane.b32.xlu0 %v549, 127
    %v560 = vpop.permute.xlu0 %559
    %561 = vrot.lane.b32.xlu0 %v550, 127
    %v562 = vpop.permute.xlu0 %561
    %571 = vrot.lane.b32.xlu0 %v536, 1
    %v572 = vpop.permute.xlu0 %571
    %573 = vrot.lane.b32.xlu0 %v539, 1
    %v574 = vpop.permute.xlu0 %573
    %575 = vrot.lane.b32.xlu0 %v542, 1
    %v576 = vpop.permute.xlu0 %575
    %577 = vrot.lane.b32.xlu0 %v545, 1
    %v578 = vpop.permute.xlu0 %577
    %v583 = vsel %vm124, %v556, %v572
    %v584 = vsel %vm124, %v558, %v574
    %v585 = vsel %vm124, %v560, %v576
    %v586 = vsel %vm124, %v562, %v578
    %v587 = vmul.f32 %v583, 0.14285715
    %v588 = vmul.f32 %v584, 0.14285715
    %v589 = vmul.f32 %v585, 0.14285715
    %v590 = vmul.f32 %v586, 0.14285715
    %v591 = vadd.f32 %v514, %v587
    %v592 = vadd.f32 %v515, %v588
    %v593 = vadd.f32 %v516, %v589
    %v594 = vadd.f32 %v517, %v590
    %595 = vmatpush.msra.mxu0 0.0
    %596 = vmatpush.msra.mxu0 0.0
    %597 = vmatpush.msra.mxu0 0.0
    %598 = vmatpush.msra.mxu0 0.0
    %599 = vmatpush.msra.mxu0 0.0
    %600 = vmatpush.msra.mxu0 0.0
    %601 = vmatpush.msra.mxu0 0.0
    %602 = vmatpush.msra.mxu0 0.0
    %603 = vmatpush.msra.mxu0 0.0
    %604 = vmatpush.msra.mxu0 0.0
    %605 = vmatpush.msra.mxu0 0.0
    %606 = vmatpush.msra.mxu0 0.0
    %607 = vmatpush.msra.mxu0 %v590
    %608 = vmatpush.msra.mxu0 %v589
    %609 = vmatpush.msra.mxu0 %v588
    %610 = vmatpush.msra.mxu0 %v587
    %611 = vmatmul.f32.gmra.mxu0 %v48
    %v612 = vpop.f32.mrf.mxu0
    %v613 = vadd.f32 0.0, %v612
    %614 = vmatmul.f32.gmra.mxu0 %v51
    %v615 = vpop.f32.mrf.mxu0
    %v616 = vadd.f32 0.0, %v615
    %617 = vmatmul.f32.gmra.mxu0 %v54
    %v618 = vpop.f32.mrf.mxu0
    %v619 = vadd.f32 0.0, %v618
    %620 = vmatmul.f32.gmra.mxu0 %v57
    %v621 = vpop.f32.mrf.mxu0
    %v622 = vadd.f32 0.0, %v621
    %623 = vdwg.mxu0
    %v624 = vsub.f32 0.0, %v613
    %v625 = vsub.f32 0.0, %v616
    %v626 = vsub.f32 0.0, %v619
    %v627 = vsub.f32 0.0, %v622
    %632 = vrot.lane.b32.xlu0 %v624, 127
    %v633 = vpop.permute.xlu0 %632
    %634 = vrot.lane.b32.xlu0 %v625, 127
    %v635 = vpop.permute.xlu0 %634
    %636 = vrot.lane.b32.xlu0 %v626, 127
    %v637 = vpop.permute.xlu0 %636
    %638 = vrot.lane.b32.xlu0 %v627, 127
    %v639 = vpop.permute.xlu0 %638
    %648 = vrot.lane.b32.xlu0 %v613, 1
    %v649 = vpop.permute.xlu0 %648
    %650 = vrot.lane.b32.xlu0 %v616, 1
    %v651 = vpop.permute.xlu0 %650
    %652 = vrot.lane.b32.xlu0 %v619, 1
    %v653 = vpop.permute.xlu0 %652
    %654 = vrot.lane.b32.xlu0 %v622, 1
    %v655 = vpop.permute.xlu0 %654
    %v660 = vsel %vm124, %v633, %v649
    %v661 = vsel %vm124, %v635, %v651
    %v662 = vsel %vm124, %v637, %v653
    %v663 = vsel %vm124, %v639, %v655
    %v664 = vmul.f32 %v660, 0.125
    %v665 = vmul.f32 %v661, 0.125
    %v666 = vmul.f32 %v662, 0.125
    %v667 = vmul.f32 %v663, 0.125
    %v668 = vadd.f32 %v591, %v664
    %v669 = vadd.f32 %v592, %v665
    %v670 = vadd.f32 %v593, %v666
    %v671 = vadd.f32 %v594, %v667
    %672 = vmatpush.msra.mxu0 0.0
    %673 = vmatpush.msra.mxu0 0.0
    %674 = vmatpush.msra.mxu0 0.0
    %675 = vmatpush.msra.mxu0 0.0
    %676 = vmatpush.msra.mxu0 0.0
    %677 = vmatpush.msra.mxu0 0.0
    %678 = vmatpush.msra.mxu0 0.0
    %679 = vmatpush.msra.mxu0 0.0
    %680 = vmatpush.msra.mxu0 0.0
    %681 = vmatpush.msra.mxu0 0.0
    %682 = vmatpush.msra.mxu0 0.0
    %683 = vmatpush.msra.mxu0 0.0
    %684 = vmatpush.msra.mxu0 %v667
    %685 = vmatpush.msra.mxu0 %v666
    %686 = vmatpush.msra.mxu0 %v665
    %687 = vmatpush.msra.mxu0 %v664
    %688 = vmatmul.f32.gmra.mxu0 %v48
    %v689 = vpop.f32.mrf.mxu0
    %v690 = vadd.f32 0.0, %v689
    %691 = vmatmul.f32.gmra.mxu0 %v51
    %v692 = vpop.f32.mrf.mxu0
    %v693 = vadd.f32 0.0, %v692
    %694 = vmatmul.f32.gmra.mxu0 %v54
    %v695 = vpop.f32.mrf.mxu0
    %v696 = vadd.f32 0.0, %v695
    %697 = vmatmul.f32.gmra.mxu0 %v57
    %v698 = vpop.f32.mrf.mxu0
    %v699 = vadd.f32 0.0, %v698
    %700 = vdwg.mxu0
    %v701 = vsub.f32 0.0, %v690
    %v702 = vsub.f32 0.0, %v693
    %v703 = vsub.f32 0.0, %v696
    %v704 = vsub.f32 0.0, %v699
    %709 = vrot.lane.b32.xlu0 %v701, 127
    %v710 = vpop.permute.xlu0 %709
    %711 = vrot.lane.b32.xlu0 %v702, 127
    %v712 = vpop.permute.xlu0 %711
    %713 = vrot.lane.b32.xlu0 %v703, 127
    %v714 = vpop.permute.xlu0 %713
    %715 = vrot.lane.b32.xlu0 %v704, 127
    %v716 = vpop.permute.xlu0 %715
    %725 = vrot.lane.b32.xlu0 %v690, 1
    %v726 = vpop.permute.xlu0 %725
    %727 = vrot.lane.b32.xlu0 %v693, 1
    %v728 = vpop.permute.xlu0 %727
    %729 = vrot.lane.b32.xlu0 %v696, 1
    %v730 = vpop.permute.xlu0 %729
    %731 = vrot.lane.b32.xlu0 %v699, 1
    %v732 = vpop.permute.xlu0 %731
    %v737 = vsel %vm124, %v710, %v726
    %v738 = vsel %vm124, %v712, %v728
    %v739 = vsel %vm124, %v714, %v730
    %v740 = vsel %vm124, %v716, %v732
    %v741 = vmul.f32 %v737, 0.11111111
    %v742 = vmul.f32 %v738, 0.11111111
    %v743 = vmul.f32 %v739, 0.11111111
    %v744 = vmul.f32 %v740, 0.11111111
    %v745 = vadd.f32 %v668, %v741
    %v746 = vadd.f32 %v669, %v742
    %v747 = vadd.f32 %v670, %v743
    %v748 = vadd.f32 %v671, %v744
    %749 = vmatpush.msra.mxu0 0.0
    %750 = vmatpush.msra.mxu0 0.0
    %751 = vmatpush.msra.mxu0 0.0
    %752 = vmatpush.msra.mxu0 0.0
    %753 = vmatpush.msra.mxu0 0.0
    %754 = vmatpush.msra.mxu0 0.0
    %755 = vmatpush.msra.mxu0 0.0
    %756 = vmatpush.msra.mxu0 0.0
    %757 = vmatpush.msra.mxu0 0.0
    %758 = vmatpush.msra.mxu0 0.0
    %759 = vmatpush.msra.mxu0 0.0
    %760 = vmatpush.msra.mxu0 0.0
    %761 = vmatpush.msra.mxu0 %v744
    %762 = vmatpush.msra.mxu0 %v743
    %763 = vmatpush.msra.mxu0 %v742
    %764 = vmatpush.msra.mxu0 %v741
    %765 = vmatmul.f32.gmra.mxu0 %v48
    %v766 = vpop.f32.mrf.mxu0
    %v767 = vadd.f32 0.0, %v766
    %768 = vmatmul.f32.gmra.mxu0 %v51
    %v769 = vpop.f32.mrf.mxu0
    %v770 = vadd.f32 0.0, %v769
    %771 = vmatmul.f32.gmra.mxu0 %v54
    %v772 = vpop.f32.mrf.mxu0
    %v773 = vadd.f32 0.0, %v772
    %774 = vmatmul.f32.gmra.mxu0 %v57
    %v775 = vpop.f32.mrf.mxu0
    %v776 = vadd.f32 0.0, %v775
    %777 = vdwg.mxu0
    %v778 = vsub.f32 0.0, %v767
    %v779 = vsub.f32 0.0, %v770
    %v780 = vsub.f32 0.0, %v773
    %v781 = vsub.f32 0.0, %v776
    %786 = vrot.lane.b32.xlu0 %v778, 127
    %v787 = vpop.permute.xlu0 %786
    %788 = vrot.lane.b32.xlu0 %v779, 127
    %v789 = vpop.permute.xlu0 %788
    %790 = vrot.lane.b32.xlu0 %v780, 127
    %v791 = vpop.permute.xlu0 %790
    %792 = vrot.lane.b32.xlu0 %v781, 127
    %v793 = vpop.permute.xlu0 %792
    %802 = vrot.lane.b32.xlu0 %v767, 1
    %v803 = vpop.permute.xlu0 %802
    %804 = vrot.lane.b32.xlu0 %v770, 1
    %v805 = vpop.permute.xlu0 %804
    %806 = vrot.lane.b32.xlu0 %v773, 1
    %v807 = vpop.permute.xlu0 %806
    %808 = vrot.lane.b32.xlu0 %v776, 1
    %v809 = vpop.permute.xlu0 %808
    %v814 = vsel %vm124, %v787, %v803
    %v815 = vsel %vm124, %v789, %v805
    %v816 = vsel %vm124, %v791, %v807
    %v817 = vsel %vm124, %v793, %v809
    %v818 = vmul.f32 %v814, 0.1
    %v819 = vmul.f32 %v815, 0.1
    %v820 = vmul.f32 %v816, 0.1
    %v821 = vmul.f32 %v817, 0.1
    %v822 = vadd.f32 %v745, %v818
    %v823 = vadd.f32 %v746, %v819
    %v824 = vadd.f32 %v747, %v820
    %v825 = vadd.f32 %v748, %v821
    %826 = vmatpush.msra.mxu0 0.0
    %827 = vmatpush.msra.mxu0 0.0
    %828 = vmatpush.msra.mxu0 0.0
    %829 = vmatpush.msra.mxu0 0.0
    %830 = vmatpush.msra.mxu0 0.0
    %831 = vmatpush.msra.mxu0 0.0
    %832 = vmatpush.msra.mxu0 0.0
    %833 = vmatpush.msra.mxu0 0.0
    %834 = vmatpush.msra.mxu0 0.0
    %835 = vmatpush.msra.mxu0 0.0
    %836 = vmatpush.msra.mxu0 0.0
    %837 = vmatpush.msra.mxu0 0.0
    %838 = vmatpush.msra.mxu0 %v821
    %839 = vmatpush.msra.mxu0 %v820
    %840 = vmatpush.msra.mxu0 %v819
    %841 = vmatpush.msra.mxu0 %v818
    %842 = vmatmul.f32.gmra.mxu0 %v48
    %v843 = vpop.f32.mrf.mxu0
    %v844 = vadd.f32 0.0, %v843
    %845 = vmatmul.f32.gmra.mxu0 %v51
    %v846 = vpop.f32.mrf.mxu0
    %v847 = vadd.f32 0.0, %v846
    %848 = vmatmul.f32.gmra.mxu0 %v54
    %v849 = vpop.f32.mrf.mxu0
    %v850 = vadd.f32 0.0, %v849
    %851 = vmatmul.f32.gmra.mxu0 %v57
    %v852 = vpop.f32.mrf.mxu0
    %v853 = vadd.f32 0.0, %v852
    %854 = vdwg.mxu0
    %v855 = vsub.f32 0.0, %v844
    %v856 = vsub.f32 0.0, %v847
    %v857 = vsub.f32 0.0, %v850
    %v858 = vsub.f32 0.0, %v853
    %863 = vrot.lane.b32.xlu0 %v855, 127
    %v864 = vpop.permute.xlu0 %863
    %865 = vrot.lane.b32.xlu0 %v856, 127
    %v866 = vpop.permute.xlu0 %865
    %867 = vrot.lane.b32.xlu0 %v857, 127
    %v868 = vpop.permute.xlu0 %867
    %869 = vrot.lane.b32.xlu0 %v858, 127
    %v870 = vpop.permute.xlu0 %869
    %879 = vrot.lane.b32.xlu0 %v844, 1
    %v880 = vpop.permute.xlu0 %879
    %881 = vrot.lane.b32.xlu0 %v847, 1
    %v882 = vpop.permute.xlu0 %881
    %883 = vrot.lane.b32.xlu0 %v850, 1
    %v884 = vpop.permute.xlu0 %883
    %885 = vrot.lane.b32.xlu0 %v853, 1
    %v886 = vpop.permute.xlu0 %885
    %v891 = vsel %vm124, %v864, %v880
    %v892 = vsel %vm124, %v866, %v882
    %v893 = vsel %vm124, %v868, %v884
    %v894 = vsel %vm124, %v870, %v886
    %v895 = vmul.f32 %v891, 0.09090909
    %v896 = vmul.f32 %v892, 0.09090909
    %v897 = vmul.f32 %v893, 0.09090909
    %v898 = vmul.f32 %v894, 0.09090909
    %v899 = vadd.f32 %v822, %v895
    %v900 = vadd.f32 %v823, %v896
    %v901 = vadd.f32 %v824, %v897
    %v902 = vadd.f32 %v825, %v898
    %903 = vmatpush.msra.mxu0 0.0
    %904 = vmatpush.msra.mxu0 0.0
    %905 = vmatpush.msra.mxu0 0.0
    %906 = vmatpush.msra.mxu0 0.0
    %907 = vmatpush.msra.mxu0 0.0
    %908 = vmatpush.msra.mxu0 0.0
    %909 = vmatpush.msra.mxu0 0.0
    %910 = vmatpush.msra.mxu0 0.0
    %911 = vmatpush.msra.mxu0 0.0
    %912 = vmatpush.msra.mxu0 0.0
    %913 = vmatpush.msra.mxu0 0.0
    %914 = vmatpush.msra.mxu0 0.0
    %915 = vmatpush.msra.mxu0 %v898
    %916 = vmatpush.msra.mxu0 %v897
    %917 = vmatpush.msra.mxu0 %v896
    %918 = vmatpush.msra.mxu0 %v895
    %919 = vmatmul.f32.gmra.mxu0 %v48
    %v920 = vpop.f32.mrf.mxu0
    %v921 = vadd.f32 0.0, %v920
    %922 = vmatmul.f32.gmra.mxu0 %v51
    %v923 = vpop.f32.mrf.mxu0
    %v924 = vadd.f32 0.0, %v923
    %925 = vmatmul.f32.gmra.mxu0 %v54
    %v926 = vpop.f32.mrf.mxu0
    %v927 = vadd.f32 0.0, %v926
    %928 = vmatmul.f32.gmra.mxu0 %v57
    %v929 = vpop.f32.mrf.mxu0
    %v930 = vadd.f32 0.0, %v929
    %931 = vdwg.mxu0
    %v932 = vsub.f32 0.0, %v921
    %v933 = vsub.f32 0.0, %v924
    %v934 = vsub.f32 0.0, %v927
    %v935 = vsub.f32 0.0, %v930
    %940 = vrot.lane.b32.xlu0 %v932, 127
    %v941 = vpop.permute.xlu0 %940
    %942 = vrot.lane.b32.xlu0 %v933, 127
    %v943 = vpop.permute.xlu0 %942
    %944 = vrot.lane.b32.xlu0 %v934, 127
    %v945 = vpop.permute.xlu0 %944
    %946 = vrot.lane.b32.xlu0 %v935, 127
    %v947 = vpop.permute.xlu0 %946
    %956 = vrot.lane.b32.xlu0 %v921, 1
    %v957 = vpop.permute.xlu0 %956
    %958 = vrot.lane.b32.xlu0 %v924, 1
    %v959 = vpop.permute.xlu0 %958
    %960 = vrot.lane.b32.xlu0 %v927, 1
    %v961 = vpop.permute.xlu0 %960
    %962 = vrot.lane.b32.xlu0 %v930, 1
    %v963 = vpop.permute.xlu0 %962
    %v968 = vsel %vm124, %v941, %v957
    %v969 = vsel %vm124, %v943, %v959
    %v970 = vsel %vm124, %v945, %v961
    %v971 = vsel %vm124, %v947, %v963
    %v972 = vmul.f32 %v968, 0.083333336
    %v973 = vmul.f32 %v969, 0.083333336
    %v974 = vmul.f32 %v970, 0.083333336
    %v975 = vmul.f32 %v971, 0.083333336
    %v976 = vadd.f32 %v899, %v972
    %v977 = vadd.f32 %v900, %v973
    %v978 = vadd.f32 %v901, %v974
    %v979 = vadd.f32 %v902, %v975
  $region30: #{_lambda_.7} parent=0 // loop_footer
    %s39 = sadd.s32 %s37, 1
  $region31: #{_lambda_.7} parent=0 // loop_footer_branch
    %36 = sbr.rel target = $region27
  $region32: #{_lambda_.7} parent=0 // loop_exit
    _
  %v980 = vld [vmem:[%s5] sm:$0xff]
  %v981 = vld [vmem:[%s5 + $0x8] sm:$0xff]
  %v982 = vld [vmem:[%s5 + $0x10] sm:$0xff]
  %v983 = vld [vmem:[%s5 + $0x18] sm:$0xff]
  %vm984 = vcmask 261120
  %v986 = vsel %vm984, %v980, 0
  %v989 = vsel %vm984, %v981, 0
  %v992 = vsel %vm984, %v982, 0
  %v995 = vsel %vm984, %v983, 0
  %997 = vmatpush.msra.mxu0 0.0
  %998 = vmatpush.msra.mxu0 0.0
  %999 = vmatpush.msra.mxu0 0.0
  %1000 = vmatpush.msra.mxu0 0.0
  %1001 = vmatpush.msra.mxu0 0.0
  %1002 = vmatpush.msra.mxu0 0.0
  %1003 = vmatpush.msra.mxu0 0.0
  %1004 = vmatpush.msra.mxu0 0.0
  %1005 = vmatpush.msra.mxu0 0.0
  %1006 = vmatpush.msra.mxu0 0.0
  %1007 = vmatpush.msra.mxu0 0.0
  %1008 = vmatpush.msra.mxu0 0.0
  %1009 = vmatpush.msra.mxu0 %v45
  %1010 = vmatpush.msra.mxu0 %v44
  %1011 = vmatpush.msra.mxu0 %v43
  %1012 = vmatpush.msra.mxu0 %v42
  %1013 = vmatmul.f32.gmra.mxu0 %v986
  %v1014 = vpop.f32.mrf.mxu0
  %v1015 = vadd.f32 0.0, %v1014
  %1016 = vmatmul.f32.gmra.mxu0 %v989
  %v1017 = vpop.f32.mrf.mxu0
  %v1018 = vadd.f32 0.0, %v1017
  %1019 = vmatmul.f32.gmra.mxu0 %v992
  %v1020 = vpop.f32.mrf.mxu0
  %v1021 = vadd.f32 0.0, %v1020
  %1022 = vmatmul.f32.gmra.mxu0 %v995
  %v1023 = vpop.f32.mrf.mxu0
  %v1024 = vadd.f32 0.0, %v1023
  %1025 = vdwg.mxu0
  %1028 = vrot.lane.b32.xlu0 %v1021, 1
  %v1029 = vpop.permute.xlu0 %1028
  %1030 = vrot.lane.b32.xlu0 %v1024, 1
  %v1031 = vpop.permute.xlu0 %1030
  %vm1034 = vcmask 7168
  %v1035 = vsel %vm1034, %v1015, %v1029
  %v1036 = vsel %vm1034, %v1018, %v1031
  %1039 = vrot.lane.b32.xlu0 %v1015, 127
  %v1040 = vpop.permute.xlu0 %1039
  %1041 = vrot.lane.b32.xlu0 %v1018, 127
  %v1042 = vpop.permute.xlu0 %1041
  %v1045 = vsel %vm1034, %v1040, %v1021
  %v1046 = vsel %vm1034, %v1042, %v1024
  %v1047 = vld [vmem:[%s1] sm:$0xff]
  %v1048 = vld [vmem:[%s1 + $0x8] sm:$0xff]
  %v1049 = vld [vmem:[%s2] sm:$0xff]
  %v1050 = vld [vmem:[%s2 + $0x8] sm:$0xff]
  %v1051 = vadd.f32 %v1049, 1.0
  %v1052 = vadd.f32 %v1050, 1.0
  %v1053 = vrcp.pop %v1051
  %v1054 = vrcp.pop %v1052
  %v1055 = vmul.f32 %v1049, %v1053
  %v1056 = vmul.f32 %v1050, %v1054
  %v1057 = vmul.f32 %v1055, %v1035
  %v1058 = vmul.f32 %v1056, %v1036
  %v1059 = vmul.f32 %v1055, %v1045
  %v1060 = vmul.f32 %v1056, %v1046
  %1062 = vset.pattern.permute.xlu0 0
  %1063 = vperm.xlu0 %1062, %v1057
  %v1064 = vpop.permute.xlu0 %1063
  %1067 = vset.pattern.permute.xlu0 0
  %1068 = vperm.xlu0 %1067, %v1058
  %v1069 = vpop.permute.xlu0 %1068
  %v1071 = vmul.f32 %v1064, %v1047
  %v1072 = vmul.f32 %v1069, %v1048
  %1074 = vset.pattern.permute.xlu0 0
  %1075 = vperm.xlu0 %1074, %v1059
  %v1076 = vpop.permute.xlu0 %1075
  %1079 = vset.pattern.permute.xlu0 0
  %1080 = vperm.xlu0 %1079, %v1060
  %v1081 = vpop.permute.xlu0 %1080
  %v1083 = vmul.f32 %v1076, %v1047
  %v1084 = vmul.f32 %v1081, %v1048
  %1085 = vset.pattern.permute.xlu0 1
  %1086 = vperm.xlu0 %1085, %v1057
  %v1087 = vpop.permute.xlu0 %1086
  %1089 = vset.pattern.permute.xlu0 1
  %1090 = vperm.xlu0 %1089, %v1058
  %v1091 = vpop.permute.xlu0 %1090
  %v1093 = vmul.f32 %v1087, %v1047
  %v1094 = vmul.f32 %v1091, %v1048
  %1097 = vrot.lane.b32.xlu0 %v1093, 80
  %v1098 = vpop.permute.xlu0 %1097
  %1099 = vrot.lane.b32.xlu0 %v1094, 80
  %v1100 = vpop.permute.xlu0 %1099
  %v1103 = vadd.f32 %v1071, %v1098
  %v1104 = vadd.f32 %v1072, %v1100
  %1105 = vset.pattern.permute.xlu0 1
  %1106 = vperm.xlu0 %1105, %v1059
  %v1107 = vpop.permute.xlu0 %1106
  %1109 = vset.pattern.permute.xlu0 1
  %1110 = vperm.xlu0 %1109, %v1060
  %v1111 = vpop.permute.xlu0 %1110
  %v1113 = vmul.f32 %v1107, %v1047
  %v1114 = vmul.f32 %v1111, %v1048
  %1117 = vrot.lane.b32.xlu0 %v1113, 80
  %v1118 = vpop.permute.xlu0 %1117
  %1119 = vrot.lane.b32.xlu0 %v1114, 80
  %v1120 = vpop.permute.xlu0 %1119
  %v1123 = vadd.f32 %v1083, %v1118
  %v1124 = vadd.f32 %v1084, %v1120
  %v1127 = vrot.slane %v1103, 1
  %v1128 = vrot.slane %v1103, 2
  %v1129 = vrot.slane %v1103, 3
  %v1130 = vrot.slane %v1103, 4
  %v1131 = vrot.slane %v1103, 5
  %v1132 = vrot.slane %v1103, 6
  %v1133 = vrot.slane %v1103, 7
  %v1134 = vrot.slane %v1104, 1
  %v1135 = vrot.slane %v1104, 2
  %v1136 = vrot.slane %v1104, 3
  %v1137 = vrot.slane %v1104, 4
  %v1138 = vrot.slane %v1104, 5
  %v1139 = vrot.slane %v1104, 6
  %v1140 = vrot.slane %v1104, 7
  %v1157 = vrot.slane %v1123, 1
  %v1158 = vrot.slane %v1123, 2
  %v1159 = vrot.slane %v1123, 3
  %v1160 = vrot.slane %v1123, 4
  %v1161 = vrot.slane %v1123, 5
  %v1162 = vrot.slane %v1123, 6
  %v1163 = vrot.slane %v1123, 7
  %v1164 = vrot.slane %v1124, 1
  %v1165 = vrot.slane %v1124, 2
  %v1166 = vrot.slane %v1124, 3
  %v1167 = vrot.slane %v1124, 4
  %v1168 = vrot.slane %v1124, 5
  %v1169 = vrot.slane %v1124, 6
  %v1170 = vrot.slane %v1124, 7
  %v1171 = vperm.slane %v1123, 0
  %v1172 = vperm.slane %v1157, 0
  %v1173 = vperm.slane %v1158, 0
  %v1174 = vperm.slane %v1159, 0
  %v1175 = vperm.slane %v1160, 0
  %v1176 = vperm.slane %v1161, 0
  %v1177 = vperm.slane %v1162, 0
  %v1178 = vperm.slane %v1163, 0
  %v1179 = vperm.slane %v1124, 0
  %v1180 = vperm.slane %v1164, 0
  %v1181 = vperm.slane %v1165, 0
  %v1182 = vperm.slane %v1166, 0
  %v1183 = vperm.slane %v1167, 0
  %v1184 = vperm.slane %v1168, 0
  %v1185 = vperm.slane %v1169, 0
  %v1186 = vperm.slane %v1170, 0
  %vm1203 = vcmask 1040384
  %v1204 = vsel %vm1203, %v1103, %v1171
  %v1205 = vsel %vm1203, %v1127, %v1172
  %v1206 = vsel %vm1203, %v1128, %v1173
  %v1207 = vsel %vm1203, %v1129, %v1174
  %v1208 = vsel %vm1203, %v1130, %v1175
  %v1209 = vsel %vm1203, %v1131, %v1176
  %v1210 = vsel %vm1203, %v1132, %v1177
  %v1211 = vsel %vm1203, %v1133, %v1178
  %v1212 = vsel %vm1203, %v1104, %v1179
  %v1213 = vsel %vm1203, %v1134, %v1180
  %v1214 = vsel %vm1203, %v1135, %v1181
  %v1215 = vsel %vm1203, %v1136, %v1182
  %v1216 = vsel %vm1203, %v1137, %v1183
  %v1217 = vsel %vm1203, %v1138, %v1184
  %v1218 = vsel %vm1203, %v1139, %v1185
  %v1219 = vsel %vm1203, %v1140, %v1186
  %v1220 = vld [vmem:[%s6] sm:$0xff]
  %v1221 = vld [vmem:[%s6 + $0x8] sm:$0xff]
  %v1222 = vld [vmem:[%s6 + $0x10] sm:$0xff]
  %v1223 = vld [vmem:[%s6 + $0x18] sm:$0xff]
  %v1224 = vld [vmem:[%s6 + $0x20] sm:$0xff]
  %v1225 = vld [vmem:[%s6 + $0x28] sm:$0xff]
  %v1226 = vld [vmem:[%s6 + $0x30] sm:$0xff]
  %v1227 = vld [vmem:[%s6 + $0x38] sm:$0xff]
  %v1228 = vld [vmem:[%s6 + $0x40] sm:$0xff]
  %v1229 = vld [vmem:[%s6 + $0x48] sm:$0xff]
  %v1230 = vld [vmem:[%s6 + $0x50] sm:$0xff]
  %v1231 = vld [vmem:[%s6 + $0x58] sm:$0xff]
  %v1232 = vld [vmem:[%s6 + $0x60] sm:$0xff]
  %v1233 = vld [vmem:[%s6 + $0x68] sm:$0xff]
  %v1234 = vld [vmem:[%s6 + $0x70] sm:$0xff]
  %v1235 = vld [vmem:[%s6 + $0x78] sm:$0xff]
  %v1236 = vld [vmem:[%s6 + $0x80] sm:$0xff]
  %v1237 = vld [vmem:[%s6 + $0x88] sm:$0xff]
  %v1238 = vld [vmem:[%s6 + $0x90] sm:$0xff]
  %v1239 = vld [vmem:[%s6 + $0x98] sm:$0xff]
  %v1240 = vld [vmem:[%s6 + $0xa0] sm:$0xff]
  %v1241 = vld [vmem:[%s6 + $0xa8] sm:$0xff]
  %v1242 = vld [vmem:[%s6 + $0xb0] sm:$0xff]
  %v1243 = vld [vmem:[%s6 + $0xb8] sm:$0xff]
  %v1244 = vld [vmem:[%s6 + $0xc0] sm:$0xff]
  %v1245 = vld [vmem:[%s6 + $0xc8] sm:$0xff]
  %v1246 = vld [vmem:[%s6 + $0xd0] sm:$0xff]
  %v1247 = vld [vmem:[%s6 + $0xd8] sm:$0xff]
  %v1248 = vld [vmem:[%s6 + $0xe0] sm:$0xff]
  %v1249 = vld [vmem:[%s6 + $0xe8] sm:$0xff]
  %v1250 = vld [vmem:[%s6 + $0xf0] sm:$0xff]
  %v1251 = vld [vmem:[%s6 + $0xf8] sm:$0xff]
  %v1252 = vld [vmem:[%s6 + $0x100] sm:$0xff]
  %v1253 = vld [vmem:[%s6 + $0x108] sm:$0xff]
  %v1254 = vld [vmem:[%s6 + $0x110] sm:$0xff]
  %v1255 = vld [vmem:[%s6 + $0x118] sm:$0xff]
  %v1256 = vld [vmem:[%s6 + $0x120] sm:$0xff]
  %v1257 = vld [vmem:[%s6 + $0x128] sm:$0xff]
  %v1258 = vld [vmem:[%s6 + $0x130] sm:$0xff]
  %v1259 = vld [vmem:[%s6 + $0x138] sm:$0xff]
  %v1260 = vld [vmem:[%s6 + $0x140] sm:$0xff]
  %v1261 = vld [vmem:[%s6 + $0x148] sm:$0xff]
  %v1262 = vld [vmem:[%s6 + $0x150] sm:$0xff]
  %v1263 = vld [vmem:[%s6 + $0x158] sm:$0xff]
  %v1264 = vld [vmem:[%s6 + $0x160] sm:$0xff]
  %v1265 = vld [vmem:[%s6 + $0x168] sm:$0xff]
  %v1266 = vld [vmem:[%s6 + $0x170] sm:$0xff]
  %v1267 = vld [vmem:[%s6 + $0x178] sm:$0xff]
  %v1268 = vld [vmem:[%s6 + $0x180] sm:$0xff]
  %v1269 = vld [vmem:[%s6 + $0x188] sm:$0xff]
  %v1270 = vld [vmem:[%s6 + $0x190] sm:$0xff]
  %v1271 = vld [vmem:[%s6 + $0x198] sm:$0xff]
  %v1272 = vld [vmem:[%s6 + $0x1a0] sm:$0xff]
  %v1273 = vld [vmem:[%s6 + $0x1a8] sm:$0xff]
  %v1274 = vld [vmem:[%s6 + $0x1b0] sm:$0xff]
  %v1275 = vld [vmem:[%s6 + $0x1b8] sm:$0xff]
  %v1276 = vld [vmem:[%s6 + $0x1c0] sm:$0xff]
  %v1277 = vld [vmem:[%s6 + $0x1c8] sm:$0xff]
  %v1278 = vld [vmem:[%s6 + $0x1d0] sm:$0xff]
  %v1279 = vld [vmem:[%s6 + $0x1d8] sm:$0xff]
  %v1280 = vld [vmem:[%s6 + $0x1e0] sm:$0xff]
  %v1281 = vld [vmem:[%s6 + $0x1e8] sm:$0xff]
  %v1282 = vld [vmem:[%s6 + $0x1f0] sm:$0xff]
  %v1283 = vld [vmem:[%s6 + $0x1f8] sm:$0xff]
  %v1284 = vld [vmem:[%s6 + $0x200] sm:$0xff]
  %v1285 = vld [vmem:[%s6 + $0x208] sm:$0xff]
  %v1286 = vld [vmem:[%s6 + $0x210] sm:$0xff]
  %v1287 = vld [vmem:[%s6 + $0x218] sm:$0xff]
  %v1288 = vld [vmem:[%s6 + $0x220] sm:$0xff]
  %v1289 = vld [vmem:[%s6 + $0x228] sm:$0xff]
  %v1290 = vld [vmem:[%s6 + $0x230] sm:$0xff]
  %v1291 = vld [vmem:[%s6 + $0x238] sm:$0xff]
  %v1292 = vld [vmem:[%s6 + $0x240] sm:$0xff]
  %v1293 = vld [vmem:[%s6 + $0x248] sm:$0xff]
  %v1294 = vld [vmem:[%s6 + $0x250] sm:$0xff]
  %v1295 = vld [vmem:[%s6 + $0x258] sm:$0xff]
  %v1296 = vld [vmem:[%s6 + $0x260] sm:$0xff]
  %v1297 = vld [vmem:[%s6 + $0x268] sm:$0xff]
  %v1298 = vld [vmem:[%s6 + $0x270] sm:$0xff]
  %v1299 = vld [vmem:[%s6 + $0x278] sm:$0xff]
  %v1300 = vld [vmem:[%s6 + $0x280] sm:$0xff]
  %v1301 = vld [vmem:[%s6 + $0x288] sm:$0xff]
  %v1302 = vld [vmem:[%s6 + $0x290] sm:$0xff]
  %v1303 = vld [vmem:[%s6 + $0x298] sm:$0xff]
  %v1304 = vld [vmem:[%s6 + $0x2a0] sm:$0xff]
  %v1305 = vld [vmem:[%s6 + $0x2a8] sm:$0xff]
  %v1306 = vld [vmem:[%s6 + $0x2b0] sm:$0xff]
  %v1307 = vld [vmem:[%s6 + $0x2b8] sm:$0xff]
  %v1308 = vld [vmem:[%s6 + $0x2c0] sm:$0xff]
  %v1309 = vld [vmem:[%s6 + $0x2c8] sm:$0xff]
  %v1310 = vld [vmem:[%s6 + $0x2d0] sm:$0xff]
  %v1311 = vld [vmem:[%s6 + $0x2d8] sm:$0xff]
  %v1312 = vld [vmem:[%s6 + $0x2e0] sm:$0xff]
  %v1313 = vld [vmem:[%s6 + $0x2e8] sm:$0xff]
  %v1314 = vld [vmem:[%s6 + $0x2f0] sm:$0xff]
  %v1315 = vld [vmem:[%s6 + $0x2f8] sm:$0xff]
  %v1316 = vld [vmem:[%s6 + $0x300] sm:$0xff]
  %v1317 = vld [vmem:[%s6 + $0x308] sm:$0xff]
  %v1318 = vld [vmem:[%s6 + $0x310] sm:$0xff]
  %v1319 = vld [vmem:[%s6 + $0x318] sm:$0xff]
  %v1320 = vld [vmem:[%s6 + $0x320] sm:$0xff]
  %v1321 = vld [vmem:[%s6 + $0x328] sm:$0xff]
  %v1322 = vld [vmem:[%s6 + $0x330] sm:$0xff]
  %v1323 = vld [vmem:[%s6 + $0x338] sm:$0xff]
  %v1324 = vld [vmem:[%s6 + $0x340] sm:$0xff]
  %v1325 = vld [vmem:[%s6 + $0x348] sm:$0xff]
  %v1326 = vld [vmem:[%s6 + $0x350] sm:$0xff]
  %v1327 = vld [vmem:[%s6 + $0x358] sm:$0xff]
  %v1328 = vld [vmem:[%s6 + $0x360] sm:$0xff]
  %v1329 = vld [vmem:[%s6 + $0x368] sm:$0xff]
  %v1330 = vld [vmem:[%s6 + $0x370] sm:$0xff]
  %v1331 = vld [vmem:[%s6 + $0x378] sm:$0xff]
  %v1332 = vld [vmem:[%s6 + $0x380] sm:$0xff]
  %v1333 = vld [vmem:[%s6 + $0x388] sm:$0xff]
  %v1334 = vld [vmem:[%s6 + $0x390] sm:$0xff]
  %v1335 = vld [vmem:[%s6 + $0x398] sm:$0xff]
  %v1336 = vld [vmem:[%s6 + $0x3a0] sm:$0xff]
  %v1337 = vld [vmem:[%s6 + $0x3a8] sm:$0xff]
  %v1338 = vld [vmem:[%s6 + $0x3b0] sm:$0xff]
  %v1339 = vld [vmem:[%s6 + $0x3b8] sm:$0xff]
  %v1340 = vld [vmem:[%s6 + $0x3c0] sm:$0xff]
  %v1341 = vld [vmem:[%s6 + $0x3c8] sm:$0xff]
  %v1342 = vld [vmem:[%s6 + $0x3d0] sm:$0xff]
  %v1343 = vld [vmem:[%s6 + $0x3d8] sm:$0xff]
  %v1344 = vld [vmem:[%s6 + $0x3e0] sm:$0xff]
  %v1345 = vld [vmem:[%s6 + $0x3e8] sm:$0xff]
  %v1346 = vld [vmem:[%s6 + $0x3f0] sm:$0xff]
  %v1347 = vld [vmem:[%s6 + $0x3f8] sm:$0xff]
  %v1348 = vld [vmem:[%s6 + $0x400] sm:$0xff]
  %v1349 = vld [vmem:[%s6 + $0x408] sm:$0xff]
  %v1350 = vld [vmem:[%s6 + $0x410] sm:$0xff]
  %v1351 = vld [vmem:[%s6 + $0x418] sm:$0xff]
  %v1352 = vld [vmem:[%s6 + $0x420] sm:$0xff]
  %v1353 = vld [vmem:[%s6 + $0x428] sm:$0xff]
  %v1354 = vld [vmem:[%s6 + $0x430] sm:$0xff]
  %v1355 = vld [vmem:[%s6 + $0x438] sm:$0xff]
  %v1356 = vld [vmem:[%s6 + $0x440] sm:$0xff]
  %v1357 = vld [vmem:[%s6 + $0x448] sm:$0xff]
  %v1358 = vld [vmem:[%s6 + $0x450] sm:$0xff]
  %v1359 = vld [vmem:[%s6 + $0x458] sm:$0xff]
  %v1360 = vld [vmem:[%s6 + $0x460] sm:$0xff]
  %v1361 = vld [vmem:[%s6 + $0x468] sm:$0xff]
  %v1362 = vld [vmem:[%s6 + $0x470] sm:$0xff]
  %v1363 = vld [vmem:[%s6 + $0x478] sm:$0xff]
  %v1364 = vld [vmem:[%s6 + $0x480] sm:$0xff]
  %v1365 = vld [vmem:[%s6 + $0x488] sm:$0xff]
  %v1366 = vld [vmem:[%s6 + $0x490] sm:$0xff]
  %v1367 = vld [vmem:[%s6 + $0x498] sm:$0xff]
  %v1368 = vld [vmem:[%s6 + $0x4a0] sm:$0xff]
  %v1369 = vld [vmem:[%s6 + $0x4a8] sm:$0xff]
  %v1370 = vld [vmem:[%s6 + $0x4b0] sm:$0xff]
  %v1371 = vld [vmem:[%s6 + $0x4b8] sm:$0xff]
  %v1372 = vld [vmem:[%s6 + $0x4c0] sm:$0xff]
  %v1373 = vld [vmem:[%s6 + $0x4c8] sm:$0xff]
  %v1374 = vld [vmem:[%s6 + $0x4d0] sm:$0xff]
  %v1375 = vld [vmem:[%s6 + $0x4d8] sm:$0xff]
  %v1376 = vld [vmem:[%s6 + $0x4e0] sm:$0xff]
  %v1377 = vld [vmem:[%s6 + $0x4e8] sm:$0xff]
  %v1378 = vld [vmem:[%s6 + $0x4f0] sm:$0xff]
  %v1379 = vld [vmem:[%s6 + $0x4f8] sm:$0xff]
  %v1380 = vld [vmem:[%s6 + $0x500] sm:$0xff]
  %v1381 = vld [vmem:[%s6 + $0x508] sm:$0xff]
  %v1382 = vld [vmem:[%s6 + $0x510] sm:$0xff]
  %v1383 = vld [vmem:[%s6 + $0x518] sm:$0xff]
  %v1384 = vld [vmem:[%s6 + $0x520] sm:$0xff]
  %v1385 = vld [vmem:[%s6 + $0x528] sm:$0xff]
  %v1386 = vld [vmem:[%s6 + $0x530] sm:$0xff]
  %v1387 = vld [vmem:[%s6 + $0x538] sm:$0xff]
  %v1388 = vld [vmem:[%s6 + $0x540] sm:$0xff]
  %v1389 = vld [vmem:[%s6 + $0x548] sm:$0xff]
  %v1390 = vld [vmem:[%s6 + $0x550] sm:$0xff]
  %v1391 = vld [vmem:[%s6 + $0x558] sm:$0xff]
  %v1392 = vld [vmem:[%s6 + $0x560] sm:$0xff]
  %v1393 = vld [vmem:[%s6 + $0x568] sm:$0xff]
  %v1394 = vld [vmem:[%s6 + $0x570] sm:$0xff]
  %v1395 = vld [vmem:[%s6 + $0x578] sm:$0xff]
  %v1396 = vld [vmem:[%s6 + $0x580] sm:$0xff]
  %v1397 = vld [vmem:[%s6 + $0x588] sm:$0xff]
  %v1398 = vld [vmem:[%s6 + $0x590] sm:$0xff]
  %v1399 = vld [vmem:[%s6 + $0x598] sm:$0xff]
  %v1400 = vld [vmem:[%s6 + $0x5a0] sm:$0xff]
  %v1401 = vld [vmem:[%s6 + $0x5a8] sm:$0xff]
  %v1402 = vld [vmem:[%s6 + $0x5b0] sm:$0xff]
  %v1403 = vld [vmem:[%s6 + $0x5b8] sm:$0xff]
  %v1404 = vld [vmem:[%s6 + $0x5c0] sm:$0xff]
  %v1405 = vld [vmem:[%s6 + $0x5c8] sm:$0xff]
  %v1406 = vld [vmem:[%s6 + $0x5d0] sm:$0xff]
  %v1407 = vld [vmem:[%s6 + $0x5d8] sm:$0xff]
  %v1408 = vld [vmem:[%s6 + $0x5e0] sm:$0xff]
  %v1409 = vld [vmem:[%s6 + $0x5e8] sm:$0xff]
  %v1410 = vld [vmem:[%s6 + $0x5f0] sm:$0xff]
  %v1411 = vld [vmem:[%s6 + $0x5f8] sm:$0xff]
  %vm1412 = vcmask 392192
  %v1414 = vsel %vm1412, %v1204, 0
  %1416 = vmatpush.msra.mxu0 0.0
  %1417 = vmatpush.msra.mxu0 0.0
  %1418 = vmatpush.msra.mxu0 0.0
  %1419 = vmatpush.msra.mxu0 0.0
  %1420 = vmatpush.msra.mxu0 0.0
  %1421 = vmatpush.msra.mxu0 0.0
  %1422 = vmatpush.msra.mxu0 0.0
  %1423 = vmatpush.msra.mxu0 0.0
  %1424 = vmatpush.msra.mxu0 0.0
  %1425 = vmatpush.msra.mxu0 0.0
  %1426 = vmatpush.msra.mxu0 %v1230
  %1427 = vmatpush.msra.mxu0 %v1228
  %1428 = vmatpush.msra.mxu0 %v1226
  %1429 = vmatpush.msra.mxu0 %v1224
  %1430 = vmatpush.msra.mxu0 %v1222
  %1431 = vmatpush.msra.mxu0 %v1220
  %1432 = vmatmul.f32.gmra.mxu0 %v1414
  %v1433 = vpop.f32.mrf.mxu0
  %v1434 = vadd.f32 0.0, %v1433
  %1435 = vdwg.mxu0
  %1436 = vmatpush.msra.mxu0 0.0
  %1437 = vmatpush.msra.mxu0 0.0
  %1438 = vmatpush.msra.mxu0 0.0
  %1439 = vmatpush.msra.mxu0 0.0
  %1440 = vmatpush.msra.mxu0 0.0
  %1441 = vmatpush.msra.mxu0 0.0
  %1442 = vmatpush.msra.mxu0 0.0
  %1443 = vmatpush.msra.mxu0 0.0
  %1444 = vmatpush.msra.mxu0 0.0
  %1445 = vmatpush.msra.mxu0 0.0
  %1446 = vmatpush.msra.mxu0 %v1231
  %1447 = vmatpush.msra.mxu0 %v1229
  %1448 = vmatpush.msra.mxu0 %v1227
  %1449 = vmatpush.msra.mxu0 %v1225
  %1450 = vmatpush.msra.mxu0 %v1223
  %1451 = vmatpush.msra.mxu0 %v1221
  %1452 = vmatmul.f32.gmra.mxu0 %v1414
  %v1453 = vpop.f32.mrf.mxu0
  %v1454 = vadd.f32 0.0, %v1453
  %1455 = vdwg.mxu0
  %v1457 = vsel %vm1412, %v1205, 0
  %1459 = vmatpush.msra.mxu0 0.0
  %1460 = vmatpush.msra.mxu0 0.0
  %1461 = vmatpush.msra.mxu0 0.0
  %1462 = vmatpush.msra.mxu0 0.0
  %1463 = vmatpush.msra.mxu0 0.0
  %1464 = vmatpush.msra.mxu0 0.0
  %1465 = vmatpush.msra.mxu0 0.0
  %1466 = vmatpush.msra.mxu0 0.0
  %1467 = vmatpush.msra.mxu0 0.0
  %1468 = vmatpush.msra.mxu0 0.0
  %1469 = vmatpush.msra.mxu0 %v1242
  %1470 = vmatpush.msra.mxu0 %v1240
  %1471 = vmatpush.msra.mxu0 %v1238
  %1472 = vmatpush.msra.mxu0 %v1236
  %1473 = vmatpush.msra.mxu0 %v1234
  %1474 = vmatpush.msra.mxu0 %v1232
  %1475 = vmatmul.f32.gmra.mxu0 %v1457
  %v1476 = vpop.f32.mrf.mxu0
  %v1477 = vadd.f32 0.0, %v1476
  %1478 = vdwg.mxu0
  %1479 = vmatpush.msra.mxu0 0.0
  %1480 = vmatpush.msra.mxu0 0.0
  %1481 = vmatpush.msra.mxu0 0.0
  %1482 = vmatpush.msra.mxu0 0.0
  %1483 = vmatpush.msra.mxu0 0.0
  %1484 = vmatpush.msra.mxu0 0.0
  %1485 = vmatpush.msra.mxu0 0.0
  %1486 = vmatpush.msra.mxu0 0.0
  %1487 = vmatpush.msra.mxu0 0.0
  %1488 = vmatpush.msra.mxu0 0.0
  %1489 = vmatpush.msra.mxu0 %v1243
  %1490 = vmatpush.msra.mxu0 %v1241
  %1491 = vmatpush.msra.mxu0 %v1239
  %1492 = vmatpush.msra.mxu0 %v1237
  %1493 = vmatpush.msra.mxu0 %v1235
  %1494 = vmatpush.msra.mxu0 %v1233
  %1495 = vmatmul.f32.gmra.mxu0 %v1457
  %v1496 = vpop.f32.mrf.mxu0
  %v1497 = vadd.f32 0.0, %v1496
  %1498 = vdwg.mxu0
  %v1500 = vsel %vm1412, %v1206, 0
  %1502 = vmatpush.msra.mxu0 0.0
  %1503 = vmatpush.msra.mxu0 0.0
  %1504 = vmatpush.msra.mxu0 0.0
  %1505 = vmatpush.msra.mxu0 0.0
  %1506 = vmatpush.msra.mxu0 0.0
  %1507 = vmatpush.msra.mxu0 0.0
  %1508 = vmatpush.msra.mxu0 0.0
  %1509 = vmatpush.msra.mxu0 0.0
  %1510 = vmatpush.msra.mxu0 0.0
  %1511 = vmatpush.msra.mxu0 0.0
  %1512 = vmatpush.msra.mxu0 %v1254
  %1513 = vmatpush.msra.mxu0 %v1252
  %1514 = vmatpush.msra.mxu0 %v1250
  %1515 = vmatpush.msra.mxu0 %v1248
  %1516 = vmatpush.msra.mxu0 %v1246
  %1517 = vmatpush.msra.mxu0 %v1244
  %1518 = vmatmul.f32.gmra.mxu0 %v1500
  %v1519 = vpop.f32.mrf.mxu0
  %v1520 = vadd.f32 0.0, %v1519
  %1521 = vdwg.mxu0
  %1522 = vmatpush.msra.mxu0 0.0
  %1523 = vmatpush.msra.mxu0 0.0
  %1524 = vmatpush.msra.mxu0 0.0
  %1525 = vmatpush.msra.mxu0 0.0
  %1526 = vmatpush.msra.mxu0 0.0
  %1527 = vmatpush.msra.mxu0 0.0
  %1528 = vmatpush.msra.mxu0 0.0
  %1529 = vmatpush.msra.mxu0 0.0
  %1530 = vmatpush.msra.mxu0 0.0
  %1531 = vmatpush.msra.mxu0 0.0
  %1532 = vmatpush.msra.mxu0 %v1255
  %1533 = vmatpush.msra.mxu0 %v1253
  %1534 = vmatpush.msra.mxu0 %v1251
  %1535 = vmatpush.msra.mxu0 %v1249
  %1536 = vmatpush.msra.mxu0 %v1247
  %1537 = vmatpush.msra.mxu0 %v1245
  %1538 = vmatmul.f32.gmra.mxu0 %v1500
  %v1539 = vpop.f32.mrf.mxu0
  %v1540 = vadd.f32 0.0, %v1539
  %1541 = vdwg.mxu0
  %v1543 = vsel %vm1412, %v1207, 0
  %1545 = vmatpush.msra.mxu0 0.0
  %1546 = vmatpush.msra.mxu0 0.0
  %1547 = vmatpush.msra.mxu0 0.0
  %1548 = vmatpush.msra.mxu0 0.0
  %1549 = vmatpush.msra.mxu0 0.0
  %1550 = vmatpush.msra.mxu0 0.0
  %1551 = vmatpush.msra.mxu0 0.0
  %1552 = vmatpush.msra.mxu0 0.0
  %1553 = vmatpush.msra.mxu0 0.0
  %1554 = vmatpush.msra.mxu0 0.0
  %1555 = vmatpush.msra.mxu0 %v1266
  %1556 = vmatpush.msra.mxu0 %v1264
  %1557 = vmatpush.msra.mxu0 %v1262
  %1558 = vmatpush.msra.mxu0 %v1260
  %1559 = vmatpush.msra.mxu0 %v1258
  %1560 = vmatpush.msra.mxu0 %v1256
  %1561 = vmatmul.f32.gmra.mxu0 %v1543
  %v1562 = vpop.f32.mrf.mxu0
  %v1563 = vadd.f32 0.0, %v1562
  %1564 = vdwg.mxu0
  %1565 = vmatpush.msra.mxu0 0.0
  %1566 = vmatpush.msra.mxu0 0.0
  %1567 = vmatpush.msra.mxu0 0.0
  %1568 = vmatpush.msra.mxu0 0.0
  %1569 = vmatpush.msra.mxu0 0.0
  %1570 = vmatpush.msra.mxu0 0.0
  %1571 = vmatpush.msra.mxu0 0.0
  %1572 = vmatpush.msra.mxu0 0.0
  %1573 = vmatpush.msra.mxu0 0.0
  %1574 = vmatpush.msra.mxu0 0.0
  %1575 = vmatpush.msra.mxu0 %v1267
  %1576 = vmatpush.msra.mxu0 %v1265
  %1577 = vmatpush.msra.mxu0 %v1263
  %1578 = vmatpush.msra.mxu0 %v1261
  %1579 = vmatpush.msra.mxu0 %v1259
  %1580 = vmatpush.msra.mxu0 %v1257
  %1581 = vmatmul.f32.gmra.mxu0 %v1543
  %v1582 = vpop.f32.mrf.mxu0
  %v1583 = vadd.f32 0.0, %v1582
  %1584 = vdwg.mxu0
  %v1586 = vsel %vm1412, %v1208, 0
  %1588 = vmatpush.msra.mxu0 0.0
  %1589 = vmatpush.msra.mxu0 0.0
  %1590 = vmatpush.msra.mxu0 0.0
  %1591 = vmatpush.msra.mxu0 0.0
  %1592 = vmatpush.msra.mxu0 0.0
  %1593 = vmatpush.msra.mxu0 0.0
  %1594 = vmatpush.msra.mxu0 0.0
  %1595 = vmatpush.msra.mxu0 0.0
  %1596 = vmatpush.msra.mxu0 0.0
  %1597 = vmatpush.msra.mxu0 0.0
  %1598 = vmatpush.msra.mxu0 %v1278
  %1599 = vmatpush.msra.mxu0 %v1276
  %1600 = vmatpush.msra.mxu0 %v1274
  %1601 = vmatpush.msra.mxu0 %v1272
  %1602 = vmatpush.msra.mxu0 %v1270
  %1603 = vmatpush.msra.mxu0 %v1268
  %1604 = vmatmul.f32.gmra.mxu0 %v1586
  %v1605 = vpop.f32.mrf.mxu0
  %v1606 = vadd.f32 0.0, %v1605
  %1607 = vdwg.mxu0
  %1608 = vmatpush.msra.mxu0 0.0
  %1609 = vmatpush.msra.mxu0 0.0
  %1610 = vmatpush.msra.mxu0 0.0
  %1611 = vmatpush.msra.mxu0 0.0
  %1612 = vmatpush.msra.mxu0 0.0
  %1613 = vmatpush.msra.mxu0 0.0
  %1614 = vmatpush.msra.mxu0 0.0
  %1615 = vmatpush.msra.mxu0 0.0
  %1616 = vmatpush.msra.mxu0 0.0
  %1617 = vmatpush.msra.mxu0 0.0
  %1618 = vmatpush.msra.mxu0 %v1279
  %1619 = vmatpush.msra.mxu0 %v1277
  %1620 = vmatpush.msra.mxu0 %v1275
  %1621 = vmatpush.msra.mxu0 %v1273
  %1622 = vmatpush.msra.mxu0 %v1271
  %1623 = vmatpush.msra.mxu0 %v1269
  %1624 = vmatmul.f32.gmra.mxu0 %v1586
  %v1625 = vpop.f32.mrf.mxu0
  %v1626 = vadd.f32 0.0, %v1625
  %1627 = vdwg.mxu0
  %v1629 = vsel %vm1412, %v1209, 0
  %1631 = vmatpush.msra.mxu0 0.0
  %1632 = vmatpush.msra.mxu0 0.0
  %1633 = vmatpush.msra.mxu0 0.0
  %1634 = vmatpush.msra.mxu0 0.0
  %1635 = vmatpush.msra.mxu0 0.0
  %1636 = vmatpush.msra.mxu0 0.0
  %1637 = vmatpush.msra.mxu0 0.0
  %1638 = vmatpush.msra.mxu0 0.0
  %1639 = vmatpush.msra.mxu0 0.0
  %1640 = vmatpush.msra.mxu0 0.0
  %1641 = vmatpush.msra.mxu0 %v1290
  %1642 = vmatpush.msra.mxu0 %v1288
  %1643 = vmatpush.msra.mxu0 %v1286
  %1644 = vmatpush.msra.mxu0 %v1284
  %1645 = vmatpush.msra.mxu0 %v1282
  %1646 = vmatpush.msra.mxu0 %v1280
  %1647 = vmatmul.f32.gmra.mxu0 %v1629
  %v1648 = vpop.f32.mrf.mxu0
  %v1649 = vadd.f32 0.0, %v1648
  %1650 = vdwg.mxu0
  %1651 = vmatpush.msra.mxu0 0.0
  %1652 = vmatpush.msra.mxu0 0.0
  %1653 = vmatpush.msra.mxu0 0.0
  %1654 = vmatpush.msra.mxu0 0.0
  %1655 = vmatpush.msra.mxu0 0.0
  %1656 = vmatpush.msra.mxu0 0.0
  %1657 = vmatpush.msra.mxu0 0.0
  %1658 = vmatpush.msra.mxu0 0.0
  %1659 = vmatpush.msra.mxu0 0.0
  %1660 = vmatpush.msra.mxu0 0.0
  %1661 = vmatpush.msra.mxu0 %v1291
  %1662 = vmatpush.msra.mxu0 %v1289
  %1663 = vmatpush.msra.mxu0 %v1287
  %1664 = vmatpush.msra.mxu0 %v1285
  %1665 = vmatpush.msra.mxu0 %v1283
  %1666 = vmatpush.msra.mxu0 %v1281
  %1667 = vmatmul.f32.gmra.mxu0 %v1629
  %v1668 = vpop.f32.mrf.mxu0
  %v1669 = vadd.f32 0.0, %v1668
  %1670 = vdwg.mxu0
  %v1672 = vsel %vm1412, %v1210, 0
  %1674 = vmatpush.msra.mxu0 0.0
  %1675 = vmatpush.msra.mxu0 0.0
  %1676 = vmatpush.msra.mxu0 0.0
  %1677 = vmatpush.msra.mxu0 0.0
  %1678 = vmatpush.msra.mxu0 0.0
  %1679 = vmatpush.msra.mxu0 0.0
  %1680 = vmatpush.msra.mxu0 0.0
  %1681 = vmatpush.msra.mxu0 0.0
  %1682 = vmatpush.msra.mxu0 0.0
  %1683 = vmatpush.msra.mxu0 0.0
  %1684 = vmatpush.msra.mxu0 %v1302
  %1685 = vmatpush.msra.mxu0 %v1300
  %1686 = vmatpush.msra.mxu0 %v1298
  %1687 = vmatpush.msra.mxu0 %v1296
  %1688 = vmatpush.msra.mxu0 %v1294
  %1689 = vmatpush.msra.mxu0 %v1292
  %1690 = vmatmul.f32.gmra.mxu0 %v1672
  %v1691 = vpop.f32.mrf.mxu0
  %v1692 = vadd.f32 0.0, %v1691
  %1693 = vdwg.mxu0
  %1694 = vmatpush.msra.mxu0 0.0
  %1695 = vmatpush.msra.mxu0 0.0
  %1696 = vmatpush.msra.mxu0 0.0
  %1697 = vmatpush.msra.mxu0 0.0
  %1698 = vmatpush.msra.mxu0 0.0
  %1699 = vmatpush.msra.mxu0 0.0
  %1700 = vmatpush.msra.mxu0 0.0
  %1701 = vmatpush.msra.mxu0 0.0
  %1702 = vmatpush.msra.mxu0 0.0
  %1703 = vmatpush.msra.mxu0 0.0
  %1704 = vmatpush.msra.mxu0 %v1303
  %1705 = vmatpush.msra.mxu0 %v1301
  %1706 = vmatpush.msra.mxu0 %v1299
  %1707 = vmatpush.msra.mxu0 %v1297
  %1708 = vmatpush.msra.mxu0 %v1295
  %1709 = vmatpush.msra.mxu0 %v1293
  %1710 = vmatmul.f32.gmra.mxu0 %v1672
  %v1711 = vpop.f32.mrf.mxu0
  %v1712 = vadd.f32 0.0, %v1711
  %1713 = vdwg.mxu0
  %v1715 = vsel %vm1412, %v1211, 0
  %1717 = vmatpush.msra.mxu0 0.0
  %1718 = vmatpush.msra.mxu0 0.0
  %1719 = vmatpush.msra.mxu0 0.0
  %1720 = vmatpush.msra.mxu0 0.0
  %1721 = vmatpush.msra.mxu0 0.0
  %1722 = vmatpush.msra.mxu0 0.0
  %1723 = vmatpush.msra.mxu0 0.0
  %1724 = vmatpush.msra.mxu0 0.0
  %1725 = vmatpush.msra.mxu0 0.0
  %1726 = vmatpush.msra.mxu0 0.0
  %1727 = vmatpush.msra.mxu0 %v1314
  %1728 = vmatpush.msra.mxu0 %v1312
  %1729 = vmatpush.msra.mxu0 %v1310
  %1730 = vmatpush.msra.mxu0 %v1308
  %1731 = vmatpush.msra.mxu0 %v1306
  %1732 = vmatpush.msra.mxu0 %v1304
  %1733 = vmatmul.f32.gmra.mxu0 %v1715
  %v1734 = vpop.f32.mrf.mxu0
  %v1735 = vadd.f32 0.0, %v1734
  %1736 = vdwg.mxu0
  %1737 = vmatpush.msra.mxu0 0.0
  %1738 = vmatpush.msra.mxu0 0.0
  %1739 = vmatpush.msra.mxu0 0.0
  %1740 = vmatpush.msra.mxu0 0.0
  %1741 = vmatpush.msra.mxu0 0.0
  %1742 = vmatpush.msra.mxu0 0.0
  %1743 = vmatpush.msra.mxu0 0.0
  %1744 = vmatpush.msra.mxu0 0.0
  %1745 = vmatpush.msra.mxu0 0.0
  %1746 = vmatpush.msra.mxu0 0.0
  %1747 = vmatpush.msra.mxu0 %v1315
  %1748 = vmatpush.msra.mxu0 %v1313
  %1749 = vmatpush.msra.mxu0 %v1311
  %1750 = vmatpush.msra.mxu0 %v1309
  %1751 = vmatpush.msra.mxu0 %v1307
  %1752 = vmatpush.msra.mxu0 %v1305
  %1753 = vmatmul.f32.gmra.mxu0 %v1715
  %v1754 = vpop.f32.mrf.mxu0
  %v1755 = vadd.f32 0.0, %v1754
  %1756 = vdwg.mxu0
  %v1758 = vsel %vm1412, %v1212, 0
  %1760 = vmatpush.msra.mxu0 0.0
  %1761 = vmatpush.msra.mxu0 0.0
  %1762 = vmatpush.msra.mxu0 0.0
  %1763 = vmatpush.msra.mxu0 0.0
  %1764 = vmatpush.msra.mxu0 0.0
  %1765 = vmatpush.msra.mxu0 0.0
  %1766 = vmatpush.msra.mxu0 0.0
  %1767 = vmatpush.msra.mxu0 0.0
  %1768 = vmatpush.msra.mxu0 0.0
  %1769 = vmatpush.msra.mxu0 0.0
  %1770 = vmatpush.msra.mxu0 %v1326
  %1771 = vmatpush.msra.mxu0 %v1324
  %1772 = vmatpush.msra.mxu0 %v1322
  %1773 = vmatpush.msra.mxu0 %v1320
  %1774 = vmatpush.msra.mxu0 %v1318
  %1775 = vmatpush.msra.mxu0 %v1316
  %1776 = vmatmul.f32.gmra.mxu0 %v1758
  %v1777 = vpop.f32.mrf.mxu0
  %v1778 = vadd.f32 0.0, %v1777
  %1779 = vdwg.mxu0
  %1780 = vmatpush.msra.mxu0 0.0
  %1781 = vmatpush.msra.mxu0 0.0
  %1782 = vmatpush.msra.mxu0 0.0
  %1783 = vmatpush.msra.mxu0 0.0
  %1784 = vmatpush.msra.mxu0 0.0
  %1785 = vmatpush.msra.mxu0 0.0
  %1786 = vmatpush.msra.mxu0 0.0
  %1787 = vmatpush.msra.mxu0 0.0
  %1788 = vmatpush.msra.mxu0 0.0
  %1789 = vmatpush.msra.mxu0 0.0
  %1790 = vmatpush.msra.mxu0 %v1327
  %1791 = vmatpush.msra.mxu0 %v1325
  %1792 = vmatpush.msra.mxu0 %v1323
  %1793 = vmatpush.msra.mxu0 %v1321
  %1794 = vmatpush.msra.mxu0 %v1319
  %1795 = vmatpush.msra.mxu0 %v1317
  %1796 = vmatmul.f32.gmra.mxu0 %v1758
  %v1797 = vpop.f32.mrf.mxu0
  %v1798 = vadd.f32 0.0, %v1797
  %1799 = vdwg.mxu0
  %v1801 = vsel %vm1412, %v1213, 0
  %1803 = vmatpush.msra.mxu0 0.0
  %1804 = vmatpush.msra.mxu0 0.0
  %1805 = vmatpush.msra.mxu0 0.0
  %1806 = vmatpush.msra.mxu0 0.0
  %1807 = vmatpush.msra.mxu0 0.0
  %1808 = vmatpush.msra.mxu0 0.0
  %1809 = vmatpush.msra.mxu0 0.0
  %1810 = vmatpush.msra.mxu0 0.0
  %1811 = vmatpush.msra.mxu0 0.0
  %1812 = vmatpush.msra.mxu0 0.0
  %1813 = vmatpush.msra.mxu0 %v1338
  %1814 = vmatpush.msra.mxu0 %v1336
  %1815 = vmatpush.msra.mxu0 %v1334
  %1816 = vmatpush.msra.mxu0 %v1332
  %1817 = vmatpush.msra.mxu0 %v1330
  %1818 = vmatpush.msra.mxu0 %v1328
  %1819 = vmatmul.f32.gmra.mxu0 %v1801
  %v1820 = vpop.f32.mrf.mxu0
  %v1821 = vadd.f32 0.0, %v1820
  %1822 = vdwg.mxu0
  %1823 = vmatpush.msra.mxu0 0.0
  %1824 = vmatpush.msra.mxu0 0.0
  %1825 = vmatpush.msra.mxu0 0.0
  %1826 = vmatpush.msra.mxu0 0.0
  %1827 = vmatpush.msra.mxu0 0.0
  %1828 = vmatpush.msra.mxu0 0.0
  %1829 = vmatpush.msra.mxu0 0.0
  %1830 = vmatpush.msra.mxu0 0.0
  %1831 = vmatpush.msra.mxu0 0.0
  %1832 = vmatpush.msra.mxu0 0.0
  %1833 = vmatpush.msra.mxu0 %v1339
  %1834 = vmatpush.msra.mxu0 %v1337
  %1835 = vmatpush.msra.mxu0 %v1335
  %1836 = vmatpush.msra.mxu0 %v1333
  %1837 = vmatpush.msra.mxu0 %v1331
  %1838 = vmatpush.msra.mxu0 %v1329
  %1839 = vmatmul.f32.gmra.mxu0 %v1801
  %v1840 = vpop.f32.mrf.mxu0
  %v1841 = vadd.f32 0.0, %v1840
  %1842 = vdwg.mxu0
  %v1844 = vsel %vm1412, %v1214, 0
  %1846 = vmatpush.msra.mxu0 0.0
  %1847 = vmatpush.msra.mxu0 0.0
  %1848 = vmatpush.msra.mxu0 0.0
  %1849 = vmatpush.msra.mxu0 0.0
  %1850 = vmatpush.msra.mxu0 0.0
  %1851 = vmatpush.msra.mxu0 0.0
  %1852 = vmatpush.msra.mxu0 0.0
  %1853 = vmatpush.msra.mxu0 0.0
  %1854 = vmatpush.msra.mxu0 0.0
  %1855 = vmatpush.msra.mxu0 0.0
  %1856 = vmatpush.msra.mxu0 %v1350
  %1857 = vmatpush.msra.mxu0 %v1348
  %1858 = vmatpush.msra.mxu0 %v1346
  %1859 = vmatpush.msra.mxu0 %v1344
  %1860 = vmatpush.msra.mxu0 %v1342
  %1861 = vmatpush.msra.mxu0 %v1340
  %1862 = vmatmul.f32.gmra.mxu0 %v1844
  %v1863 = vpop.f32.mrf.mxu0
  %v1864 = vadd.f32 0.0, %v1863
  %1865 = vdwg.mxu0
  %1866 = vmatpush.msra.mxu0 0.0
  %1867 = vmatpush.msra.mxu0 0.0
  %1868 = vmatpush.msra.mxu0 0.0
  %1869 = vmatpush.msra.mxu0 0.0
  %1870 = vmatpush.msra.mxu0 0.0
  %1871 = vmatpush.msra.mxu0 0.0
  %1872 = vmatpush.msra.mxu0 0.0
  %1873 = vmatpush.msra.mxu0 0.0
  %1874 = vmatpush.msra.mxu0 0.0
  %1875 = vmatpush.msra.mxu0 0.0
  %1876 = vmatpush.msra.mxu0 %v1351
  %1877 = vmatpush.msra.mxu0 %v1349
  %1878 = vmatpush.msra.mxu0 %v1347
  %1879 = vmatpush.msra.mxu0 %v1345
  %1880 = vmatpush.msra.mxu0 %v1343
  %1881 = vmatpush.msra.mxu0 %v1341
  %1882 = vmatmul.f32.gmra.mxu0 %v1844
  %v1883 = vpop.f32.mrf.mxu0
  %v1884 = vadd.f32 0.0, %v1883
  %1885 = vdwg.mxu0
  %v1887 = vsel %vm1412, %v1215, 0
  %1889 = vmatpush.msra.mxu0 0.0
  %1890 = vmatpush.msra.mxu0 0.0
  %1891 = vmatpush.msra.mxu0 0.0
  %1892 = vmatpush.msra.mxu0 0.0
  %1893 = vmatpush.msra.mxu0 0.0
  %1894 = vmatpush.msra.mxu0 0.0
  %1895 = vmatpush.msra.mxu0 0.0
  %1896 = vmatpush.msra.mxu0 0.0
  %1897 = vmatpush.msra.mxu0 0.0
  %1898 = vmatpush.msra.mxu0 0.0
  %1899 = vmatpush.msra.mxu0 %v1362
  %1900 = vmatpush.msra.mxu0 %v1360
  %1901 = vmatpush.msra.mxu0 %v1358
  %1902 = vmatpush.msra.mxu0 %v1356
  %1903 = vmatpush.msra.mxu0 %v1354
  %1904 = vmatpush.msra.mxu0 %v1352
  %1905 = vmatmul.f32.gmra.mxu0 %v1887
  %v1906 = vpop.f32.mrf.mxu0
  %v1907 = vadd.f32 0.0, %v1906
  %1908 = vdwg.mxu0
  %1909 = vmatpush.msra.mxu0 0.0
  %1910 = vmatpush.msra.mxu0 0.0
  %1911 = vmatpush.msra.mxu0 0.0
  %1912 = vmatpush.msra.mxu0 0.0
  %1913 = vmatpush.msra.mxu0 0.0
  %1914 = vmatpush.msra.mxu0 0.0
  %1915 = vmatpush.msra.mxu0 0.0
  %1916 = vmatpush.msra.mxu0 0.0
  %1917 = vmatpush.msra.mxu0 0.0
  %1918 = vmatpush.msra.mxu0 0.0
  %1919 = vmatpush.msra.mxu0 %v1363
  %1920 = vmatpush.msra.mxu0 %v1361
  %1921 = vmatpush.msra.mxu0 %v1359
  %1922 = vmatpush.msra.mxu0 %v1357
  %1923 = vmatpush.msra.mxu0 %v1355
  %1924 = vmatpush.msra.mxu0 %v1353
  %1925 = vmatmul.f32.gmra.mxu0 %v1887
  %v1926 = vpop.f32.mrf.mxu0
  %v1927 = vadd.f32 0.0, %v1926
  %1928 = vdwg.mxu0
  %v1930 = vsel %vm1412, %v1216, 0
  %1932 = vmatpush.msra.mxu0 0.0
  %1933 = vmatpush.msra.mxu0 0.0
  %1934 = vmatpush.msra.mxu0 0.0
  %1935 = vmatpush.msra.mxu0 0.0
  %1936 = vmatpush.msra.mxu0 0.0
  %1937 = vmatpush.msra.mxu0 0.0
  %1938 = vmatpush.msra.mxu0 0.0
  %1939 = vmatpush.msra.mxu0 0.0
  %1940 = vmatpush.msra.mxu0 0.0
  %1941 = vmatpush.msra.mxu0 0.0
  %1942 = vmatpush.msra.mxu0 %v1374
  %1943 = vmatpush.msra.mxu0 %v1372
  %1944 = vmatpush.msra.mxu0 %v1370
  %1945 = vmatpush.msra.mxu0 %v1368
  %1946 = vmatpush.msra.mxu0 %v1366
  %1947 = vmatpush.msra.mxu0 %v1364
  %1948 = vmatmul.f32.gmra.mxu0 %v1930
  %v1949 = vpop.f32.mrf.mxu0
  %v1950 = vadd.f32 0.0, %v1949
  %1951 = vdwg.mxu0
  %1952 = vmatpush.msra.mxu0 0.0
  %1953 = vmatpush.msra.mxu0 0.0
  %1954 = vmatpush.msra.mxu0 0.0
  %1955 = vmatpush.msra.mxu0 0.0
  %1956 = vmatpush.msra.mxu0 0.0
  %1957 = vmatpush.msra.mxu0 0.0
  %1958 = vmatpush.msra.mxu0 0.0
  %1959 = vmatpush.msra.mxu0 0.0
  %1960 = vmatpush.msra.mxu0 0.0
  %1961 = vmatpush.msra.mxu0 0.0
  %1962 = vmatpush.msra.mxu0 %v1375
  %1963 = vmatpush.msra.mxu0 %v1373
  %1964 = vmatpush.msra.mxu0 %v1371
  %1965 = vmatpush.msra.mxu0 %v1369
  %1966 = vmatpush.msra.mxu0 %v1367
  %1967 = vmatpush.msra.mxu0 %v1365
  %1968 = vmatmul.f32.gmra.mxu0 %v1930
  %v1969 = vpop.f32.mrf.mxu0
  %v1970 = vadd.f32 0.0, %v1969
  %1971 = vdwg.mxu0
  %v1973 = vsel %vm1412, %v1217, 0
  %1975 = vmatpush.msra.mxu0 0.0
  %1976 = vmatpush.msra.mxu0 0.0
  %1977 = vmatpush.msra.mxu0 0.0
  %1978 = vmatpush.msra.mxu0 0.0
  %1979 = vmatpush.msra.mxu0 0.0
  %1980 = vmatpush.msra.mxu0 0.0
  %1981 = vmatpush.msra.mxu0 0.0
  %1982 = vmatpush.msra.mxu0 0.0
  %1983 = vmatpush.msra.mxu0 0.0
  %1984 = vmatpush.msra.mxu0 0.0
  %1985 = vmatpush.msra.mxu0 %v1386
  %1986 = vmatpush.msra.mxu0 %v1384
  %1987 = vmatpush.msra.mxu0 %v1382
  %1988 = vmatpush.msra.mxu0 %v1380
  %1989 = vmatpush.msra.mxu0 %v1378
  %1990 = vmatpush.msra.mxu0 %v1376
  %1991 = vmatmul.f32.gmra.mxu0 %v1973
  %v1992 = vpop.f32.mrf.mxu0
  %v1993 = vadd.f32 0.0, %v1992
  %1994 = vdwg.mxu0
  %1995 = vmatpush.msra.mxu0 0.0
  %1996 = vmatpush.msra.mxu0 0.0
  %1997 = vmatpush.msra.mxu0 0.0
  %1998 = vmatpush.msra.mxu0 0.0
  %1999 = vmatpush.msra.mxu0 0.0
  %2000 = vmatpush.msra.mxu0 0.0
  %2001 = vmatpush.msra.mxu0 0.0
  %2002 = vmatpush.msra.mxu0 0.0
  %2003 = vmatpush.msra.mxu0 0.0
  %2004 = vmatpush.msra.mxu0 0.0
  %2005 = vmatpush.msra.mxu0 %v1387
  %2006 = vmatpush.msra.mxu0 %v1385
  %2007 = vmatpush.msra.mxu0 %v1383
  %2008 = vmatpush.msra.mxu0 %v1381
  %2009 = vmatpush.msra.mxu0 %v1379
  %2010 = vmatpush.msra.mxu0 %v1377
  %2011 = vmatmul.f32.gmra.mxu0 %v1973
  %v2012 = vpop.f32.mrf.mxu0
  %v2013 = vadd.f32 0.0, %v2012
  %2014 = vdwg.mxu0
  %v2016 = vsel %vm1412, %v1218, 0
  %2018 = vmatpush.msra.mxu0 0.0
  %2019 = vmatpush.msra.mxu0 0.0
  %2020 = vmatpush.msra.mxu0 0.0
  %2021 = vmatpush.msra.mxu0 0.0
  %2022 = vmatpush.msra.mxu0 0.0
  %2023 = vmatpush.msra.mxu0 0.0
  %2024 = vmatpush.msra.mxu0 0.0
  %2025 = vmatpush.msra.mxu0 0.0
  %2026 = vmatpush.msra.mxu0 0.0
  %2027 = vmatpush.msra.mxu0 0.0
  %2028 = vmatpush.msra.mxu0 %v1398
  %2029 = vmatpush.msra.mxu0 %v1396
  %2030 = vmatpush.msra.mxu0 %v1394
  %2031 = vmatpush.msra.mxu0 %v1392
  %2032 = vmatpush.msra.mxu0 %v1390
  %2033 = vmatpush.msra.mxu0 %v1388
  %2034 = vmatmul.f32.gmra.mxu0 %v2016
  %v2035 = vpop.f32.mrf.mxu0
  %v2036 = vadd.f32 0.0, %v2035
  %2037 = vdwg.mxu0
  %2038 = vmatpush.msra.mxu0 0.0
  %2039 = vmatpush.msra.mxu0 0.0
  %2040 = vmatpush.msra.mxu0 0.0
  %2041 = vmatpush.msra.mxu0 0.0
  %2042 = vmatpush.msra.mxu0 0.0
  %2043 = vmatpush.msra.mxu0 0.0
  %2044 = vmatpush.msra.mxu0 0.0
  %2045 = vmatpush.msra.mxu0 0.0
  %2046 = vmatpush.msra.mxu0 0.0
  %2047 = vmatpush.msra.mxu0 0.0
  %2048 = vmatpush.msra.mxu0 %v1399
  %2049 = vmatpush.msra.mxu0 %v1397
  %2050 = vmatpush.msra.mxu0 %v1395
  %2051 = vmatpush.msra.mxu0 %v1393
  %2052 = vmatpush.msra.mxu0 %v1391
  %2053 = vmatpush.msra.mxu0 %v1389
  %2054 = vmatmul.f32.gmra.mxu0 %v2016
  %v2055 = vpop.f32.mrf.mxu0
  %v2056 = vadd.f32 0.0, %v2055
  %2057 = vdwg.mxu0
  %v2059 = vsel %vm1412, %v1219, 0
  %2061 = vmatpush.msra.mxu0 0.0
  %2062 = vmatpush.msra.mxu0 0.0
  %2063 = vmatpush.msra.mxu0 0.0
  %2064 = vmatpush.msra.mxu0 0.0
  %2065 = vmatpush.msra.mxu0 0.0
  %2066 = vmatpush.msra.mxu0 0.0
  %2067 = vmatpush.msra.mxu0 0.0
  %2068 = vmatpush.msra.mxu0 0.0
  %2069 = vmatpush.msra.mxu0 0.0
  %2070 = vmatpush.msra.mxu0 0.0
  %2071 = vmatpush.msra.mxu0 %v1410
  %2072 = vmatpush.msra.mxu0 %v1408
  %2073 = vmatpush.msra.mxu0 %v1406
  %2074 = vmatpush.msra.mxu0 %v1404
  %2075 = vmatpush.msra.mxu0 %v1402
  %2076 = vmatpush.msra.mxu0 %v1400
  %2077 = vmatmul.f32.gmra.mxu0 %v2059
  %v2078 = vpop.f32.mrf.mxu0
  %v2079 = vadd.f32 0.0, %v2078
  %2080 = vdwg.mxu0
  %2081 = vmatpush.msra.mxu0 0.0
  %2082 = vmatpush.msra.mxu0 0.0
  %2083 = vmatpush.msra.mxu0 0.0
  %2084 = vmatpush.msra.mxu0 0.0
  %2085 = vmatpush.msra.mxu0 0.0
  %2086 = vmatpush.msra.mxu0 0.0
  %2087 = vmatpush.msra.mxu0 0.0
  %2088 = vmatpush.msra.mxu0 0.0
  %2089 = vmatpush.msra.mxu0 0.0
  %2090 = vmatpush.msra.mxu0 0.0
  %2091 = vmatpush.msra.mxu0 %v1411
  %2092 = vmatpush.msra.mxu0 %v1409
  %2093 = vmatpush.msra.mxu0 %v1407
  %2094 = vmatpush.msra.mxu0 %v1405
  %2095 = vmatpush.msra.mxu0 %v1403
  %2096 = vmatpush.msra.mxu0 %v1401
  %2097 = vmatmul.f32.gmra.mxu0 %v2059
  %v2098 = vpop.f32.mrf.mxu0
  %v2099 = vadd.f32 0.0, %v2098
  %2100 = vdwg.mxu0
  %vm2101 = vcmask 1041408
  %v2102 = vsel %vm2101, %v1434, 0.0
  %v2103 = vsel %vm2101, %v1477, 0.0
  %v2104 = vadd.f32 %v2102, %v2103
  %v2105 = vsel %vm2101, %v1520, 0.0
  %v2106 = vadd.f32 %v2104, %v2105
  %v2107 = vsel %vm2101, %v1563, 0.0
  %v2108 = vadd.f32 %v2106, %v2107
  %v2109 = vsel %vm2101, %v1606, 0.0
  %v2110 = vadd.f32 %v2108, %v2109
  %v2111 = vsel %vm2101, %v1649, 0.0
  %v2112 = vadd.f32 %v2110, %v2111
  %v2113 = vsel %vm2101, %v1692, 0.0
  %v2114 = vadd.f32 %v2112, %v2113
  %v2115 = vsel %vm2101, %v1735, 0.0
  %v2116 = vadd.f32 %v2114, %v2115
  %v2117 = vsel %vm2101, %v1778, 0.0
  %v2118 = vadd.f32 %v2116, %v2117
  %v2119 = vsel %vm2101, %v1821, 0.0
  %v2120 = vadd.f32 %v2118, %v2119
  %v2121 = vsel %vm2101, %v1864, 0.0
  %v2122 = vadd.f32 %v2120, %v2121
  %v2123 = vsel %vm2101, %v1907, 0.0
  %v2124 = vadd.f32 %v2122, %v2123
  %v2125 = vsel %vm2101, %v1950, 0.0
  %v2126 = vadd.f32 %v2124, %v2125
  %v2127 = vsel %vm2101, %v1993, 0.0
  %v2128 = vadd.f32 %v2126, %v2127
  %v2129 = vsel %vm2101, %v2036, 0.0
  %v2130 = vadd.f32 %v2128, %v2129
  %v2131 = vsel %vm2101, %v2079, 0.0
  %v2132 = vadd.f32 %v2130, %v2131
  %v2133 = vsel %vm2101, %v1454, 0.0
  %v2134 = vsel %vm2101, %v1497, 0.0
  %v2135 = vadd.f32 %v2133, %v2134
  %v2136 = vsel %vm2101, %v1540, 0.0
  %v2137 = vadd.f32 %v2135, %v2136
  %v2138 = vsel %vm2101, %v1583, 0.0
  %v2139 = vadd.f32 %v2137, %v2138
  %v2140 = vsel %vm2101, %v1626, 0.0
  %v2141 = vadd.f32 %v2139, %v2140
  %v2142 = vsel %vm2101, %v1669, 0.0
  %v2143 = vadd.f32 %v2141, %v2142
  %v2144 = vsel %vm2101, %v1712, 0.0
  %v2145 = vadd.f32 %v2143, %v2144
  %v2146 = vsel %vm2101, %v1755, 0.0
  %v2147 = vadd.f32 %v2145, %v2146
  %v2148 = vsel %vm2101, %v1798, 0.0
  %v2149 = vadd.f32 %v2147, %v2148
  %v2150 = vsel %vm2101, %v1841, 0.0
  %v2151 = vadd.f32 %v2149, %v2150
  %v2152 = vsel %vm2101, %v1884, 0.0
  %v2153 = vadd.f32 %v2151, %v2152
  %v2154 = vsel %vm2101, %v1927, 0.0
  %v2155 = vadd.f32 %v2153, %v2154
  %v2156 = vsel %vm2101, %v1970, 0.0
  %v2157 = vadd.f32 %v2155, %v2156
  %v2158 = vsel %vm2101, %v2013, 0.0
  %v2159 = vadd.f32 %v2157, %v2158
  %v2160 = vsel %vm2101, %v2056, 0.0
  %v2161 = vadd.f32 %v2159, %v2160
  %v2162 = vsel %vm2101, %v2099, 0.0
  %v2163 = vadd.f32 %v2161, %v2162
  %v2165 = vrot.slane %v2163, 1
  %v2167 = vsub.f32 %v2132, %v2165
  %2168 = vst [vmem:[%s7] sm:$0x1] %v2167
  %v2170 = vrot.slane %v2132, 1
  %v2172 = vadd.f32 %v2163, %v2170
  %2173 = vst [vmem:[%s8] sm:$0x1] %v2172
  // Predicated region
  $region33: #{_lambda_.7} parent=0 // pred_check
    _
  $region34: #{_lambda_.7} parent=0 // pred_check_branch
    %2175 = sbr.rel (0) target = $region36
  $region35: #{_lambda_.7} parent=0 // pred_region
    _
  $region36: #{_lambda_.7} parent=0 // pred_fallthru
    _
  // Predicated region
  $region37: #{_lambda_.7} parent=0 // pred_check
    _
  $region38: #{_lambda_.7} parent=0 // pred_check_branch
    %2177 = sbr.rel (0) target = $region40
  $region39: #{_lambda_.7} parent=0 // pred_region
    _
  $region40: #{_lambda_.7} parent=0 // pred_fallthru
    _
  // Predicated region
  $region41: #{_lambda_.7} parent=0 // pred_check
    _
  $region42: #{_lambda_.7} parent=0 // pred_check_branch
    %2179 = sbr.rel (0) target = $region44
  $region43: #{_lambda_.7} parent=0 // pred_region
    _
  $region44: #{_lambda_.7} parent=0 // pred_fallthru
    _
  // Predicated region
  $region45: #{_lambda_.7} parent=0 // pred_check
    _
  $region46: #{_lambda_.7} parent=0 // pred_check_branch
    %2181 = sbr.rel (0) target = $region48
  $region47: #{_lambda_.7} parent=0 // pred_region
    _
  $region48: #{_lambda_.7} parent=0 // pred_fallthru
    _

</llo_original>
